<compile_context>
chip_gen: v7x
topology: tpu7x:2x2x1
jax: 0.10.0
libtpu: 0.0.40
codegen_flags: <defaults>
</compile_context>

<pallas_src>
import functools

import jax
import jax.numpy as jnp
from jax import lax
from jax.experimental import pallas as pl
from jax.experimental.pallas import tpu as pltpu

EPS = 1e-5


# --------------------------- fused kernel helpers ---------------------------
def _zero_halo_border(p_ref):
    """Zero the 1-pixel halo border strips of a (B, H+2, W+2, C) scratch.

    Done unconditionally every grid step (few KB) so the kernel is correct no
    matter which TensorCore executes which grid index (v7x megacore)."""
    B, Hh, Wh, C = p_ref.shape
    p_ref[:, 0:1, :, :] = jnp.zeros((B, 1, Wh, C), p_ref.dtype)
    p_ref[:, Hh - 1:Hh, :, :] = jnp.zeros((B, 1, Wh, C), p_ref.dtype)
    p_ref[:, :, 0:1, :] = jnp.zeros((B, Hh, 1, C), p_ref.dtype)
    p_ref[:, :, Wh - 1:Wh, :] = jnp.zeros((B, Hh, 1, C), p_ref.dtype)


def _maxpool2(y, B, H, W, C):
    """2x2 max-pool of a (B*H*W, C) row-major activation -> (B, H//2, W//2, C)."""
    y = y.reshape(B * H, W // 2, 2, C).max(axis=2)            # pool along W
    y = y.reshape(B * (H // 2), 2, W // 2, C).max(axis=1)     # pool along H
    return y.reshape(B, H // 2, W // 2, C)


def _conv_block_folded(p_ref, w_ref, st_ref, B, H, W):
    """3x3 conv (halo already in p_ref) + fused BN + ReLU + 2x2 max-pool.

    p_ref : (B, H+2, W+2, Cin) f32 VMEM scratch (borders zero)
    w_ref : (3, 3*Cin, Cout) bf16 conv weight, ky-major, K order = kx*Cin + cin
    st_ref: (2, Cout) f32  rows = [BN scale, conv-bias + BN shift]
    returns (B, H//2, W//2, Cout) f32
    """
    Cin = p_ref.shape[-1]
    Cout = w_ref.shape[-1]
    M = B * H * W
    acc = jnp.zeros((M, Cout), jnp.float32)
    for ky in range(3):                                   # 3 matmuls, K = 3*Cin
        band = p_ref[:, ky:ky + H, :, :].astype(jnp.bfloat16)   # (B,H,W+2,Cin)
        patch = jnp.concatenate(
            [band[:, :, kx:kx + W, :] for kx in range(3)], axis=-1)
        acc = acc + jnp.dot(patch.reshape(M, 3 * Cin), w_ref[ky],
                            preferred_element_type=jnp.float32)
    y = jnp.maximum(acc * st_ref[0:1, :] + st_ref[1:2, :], 0.0)   # BN + ReLU (f32)
    return _maxpool2(y, B, H, W, Cout)


def _fused_kernel(x_ref, w1, st1, w2, st2, w3, st3, w4, st4,
                  wf1, stf1, wf2, b2, o_ref,
                  p2, p3, p4, *, B, H, W):
    H2, W2 = H // 2, W // 2
    H3, W3 = H // 4, W // 4
    H4, W4 = H // 8, W // 8

    # Borders stay zero; interiors fully overwritten below.
    _zero_halo_border(p2)
    _zero_halo_border(p3)
    _zero_halo_border(p4)

    # ---- layer 1: pre-im2col'd input (K = 9*C0), a single matmul ----
    C1 = w1.shape[-1]
    M1 = B * H * W
    acc = jnp.dot(x_ref[...].reshape(M1, x_ref.shape[-1]), w1[...],
                  preferred_element_type=jnp.float32)
    y = jnp.maximum(acc * st1[0:1, :] + st1[1:2, :], 0.0)
    y = _maxpool2(y, B, H, W, C1)                          # (B, H/2, W/2, 32)

    # ---- layers 2..4: halo scratch + kx-folded (K = 3*Cin) matmuls ----
    p2[:, 1:H2 + 1, 1:W2 + 1, :] = y
    y = _conv_block_folded(p2, w2, st2, B, H2, W2)
    p3[:, 1:H3 + 1, 1:W3 + 1, :] = y
    y = _conv_block_folded(p3, w3, st3, B, H3, W3)
    p4[:, 1:H4 + 1, 1:W4 + 1, :] = y
    y = _conv_block_folded(p4, w4, st4, B, H4, W4)         # (B, H/16, W/16, 256)

    # ---- MLP head (fc1 weight pre-permuted to NHWC flatten order) ----
    flat = y.reshape(B, -1).astype(jnp.bfloat16)
    h = jnp.dot(flat, wf1[...], preferred_element_type=jnp.float32)
    h = jnp.maximum(h * stf1[0:1, :] + stf1[1:2, :], 0.0)
    o_ref[...] = (jnp.dot(h.astype(jnp.bfloat16), wf2[...],
                          preferred_element_type=jnp.float32) + b2[...])


# --------------------------- one-time weight prep ---------------------------
def prepare_params(params, image_size):
    """Hoisted repacking: fold BN into scale/shift, reorder conv weights to
    K-major im2col order, permute fc1 to NHWC flatten order, cast to bf16."""
    packed = {"convs": []}
    for li, p in enumerate(params["convs"]):
        cout, cin = p["w"].shape[0], p["w"].shape[1]
        w = jnp.transpose(p["w"], (2, 3, 1, 0))            # (ky, kx, cin, cout)
        if li == 0:
            w = w.reshape(9 * cin, cout)                   # full im2col, K=9*Cin
        else:
            w = w.reshape(3, 3 * cin, cout)                # per-ky, K=3*Cin
        scale = p["gamma"] / jnp.sqrt(p["var"] + EPS)
        shift = (p["b"] - p["mean"]) * scale + p["beta"]
        packed["convs"].append(
            (w.astype(jnp.bfloat16),
             jnp.stack([scale, shift]).astype(jnp.float32)))
    hw = image_size // 16
    p1 = params["fc1"]
    # fc1 weight: columns indexed (c, i, j) in PyTorch NCHW flatten order ->
    # permute to (i, j, c) so the kernel can flatten NHWC directly.
    wf1 = (p1["w"].reshape(512, 256, hw, hw).transpose(2, 3, 1, 0)
           .reshape(hw * hw * 256, 512))
    s1 = p1["gamma"] / jnp.sqrt(p1["var"] + EPS)
    t1 = (p1["b"] - p1["mean"]) * s1 + p1["beta"]
    packed["fc1"] = (wf1.astype(jnp.bfloat16),
                     jnp.stack([s1, t1]).astype(jnp.float32))
    p2 = params["fc2"]
    packed["fc2"] = (p2["w"].T.astype(jnp.bfloat16),
                     p2["b"].reshape(1, -1).astype(jnp.float32))
    return packed


# --------------------------- forward (Pallas path) ---------------------------
def image_classifier_forward(x_nchw, packed):
    N, C0, H, W = x_nchw.shape
    assert H % 16 == 0 and W % 16 == 0, "spatial dims must be divisible by 16"
    (w1, st1), (w2, st2), (w3, st3), (w4, st4) = packed["convs"]
    wf1, stf1 = packed["fc1"]
    wf2, b2 = packed["fc2"]
    nc = wf2.shape[1]

    # Layer-1 im2col in the wrapper: lane-dense bf16 (N, H*W, 9*C0) patches.
    # Removes the C0=3 -> 128-lane padding and the first halo scratch.
    x = jnp.transpose(x_nchw, (0, 2, 3, 1))                       # NCHW -> NHWC
    xp = jnp.pad(x, ((0, 0), (1, 1), (1, 1), (0, 0)))
    patches = jnp.concatenate(
        [xp[:, ky:ky + H, kx:kx + W, :] for ky in range(3) for kx in range(3)],
        axis=-1).reshape(N, H * W, 9 * C0).astype(jnp.bfloat16)

    # Clamp B_tile and pad the batch (scratch must not scale with full batch).
    B_tile = min(N, 16)
    n_tiles = -(-N // B_tile)
    N_pad = n_tiles * B_tile
    if N_pad != N:
        patches = jnp.pad(patches, ((0, N_pad - N), (0, 0), (0, 0)))

    def _full(a):
        return pl.BlockSpec(a.shape, lambda n, _nd=a.ndim: (0,) * _nd)

    kernel = functools.partial(_fused_kernel, B=B_tile, H=H, W=W)
    out = pl.pallas_call(
        kernel,
        out_shape=jax.ShapeDtypeStruct((N_pad, nc), jnp.float32),
        grid=(n_tiles,),
        in_specs=[pl.BlockSpec((B_tile, H * W, 9 * C0), lambda n: (n, 0, 0))]
                 + [_full(a) for a in (w1, st1, w2, st2, w3, st3, w4, st4,
                                       wf1, stf1, wf2, b2)],
        out_specs=pl.BlockSpec((B_tile, nc), lambda n: (n, 0)),
        scratch_shapes=[
            pltpu.VMEM((B_tile, H // 2 + 2, W // 2 + 2, 32), jnp.float32),
            pltpu.VMEM((B_tile, H // 4 + 2, W // 4 + 2, 64), jnp.float32),
            pltpu.VMEM((B_tile, H // 8 + 2, W // 8 + 2, 128), jnp.float32),
        ],
        compiler_params=pltpu.CompilerParams(
            dimension_semantics=("parallel",),
            vmem_limit_bytes=64 * 1024 * 1024),
    )(patches, w1, st1, w2, st2, w3, st3, w4, st4, wf1, stf1, wf2, b2)
    return out[:N]


# ----------------- parameters (deterministic, synthetic) --------------------
def init_params(key, num_classes, image_size, image_channel):
    chans = [image_channel, 32, 64, 128, 256]
    params = {"convs": []}
    for i in range(4):
        key, kw, kb, kg, kbt, km, kv = jax.random.split(key, 7)
        cin, cout = chans[i], chans[i + 1]
        params["convs"].append(dict(
            w=jax.random.normal(kw, (cout, cin, 3, 3), jnp.float32)
              / jnp.sqrt(9.0 * cin),
            b=0.01 * jax.random.normal(kb, (cout,), jnp.float32),
            gamma=1.0 + 0.1 * jax.random.normal(kg, (cout,), jnp.float32),
            beta=0.1 * jax.random.normal(kbt, (cout,), jnp.float32),
            mean=0.1 * jax.random.normal(km, (cout,), jnp.float32),
            var=1.0 + 0.5 * jax.random.uniform(kv, (cout,), jnp.float32),
        ))
    feat = 256 * (image_size // 16) * (image_size // 16)
    key, k1, k2, k3, k4, k5, k6, k7, k8 = jax.random.split(key, 9)
    params["fc1"] = dict(
        w=jax.random.normal(k1, (512, feat), jnp.float32) / jnp.sqrt(feat),
        b=0.01 * jax.random.normal(k2, (512,), jnp.float32),
        gamma=1.0 + 0.1 * jax.random.normal(k3, (512,), jnp.float32),
        beta=0.1 * jax.random.normal(k4, (512,), jnp.float32),
        mean=0.1 * jax.random.normal(k5, (512,), jnp.float32),
        var=1.0 + 0.5 * jax.random.uniform(k6, (512,), jnp.float32),
    )
    params["fc2"] = dict(
        w=jax.random.normal(k7, (num_classes, 512), jnp.float32) / jnp.sqrt(512.0),
        b=0.01 * jax.random.normal(k8, (num_classes,), jnp.float32),
    )
    return params


# ----------------- pure-JAX reference (for correctness check) ---------------
def reference_forward(x_nchw, params):
    y = x_nchw.astype(jnp.float32)
    for p in params["convs"]:
        y = lax.conv_general_dilated(
            y, p["w"], (1, 1), [(1, 1), (1, 1)],
            dimension_numbers=("NCHW", "OIHW", "NCHW"),
            precision=lax.Precision.HIGHEST) + p["b"][None, :, None, None]
        y = ((y - p["mean"][None, :, None, None])
             / jnp.sqrt(p["var"] + EPS)[None, :, None, None]
             * p["gamma"][None, :, None, None] + p["beta"][None, :, None, None])
        y = jnp.maximum(y, 0.0)
        y = lax.reduce_window(y, -jnp.inf, lax.max,
                              (1, 1, 2, 2), (1, 1, 2, 2), "VALID")
    y = y.reshape(y.shape[0], -1)
    p1, p2 = params["fc1"], params["fc2"]
    h = jnp.dot(y, p1["w"].T, precision=lax.Precision.HIGHEST) + p1["b"]
    h = (h - p1["mean"]) / jnp.sqrt(p1["var"] + EPS) * p1["gamma"] + p1["beta"]
    h = jnp.maximum(h, 0.0)
    return jnp.dot(h, p2["w"].T, precision=lax.Precision.HIGHEST) + p2["b"]


if __name__ == "__main__":
    num_classes, image_size_t, image_channel_t, batch = 10, 16, 3, 2
    root = jax.random.PRNGKey(0)
    kx_, kp_ = jax.random.split(root)
    x = jax.random.normal(
        kx_, (batch, image_channel_t, image_size_t, image_size_t), jnp.float32)
    params = init_params(kp_, num_classes, image_size_t, image_channel_t)

    packed = prepare_params(params, image_size_t)      # hoisted one-time prep
    fwd = jax.jit(image_classifier_forward)

    out = jax.block_until_ready(fwd(x, packed))
    ref = jax.block_until_ready(reference_forward(x, params))

    assert out.shape == (batch, num_classes)
    # bf16 MXU inputs with f32 accumulation vs f32 HIGHEST reference.
    assert jnp.allclose(out, ref, rtol=2e-2, atol=2e-2), (
        f"mismatch: max abs diff = {float(jnp.max(jnp.abs(out - ref)))}")
    print("KERNEL_OK")
</pallas_src>

<mosaic_0001>
module attributes {stable_mosaic.version = 11 : i64} {
  func.func @_fused_kernel(%arg0: i32, %arg1: memref<2x256x27xbf16, #tpu.memory_space<vmem>>, %arg2: memref<27x32xbf16, #tpu.memory_space<vmem>>, %arg3: memref<2x32xf32, #tpu.memory_space<vmem>>, %arg4: memref<3x96x64xbf16, #tpu.memory_space<vmem>>, %arg5: memref<2x64xf32, #tpu.memory_space<vmem>>, %arg6: memref<3x192x128xbf16, #tpu.memory_space<vmem>>, %arg7: memref<2x128xf32, #tpu.memory_space<vmem>>, %arg8: memref<3x384x256xbf16, #tpu.memory_space<vmem>>, %arg9: memref<2x256xf32, #tpu.memory_space<vmem>>, %arg10: memref<256x512xbf16, #tpu.memory_space<vmem>>, %arg11: memref<2x512xf32, #tpu.memory_space<vmem>>, %arg12: memref<512x10xbf16, #tpu.memory_space<vmem>>, %arg13: memref<1x10xf32, #tpu.memory_space<vmem>>, %arg14: memref<2x10xf32, #tpu.memory_space<vmem>>, %arg15: memref<2x10x10x32xf32, #tpu.memory_space<vmem>>, %arg16: memref<2x6x6x64xf32, #tpu.memory_space<vmem>>, %arg17: memref<2x4x4x128xf32, #tpu.memory_space<vmem>>) attributes {dimension_semantics = [#tpu.dimension_semantics<parallel>], iteration_bounds = array<i64: 1>, scalar_prefetch = 0 : i64, scratch_operands = 3 : i64, tpu.core_type = #tpu.core_type<tc>, window_params = [{transform_indices = @transform_0, window_bounds = array<i64: 2, 256, 27>}, {pipeline_mode = #tpu.pipeline_mode<synchronous>, transform_indices = @transform_1, window_bounds = array<i64: 27, 32>}, {pipeline_mode = #tpu.pipeline_mode<synchronous>, transform_indices = @transform_2, window_bounds = array<i64: 2, 32>}, {pipeline_mode = #tpu.pipeline_mode<synchronous>, transform_indices = @transform_3, window_bounds = array<i64: 3, 96, 64>}, {pipeline_mode = #tpu.pipeline_mode<synchronous>, transform_indices = @transform_4, window_bounds = array<i64: 2, 64>}, {pipeline_mode = #tpu.pipeline_mode<synchronous>, transform_indices = @transform_5, window_bounds = array<i64: 3, 192, 128>}, {pipeline_mode = #tpu.pipeline_mode<synchronous>, transform_indices = @transform_6, window_bounds = array<i64: 2, 128>}, {pipeline_mode = #tpu.pipeline_mode<synchronous>, transform_indices = @transform_7, window_bounds = array<i64: 3, 384, 256>}, {pipeline_mode = #tpu.pipeline_mode<synchronous>, transform_indices = @transform_8, window_bounds = array<i64: 2, 256>}, {pipeline_mode = #tpu.pipeline_mode<synchronous>, transform_indices = @transform_9, window_bounds = array<i64: 256, 512>}, {pipeline_mode = #tpu.pipeline_mode<synchronous>, transform_indices = @transform_10, window_bounds = array<i64: 2, 512>}, {pipeline_mode = #tpu.pipeline_mode<synchronous>, transform_indices = @transform_11, window_bounds = array<i64: 512, 10>}, {pipeline_mode = #tpu.pipeline_mode<synchronous>, transform_indices = @transform_12, window_bounds = array<i64: 1, 10>}, {transform_indices = @transform_13, window_bounds = array<i64: 2, 10>}]} {
    %cst = arith.constant 0.000000e+00 : f32
    %0 = vector.broadcast %cst : f32 to vector<2x1x10x32xf32>
    %c0 = arith.constant 0 : index
    %c0_0 = arith.constant 0 : index
    %c0_1 = arith.constant 0 : index
    %c0_2 = arith.constant 0 : index
    %1 = vector.load %arg15[%c0, %c0_0, %c0_1, %c0_2] : memref<2x10x10x32xf32, #tpu.memory_space<vmem>>, vector<2x1x10x32xf32>
    tpu.vector_store %arg15[%c0, %c0_0, %c0_1, %c0_2], %0 {strides = array<i32>} : memref<2x10x10x32xf32, #tpu.memory_space<vmem>>, vector<2x1x10x32xf32>,
    %cst_3 = arith.constant 0.000000e+00 : f32
    %2 = vector.broadcast %cst_3 : f32 to vector<2x1x10x32xf32>
    %c0_4 = arith.constant 0 : index
    %c9 = arith.constant 9 : index
    %c0_5 = arith.constant 0 : index
    %c0_6 = arith.constant 0 : index
    %3 = vector.load %arg15[%c0_4, %c9, %c0_5, %c0_6] : memref<2x10x10x32xf32, #tpu.memory_space<vmem>>, vector<2x1x10x32xf32>
    tpu.vector_store %arg15[%c0_4, %c9, %c0_5, %c0_6], %2 {strides = array<i32>} : memref<2x10x10x32xf32, #tpu.memory_space<vmem>>, vector<2x1x10x32xf32>,
    %cst_7 = arith.constant 0.000000e+00 : f32
    %4 = vector.broadcast %cst_7 : f32 to vector<2x10x1x32xf32>
    %c0_8 = arith.constant 0 : index
    %c0_9 = arith.constant 0 : index
    %c0_10 = arith.constant 0 : index
    %c0_11 = arith.constant 0 : index
    %5 = vector.load %arg15[%c0_8, %c0_9, %c0_10, %c0_11] : memref<2x10x10x32xf32, #tpu.memory_space<vmem>>, vector<2x10x1x32xf32>
    tpu.vector_store %arg15[%c0_8, %c0_9, %c0_10, %c0_11], %4 {strides = array<i32>} : memref<2x10x10x32xf32, #tpu.memory_space<vmem>>, vector<2x10x1x32xf32>,
    %cst_12 = arith.constant 0.000000e+00 : f32
    %6 = vector.broadcast %cst_12 : f32 to vector<2x10x1x32xf32>
    %c0_13 = arith.constant 0 : index
    %c0_14 = arith.constant 0 : index
    %c9_15 = arith.constant 9 : index
    %c0_16 = arith.constant 0 : index
    %7 = vector.load %arg15[%c0_13, %c0_14, %c9_15, %c0_16] : memref<2x10x10x32xf32, #tpu.memory_space<vmem>>, vector<2x10x1x32xf32>
    tpu.vector_store %arg15[%c0_13, %c0_14, %c9_15, %c0_16], %6 {strides = array<i32>} : memref<2x10x10x32xf32, #tpu.memory_space<vmem>>, vector<2x10x1x32xf32>,
    %cst_17 = arith.constant 0.000000e+00 : f32
    %8 = vector.broadcast %cst_17 : f32 to vector<2x1x6x64xf32>
    %c0_18 = arith.constant 0 : index
    %c0_19 = arith.constant 0 : index
    %c0_20 = arith.constant 0 : index
    %c0_21 = arith.constant 0 : index
    %9 = vector.load %arg16[%c0_18, %c0_19, %c0_20, %c0_21] : memref<2x6x6x64xf32, #tpu.memory_space<vmem>>, vector<2x1x6x64xf32>
    tpu.vector_store %arg16[%c0_18, %c0_19, %c0_20, %c0_21], %8 {strides = array<i32>} : memref<2x6x6x64xf32, #tpu.memory_space<vmem>>, vector<2x1x6x64xf32>,
    %cst_22 = arith.constant 0.000000e+00 : f32
    %10 = vector.broadcast %cst_22 : f32 to vector<2x1x6x64xf32>
    %c0_23 = arith.constant 0 : index
    %c5 = arith.constant 5 : index
    %c0_24 = arith.constant 0 : index
    %c0_25 = arith.constant 0 : index
    %11 = vector.load %arg16[%c0_23, %c5, %c0_24, %c0_25] : memref<2x6x6x64xf32, #tpu.memory_space<vmem>>, vector<2x1x6x64xf32>
    tpu.vector_store %arg16[%c0_23, %c5, %c0_24, %c0_25], %10 {strides = array<i32>} : memref<2x6x6x64xf32, #tpu.memory_space<vmem>>, vector<2x1x6x64xf32>,
    %cst_26 = arith.constant 0.000000e+00 : f32
    %12 = vector.broadcast %cst_26 : f32 to vector<2x6x1x64xf32>
    %c0_27 = arith.constant 0 : index
    %c0_28 = arith.constant 0 : index
    %c0_29 = arith.constant 0 : index
    %c0_30 = arith.constant 0 : index
    %13 = vector.load %arg16[%c0_27, %c0_28, %c0_29, %c0_30] : memref<2x6x6x64xf32, #tpu.memory_space<vmem>>, vector<2x6x1x64xf32>
    tpu.vector_store %arg16[%c0_27, %c0_28, %c0_29, %c0_30], %12 {strides = array<i32>} : memref<2x6x6x64xf32, #tpu.memory_space<vmem>>, vector<2x6x1x64xf32>,
    %cst_31 = arith.constant 0.000000e+00 : f32
    %14 = vector.broadcast %cst_31 : f32 to vector<2x6x1x64xf32>
    %c0_32 = arith.constant 0 : index
    %c0_33 = arith.constant 0 : index
    %c5_34 = arith.constant 5 : index
    %c0_35 = arith.constant 0 : index
    %15 = vector.load %arg16[%c0_32, %c0_33, %c5_34, %c0_35] : memref<2x6x6x64xf32, #tpu.memory_space<vmem>>, vector<2x6x1x64xf32>
    tpu.vector_store %arg16[%c0_32, %c0_33, %c5_34, %c0_35], %14 {strides = array<i32>} : memref<2x6x6x64xf32, #tpu.memory_space<vmem>>, vector<2x6x1x64xf32>,
    %cst_36 = arith.constant 0.000000e+00 : f32
    %16 = vector.broadcast %cst_36 : f32 to vector<2x1x4x128xf32>
    %c0_37 = arith.constant 0 : index
    %c0_38 = arith.constant 0 : index
    %c0_39 = arith.constant 0 : index
    %c0_40 = arith.constant 0 : index
    %17 = vector.load %arg17[%c0_37, %c0_38, %c0_39, %c0_40] : memref<2x4x4x128xf32, #tpu.memory_space<vmem>>, vector<2x1x4x128xf32>
    tpu.vector_store %arg17[%c0_37, %c0_38, %c0_39, %c0_40], %16 {strides = array<i32>} : memref<2x4x4x128xf32, #tpu.memory_space<vmem>>, vector<2x1x4x128xf32>,
    %cst_41 = arith.constant 0.000000e+00 : f32
    %18 = vector.broadcast %cst_41 : f32 to vector<2x1x4x128xf32>
    %c0_42 = arith.constant 0 : index
    %c3 = arith.constant 3 : index
    %c0_43 = arith.constant 0 : index
    %c0_44 = arith.constant 0 : index
    %19 = vector.load %arg17[%c0_42, %c3, %c0_43, %c0_44] : memref<2x4x4x128xf32, #tpu.memory_space<vmem>>, vector<2x1x4x128xf32>
    tpu.vector_store %arg17[%c0_42, %c3, %c0_43, %c0_44], %18 {strides = array<i32>} : memref<2x4x4x128xf32, #tpu.memory_space<vmem>>, vector<2x1x4x128xf32>,
    %cst_45 = arith.constant 0.000000e+00 : f32
    %20 = vector.broadcast %cst_45 : f32 to vector<2x4x1x128xf32>
    %c0_46 = arith.constant 0 : index
    %c0_47 = arith.constant 0 : index
    %c0_48 = arith.constant 0 : index
    %c0_49 = arith.constant 0 : index
    %21 = vector.load %arg17[%c0_46, %c0_47, %c0_48, %c0_49] : memref<2x4x4x128xf32, #tpu.memory_space<vmem>>, vector<2x4x1x128xf32>
    tpu.vector_store %arg17[%c0_46, %c0_47, %c0_48, %c0_49], %20 {strides = array<i32>} : memref<2x4x4x128xf32, #tpu.memory_space<vmem>>, vector<2x4x1x128xf32>,
    %cst_50 = arith.constant 0.000000e+00 : f32
    %22 = vector.broadcast %cst_50 : f32 to vector<2x4x1x128xf32>
    %c0_51 = arith.constant 0 : index
    %c0_52 = arith.constant 0 : index
    %c3_53 = arith.constant 3 : index
    %c0_54 = arith.constant 0 : index
    %23 = vector.load %arg17[%c0_51, %c0_52, %c3_53, %c0_54] : memref<2x4x4x128xf32, #tpu.memory_space<vmem>>, vector<2x4x1x128xf32>
    tpu.vector_store %arg17[%c0_51, %c0_52, %c3_53, %c0_54], %22 {strides = array<i32>} : memref<2x4x4x128xf32, #tpu.memory_space<vmem>>, vector<2x4x1x128xf32>,
    %c0_55 = arith.constant 0 : index
    %c0_56 = arith.constant 0 : index
    %c0_57 = arith.constant 0 : index
    %24 = vector.load %arg1[%c0_55, %c0_56, %c0_57] : memref<2x256x27xbf16, #tpu.memory_space<vmem>>, vector<2x256x27xbf16>
    %25 = vector.shape_cast %24 : vector<2x256x27xbf16> to vector<512x27xbf16>
    %c0_58 = arith.constant 0 : index
    %c0_59 = arith.constant 0 : index
    %26 = vector.load %arg2[%c0_58, %c0_59] : memref<27x32xbf16, #tpu.memory_space<vmem>>, vector<27x32xbf16>
    %cst_60 = arith.constant dense<0.000000e+00> : vector<512x32xf32>
    %27 = tpu.matmul %25, %26, %cst_60 {dimension_numbers = #tpu.dot_dimension_numbers<[1], [0], [0], [1], [0, 0, 1, 1], [], []>} : vector<512x27xbf16>, vector<27x32xbf16>, vector<512x32xf32> -> vector<512x32xf32>
    %c0_61 = arith.constant 0 : index
    %c0_62 = arith.constant 0 : index
    %28 = vector.load %arg3[%c0_61, %c0_62] : memref<2x32xf32, #tpu.memory_space<vmem>>, vector<1x32xf32>
    %29 = vector.broadcast %28 : vector<1x32xf32> to vector<512x32xf32>
    %30 = arith.mulf %27, %29 : vector<512x32xf32>
    %c1 = arith.constant 1 : index
    %c0_63 = arith.constant 0 : index
    %31 = vector.load %arg3[%c1, %c0_63] : memref<2x32xf32, #tpu.memory_space<vmem>>, vector<1x32xf32>
    %32 = vector.broadcast %31 : vector<1x32xf32> to vector<512x32xf32>
    %33 = arith.addf %30, %32 : vector<512x32xf32>
    %cst_64 = arith.constant 0.000000e+00 : f32
    %34 = vector.broadcast %cst_64 : f32 to vector<512x32xf32>
    %35 = arith.maximumf %33, %34 : vector<512x32xf32>
    %36 = vector.shape_cast %35 : vector<512x32xf32> to vector<32x8x2x32xf32>
    %cst_65 = arith.constant dense<0xFF800000> : vector<32x8x32xf32>
    %37 = vector.multi_reduction <maximumf>, %36, %cst_65 [2] : vector<32x8x2x32xf32> to vector<32x8x32xf32>
    %38 = vector.shape_cast %37 : vector<32x8x32xf32> to vector<16x2x8x32xf32>
    %cst_66 = arith.constant dense<0xFF800000> : vector<16x8x32xf32>
    %39 = vector.multi_reduction <maximumf>, %38, %cst_66 [1] : vector<16x2x8x32xf32> to vector<16x8x32xf32>
    %40 = vector.shape_cast %39 : vector<16x8x32xf32> to vector<2x8x8x32xf32>
    %c0_67 = arith.constant 0 : index
    %c1_68 = arith.constant 1 : index
    %c1_69 = arith.constant 1 : index
    %c0_70 = arith.constant 0 : index
    %41 = vector.load %arg15[%c0_67, %c1_68, %c1_69, %c0_70] : memref<2x10x10x32xf32, #tpu.memory_space<vmem>>, vector<2x8x8x32xf32>
    tpu.vector_store %arg15[%c0_67, %c1_68, %c1_69, %c0_70], %40 {strides = array<i32>} : memref<2x10x10x32xf32, #tpu.memory_space<vmem>>, vector<2x8x8x32xf32>,
    %cst_71 = arith.constant 0.000000e+00 : f32
    %42 = vector.broadcast %cst_71 : f32 to vector<128x64xf32>
    %c0_72 = arith.constant 0 : index
    %c0_73 = arith.constant 0 : index
    %c0_74 = arith.constant 0 : index
    %c0_75 = arith.constant 0 : index
    %43 = vector.load %arg15[%c0_72, %c0_73, %c0_74, %c0_75] : memref<2x10x10x32xf32, #tpu.memory_space<vmem>>, vector<2x8x10x32xf32>
    %44 = arith.truncf %43 : vector<2x8x10x32xf32> to vector<2x8x10x32xbf16>
    %45 = vector.extract_strided_slice %44 {offsets = [0, 0, 0, 0], sizes = [2, 8, 8, 32], strides = [1, 1, 1, 1]} : vector<2x8x10x32xbf16> to vector<2x8x8x32xbf16>
    %46 = vector.extract_strided_slice %44 {offsets = [0, 0, 1, 0], sizes = [2, 8, 8, 32], strides = [1, 1, 1, 1]} : vector<2x8x10x32xbf16> to vector<2x8x8x32xbf16>
    %47 = vector.extract_strided_slice %44 {offsets = [0, 0, 2, 0], sizes = [2, 8, 8, 32], strides = [1, 1, 1, 1]} : vector<2x8x10x32xbf16> to vector<2x8x8x32xbf16>
    %48 = tpu.concatenate %45, %46, %47 in 3 : vector<2x8x8x32xbf16>, vector<2x8x8x32xbf16>, vector<2x8x8x32xbf16> -> vector<2x8x8x96xbf16>
    %49 = vector.shape_cast %48 : vector<2x8x8x96xbf16> to vector<128x96xbf16>
    %c0_76 = arith.constant 0 : index
    %c0_77 = arith.constant 0 : index
    %c0_78 = arith.constant 0 : index
    %50 = vector.load %arg4[%c0_76, %c0_77, %c0_78] : memref<3x96x64xbf16, #tpu.memory_space<vmem>>, vector<1x96x64xbf16>
    %51 = vector.shape_cast %50 : vector<1x96x64xbf16> to vector<96x64xbf16>
    %cst_79 = arith.constant dense<0.000000e+00> : vector<128x64xf32>
    %52 = tpu.matmul %49, %51, %cst_79 {dimension_numbers = #tpu.dot_dimension_numbers<[1], [0], [0], [1], [0, 0, 1, 1], [], []>} : vector<128x96xbf16>, vector<96x64xbf16>, vector<128x64xf32> -> vector<128x64xf32>
    %53 = arith.addf %42, %52 : vector<128x64xf32>
    %c0_80 = arith.constant 0 : index
    %c1_81 = arith.constant 1 : index
    %c0_82 = arith.constant 0 : index
    %c0_83 = arith.constant 0 : index
    %54 = vector.load %arg15[%c0_80, %c1_81, %c0_82, %c0_83] : memref<2x10x10x32xf32, #tpu.memory_space<vmem>>, vector<2x8x10x32xf32>
    %55 = arith.truncf %54 : vector<2x8x10x32xf32> to vector<2x8x10x32xbf16>
    %56 = vector.extract_strided_slice %55 {offsets = [0, 0, 0, 0], sizes = [2, 8, 8, 32], strides = [1, 1, 1, 1]} : vector<2x8x10x32xbf16> to vector<2x8x8x32xbf16>
    %57 = vector.extract_strided_slice %55 {offsets = [0, 0, 1, 0], sizes = [2, 8, 8, 32], strides = [1, 1, 1, 1]} : vector<2x8x10x32xbf16> to vector<2x8x8x32xbf16>
    %58 = vector.extract_strided_slice %55 {offsets = [0, 0, 2, 0], sizes = [2, 8, 8, 32], strides = [1, 1, 1, 1]} : vector<2x8x10x32xbf16> to vector<2x8x8x32xbf16>
    %59 = tpu.concatenate %56, %57, %58 in 3 : vector<2x8x8x32xbf16>, vector<2x8x8x32xbf16>, vector<2x8x8x32xbf16> -> vector<2x8x8x96xbf16>
    %60 = vector.shape_cast %59 : vector<2x8x8x96xbf16> to vector<128x96xbf16>
    %c1_84 = arith.constant 1 : index
    %c0_85 = arith.constant 0 : index
    %c0_86 = arith.constant 0 : index
    %61 = vector.load %arg4[%c1_84, %c0_85, %c0_86] : memref<3x96x64xbf16, #tpu.memory_space<vmem>>, vector<1x96x64xbf16>
    %62 = vector.shape_cast %61 : vector<1x96x64xbf16> to vector<96x64xbf16>
    %cst_87 = arith.constant dense<0.000000e+00> : vector<128x64xf32>
    %63 = tpu.matmul %60, %62, %cst_87 {dimension_numbers = #tpu.dot_dimension_numbers<[1], [0], [0], [1], [0, 0, 1, 1], [], []>} : vector<128x96xbf16>, vector<96x64xbf16>, vector<128x64xf32> -> vector<128x64xf32>
    %64 = arith.addf %53, %63 : vector<128x64xf32>
    %c0_88 = arith.constant 0 : index
    %c2 = arith.constant 2 : index
    %c0_89 = arith.constant 0 : index
    %c0_90 = arith.constant 0 : index
    %65 = vector.load %arg15[%c0_88, %c2, %c0_89, %c0_90] : memref<2x10x10x32xf32, #tpu.memory_space<vmem>>, vector<2x8x10x32xf32>
    %66 = arith.truncf %65 : vector<2x8x10x32xf32> to vector<2x8x10x32xbf16>
    %67 = vector.extract_strided_slice %66 {offsets = [0, 0, 0, 0], sizes = [2, 8, 8, 32], strides = [1, 1, 1, 1]} : vector<2x8x10x32xbf16> to vector<2x8x8x32xbf16>
    %68 = vector.extract_strided_slice %66 {offsets = [0, 0, 1, 0], sizes = [2, 8, 8, 32], strides = [1, 1, 1, 1]} : vector<2x8x10x32xbf16> to vector<2x8x8x32xbf16>
    %69 = vector.extract_strided_slice %66 {offsets = [0, 0, 2, 0], sizes = [2, 8, 8, 32], strides = [1, 1, 1, 1]} : vector<2x8x10x32xbf16> to vector<2x8x8x32xbf16>
    %70 = tpu.concatenate %67, %68, %69 in 3 : vector<2x8x8x32xbf16>, vector<2x8x8x32xbf16>, vector<2x8x8x32xbf16> -> vector<2x8x8x96xbf16>
    %71 = vector.shape_cast %70 : vector<2x8x8x96xbf16> to vector<128x96xbf16>
    %c2_91 = arith.constant 2 : index
    %c0_92 = arith.constant 0 : index
    %c0_93 = arith.constant 0 : index
    %72 = vector.load %arg4[%c2_91, %c0_92, %c0_93] : memref<3x96x64xbf16, #tpu.memory_space<vmem>>, vector<1x96x64xbf16>
    %73 = vector.shape_cast %72 : vector<1x96x64xbf16> to vector<96x64xbf16>
    %cst_94 = arith.constant dense<0.000000e+00> : vector<128x64xf32>
    %74 = tpu.matmul %71, %73, %cst_94 {dimension_numbers = #tpu.dot_dimension_numbers<[1], [0], [0], [1], [0, 0, 1, 1], [], []>} : vector<128x96xbf16>, vector<96x64xbf16>, vector<128x64xf32> -> vector<128x64xf32>
    %75 = arith.addf %64, %74 : vector<128x64xf32>
    %c0_95 = arith.constant 0 : index
    %c0_96 = arith.constant 0 : index
    %76 = vector.load %arg5[%c0_95, %c0_96] : memref<2x64xf32, #tpu.memory_space<vmem>>, vector<1x64xf32>
    %77 = vector.broadcast %76 : vector<1x64xf32> to vector<128x64xf32>
    %78 = arith.mulf %75, %77 : vector<128x64xf32>
    %c1_97 = arith.constant 1 : index
    %c0_98 = arith.constant 0 : index
    %79 = vector.load %arg5[%c1_97, %c0_98] : memref<2x64xf32, #tpu.memory_space<vmem>>, vector<1x64xf32>
    %80 = vector.broadcast %79 : vector<1x64xf32> to vector<128x64xf32>
    %81 = arith.addf %78, %80 : vector<128x64xf32>
    %cst_99 = arith.constant 0.000000e+00 : f32
    %82 = vector.broadcast %cst_99 : f32 to vector<128x64xf32>
    %83 = arith.maximumf %81, %82 : vector<128x64xf32>
    %84 = vector.shape_cast %83 : vector<128x64xf32> to vector<16x4x2x64xf32>
    %cst_100 = arith.constant dense<0xFF800000> : vector<16x4x64xf32>
    %85 = vector.multi_reduction <maximumf>, %84, %cst_100 [2] : vector<16x4x2x64xf32> to vector<16x4x64xf32>
    %86 = vector.shape_cast %85 : vector<16x4x64xf32> to vector<8x2x4x64xf32>
    %cst_101 = arith.constant dense<0xFF800000> : vector<8x4x64xf32>
    %87 = vector.multi_reduction <maximumf>, %86, %cst_101 [1] : vector<8x2x4x64xf32> to vector<8x4x64xf32>
    %88 = vector.shape_cast %87 : vector<8x4x64xf32> to vector<2x4x4x64xf32>
    %c0_102 = arith.constant 0 : index
    %c1_103 = arith.constant 1 : index
    %c1_104 = arith.constant 1 : index
    %c0_105 = arith.constant 0 : index
    %89 = vector.load %arg16[%c0_102, %c1_103, %c1_104, %c0_105] : memref<2x6x6x64xf32, #tpu.memory_space<vmem>>, vector<2x4x4x64xf32>
    tpu.vector_store %arg16[%c0_102, %c1_103, %c1_104, %c0_105], %88 {strides = array<i32>} : memref<2x6x6x64xf32, #tpu.memory_space<vmem>>, vector<2x4x4x64xf32>,
    %cst_106 = arith.constant 0.000000e+00 : f32
    %90 = vector.broadcast %cst_106 : f32 to vector<32x128xf32>
    %c0_107 = arith.constant 0 : index
    %c0_108 = arith.constant 0 : index
    %c0_109 = arith.constant 0 : index
    %c0_110 = arith.constant 0 : index
    %91 = vector.load %arg16[%c0_107, %c0_108, %c0_109, %c0_110] : memref<2x6x6x64xf32, #tpu.memory_space<vmem>>, vector<2x4x6x64xf32>
    %92 = arith.truncf %91 : vector<2x4x6x64xf32> to vector<2x4x6x64xbf16>
    %93 = vector.extract_strided_slice %92 {offsets = [0, 0, 0, 0], sizes = [2, 4, 4, 64], strides = [1, 1, 1, 1]} : vector<2x4x6x64xbf16> to vector<2x4x4x64xbf16>
    %94 = vector.extract_strided_slice %92 {offsets = [0, 0, 1, 0], sizes = [2, 4, 4, 64], strides = [1, 1, 1, 1]} : vector<2x4x6x64xbf16> to vector<2x4x4x64xbf16>
    %95 = vector.extract_strided_slice %92 {offsets = [0, 0, 2, 0], sizes = [2, 4, 4, 64], strides = [1, 1, 1, 1]} : vector<2x4x6x64xbf16> to vector<2x4x4x64xbf16>
    %96 = tpu.concatenate %93, %94, %95 in 3 : vector<2x4x4x64xbf16>, vector<2x4x4x64xbf16>, vector<2x4x4x64xbf16> -> vector<2x4x4x192xbf16>
    %97 = vector.shape_cast %96 : vector<2x4x4x192xbf16> to vector<32x192xbf16>
    %c0_111 = arith.constant 0 : index
    %c0_112 = arith.constant 0 : index
    %c0_113 = arith.constant 0 : index
    %98 = vector.load %arg6[%c0_111, %c0_112, %c0_113] : memref<3x192x128xbf16, #tpu.memory_space<vmem>>, vector<1x192x128xbf16>
    %99 = vector.shape_cast %98 : vector<1x192x128xbf16> to vector<192x128xbf16>
    %cst_114 = arith.constant dense<0.000000e+00> : vector<32x128xf32>
    %100 = tpu.matmul %97, %99, %cst_114 {dimension_numbers = #tpu.dot_dimension_numbers<[1], [0], [0], [1], [0, 0, 1, 1], [], []>} : vector<32x192xbf16>, vector<192x128xbf16>, vector<32x128xf32> -> vector<32x128xf32>
    %101 = arith.addf %90, %100 : vector<32x128xf32>
    %c0_115 = arith.constant 0 : index
    %c1_116 = arith.constant 1 : index
    %c0_117 = arith.constant 0 : index
    %c0_118 = arith.constant 0 : index
    %102 = vector.load %arg16[%c0_115, %c1_116, %c0_117, %c0_118] : memref<2x6x6x64xf32, #tpu.memory_space<vmem>>, vector<2x4x6x64xf32>
    %103 = arith.truncf %102 : vector<2x4x6x64xf32> to vector<2x4x6x64xbf16>
    %104 = vector.extract_strided_slice %103 {offsets = [0, 0, 0, 0], sizes = [2, 4, 4, 64], strides = [1, 1, 1, 1]} : vector<2x4x6x64xbf16> to vector<2x4x4x64xbf16>
    %105 = vector.extract_strided_slice %103 {offsets = [0, 0, 1, 0], sizes = [2, 4, 4, 64], strides = [1, 1, 1, 1]} : vector<2x4x6x64xbf16> to vector<2x4x4x64xbf16>
    %106 = vector.extract_strided_slice %103 {offsets = [0, 0, 2, 0], sizes = [2, 4, 4, 64], strides = [1, 1, 1, 1]} : vector<2x4x6x64xbf16> to vector<2x4x4x64xbf16>
    %107 = tpu.concatenate %104, %105, %106 in 3 : vector<2x4x4x64xbf16>, vector<2x4x4x64xbf16>, vector<2x4x4x64xbf16> -> vector<2x4x4x192xbf16>
    %108 = vector.shape_cast %107 : vector<2x4x4x192xbf16> to vector<32x192xbf16>
    %c1_119 = arith.constant 1 : index
    %c0_120 = arith.constant 0 : index
    %c0_121 = arith.constant 0 : index
    %109 = vector.load %arg6[%c1_119, %c0_120, %c0_121] : memref<3x192x128xbf16, #tpu.memory_space<vmem>>, vector<1x192x128xbf16>
    %110 = vector.shape_cast %109 : vector<1x192x128xbf16> to vector<192x128xbf16>
    %cst_122 = arith.constant dense<0.000000e+00> : vector<32x128xf32>
    %111 = tpu.matmul %108, %110, %cst_122 {dimension_numbers = #tpu.dot_dimension_numbers<[1], [0], [0], [1], [0, 0, 1, 1], [], []>} : vector<32x192xbf16>, vector<192x128xbf16>, vector<32x128xf32> -> vector<32x128xf32>
    %112 = arith.addf %101, %111 : vector<32x128xf32>
    %c0_123 = arith.constant 0 : index
    %c2_124 = arith.constant 2 : index
    %c0_125 = arith.constant 0 : index
    %c0_126 = arith.constant 0 : index
    %113 = vector.load %arg16[%c0_123, %c2_124, %c0_125, %c0_126] : memref<2x6x6x64xf32, #tpu.memory_space<vmem>>, vector<2x4x6x64xf32>
    %114 = arith.truncf %113 : vector<2x4x6x64xf32> to vector<2x4x6x64xbf16>
    %115 = vector.extract_strided_slice %114 {offsets = [0, 0, 0, 0], sizes = [2, 4, 4, 64], strides = [1, 1, 1, 1]} : vector<2x4x6x64xbf16> to vector<2x4x4x64xbf16>
    %116 = vector.extract_strided_slice %114 {offsets = [0, 0, 1, 0], sizes = [2, 4, 4, 64], strides = [1, 1, 1, 1]} : vector<2x4x6x64xbf16> to vector<2x4x4x64xbf16>
    %117 = vector.extract_strided_slice %114 {offsets = [0, 0, 2, 0], sizes = [2, 4, 4, 64], strides = [1, 1, 1, 1]} : vector<2x4x6x64xbf16> to vector<2x4x4x64xbf16>
    %118 = tpu.concatenate %115, %116, %117 in 3 : vector<2x4x4x64xbf16>, vector<2x4x4x64xbf16>, vector<2x4x4x64xbf16> -> vector<2x4x4x192xbf16>
    %119 = vector.shape_cast %118 : vector<2x4x4x192xbf16> to vector<32x192xbf16>
    %c2_127 = arith.constant 2 : index
    %c0_128 = arith.constant 0 : index
    %c0_129 = arith.constant 0 : index
    %120 = vector.load %arg6[%c2_127, %c0_128, %c0_129] : memref<3x192x128xbf16, #tpu.memory_space<vmem>>, vector<1x192x128xbf16>
    %121 = vector.shape_cast %120 : vector<1x192x128xbf16> to vector<192x128xbf16>
    %cst_130 = arith.constant dense<0.000000e+00> : vector<32x128xf32>
    %122 = tpu.matmul %119, %121, %cst_130 {dimension_numbers = #tpu.dot_dimension_numbers<[1], [0], [0], [1], [0, 0, 1, 1], [], []>} : vector<32x192xbf16>, vector<192x128xbf16>, vector<32x128xf32> -> vector<32x128xf32>
    %123 = arith.addf %112, %122 : vector<32x128xf32>
    %c0_131 = arith.constant 0 : index
    %c0_132 = arith.constant 0 : index
    %124 = vector.load %arg7[%c0_131, %c0_132] : memref<2x128xf32, #tpu.memory_space<vmem>>, vector<1x128xf32>
    %125 = vector.broadcast %124 : vector<1x128xf32> to vector<32x128xf32>
    %126 = arith.mulf %123, %125 : vector<32x128xf32>
    %c1_133 = arith.constant 1 : index
    %c0_134 = arith.constant 0 : index
    %127 = vector.load %arg7[%c1_133, %c0_134] : memref<2x128xf32, #tpu.memory_space<vmem>>, vector<1x128xf32>
    %128 = vector.broadcast %127 : vector<1x128xf32> to vector<32x128xf32>
    %129 = arith.addf %126, %128 : vector<32x128xf32>
    %cst_135 = arith.constant 0.000000e+00 : f32
    %130 = vector.broadcast %cst_135 : f32 to vector<32x128xf32>
    %131 = arith.maximumf %129, %130 : vector<32x128xf32>
    %132 = vector.shape_cast %131 : vector<32x128xf32> to vector<8x2x2x128xf32>
    %cst_136 = arith.constant dense<0xFF800000> : vector<8x2x128xf32>
    %133 = vector.multi_reduction <maximumf>, %132, %cst_136 [2] : vector<8x2x2x128xf32> to vector<8x2x128xf32>
    %134 = vector.shape_cast %133 : vector<8x2x128xf32> to vector<4x2x2x128xf32>
    %cst_137 = arith.constant dense<0xFF800000> : vector<4x2x128xf32>
    %135 = vector.multi_reduction <maximumf>, %134, %cst_137 [1] : vector<4x2x2x128xf32> to vector<4x2x128xf32>
    %136 = vector.shape_cast %135 : vector<4x2x128xf32> to vector<2x2x2x128xf32>
    %c0_138 = arith.constant 0 : index
    %c1_139 = arith.constant 1 : index
    %c1_140 = arith.constant 1 : index
    %c0_141 = arith.constant 0 : index
    %137 = vector.load %arg17[%c0_138, %c1_139, %c1_140, %c0_141] : memref<2x4x4x128xf32, #tpu.memory_space<vmem>>, vector<2x2x2x128xf32>
    tpu.vector_store %arg17[%c0_138, %c1_139, %c1_140, %c0_141], %136 {strides = array<i32>} : memref<2x4x4x128xf32, #tpu.memory_space<vmem>>, vector<2x2x2x128xf32>,
    %cst_142 = arith.constant 0.000000e+00 : f32
    %138 = vector.broadcast %cst_142 : f32 to vector<8x256xf32>
    %c0_143 = arith.constant 0 : index
    %c0_144 = arith.constant 0 : index
    %c0_145 = arith.constant 0 : index
    %c0_146 = arith.constant 0 : index
    %139 = vector.load %arg17[%c0_143, %c0_144, %c0_145, %c0_146] : memref<2x4x4x128xf32, #tpu.memory_space<vmem>>, vector<2x2x4x128xf32>
    %140 = arith.truncf %139 : vector<2x2x4x128xf32> to vector<2x2x4x128xbf16>
    %141 = vector.extract_strided_slice %140 {offsets = [0, 0, 0, 0], sizes = [2, 2, 2, 128], strides = [1, 1, 1, 1]} : vector<2x2x4x128xbf16> to vector<2x2x2x128xbf16>
    %142 = vector.extract_strided_slice %140 {offsets = [0, 0, 1, 0], sizes = [2, 2, 2, 128], strides = [1, 1, 1, 1]} : vector<2x2x4x128xbf16> to vector<2x2x2x128xbf16>
    %143 = vector.extract_strided_slice %140 {offsets = [0, 0, 2, 0], sizes = [2, 2, 2, 128], strides = [1, 1, 1, 1]} : vector<2x2x4x128xbf16> to vector<2x2x2x128xbf16>
    %144 = tpu.concatenate %141, %142, %143 in 3 : vector<2x2x2x128xbf16>, vector<2x2x2x128xbf16>, vector<2x2x2x128xbf16> -> vector<2x2x2x384xbf16>
    %145 = vector.shape_cast %144 : vector<2x2x2x384xbf16> to vector<8x384xbf16>
    %c0_147 = arith.constant 0 : index
    %c0_148 = arith.constant 0 : index
    %c0_149 = arith.constant 0 : index
    %146 = vector.load %arg8[%c0_147, %c0_148, %c0_149] : memref<3x384x256xbf16, #tpu.memory_space<vmem>>, vector<1x384x256xbf16>
    %147 = vector.shape_cast %146 : vector<1x384x256xbf16> to vector<384x256xbf16>
    %cst_150 = arith.constant dense<0.000000e+00> : vector<8x256xf32>
    %148 = tpu.matmul %145, %147, %cst_150 {dimension_numbers = #tpu.dot_dimension_numbers<[1], [0], [0], [1], [0, 0, 1, 1], [], []>} : vector<8x384xbf16>, vector<384x256xbf16>, vector<8x256xf32> -> vector<8x256xf32>
    %149 = arith.addf %138, %148 : vector<8x256xf32>
    %c0_151 = arith.constant 0 : index
    %c1_152 = arith.constant 1 : index
    %c0_153 = arith.constant 0 : index
    %c0_154 = arith.constant 0 : index
    %150 = vector.load %arg17[%c0_151, %c1_152, %c0_153, %c0_154] : memref<2x4x4x128xf32, #tpu.memory_space<vmem>>, vector<2x2x4x128xf32>
    %151 = arith.truncf %150 : vector<2x2x4x128xf32> to vector<2x2x4x128xbf16>
    %152 = vector.extract_strided_slice %151 {offsets = [0, 0, 0, 0], sizes = [2, 2, 2, 128], strides = [1, 1, 1, 1]} : vector<2x2x4x128xbf16> to vector<2x2x2x128xbf16>
    %153 = vector.extract_strided_slice %151 {offsets = [0, 0, 1, 0], sizes = [2, 2, 2, 128], strides = [1, 1, 1, 1]} : vector<2x2x4x128xbf16> to vector<2x2x2x128xbf16>
    %154 = vector.extract_strided_slice %151 {offsets = [0, 0, 2, 0], sizes = [2, 2, 2, 128], strides = [1, 1, 1, 1]} : vector<2x2x4x128xbf16> to vector<2x2x2x128xbf16>
    %155 = tpu.concatenate %152, %153, %154 in 3 : vector<2x2x2x128xbf16>, vector<2x2x2x128xbf16>, vector<2x2x2x128xbf16> -> vector<2x2x2x384xbf16>
    %156 = vector.shape_cast %155 : vector<2x2x2x384xbf16> to vector<8x384xbf16>
    %c1_155 = arith.constant 1 : index
    %c0_156 = arith.constant 0 : index
    %c0_157 = arith.constant 0 : index
    %157 = vector.load %arg8[%c1_155, %c0_156, %c0_157] : memref<3x384x256xbf16, #tpu.memory_space<vmem>>, vector<1x384x256xbf16>
    %158 = vector.shape_cast %157 : vector<1x384x256xbf16> to vector<384x256xbf16>
    %cst_158 = arith.constant dense<0.000000e+00> : vector<8x256xf32>
    %159 = tpu.matmul %156, %158, %cst_158 {dimension_numbers = #tpu.dot_dimension_numbers<[1], [0], [0], [1], [0, 0, 1, 1], [], []>} : vector<8x384xbf16>, vector<384x256xbf16>, vector<8x256xf32> -> vector<8x256xf32>
    %160 = arith.addf %149, %159 : vector<8x256xf32>
    %c0_159 = arith.constant 0 : index
    %c2_160 = arith.constant 2 : index
    %c0_161 = arith.constant 0 : index
    %c0_162 = arith.constant 0 : index
    %161 = vector.load %arg17[%c0_159, %c2_160, %c0_161, %c0_162] : memref<2x4x4x128xf32, #tpu.memory_space<vmem>>, vector<2x2x4x128xf32>
    %162 = arith.truncf %161 : vector<2x2x4x128xf32> to vector<2x2x4x128xbf16>
    %163 = vector.extract_strided_slice %162 {offsets = [0, 0, 0, 0], sizes = [2, 2, 2, 128], strides = [1, 1, 1, 1]} : vector<2x2x4x128xbf16> to vector<2x2x2x128xbf16>
    %164 = vector.extract_strided_slice %162 {offsets = [0, 0, 1, 0], sizes = [2, 2, 2, 128], strides = [1, 1, 1, 1]} : vector<2x2x4x128xbf16> to vector<2x2x2x128xbf16>
    %165 = vector.extract_strided_slice %162 {offsets = [0, 0, 2, 0], sizes = [2, 2, 2, 128], strides = [1, 1, 1, 1]} : vector<2x2x4x128xbf16> to vector<2x2x2x128xbf16>
    %166 = tpu.concatenate %163, %164, %165 in 3 : vector<2x2x2x128xbf16>, vector<2x2x2x128xbf16>, vector<2x2x2x128xbf16> -> vector<2x2x2x384xbf16>
    %167 = vector.shape_cast %166 : vector<2x2x2x384xbf16> to vector<8x384xbf16>
    %c2_163 = arith.constant 2 : index
    %c0_164 = arith.constant 0 : index
    %c0_165 = arith.constant 0 : index
    %168 = vector.load %arg8[%c2_163, %c0_164, %c0_165] : memref<3x384x256xbf16, #tpu.memory_space<vmem>>, vector<1x384x256xbf16>
    %169 = vector.shape_cast %168 : vector<1x384x256xbf16> to vector<384x256xbf16>
    %cst_166 = arith.constant dense<0.000000e+00> : vector<8x256xf32>
    %170 = tpu.matmul %167, %169, %cst_166 {dimension_numbers = #tpu.dot_dimension_numbers<[1], [0], [0], [1], [0, 0, 1, 1], [], []>} : vector<8x384xbf16>, vector<384x256xbf16>, vector<8x256xf32> -> vector<8x256xf32>
    %171 = arith.addf %160, %170 : vector<8x256xf32>
    %c0_167 = arith.constant 0 : index
    %c0_168 = arith.constant 0 : index
    %172 = vector.load %arg9[%c0_167, %c0_168] : memref<2x256xf32, #tpu.memory_space<vmem>>, vector<1x256xf32>
    %173 = vector.broadcast %172 : vector<1x256xf32> to vector<8x256xf32>
    %174 = arith.mulf %171, %173 : vector<8x256xf32>
    %c1_169 = arith.constant 1 : index
    %c0_170 = arith.constant 0 : index
    %175 = vector.load %arg9[%c1_169, %c0_170] : memref<2x256xf32, #tpu.memory_space<vmem>>, vector<1x256xf32>
    %176 = vector.broadcast %175 : vector<1x256xf32> to vector<8x256xf32>
    %177 = arith.addf %174, %176 : vector<8x256xf32>
    %cst_171 = arith.constant 0.000000e+00 : f32
    %178 = vector.broadcast %cst_171 : f32 to vector<8x256xf32>
    %179 = arith.maximumf %177, %178 : vector<8x256xf32>
    %180 = vector.shape_cast %179 : vector<8x256xf32> to vector<4x1x2x256xf32>
    %cst_172 = arith.constant dense<0xFF800000> : vector<4x1x256xf32>
    %181 = vector.multi_reduction <maximumf>, %180, %cst_172 [2] : vector<4x1x2x256xf32> to vector<4x1x256xf32>
    %182 = vector.shape_cast %181 : vector<4x1x256xf32> to vector<2x2x1x256xf32>
    %cst_173 = arith.constant dense<0xFF800000> : vector<2x1x256xf32>
    %183 = vector.multi_reduction <maximumf>, %182, %cst_173 [1] : vector<2x2x1x256xf32> to vector<2x1x256xf32>
    %184 = vector.shape_cast %183 : vector<2x1x256xf32> to vector<2x1x1x256xf32>
    %185 = vector.shape_cast %184 : vector<2x1x1x256xf32> to vector<2x256xf32>
    %186 = arith.truncf %185 : vector<2x256xf32> to vector<2x256xbf16>
    %c0_174 = arith.constant 0 : index
    %c0_175 = arith.constant 0 : index
    %187 = vector.load %arg10[%c0_174, %c0_175] : memref<256x512xbf16, #tpu.memory_space<vmem>>, vector<256x512xbf16>
    %cst_176 = arith.constant dense<0.000000e+00> : vector<2x512xf32>
    %188 = tpu.matmul %186, %187, %cst_176 {dimension_numbers = #tpu.dot_dimension_numbers<[1], [0], [0], [1], [0, 0, 1, 1], [], []>} : vector<2x256xbf16>, vector<256x512xbf16>, vector<2x512xf32> -> vector<2x512xf32>
    %c0_177 = arith.constant 0 : index
    %c0_178 = arith.constant 0 : index
    %189 = vector.load %arg11[%c0_177, %c0_178] : memref<2x512xf32, #tpu.memory_space<vmem>>, vector<1x512xf32>
    %190 = vector.broadcast %189 : vector<1x512xf32> to vector<2x512xf32>
    %191 = arith.mulf %188, %190 : vector<2x512xf32>
    %c1_179 = arith.constant 1 : index
    %c0_180 = arith.constant 0 : index
    %192 = vector.load %arg11[%c1_179, %c0_180] : memref<2x512xf32, #tpu.memory_space<vmem>>, vector<1x512xf32>
    %193 = vector.broadcast %192 : vector<1x512xf32> to vector<2x512xf32>
    %194 = arith.addf %191, %193 : vector<2x512xf32>
    %cst_181 = arith.constant 0.000000e+00 : f32
    %195 = vector.broadcast %cst_181 : f32 to vector<2x512xf32>
    %196 = arith.maximumf %194, %195 : vector<2x512xf32>
    %197 = arith.truncf %196 : vector<2x512xf32> to vector<2x512xbf16>
    %c0_182 = arith.constant 0 : index
    %c0_183 = arith.constant 0 : index
    %198 = vector.load %arg12[%c0_182, %c0_183] : memref<512x10xbf16, #tpu.memory_space<vmem>>, vector<512x10xbf16>
    %cst_184 = arith.constant dense<0.000000e+00> : vector<2x10xf32>
    %199 = tpu.matmul %197, %198, %cst_184 {dimension_numbers = #tpu.dot_dimension_numbers<[1], [0], [0], [1], [0, 0, 1, 1], [], []>} : vector<2x512xbf16>, vector<512x10xbf16>, vector<2x10xf32> -> vector<2x10xf32>
    %c0_185 = arith.constant 0 : index
    %c0_186 = arith.constant 0 : index
    %200 = vector.load %arg13[%c0_185, %c0_186] : memref<1x10xf32, #tpu.memory_space<vmem>>, vector<1x10xf32>
    %201 = vector.broadcast %200 : vector<1x10xf32> to vector<2x10xf32>
    %202 = arith.addf %199, %201 : vector<2x10xf32>
    %c0_187 = arith.constant 0 : index
    %c0_188 = arith.constant 0 : index
    %203 = vector.load %arg14[%c0_187, %c0_188] : memref<2x10xf32, #tpu.memory_space<vmem>>, vector<2x10xf32>
    tpu.vector_store %arg14[%c0_187, %c0_188], %202 {strides = array<i32>} : memref<2x10xf32, #tpu.memory_space<vmem>>, vector<2x10xf32>,
    return
  }
  func.func @transform_0(%arg0: i32) -> (i32, i32, i32) {
    %c0_i32 = arith.constant 0 : i32
    %c0_i32_0 = arith.constant 0 : i32
    %c0_i32_1 = arith.constant 0 : i32
    return %arg0, %c0_i32, %c0_i32_0 : i32, i32, i32
  }
  func.func @transform_1(%arg0: i32) -> (i32, i32) {
    %c0_i32 = arith.constant 0 : i32
    %c0_i32_0 = arith.constant 0 : i32
    %c0_i32_1 = arith.constant 0 : i32
    return %c0_i32, %c0_i32_0 : i32, i32
  }
  func.func @transform_2(%arg0: i32) -> (i32, i32) {
    %c0_i32 = arith.constant 0 : i32
    %c0_i32_0 = arith.constant 0 : i32
    %c0_i32_1 = arith.constant 0 : i32
    return %c0_i32, %c0_i32_0 : i32, i32
  }
  func.func @transform_3(%arg0: i32) -> (i32, i32, i32) {
    %c0_i32 = arith.constant 0 : i32
    %c0_i32_0 = arith.constant 0 : i32
    %c0_i32_1 = arith.constant 0 : i32
    %c0_i32_2 = arith.constant 0 : i32
    return %c0_i32, %c0_i32_0, %c0_i32_1 : i32, i32, i32
  }
  func.func @transform_4(%arg0: i32) -> (i32, i32) {
    %c0_i32 = arith.constant 0 : i32
    %c0_i32_0 = arith.constant 0 : i32
    %c0_i32_1 = arith.constant 0 : i32
    return %c0_i32, %c0_i32_0 : i32, i32
  }
  func.func @transform_5(%arg0: i32) -> (i32, i32, i32) {
    %c0_i32 = arith.constant 0 : i32
    %c0_i32_0 = arith.constant 0 : i32
    %c0_i32_1 = arith.constant 0 : i32
    %c0_i32_2 = arith.constant 0 : i32
    return %c0_i32, %c0_i32_0, %c0_i32_1 : i32, i32, i32
  }
  func.func @transform_6(%arg0: i32) -> (i32, i32) {
    %c0_i32 = arith.constant 0 : i32
    %c0_i32_0 = arith.constant 0 : i32
    %c0_i32_1 = arith.constant 0 : i32
    return %c0_i32, %c0_i32_0 : i32, i32
  }
  func.func @transform_7(%arg0: i32) -> (i32, i32, i32) {
    %c0_i32 = arith.constant 0 : i32
    %c0_i32_0 = arith.constant 0 : i32
    %c0_i32_1 = arith.constant 0 : i32
    %c0_i32_2 = arith.constant 0 : i32
    return %c0_i32, %c0_i32_0, %c0_i32_1 : i32, i32, i32
  }
  func.func @transform_8(%arg0: i32) -> (i32, i32) {
    %c0_i32 = arith.constant 0 : i32
    %c0_i32_0 = arith.constant 0 : i32
    %c0_i32_1 = arith.constant 0 : i32
    return %c0_i32, %c0_i32_0 : i32, i32
  }
  func.func @transform_9(%arg0: i32) -> (i32, i32) {
    %c0_i32 = arith.constant 0 : i32
    %c0_i32_0 = arith.constant 0 : i32
    %c0_i32_1 = arith.constant 0 : i32
    return %c0_i32, %c0_i32_0 : i32, i32
  }
  func.func @transform_10(%arg0: i32) -> (i32, i32) {
    %c0_i32 = arith.constant 0 : i32
    %c0_i32_0 = arith.constant 0 : i32
    %c0_i32_1 = arith.constant 0 : i32
    return %c0_i32, %c0_i32_0 : i32, i32
  }
  func.func @transform_11(%arg0: i32) -> (i32, i32) {
    %c0_i32 = arith.constant 0 : i32
    %c0_i32_0 = arith.constant 0 : i32
    %c0_i32_1 = arith.constant 0 : i32
    return %c0_i32, %c0_i32_0 : i32, i32
  }
  func.func @transform_12(%arg0: i32) -> (i32, i32) {
    %c0_i32 = arith.constant 0 : i32
    %c0_i32_0 = arith.constant 0 : i32
    %c0_i32_1 = arith.constant 0 : i32
    return %c0_i32, %c0_i32_0 : i32, i32
  }
  func.func @transform_13(%arg0: i32) -> (i32, i32) {
    %c0_i32 = arith.constant 0 : i32
    %c0_i32_0 = arith.constant 0 : i32
    return %arg0, %c0_i32 : i32, i32
  }
}

</mosaic_0001>

<llo_original>
// kernel: image_classifier_forward.1
$region0: #{image_classifier_forward.1}
  #allocation0 [shape = 'u32[]', space=smem, size = 0x4, offset = 0x4, fixed_abs, tag = 'smem constant byte address 0x4 - core index']
  #allocation1 [shape = 'u32[144,128]{1,0:T(1,128)}', space=vmem, size = 0x12000, scoped, tag = 'internal scratch']
  #allocation2 [shape = 'f32[2,10,10,32]{3,2,1,0:T(8,128)}', space=vmem, size = 0x28000, scoped, tag = 'scratch operand']
  #allocation3 [shape = 'f32[2,6,6,64]{3,2,1,0:T(8,128)}', space=vmem, size = 0xc000, scoped, tag = 'scratch operand']
  #allocation4 [shape = 'f32[2,4,4,128]{3,2,1,0:T(4,128)}', space=vmem, size = 0x4000, scoped, tag = 'scratch operand']
  %s0 = inlined_call_operand.hbm [shape: bf16[2,256,27], index: 0, kind: input, shape index: {}]
  %s1 = inlined_call_operand.hbm [shape: bf16[27,32], index: 1, kind: input, shape index: {}]
  %s2 = inlined_call_operand.hbm [shape: f32[2,32], index: 2, kind: input, shape index: {}]
  %s3 = inlined_call_operand.hbm [shape: bf16[3,96,64], index: 3, kind: input, shape index: {}]
  %s4 = inlined_call_operand.hbm [shape: f32[2,64], index: 4, kind: input, shape index: {}]
  %s5 = inlined_call_operand.hbm [shape: bf16[3,192,128], index: 5, kind: input, shape index: {}]
  %s6 = inlined_call_operand.hbm [shape: f32[2,128], index: 6, kind: input, shape index: {}]
  %s7 = inlined_call_operand.hbm [shape: bf16[3,384,256], index: 7, kind: input, shape index: {}]
  %s8 = inlined_call_operand.hbm [shape: f32[2,256], index: 8, kind: input, shape index: {}]
  %s9 = inlined_call_operand.hbm [shape: bf16[256,512], index: 9, kind: input, shape index: {}]
  %s10 = inlined_call_operand.hbm [shape: f32[2,512], index: 10, kind: input, shape index: {}]
  %s11 = inlined_call_operand.hbm [shape: bf16[512,10], index: 11, kind: input, shape index: {}]
  %s12 = inlined_call_operand.hbm [shape: f32[1,10], index: 12, kind: input, shape index: {}]
  %s13 = inlined_call_operand.hbm [shape: f32[2,10], index: 13, kind: output, shape index: {}]
  %s14 = sld [smem:[#allocation0]]
  $region114: #{image_classifier_forward.1} parent=0
    _
  %s16 = ssub.s32 1, %s14
  %s17 = scalar_select 0, %s16, %s14
  $region1: #{image_classifier_forward.1} parent=0
    #allocation5 [shape = 'u8[131072]{0}', space=vmem, size = 0x20000, scoped, tag = 'input window, operand 0, single buffered']
    #allocation6 [shape = 's32[1]{0}', space=sflag, size = 0x4, scoped, tag = 'scoped memory for image_classifier_forward.1']
    #allocation7 [shape = 's32[1]{0}', space=sflag, size = 0x4, scoped, tag = 'scoped memory for image_classifier_forward.1']
    #allocation8 [shape = 'u8[8192]{0}', space=vmem, size = 0x2000, scoped, tag = 'input window, operand 1, single buffered']
    #allocation9 [shape = 's32[1]{0}', space=sflag, size = 0x4, scoped, tag = 'scoped memory for image_classifier_forward.1']
    #allocation10 [shape = 'u8[1024]{0}', space=vmem, size = 0x400, scoped, tag = 'input window, operand 2, single buffered']
    #allocation11 [shape = 'u8[73728]{0}', space=vmem, size = 0x12000, scoped, tag = 'input window, operand 3, single buffered']
    #allocation12 [shape = 's32[1]{0}', space=sflag, size = 0x4, scoped, tag = 'scoped memory for image_classifier_forward.1']
    #allocation13 [shape = 'u8[1024]{0}', space=vmem, size = 0x400, scoped, tag = 'input window, operand 4, single buffered']
    #allocation14 [shape = 'u8[147456]{0}', space=vmem, size = 0x24000, scoped, tag = 'input window, operand 5, single buffered']
    #allocation15 [shape = 's32[1]{0}', space=sflag, size = 0x4, scoped, tag = 'scoped memory for image_classifier_forward.1']
    #allocation16 [shape = 'u8[1024]{0}', space=vmem, size = 0x400, scoped, tag = 'input window, operand 6, single buffered']
    #allocation17 [shape = 'u8[589824]{0}', space=vmem, size = 0x90000, scoped, tag = 'input window, operand 7, single buffered']
    #allocation18 [shape = 's32[1]{0}', space=sflag, size = 0x4, scoped, tag = 'scoped memory for image_classifier_forward.1']
    #allocation19 [shape = 'u8[2048]{0}', space=vmem, size = 0x800, scoped, tag = 'input window, operand 8, single buffered']
    #allocation20 [shape = 'u8[262144]{0}', space=vmem, size = 0x40000, scoped, tag = 'input window, operand 9, single buffered']
    #allocation21 [shape = 's32[1]{0}', space=sflag, size = 0x4, scoped, tag = 'scoped memory for image_classifier_forward.1']
    #allocation22 [shape = 'u8[4096]{0}', space=vmem, size = 0x1000, scoped, tag = 'input window, operand 10, single buffered']
    #allocation23 [shape = 'u8[131072]{0}', space=vmem, size = 0x20000, scoped, tag = 'input window, operand 11, single buffered']
    #allocation24 [shape = 's32[1]{0}', space=sflag, size = 0x4, scoped, tag = 'scoped memory for image_classifier_forward.1']
    #allocation25 [shape = 'u8[512]{0}', space=vmem, size = 0x400, scoped, tag = 'input window, operand 12, single buffered']
    #allocation26 [shape = 'u8[1024]{0}', space=vmem, size = 0x400, scoped, tag = 'output window, operand 0, single buffered']
    %18 = vsyncpa [#allocation6], 0
    %19 = vsyncpa [#allocation9], 0
    %20 = vsyncpa [#allocation12], 0
    %21 = vsyncpa [#allocation15], 0
    %22 = vsyncpa [#allocation18], 0
    %23 = vsyncpa [#allocation21], 0
    %24 = vsyncpa [#allocation24], 0
    %25 = vsyncpa [#allocation7], 0
    // Predicated region
    $region2: #{image_classifier_forward.1} parent=1 // pred_check
      _
    $region3: #{image_classifier_forward.1} parent=1 // pred_check_branch
      %27 = sbr.rel (0) target = $region5
    $region4: #{image_classifier_forward.1} parent=1 // pred_region
      %s29 = ssub.s32 4096, 4096
      %30 = vsyncadd [#allocation6], %s29
      %s31 = sshll.u32 [#allocation5], 4
      %s32 = int_to_ptr.vmem [resolvable:$true] %s31
      %37 = dma.hbm_to_vmem [thread:$0]  %s0, 4096, %s32, [#allocation6], 64, 64, 4
    $region5: #{image_classifier_forward.1} parent=1 // pred_fallthru
      _
    // Predicated region
    $region6: #{image_classifier_forward.1} parent=1 // pred_check
      _
    $region7: #{image_classifier_forward.1} parent=1 // pred_check_branch
      %39 = sbr.rel (0) target = $region9
    $region8: #{image_classifier_forward.1} parent=1 // pred_region
      %s41 = ssub.s32 256, 256
      %42 = vsyncadd [#allocation9], %s41
      %s43 = sshll.u32 [#allocation8], 4
      %s44 = int_to_ptr.vmem [resolvable:$true] %s43
      %49 = dma.hbm_to_vmem [thread:$0]  %s1, 256, %s44, [#allocation9], 64, 64, 4
    $region9: #{image_classifier_forward.1} parent=1 // pred_fallthru
      _
    // Predicated region
    $region10: #{image_classifier_forward.1} parent=1 // pred_check
      _
    $region11: #{image_classifier_forward.1} parent=1 // pred_check_branch
      %51 = sbr.rel (0) target = $region13
    $region12: #{image_classifier_forward.1} parent=1 // pred_region
      %s53 = ssub.s32 32, 32
      %54 = vsyncadd [#allocation9], %s53
      %s56 = sshll.u32 [#allocation10], 4
      %s57 = int_to_ptr.vmem [resolvable:$true] %s56
      %59 = dma.hbm_to_vmem [thread:$0]  %s2, 32, %s57, [#allocation9]
    $region13: #{image_classifier_forward.1} parent=1 // pred_fallthru
      _
    // Predicated region
    $region14: #{image_classifier_forward.1} parent=1 // pred_check
      _
    $region15: #{image_classifier_forward.1} parent=1 // pred_check_branch
      %61 = sbr.rel (0) target = $region17
    $region16: #{image_classifier_forward.1} parent=1 // pred_region
      %s63 = ssub.s32 2304, 2304
      %64 = vsyncadd [#allocation12], %s63
      %s65 = sshll.u32 [#allocation11], 4
      %s66 = int_to_ptr.vmem [resolvable:$true] %s65
      %71 = dma.hbm_to_vmem [thread:$0]  %s3, 2304, %s66, [#allocation12], 64, 64, 4
    $region17: #{image_classifier_forward.1} parent=1 // pred_fallthru
      _
    // Predicated region
    $region18: #{image_classifier_forward.1} parent=1 // pred_check
      _
    $region19: #{image_classifier_forward.1} parent=1 // pred_check_branch
      %73 = sbr.rel (0) target = $region21
    $region20: #{image_classifier_forward.1} parent=1 // pred_region
      %s75 = ssub.s32 32, 32
      %76 = vsyncadd [#allocation12], %s75
      %s78 = sshll.u32 [#allocation13], 4
      %s79 = int_to_ptr.vmem [resolvable:$true] %s78
      %81 = dma.hbm_to_vmem [thread:$0]  %s4, 32, %s79, [#allocation12]
    $region21: #{image_classifier_forward.1} parent=1 // pred_fallthru
      _
    // Predicated region
    $region22: #{image_classifier_forward.1} parent=1 // pred_check
      _
    $region23: #{image_classifier_forward.1} parent=1 // pred_check_branch
      %83 = sbr.rel (0) target = $region25
    $region24: #{image_classifier_forward.1} parent=1 // pred_region
      %s85 = ssub.s32 4608, 4608
      %86 = vsyncadd [#allocation15], %s85
      %s87 = sshll.u32 [#allocation14], 4
      %s88 = int_to_ptr.vmem [resolvable:$true] %s87
      %93 = dma.hbm_to_vmem [thread:$0]  %s5, 4608, %s88, [#allocation15], 64, 64, 4
    $region25: #{image_classifier_forward.1} parent=1 // pred_fallthru
      _
    // Predicated region
    $region26: #{image_classifier_forward.1} parent=1 // pred_check
      _
    $region27: #{image_classifier_forward.1} parent=1 // pred_check_branch
      %95 = sbr.rel (0) target = $region29
    $region28: #{image_classifier_forward.1} parent=1 // pred_region
      %s97 = ssub.s32 32, 32
      %98 = vsyncadd [#allocation15], %s97
      %s100 = sshll.u32 [#allocation16], 4
      %s101 = int_to_ptr.vmem [resolvable:$true] %s100
      %103 = dma.hbm_to_vmem [thread:$0]  %s6, 32, %s101, [#allocation15]
    $region29: #{image_classifier_forward.1} parent=1 // pred_fallthru
      _
    // Predicated region
    $region30: #{image_classifier_forward.1} parent=1 // pred_check
      _
    $region31: #{image_classifier_forward.1} parent=1 // pred_check_branch
      %105 = sbr.rel (0) target = $region33
    $region32: #{image_classifier_forward.1} parent=1 // pred_region
      %s107 = ssub.s32 18432, 18432
      %108 = vsyncadd [#allocation18], %s107
      %s109 = sshll.u32 [#allocation17], 4
      %s110 = int_to_ptr.vmem [resolvable:$true] %s109
      %115 = dma.hbm_to_vmem [thread:$0]  %s7, 18432, %s110, [#allocation18], 128, 128, 8
    $region33: #{image_classifier_forward.1} parent=1 // pred_fallthru
      _
    // Predicated region
    $region34: #{image_classifier_forward.1} parent=1 // pred_check
      _
    $region35: #{image_classifier_forward.1} parent=1 // pred_check_branch
      %117 = sbr.rel (0) target = $region37
    $region36: #{image_classifier_forward.1} parent=1 // pred_region
      %s119 = ssub.s32 64, 64
      %120 = vsyncadd [#allocation18], %s119
      %s122 = sshll.u32 [#allocation19], 4
      %s123 = int_to_ptr.vmem [resolvable:$true] %s122
      %125 = dma.hbm_to_vmem [thread:$0]  %s8, 64, %s123, [#allocation18]
    $region37: #{image_classifier_forward.1} parent=1 // pred_fallthru
      _
    // Predicated region
    $region38: #{image_classifier_forward.1} parent=1 // pred_check
      _
    $region39: #{image_classifier_forward.1} parent=1 // pred_check_branch
      %127 = sbr.rel (0) target = $region41
    $region40: #{image_classifier_forward.1} parent=1 // pred_region
      %s129 = ssub.s32 8192, 8192
      %130 = vsyncadd [#allocation21], %s129
      %s131 = sshll.u32 [#allocation20], 4
      %s132 = int_to_ptr.vmem [resolvable:$true] %s131
      %137 = dma.hbm_to_vmem [thread:$0]  %s9, 8192, %s132, [#allocation21], 256, 256, 16
    $region41: #{image_classifier_forward.1} parent=1 // pred_fallthru
      _
    // Predicated region
    $region42: #{image_classifier_forward.1} parent=1 // pred_check
      _
    $region43: #{image_classifier_forward.1} parent=1 // pred_check_branch
      %139 = sbr.rel (0) target = $region45
    $region44: #{image_classifier_forward.1} parent=1 // pred_region
      %s141 = ssub.s32 128, 128
      %142 = vsyncadd [#allocation21], %s141
      %s144 = sshll.u32 [#allocation22], 4
      %s145 = int_to_ptr.vmem [resolvable:$true] %s144
      %147 = dma.hbm_to_vmem [thread:$0]  %s10, 128, %s145, [#allocation21]
    $region45: #{image_classifier_forward.1} parent=1 // pred_fallthru
      _
    // Predicated region
    $region46: #{image_classifier_forward.1} parent=1 // pred_check
      _
    $region47: #{image_classifier_forward.1} parent=1 // pred_check_branch
      %149 = sbr.rel (0) target = $region49
    $region48: #{image_classifier_forward.1} parent=1 // pred_region
      %s151 = ssub.s32 4096, 4096
      %152 = vsyncadd [#allocation24], %s151
      %s153 = sshll.u32 [#allocation23], 4
      %s154 = int_to_ptr.vmem [resolvable:$true] %s153
      %159 = dma.hbm_to_vmem [thread:$0]  %s11, 4096, %s154, [#allocation24], 64, 64, 4
    $region49: #{image_classifier_forward.1} parent=1 // pred_fallthru
      _
    // Predicated region
    $region50: #{image_classifier_forward.1} parent=1 // pred_check
      _
    $region51: #{image_classifier_forward.1} parent=1 // pred_check_branch
      %161 = sbr.rel (0) target = $region53
    $region52: #{image_classifier_forward.1} parent=1 // pred_region
      %s163 = ssub.s32 16, 16
      %164 = vsyncadd [#allocation24], %s163
      %s166 = sshll.u32 [#allocation25], 4
      %s167 = int_to_ptr.vmem [resolvable:$true] %s166
      %169 = dma.hbm_to_vmem [thread:$0]  %s12, 16, %s167, [#allocation24]
    $region53: #{image_classifier_forward.1} parent=1 // pred_fallthru
      _
    // Predicated region
    $region54: #{image_classifier_forward.1} parent=1 // pred_check
      _
    $region55: #{image_classifier_forward.1} parent=1 // pred_check_branch
      %171 = sbr.rel (0) target = $region57
    $region56: #{image_classifier_forward.1} parent=1 // pred_region
      %172 = dma.done [#allocation6], 4096
    $region57: #{image_classifier_forward.1} parent=1 // pred_fallthru
      _
    // Predicated region
    $region58: #{image_classifier_forward.1} parent=1 // pred_check
      _
    $region59: #{image_classifier_forward.1} parent=1 // pred_check_branch
      %174 = sbr.rel (0) target = $region61
    $region60: #{image_classifier_forward.1} parent=1 // pred_region
      %175 = dma.done [#allocation9], 256
    $region61: #{image_classifier_forward.1} parent=1 // pred_fallthru
      _
    // Predicated region
    $region62: #{image_classifier_forward.1} parent=1 // pred_check
      _
    $region63: #{image_classifier_forward.1} parent=1 // pred_check_branch
      %177 = sbr.rel (0) target = $region65
    $region64: #{image_classifier_forward.1} parent=1 // pred_region
      %178 = dma.done [#allocation9], 32
    $region65: #{image_classifier_forward.1} parent=1 // pred_fallthru
      _
    // Predicated region
    $region66: #{image_classifier_forward.1} parent=1 // pred_check
      _
    $region67: #{image_classifier_forward.1} parent=1 // pred_check_branch
      %180 = sbr.rel (0) target = $region69
    $region68: #{image_classifier_forward.1} parent=1 // pred_region
      %181 = dma.done [#allocation12], 2304
    $region69: #{image_classifier_forward.1} parent=1 // pred_fallthru
      _
    // Predicated region
    $region70: #{image_classifier_forward.1} parent=1 // pred_check
      _
    $region71: #{image_classifier_forward.1} parent=1 // pred_check_branch
      %183 = sbr.rel (0) target = $region73
    $region72: #{image_classifier_forward.1} parent=1 // pred_region
      %184 = dma.done [#allocation12], 32
    $region73: #{image_classifier_forward.1} parent=1 // pred_fallthru
      _
    // Predicated region
    $region74: #{image_classifier_forward.1} parent=1 // pred_check
      _
    $region75: #{image_classifier_forward.1} parent=1 // pred_check_branch
      %186 = sbr.rel (0) target = $region77
    $region76: #{image_classifier_forward.1} parent=1 // pred_region
      %187 = dma.done [#allocation15], 4608
    $region77: #{image_classifier_forward.1} parent=1 // pred_fallthru
      _
    // Predicated region
    $region78: #{image_classifier_forward.1} parent=1 // pred_check
      _
    $region79: #{image_classifier_forward.1} parent=1 // pred_check_branch
      %189 = sbr.rel (0) target = $region81
    $region80: #{image_classifier_forward.1} parent=1 // pred_region
      %190 = dma.done [#allocation15], 32
    $region81: #{image_classifier_forward.1} parent=1 // pred_fallthru
      _
    // Predicated region
    $region82: #{image_classifier_forward.1} parent=1 // pred_check
      _
    $region83: #{image_classifier_forward.1} parent=1 // pred_check_branch
      %192 = sbr.rel (0) target = $region85
    $region84: #{image_classifier_forward.1} parent=1 // pred_region
      %193 = dma.done [#allocation18], 18432
    $region85: #{image_classifier_forward.1} parent=1 // pred_fallthru
      _
    // Predicated region
    $region86: #{image_classifier_forward.1} parent=1 // pred_check
      _
    $region87: #{image_classifier_forward.1} parent=1 // pred_check_branch
      %195 = sbr.rel (0) target = $region89
    $region88: #{image_classifier_forward.1} parent=1 // pred_region
      %196 = dma.done [#allocation18], 64
    $region89: #{image_classifier_forward.1} parent=1 // pred_fallthru
      _
    // Predicated region
    $region90: #{image_classifier_forward.1} parent=1 // pred_check
      _
    $region91: #{image_classifier_forward.1} parent=1 // pred_check_branch
      %198 = sbr.rel (0) target = $region93
    $region92: #{image_classifier_forward.1} parent=1 // pred_region
      %199 = dma.done [#allocation21], 8192
    $region93: #{image_classifier_forward.1} parent=1 // pred_fallthru
      _
    // Predicated region
    $region94: #{image_classifier_forward.1} parent=1 // pred_check
      _
    $region95: #{image_classifier_forward.1} parent=1 // pred_check_branch
      %201 = sbr.rel (0) target = $region97
    $region96: #{image_classifier_forward.1} parent=1 // pred_region
      %202 = dma.done [#allocation21], 128
    $region97: #{image_classifier_forward.1} parent=1 // pred_fallthru
      _
    // Predicated region
    $region98: #{image_classifier_forward.1} parent=1 // pred_check
      _
    $region99: #{image_classifier_forward.1} parent=1 // pred_check_branch
      %204 = sbr.rel (0) target = $region101
    $region100: #{image_classifier_forward.1} parent=1 // pred_region
      %205 = dma.done [#allocation24], 4096
    $region101: #{image_classifier_forward.1} parent=1 // pred_fallthru
      _
    // Predicated region
    $region102: #{image_classifier_forward.1} parent=1 // pred_check
      _
    $region103: #{image_classifier_forward.1} parent=1 // pred_check_branch
      %207 = sbr.rel (0) target = $region105
    $region104: #{image_classifier_forward.1} parent=1 // pred_region
      %208 = dma.done [#allocation24], 16
    $region105: #{image_classifier_forward.1} parent=1 // pred_fallthru
      _
    %vm210 = vcmask 261120
    %211 = vst.msk [vmem:[#allocation2] sm:$0xff] %vm210, 0.0
    %vm212 = vcmask 254976
    %213 = vst.msk [vmem:[#allocation2 + $0x8] sm:$0x3] %vm212, 0.0
    %214 = vst.msk [vmem:[#allocation2 + $0xa0] sm:$0xff] %vm210, 0.0
    %215 = vst.msk [vmem:[#allocation2 + $0xa8] sm:$0x3] %vm212, 0.0
    %s216 = scalar_lea.vmem [#allocation2], 144
    %217 = vst.msk [vmem:[%s216] sm:$0xff] %vm210, 0.0
    %218 = vst.msk [vmem:[%s216 + $0x8] sm:$0x3] %vm212, 0.0
    %219 = vst.msk [vmem:[%s216 + $0xa0] sm:$0xff] %vm210, 0.0
    %220 = vst.msk [vmem:[%s216 + $0xa8] sm:$0x3] %vm212, 0.0
    %vm221 = vcmask 253952
    %222 = vst.msk [vmem:[#allocation2] sm:$0x1] %vm221, 0.0
    %223 = vst.msk [vmem:[#allocation2 + $0x10] sm:$0x1] %vm221, 0.0
    %224 = vst.msk [vmem:[#allocation2 + $0x20] sm:$0x1] %vm221, 0.0
    %225 = vst.msk [vmem:[#allocation2 + $0x30] sm:$0x1] %vm221, 0.0
    %226 = vst.msk [vmem:[#allocation2 + $0x40] sm:$0x1] %vm221, 0.0
    %227 = vst.msk [vmem:[#allocation2 + $0x50] sm:$0x1] %vm221, 0.0
    %228 = vst.msk [vmem:[#allocation2 + $0x60] sm:$0x1] %vm221, 0.0
    %229 = vst.msk [vmem:[#allocation2 + $0x70] sm:$0x1] %vm221, 0.0
    %230 = vst.msk [vmem:[#allocation2 + $0x80] sm:$0x1] %vm221, 0.0
    %231 = vst.msk [vmem:[#allocation2 + $0x90] sm:$0x1] %vm221, 0.0
    %232 = vst.msk [vmem:[#allocation2 + $0xa0] sm:$0x1] %vm221, 0.0
    %233 = vst.msk [vmem:[#allocation2 + $0xb0] sm:$0x1] %vm221, 0.0
    %234 = vst.msk [vmem:[#allocation2 + $0xc0] sm:$0x1] %vm221, 0.0
    %235 = vst.msk [vmem:[#allocation2 + $0xd0] sm:$0x1] %vm221, 0.0
    %236 = vst.msk [vmem:[#allocation2 + $0xe0] sm:$0x1] %vm221, 0.0
    %237 = vst.msk [vmem:[#allocation2 + $0xf0] sm:$0x1] %vm221, 0.0
    %238 = vst.msk [vmem:[#allocation2 + $0x100] sm:$0x1] %vm221, 0.0
    %239 = vst.msk [vmem:[#allocation2 + $0x110] sm:$0x1] %vm221, 0.0
    %240 = vst.msk [vmem:[#allocation2 + $0x120] sm:$0x1] %vm221, 0.0
    %241 = vst.msk [vmem:[#allocation2 + $0x130] sm:$0x1] %vm221, 0.0
    %242 = vst.msk [vmem:[#allocation2 + $0x9] sm:$0x1] %vm221, 0.0
    %243 = vst.msk [vmem:[#allocation2 + $0x19] sm:$0x1] %vm221, 0.0
    %244 = vst.msk [vmem:[#allocation2 + $0x29] sm:$0x1] %vm221, 0.0
    %245 = vst.msk [vmem:[#allocation2 + $0x39] sm:$0x1] %vm221, 0.0
    %246 = vst.msk [vmem:[#allocation2 + $0x49] sm:$0x1] %vm221, 0.0
    %247 = vst.msk [vmem:[#allocation2 + $0x59] sm:$0x1] %vm221, 0.0
    %248 = vst.msk [vmem:[#allocation2 + $0x69] sm:$0x1] %vm221, 0.0
    %249 = vst.msk [vmem:[#allocation2 + $0x79] sm:$0x1] %vm221, 0.0
    %250 = vst.msk [vmem:[#allocation2 + $0x89] sm:$0x1] %vm221, 0.0
    %251 = vst.msk [vmem:[#allocation2 + $0x99] sm:$0x1] %vm221, 0.0
    %252 = vst.msk [vmem:[#allocation2 + $0xa9] sm:$0x1] %vm221, 0.0
    %253 = vst.msk [vmem:[#allocation2 + $0xb9] sm:$0x1] %vm221, 0.0
    %254 = vst.msk [vmem:[#allocation2 + $0xc9] sm:$0x1] %vm221, 0.0
    %255 = vst.msk [vmem:[#allocation2 + $0xd9] sm:$0x1] %vm221, 0.0
    %256 = vst.msk [vmem:[#allocation2 + $0xe9] sm:$0x1] %vm221, 0.0
    %257 = vst.msk [vmem:[#allocation2 + $0xf9] sm:$0x1] %vm221, 0.0
    %258 = vst.msk [vmem:[#allocation2 + $0x109] sm:$0x1] %vm221, 0.0
    %259 = vst.msk [vmem:[#allocation2 + $0x119] sm:$0x1] %vm221, 0.0
    %260 = vst.msk [vmem:[#allocation2 + $0x129] sm:$0x1] %vm221, 0.0
    %261 = vst.msk [vmem:[#allocation2 + $0x139] sm:$0x1] %vm221, 0.0
    %vm262 = vcmask 521216
    %263 = vst.msk [vmem:[#allocation3] sm:$0x3f] %vm262, 0.0
    %264 = vst.msk [vmem:[#allocation3 + $0x30] sm:$0x3f] %vm262, 0.0
    %s265 = scalar_lea.vmem [#allocation3], 40
    %266 = vst.msk [vmem:[%s265] sm:$0x3f] %vm262, 0.0
    %267 = vst.msk [vmem:[%s265 + $0x30] sm:$0x3f] %vm262, 0.0
    %vm268 = vcmask 516096
    %269 = vst.msk [vmem:[#allocation3] sm:$0x1] %vm268, 0.0
    %270 = vst.msk [vmem:[#allocation3 + $0x8] sm:$0x1] %vm268, 0.0
    %271 = vst.msk [vmem:[#allocation3 + $0x10] sm:$0x1] %vm268, 0.0
    %272 = vst.msk [vmem:[#allocation3 + $0x18] sm:$0x1] %vm268, 0.0
    %273 = vst.msk [vmem:[#allocation3 + $0x20] sm:$0x1] %vm268, 0.0
    %274 = vst.msk [vmem:[#allocation3 + $0x28] sm:$0x1] %vm268, 0.0
    %275 = vst.msk [vmem:[#allocation3 + $0x30] sm:$0x1] %vm268, 0.0
    %276 = vst.msk [vmem:[#allocation3 + $0x38] sm:$0x1] %vm268, 0.0
    %277 = vst.msk [vmem:[#allocation3 + $0x40] sm:$0x1] %vm268, 0.0
    %278 = vst.msk [vmem:[#allocation3 + $0x48] sm:$0x1] %vm268, 0.0
    %279 = vst.msk [vmem:[#allocation3 + $0x50] sm:$0x1] %vm268, 0.0
    %280 = vst.msk [vmem:[#allocation3 + $0x58] sm:$0x1] %vm268, 0.0
    %281 = vst.msk [vmem:[#allocation3 + $0x5] sm:$0x1] %vm268, 0.0
    %282 = vst.msk [vmem:[#allocation3 + $0xd] sm:$0x1] %vm268, 0.0
    %283 = vst.msk [vmem:[#allocation3 + $0x15] sm:$0x1] %vm268, 0.0
    %284 = vst.msk [vmem:[#allocation3 + $0x1d] sm:$0x1] %vm268, 0.0
    %285 = vst.msk [vmem:[#allocation3 + $0x25] sm:$0x1] %vm268, 0.0
    %286 = vst.msk [vmem:[#allocation3 + $0x2d] sm:$0x1] %vm268, 0.0
    %287 = vst.msk [vmem:[#allocation3 + $0x35] sm:$0x1] %vm268, 0.0
    %288 = vst.msk [vmem:[#allocation3 + $0x3d] sm:$0x1] %vm268, 0.0
    %289 = vst.msk [vmem:[#allocation3 + $0x45] sm:$0x1] %vm268, 0.0
    %290 = vst.msk [vmem:[#allocation3 + $0x4d] sm:$0x1] %vm268, 0.0
    %291 = vst.msk [vmem:[#allocation3 + $0x55] sm:$0x1] %vm268, 0.0
    %292 = vst.msk [vmem:[#allocation3 + $0x5d] sm:$0x1] %vm268, 0.0
    %293 = vst [vmem:[#allocation4] sm:$0xf] 0.0
    %294 = vst [vmem:[#allocation4 + $0x10] sm:$0xf] 0.0
    %s295 = scalar_lea.vmem [#allocation4], 12
    %296 = vst [vmem:[%s295] sm:$0xf] 0.0
    %297 = vst [vmem:[%s295 + $0x10] sm:$0xf] 0.0
    %298 = vst [vmem:[#allocation4] sm:$0x1] 0.0
    %299 = vst [vmem:[#allocation4 + $0x4] sm:$0x1] 0.0
    %300 = vst [vmem:[#allocation4 + $0x8] sm:$0x1] 0.0
    %301 = vst [vmem:[#allocation4 + $0xc] sm:$0x1] 0.0
    %302 = vst [vmem:[#allocation4 + $0x10] sm:$0x1] 0.0
    %303 = vst [vmem:[#allocation4 + $0x14] sm:$0x1] 0.0
    %304 = vst [vmem:[#allocation4 + $0x18] sm:$0x1] 0.0
    %305 = vst [vmem:[#allocation4 + $0x1c] sm:$0x1] 0.0
    %306 = vst [vmem:[#allocation4 + $0x3] sm:$0x1] 0.0
    %307 = vst [vmem:[#allocation4 + $0x7] sm:$0x1] 0.0
    %308 = vst [vmem:[#allocation4 + $0xb] sm:$0x1] 0.0
    %309 = vst [vmem:[#allocation4 + $0xf] sm:$0x1] 0.0
    %310 = vst [vmem:[#allocation4 + $0x13] sm:$0x1] 0.0
    %311 = vst [vmem:[#allocation4 + $0x17] sm:$0x1] 0.0
    %312 = vst [vmem:[#allocation4 + $0x1b] sm:$0x1] 0.0
    %313 = vst [vmem:[#allocation4 + $0x1f] sm:$0x1] 0.0
    %v314 = vld [vmem:[#allocation5] sm:$0xf]
    %v315 = vld [vmem:[#allocation5 + $0x4] sm:$0xf]
    %v316 = vld [vmem:[#allocation5 + $0x8] sm:$0xf]
    %v317 = vld [vmem:[#allocation5 + $0xc] sm:$0xf]
    %v318 = vld [vmem:[#allocation5 + $0x10] sm:$0xf]
    %v319 = vld [vmem:[#allocation5 + $0x14] sm:$0xf]
    %v320 = vld [vmem:[#allocation5 + $0x18] sm:$0xf]
    %v321 = vld [vmem:[#allocation5 + $0x1c] sm:$0xf]
    %v322 = vld [vmem:[#allocation5 + $0x20] sm:$0xf]
    %v323 = vld [vmem:[#allocation5 + $0x24] sm:$0xf]
    %v324 = vld [vmem:[#allocation5 + $0x28] sm:$0xf]
    %v325 = vld [vmem:[#allocation5 + $0x2c] sm:$0xf]
    %v326 = vld [vmem:[#allocation5 + $0x30] sm:$0xf]
    %v327 = vld [vmem:[#allocation5 + $0x34] sm:$0xf]
    %v328 = vld [vmem:[#allocation5 + $0x38] sm:$0xf]
    %v329 = vld [vmem:[#allocation5 + $0x3c] sm:$0xf]
    %v330 = vld [vmem:[#allocation5 + $0x40] sm:$0xf]
    %v331 = vld [vmem:[#allocation5 + $0x44] sm:$0xf]
    %v332 = vld [vmem:[#allocation5 + $0x48] sm:$0xf]
    %v333 = vld [vmem:[#allocation5 + $0x4c] sm:$0xf]
    %v334 = vld [vmem:[#allocation5 + $0x50] sm:$0xf]
    %v335 = vld [vmem:[#allocation5 + $0x54] sm:$0xf]
    %v336 = vld [vmem:[#allocation5 + $0x58] sm:$0xf]
    %v337 = vld [vmem:[#allocation5 + $0x5c] sm:$0xf]
    %v338 = vld [vmem:[#allocation5 + $0x60] sm:$0xf]
    %v339 = vld [vmem:[#allocation5 + $0x64] sm:$0xf]
    %v340 = vld [vmem:[#allocation5 + $0x68] sm:$0xf]
    %v341 = vld [vmem:[#allocation5 + $0x6c] sm:$0xf]
    %v342 = vld [vmem:[#allocation5 + $0x70] sm:$0xf]
    %v343 = vld [vmem:[#allocation5 + $0x74] sm:$0xf]
    %v344 = vld [vmem:[#allocation5 + $0x78] sm:$0xf]
    %v345 = vld [vmem:[#allocation5 + $0x7c] sm:$0xf]
    %v346 = vld [vmem:[#allocation5 + $0x80] sm:$0xf]
    %v347 = vld [vmem:[#allocation5 + $0x84] sm:$0xf]
    %v348 = vld [vmem:[#allocation5 + $0x88] sm:$0xf]
    %v349 = vld [vmem:[#allocation5 + $0x8c] sm:$0xf]
    %v350 = vld [vmem:[#allocation5 + $0x90] sm:$0xf]
    %v351 = vld [vmem:[#allocation5 + $0x94] sm:$0xf]
    %v352 = vld [vmem:[#allocation5 + $0x98] sm:$0xf]
    %v353 = vld [vmem:[#allocation5 + $0x9c] sm:$0xf]
    %v354 = vld [vmem:[#allocation5 + $0xa0] sm:$0xf]
    %v355 = vld [vmem:[#allocation5 + $0xa4] sm:$0xf]
    %v356 = vld [vmem:[#allocation5 + $0xa8] sm:$0xf]
    %v357 = vld [vmem:[#allocation5 + $0xac] sm:$0xf]
    %v358 = vld [vmem:[#allocation5 + $0xb0] sm:$0xf]
    %v359 = vld [vmem:[#allocation5 + $0xb4] sm:$0xf]
    %v360 = vld [vmem:[#allocation5 + $0xb8] sm:$0xf]
    %v361 = vld [vmem:[#allocation5 + $0xbc] sm:$0xf]
    %v362 = vld [vmem:[#allocation5 + $0xc0] sm:$0xf]
    %v363 = vld [vmem:[#allocation5 + $0xc4] sm:$0xf]
    %v364 = vld [vmem:[#allocation5 + $0xc8] sm:$0xf]
    %v365 = vld [vmem:[#allocation5 + $0xcc] sm:$0xf]
    %v366 = vld [vmem:[#allocation5 + $0xd0] sm:$0xf]
    %v367 = vld [vmem:[#allocation5 + $0xd4] sm:$0xf]
    %v368 = vld [vmem:[#allocation5 + $0xd8] sm:$0xf]
    %v369 = vld [vmem:[#allocation5 + $0xdc] sm:$0xf]
    %v370 = vld [vmem:[#allocation5 + $0xe0] sm:$0xf]
    %v371 = vld [vmem:[#allocation5 + $0xe4] sm:$0xf]
    %v372 = vld [vmem:[#allocation5 + $0xe8] sm:$0xf]
    %v373 = vld [vmem:[#allocation5 + $0xec] sm:$0xf]
    %v374 = vld [vmem:[#allocation5 + $0xf0] sm:$0xf]
    %v375 = vld [vmem:[#allocation5 + $0xf4] sm:$0xf]
    %v376 = vld [vmem:[#allocation5 + $0xf8] sm:$0xf]
    %v377 = vld [vmem:[#allocation5 + $0xfc] sm:$0xf]
    %v378 = vld [vmem:[#allocation8] sm:$0xf]
    %v379 = vld [vmem:[#allocation8 + $0x4] sm:$0xf]
    %v380 = vld [vmem:[#allocation8 + $0x8] sm:$0xf]
    %v381 = vld [vmem:[#allocation8 + $0xc] sm:$0x3]
    %v446 = vunpack.c.l.b16 %v314
    %v447 = vunpack.c.l.b16 %v315
    %v448 = vunpack.c.l.b16 %v316
    %v449 = vunpack.c.l.b16 %v317
    %v450 = vunpack.c.l.b16 %v318
    %v451 = vunpack.c.l.b16 %v319
    %v452 = vunpack.c.l.b16 %v320
    %v453 = vunpack.c.l.b16 %v321
    %v454 = vunpack.c.l.b16 %v322
    %v455 = vunpack.c.l.b16 %v323
    %v456 = vunpack.c.l.b16 %v324
    %v457 = vunpack.c.l.b16 %v325
    %v458 = vunpack.c.l.b16 %v326
    %v459 = vunpack.c.l.b16 %v327
    %v460 = vunpack.c.l.b16 %v328
    %v461 = vunpack.c.l.b16 %v329
    %v462 = vunpack.c.l.b16 %v330
    %v463 = vunpack.c.l.b16 %v331
    %v464 = vunpack.c.l.b16 %v332
    %v465 = vunpack.c.l.b16 %v333
    %v466 = vunpack.c.l.b16 %v334
    %v467 = vunpack.c.l.b16 %v335
    %v468 = vunpack.c.l.b16 %v336
    %v469 = vunpack.c.l.b16 %v337
    %v470 = vunpack.c.l.b16 %v338
    %v471 = vunpack.c.l.b16 %v339
    %v472 = vunpack.c.l.b16 %v340
    %v473 = vunpack.c.l.b16 %v341
    %v474 = vunpack.c.l.b16 %v342
    %v475 = vunpack.c.l.b16 %v343
    %v476 = vunpack.c.l.b16 %v344
    %v477 = vunpack.c.l.b16 %v345
    %v478 = vunpack.c.l.b16 %v346
    %v479 = vunpack.c.l.b16 %v347
    %v480 = vunpack.c.l.b16 %v348
    %v481 = vunpack.c.l.b16 %v349
    %v482 = vunpack.c.l.b16 %v350
    %v483 = vunpack.c.l.b16 %v351
    %v484 = vunpack.c.l.b16 %v352
    %v485 = vunpack.c.l.b16 %v353
    %v486 = vunpack.c.l.b16 %v354
    %v487 = vunpack.c.l.b16 %v355
    %v488 = vunpack.c.l.b16 %v356
    %v489 = vunpack.c.l.b16 %v357
    %v490 = vunpack.c.l.b16 %v358
    %v491 = vunpack.c.l.b16 %v359
    %v492 = vunpack.c.l.b16 %v360
    %v493 = vunpack.c.l.b16 %v361
    %v494 = vunpack.c.l.b16 %v362
    %v495 = vunpack.c.l.b16 %v363
    %v496 = vunpack.c.l.b16 %v364
    %v497 = vunpack.c.l.b16 %v365
    %v498 = vunpack.c.l.b16 %v366
    %v499 = vunpack.c.l.b16 %v367
    %v500 = vunpack.c.l.b16 %v368
    %v501 = vunpack.c.l.b16 %v369
    %v502 = vunpack.c.l.b16 %v370
    %v503 = vunpack.c.l.b16 %v371
    %v504 = vunpack.c.l.b16 %v372
    %v505 = vunpack.c.l.b16 %v373
    %v506 = vunpack.c.l.b16 %v374
    %v507 = vunpack.c.l.b16 %v375
    %v508 = vunpack.c.l.b16 %v376
    %v509 = vunpack.c.l.b16 %v377
    %v510 = vpack.c.b16 %v447, %v446
    %v511 = vpack.c.b16 %v449, %v448
    %v512 = vpack.c.b16 %v451, %v450
    %v513 = vpack.c.b16 %v453, %v452
    %v514 = vpack.c.b16 %v455, %v454
    %v515 = vpack.c.b16 %v457, %v456
    %v516 = vpack.c.b16 %v459, %v458
    %v517 = vpack.c.b16 %v461, %v460
    %v518 = vpack.c.b16 %v463, %v462
    %v519 = vpack.c.b16 %v465, %v464
    %v520 = vpack.c.b16 %v467, %v466
    %v521 = vpack.c.b16 %v469, %v468
    %v522 = vpack.c.b16 %v471, %v470
    %v523 = vpack.c.b16 %v473, %v472
    %v524 = vpack.c.b16 %v475, %v474
    %v525 = vpack.c.b16 %v477, %v476
    %v526 = vpack.c.b16 %v479, %v478
    %v527 = vpack.c.b16 %v481, %v480
    %v528 = vpack.c.b16 %v483, %v482
    %v529 = vpack.c.b16 %v485, %v484
    %v530 = vpack.c.b16 %v487, %v486
    %v531 = vpack.c.b16 %v489, %v488
    %v532 = vpack.c.b16 %v491, %v490
    %v533 = vpack.c.b16 %v493, %v492
    %v534 = vpack.c.b16 %v495, %v494
    %v535 = vpack.c.b16 %v497, %v496
    %v536 = vpack.c.b16 %v499, %v498
    %v537 = vpack.c.b16 %v501, %v500
    %v538 = vpack.c.b16 %v503, %v502
    %v539 = vpack.c.b16 %v505, %v504
    %v540 = vpack.c.b16 %v507, %v506
    %v541 = vpack.c.b16 %v509, %v508
    %v546 = vunpack.c.l.b16 %v378
    %v547 = vunpack.c.l.b16 %v379
    %v548 = vunpack.c.l.b16 %v380
    %v549 = vunpack.c.l.b16 %v381
    %v550 = vpack.c.b16 %v547, %v546
    %v551 = vpack.c.b16 %v549, %v548
    %vm553 = vcmask 220160
    %v555 = vsel %vm553, %v510, 0
    %v558 = vsel %vm553, %v511, 0
    %v561 = vsel %vm553, %v512, 0
    %v564 = vsel %vm553, %v513, 0
    %v567 = vsel %vm553, %v514, 0
    %v570 = vsel %vm553, %v515, 0
    %v573 = vsel %vm553, %v516, 0
    %v576 = vsel %vm553, %v517, 0
    %v579 = vsel %vm553, %v518, 0
    %v582 = vsel %vm553, %v519, 0
    %v585 = vsel %vm553, %v520, 0
    %v588 = vsel %vm553, %v521, 0
    %v591 = vsel %vm553, %v522, 0
    %v594 = vsel %vm553, %v523, 0
    %v597 = vsel %vm553, %v524, 0
    %v600 = vsel %vm553, %v525, 0
    %v603 = vsel %vm553, %v526, 0
    %v606 = vsel %vm553, %v527, 0
    %v609 = vsel %vm553, %v528, 0
    %v612 = vsel %vm553, %v529, 0
    %v615 = vsel %vm553, %v530, 0
    %v618 = vsel %vm553, %v531, 0
    %v621 = vsel %vm553, %v532, 0
    %v624 = vsel %vm553, %v533, 0
    %v627 = vsel %vm553, %v534, 0
    %v630 = vsel %vm553, %v535, 0
    %v633 = vsel %vm553, %v536, 0
    %v636 = vsel %vm553, %v537, 0
    %v639 = vsel %vm553, %v538, 0
    %v642 = vsel %vm553, %v539, 0
    %v645 = vsel %vm553, %v540, 0
    %v648 = vsel %vm553, %v541, 0
    %vm650 = vcmask 1044480
    %vm651 = vcmask 1045504
    %v652 = vsel %vm650, 4294967295, 65535
    %v653 = vsel %vm651, %v652, 0
    %v655 = vand.u32 %v551, %v653
    %657 = vmatprep.subr.bf16.mxu0 0
    %658 = vmatpush1.bf16.msra.mxu0 %v550
    %659 = vmatprep.subr.bf16.mxu0 0
    %660 = vmatpush1.bf16.msra.mxu0 %v655
    %661 = vmatprep.subr.bf16.mxu0 0
    %662 = vmatpush1.bf16.msra.mxu0 0
    %663 = vmatprep.subr.bf16.mxu0 0
    %664 = vmatpush1.bf16.msra.mxu0 0
    %665 = vmatprep.subr.bf16.mxu0 0
    %666 = vmatpush1.bf16.msra.mxu0 0
    %667 = vmatprep.subr.bf16.mxu0 0
    %668 = vmatpush1.bf16.msra.mxu0 0
    %669 = vmatprep.subr.bf16.mxu0 0
    %670 = vmatpush1.bf16.msra.mxu0 0
    %671 = vmatprep.subr.bf16.mxu0 0
    %672 = vmatpush1.bf16.msra.mxu0 0
    %673 = vmatprep.subr.bf16.mxu0 0
    %674 = vmatpush1.bf16.msra.mxu0 0
    %675 = vmatprep.subr.bf16.mxu0 0
    %676 = vmatpush1.bf16.msra.mxu0 0
    %677 = vmatprep.subr.bf16.mxu0 0
    %678 = vmatpush1.bf16.msra.mxu0 0
    %679 = vmatprep.subr.bf16.mxu0 0
    %680 = vmatpush1.bf16.msra.mxu0 0
    %681 = vmatprep.subr.bf16.mxu0 0
    %682 = vmatpush1.bf16.msra.mxu0 0
    %683 = vmatprep.subr.bf16.mxu0 0
    %684 = vmatpush1.bf16.msra.mxu0 0
    %685 = vmatprep.subr.bf16.mxu0 0
    %686 = vmatpush1.bf16.msra.mxu0 0
    %687 = vmatprep.subr.bf16.mxu0 0
    %688 = vmatpush1.bf16.msra.mxu0 0
    %689 = vmatprep.mubr.bf16.mxu0 0
    %690 = vmatmul.mubr.bf16.gmra.mrb[0].mxu0 %v555
    %v691 = vpop.f32.mrb[0].mxu0
    %v692 = vadd.f32 0.0, %v691
    %v693 = vpop.f32.mrb[0].mxu0
    %v694 = vpop.f32.mrb[0].mxu0
    %v695 = vadd.f32 0.0, %v694
    %v696 = vpop.f32.mrb[0].mxu0
    %697 = vmatprep.mubr.bf16.mxu0 0
    %698 = vmatmul.mubr.bf16.gmra.mrb[0].mxu0 %v558
    %v699 = vpop.f32.mrb[0].mxu0
    %v700 = vadd.f32 0.0, %v699
    %v701 = vpop.f32.mrb[0].mxu0
    %v702 = vpop.f32.mrb[0].mxu0
    %v703 = vadd.f32 0.0, %v702
    %v704 = vpop.f32.mrb[0].mxu0
    %705 = vmatprep.mubr.bf16.mxu0 0
    %706 = vmatmul.mubr.bf16.gmra.mrb[0].mxu0 %v561
    %v707 = vpop.f32.mrb[0].mxu0
    %v708 = vadd.f32 0.0, %v707
    %v709 = vpop.f32.mrb[0].mxu0
    %v710 = vpop.f32.mrb[0].mxu0
    %v711 = vadd.f32 0.0, %v710
    %v712 = vpop.f32.mrb[0].mxu0
    %713 = vmatprep.mubr.bf16.mxu0 0
    %714 = vmatmul.mubr.bf16.gmra.mrb[0].mxu0 %v564
    %v715 = vpop.f32.mrb[0].mxu0
    %v716 = vadd.f32 0.0, %v715
    %v717 = vpop.f32.mrb[0].mxu0
    %v718 = vpop.f32.mrb[0].mxu0
    %v719 = vadd.f32 0.0, %v718
    %v720 = vpop.f32.mrb[0].mxu0
    %721 = vmatprep.mubr.bf16.mxu0 0
    %722 = vmatmul.mubr.bf16.gmra.mrb[0].mxu0 %v567
    %v723 = vpop.f32.mrb[0].mxu0
    %v724 = vadd.f32 0.0, %v723
    %v725 = vpop.f32.mrb[0].mxu0
    %v726 = vpop.f32.mrb[0].mxu0
    %v727 = vadd.f32 0.0, %v726
    %v728 = vpop.f32.mrb[0].mxu0
    %729 = vmatprep.mubr.bf16.mxu0 0
    %730 = vmatmul.mubr.bf16.gmra.mrb[0].mxu0 %v570
    %v731 = vpop.f32.mrb[0].mxu0
    %v732 = vadd.f32 0.0, %v731
    %v733 = vpop.f32.mrb[0].mxu0
    %v734 = vpop.f32.mrb[0].mxu0
    %v735 = vadd.f32 0.0, %v734
    %v736 = vpop.f32.mrb[0].mxu0
    %737 = vmatprep.mubr.bf16.mxu0 0
    %738 = vmatmul.mubr.bf16.gmra.mrb[0].mxu0 %v573
    %v739 = vpop.f32.mrb[0].mxu0
    %v740 = vadd.f32 0.0, %v739
    %v741 = vpop.f32.mrb[0].mxu0
    %v742 = vpop.f32.mrb[0].mxu0
    %v743 = vadd.f32 0.0, %v742
    %v744 = vpop.f32.mrb[0].mxu0
    %745 = vmatprep.mubr.bf16.mxu0 0
    %746 = vmatmul.mubr.bf16.gmra.mrb[0].mxu0 %v576
    %v747 = vpop.f32.mrb[0].mxu0
    %v748 = vadd.f32 0.0, %v747
    %v749 = vpop.f32.mrb[0].mxu0
    %v750 = vpop.f32.mrb[0].mxu0
    %v751 = vadd.f32 0.0, %v750
    %v752 = vpop.f32.mrb[0].mxu0
    %753 = vmatprep.mubr.bf16.mxu0 0
    %754 = vmatmul.mubr.bf16.gmra.mrb[0].mxu0 %v579
    %v755 = vpop.f32.mrb[0].mxu0
    %v756 = vadd.f32 0.0, %v755
    %v757 = vpop.f32.mrb[0].mxu0
    %v758 = vpop.f32.mrb[0].mxu0
    %v759 = vadd.f32 0.0, %v758
    %v760 = vpop.f32.mrb[0].mxu0
    %761 = vmatprep.mubr.bf16.mxu0 0
    %762 = vmatmul.mubr.bf16.gmra.mrb[0].mxu0 %v582
    %v763 = vpop.f32.mrb[0].mxu0
    %v764 = vadd.f32 0.0, %v763
    %v765 = vpop.f32.mrb[0].mxu0
    %v766 = vpop.f32.mrb[0].mxu0
    %v767 = vadd.f32 0.0, %v766
    %v768 = vpop.f32.mrb[0].mxu0
    %769 = vmatprep.mubr.bf16.mxu0 0
    %770 = vmatmul.mubr.bf16.gmra.mrb[0].mxu0 %v585
    %v771 = vpop.f32.mrb[0].mxu0
    %v772 = vadd.f32 0.0, %v771
    %v773 = vpop.f32.mrb[0].mxu0
    %v774 = vpop.f32.mrb[0].mxu0
    %v775 = vadd.f32 0.0, %v774
    %v776 = vpop.f32.mrb[0].mxu0
    %777 = vmatprep.mubr.bf16.mxu0 0
    %778 = vmatmul.mubr.bf16.gmra.mrb[0].mxu0 %v588
    %v779 = vpop.f32.mrb[0].mxu0
    %v780 = vadd.f32 0.0, %v779
    %v781 = vpop.f32.mrb[0].mxu0
    %v782 = vpop.f32.mrb[0].mxu0
    %v783 = vadd.f32 0.0, %v782
    %v784 = vpop.f32.mrb[0].mxu0
    %785 = vmatprep.mubr.bf16.mxu0 0
    %786 = vmatmul.mubr.bf16.gmra.mrb[0].mxu0 %v591
    %v787 = vpop.f32.mrb[0].mxu0
    %v788 = vadd.f32 0.0, %v787
    %v789 = vpop.f32.mrb[0].mxu0
    %v790 = vpop.f32.mrb[0].mxu0
    %v791 = vadd.f32 0.0, %v790
    %v792 = vpop.f32.mrb[0].mxu0
    %793 = vmatprep.mubr.bf16.mxu0 0
    %794 = vmatmul.mubr.bf16.gmra.mrb[0].mxu0 %v594
    %v795 = vpop.f32.mrb[0].mxu0
    %v796 = vadd.f32 0.0, %v795
    %v797 = vpop.f32.mrb[0].mxu0
    %v798 = vpop.f32.mrb[0].mxu0
    %v799 = vadd.f32 0.0, %v798
    %v800 = vpop.f32.mrb[0].mxu0
    %801 = vmatprep.mubr.bf16.mxu0 0
    %802 = vmatmul.mubr.bf16.gmra.mrb[0].mxu0 %v597
    %v803 = vpop.f32.mrb[0].mxu0
    %v804 = vadd.f32 0.0, %v803
    %v805 = vpop.f32.mrb[0].mxu0
    %v806 = vpop.f32.mrb[0].mxu0
    %v807 = vadd.f32 0.0, %v806
    %v808 = vpop.f32.mrb[0].mxu0
    %809 = vmatprep.mubr.bf16.mxu0 0
    %810 = vmatmul.mubr.bf16.gmra.mrb[0].mxu0 %v600
    %v811 = vpop.f32.mrb[0].mxu0
    %v812 = vadd.f32 0.0, %v811
    %v813 = vpop.f32.mrb[0].mxu0
    %v814 = vpop.f32.mrb[0].mxu0
    %v815 = vadd.f32 0.0, %v814
    %v816 = vpop.f32.mrb[0].mxu0
    %817 = vmatprep.mubr.bf16.mxu0 0
    %818 = vmatmul.mubr.bf16.gmra.mrb[0].mxu0 %v603
    %v819 = vpop.f32.mrb[0].mxu0
    %v820 = vadd.f32 0.0, %v819
    %v821 = vpop.f32.mrb[0].mxu0
    %v822 = vpop.f32.mrb[0].mxu0
    %v823 = vadd.f32 0.0, %v822
    %v824 = vpop.f32.mrb[0].mxu0
    %825 = vmatprep.mubr.bf16.mxu0 0
    %826 = vmatmul.mubr.bf16.gmra.mrb[0].mxu0 %v606
    %v827 = vpop.f32.mrb[0].mxu0
    %v828 = vadd.f32 0.0, %v827
    %v829 = vpop.f32.mrb[0].mxu0
    %v830 = vpop.f32.mrb[0].mxu0
    %v831 = vadd.f32 0.0, %v830
    %v832 = vpop.f32.mrb[0].mxu0
    %833 = vmatprep.mubr.bf16.mxu0 0
    %834 = vmatmul.mubr.bf16.gmra.mrb[0].mxu0 %v609
    %v835 = vpop.f32.mrb[0].mxu0
    %v836 = vadd.f32 0.0, %v835
    %v837 = vpop.f32.mrb[0].mxu0
    %v838 = vpop.f32.mrb[0].mxu0
    %v839 = vadd.f32 0.0, %v838
    %v840 = vpop.f32.mrb[0].mxu0
    %841 = vmatprep.mubr.bf16.mxu0 0
    %842 = vmatmul.mubr.bf16.gmra.mrb[0].mxu0 %v612
    %v843 = vpop.f32.mrb[0].mxu0
    %v844 = vadd.f32 0.0, %v843
    %v845 = vpop.f32.mrb[0].mxu0
    %v846 = vpop.f32.mrb[0].mxu0
    %v847 = vadd.f32 0.0, %v846
    %v848 = vpop.f32.mrb[0].mxu0
    %849 = vmatprep.mubr.bf16.mxu0 0
    %850 = vmatmul.mubr.bf16.gmra.mrb[0].mxu0 %v615
    %v851 = vpop.f32.mrb[0].mxu0
    %v852 = vadd.f32 0.0, %v851
    %v853 = vpop.f32.mrb[0].mxu0
    %v854 = vpop.f32.mrb[0].mxu0
    %v855 = vadd.f32 0.0, %v854
    %v856 = vpop.f32.mrb[0].mxu0
    %857 = vmatprep.mubr.bf16.mxu0 0
    %858 = vmatmul.mubr.bf16.gmra.mrb[0].mxu0 %v618
    %v859 = vpop.f32.mrb[0].mxu0
    %v860 = vadd.f32 0.0, %v859
    %v861 = vpop.f32.mrb[0].mxu0
    %v862 = vpop.f32.mrb[0].mxu0
    %v863 = vadd.f32 0.0, %v862
    %v864 = vpop.f32.mrb[0].mxu0
    %865 = vmatprep.mubr.bf16.mxu0 0
    %866 = vmatmul.mubr.bf16.gmra.mrb[0].mxu0 %v621
    %v867 = vpop.f32.mrb[0].mxu0
    %v868 = vadd.f32 0.0, %v867
    %v869 = vpop.f32.mrb[0].mxu0
    %v870 = vpop.f32.mrb[0].mxu0
    %v871 = vadd.f32 0.0, %v870
    %v872 = vpop.f32.mrb[0].mxu0
    %873 = vmatprep.mubr.bf16.mxu0 0
    %874 = vmatmul.mubr.bf16.gmra.mrb[0].mxu0 %v624
    %v875 = vpop.f32.mrb[0].mxu0
    %v876 = vadd.f32 0.0, %v875
    %v877 = vpop.f32.mrb[0].mxu0
    %v878 = vpop.f32.mrb[0].mxu0
    %v879 = vadd.f32 0.0, %v878
    %v880 = vpop.f32.mrb[0].mxu0
    %881 = vmatprep.mubr.bf16.mxu0 0
    %882 = vmatmul.mubr.bf16.gmra.mrb[0].mxu0 %v627
    %v883 = vpop.f32.mrb[0].mxu0
    %v884 = vadd.f32 0.0, %v883
    %v885 = vpop.f32.mrb[0].mxu0
    %v886 = vpop.f32.mrb[0].mxu0
    %v887 = vadd.f32 0.0, %v886
    %v888 = vpop.f32.mrb[0].mxu0
    %889 = vmatprep.mubr.bf16.mxu0 0
    %890 = vmatmul.mubr.bf16.gmra.mrb[0].mxu0 %v630
    %v891 = vpop.f32.mrb[0].mxu0
    %v892 = vadd.f32 0.0, %v891
    %v893 = vpop.f32.mrb[0].mxu0
    %v894 = vpop.f32.mrb[0].mxu0
    %v895 = vadd.f32 0.0, %v894
    %v896 = vpop.f32.mrb[0].mxu0
    %897 = vmatprep.mubr.bf16.mxu0 0
    %898 = vmatmul.mubr.bf16.gmra.mrb[0].mxu0 %v633
    %v899 = vpop.f32.mrb[0].mxu0
    %v900 = vadd.f32 0.0, %v899
    %v901 = vpop.f32.mrb[0].mxu0
    %v902 = vpop.f32.mrb[0].mxu0
    %v903 = vadd.f32 0.0, %v902
    %v904 = vpop.f32.mrb[0].mxu0
    %905 = vmatprep.mubr.bf16.mxu0 0
    %906 = vmatmul.mubr.bf16.gmra.mrb[0].mxu0 %v636
    %v907 = vpop.f32.mrb[0].mxu0
    %v908 = vadd.f32 0.0, %v907
    %v909 = vpop.f32.mrb[0].mxu0
    %v910 = vpop.f32.mrb[0].mxu0
    %v911 = vadd.f32 0.0, %v910
    %v912 = vpop.f32.mrb[0].mxu0
    %913 = vmatprep.mubr.bf16.mxu0 0
    %914 = vmatmul.mubr.bf16.gmra.mrb[0].mxu0 %v639
    %v915 = vpop.f32.mrb[0].mxu0
    %v916 = vadd.f32 0.0, %v915
    %v917 = vpop.f32.mrb[0].mxu0
    %v918 = vpop.f32.mrb[0].mxu0
    %v919 = vadd.f32 0.0, %v918
    %v920 = vpop.f32.mrb[0].mxu0
    %921 = vmatprep.mubr.bf16.mxu0 0
    %922 = vmatmul.mubr.bf16.gmra.mrb[0].mxu0 %v642
    %v923 = vpop.f32.mrb[0].mxu0
    %v924 = vadd.f32 0.0, %v923
    %v925 = vpop.f32.mrb[0].mxu0
    %v926 = vpop.f32.mrb[0].mxu0
    %v927 = vadd.f32 0.0, %v926
    %v928 = vpop.f32.mrb[0].mxu0
    %929 = vmatprep.mubr.bf16.mxu0 0
    %930 = vmatmul.mubr.bf16.gmra.mrb[0].mxu0 %v645
    %v931 = vpop.f32.mrb[0].mxu0
    %v932 = vadd.f32 0.0, %v931
    %v933 = vpop.f32.mrb[0].mxu0
    %v934 = vpop.f32.mrb[0].mxu0
    %v935 = vadd.f32 0.0, %v934
    %v936 = vpop.f32.mrb[0].mxu0
    %937 = vmatprep.mubr.bf16.mxu0 0
    %938 = vmatmul.mubr.bf16.gmra.mrb[0].mxu0 %v648
    %v939 = vpop.f32.mrb[0].mxu0
    %v940 = vadd.f32 0.0, %v939
    %v941 = vpop.f32.mrb[0].mxu0
    %v942 = vpop.f32.mrb[0].mxu0
    %v943 = vadd.f32 0.0, %v942
    %v944 = vpop.f32.mrb[0].mxu0
    %945 = vdwg.mxu0
    %v946 = vld [vmem:[#allocation10] sm:$0x1]
    %v947 = vlaneseq
    %v948 = vshrl.u32 %v947, 7
    %v949 = vsub.s32 0, %v948
    %v950 = vrot.slane %v946, %v949
    %v951 = vmul.f32 %v692, %v950
    %v952 = vmul.f32 %v695, %v950
    %v953 = vmul.f32 %v700, %v950
    %v954 = vmul.f32 %v703, %v950
    %v955 = vmul.f32 %v708, %v950
    %v956 = vmul.f32 %v711, %v950
    %v957 = vmul.f32 %v716, %v950
    %v958 = vmul.f32 %v719, %v950
    %v959 = vmul.f32 %v724, %v950
    %v960 = vmul.f32 %v727, %v950
    %v961 = vmul.f32 %v732, %v950
    %v962 = vmul.f32 %v735, %v950
    %v963 = vmul.f32 %v740, %v950
    %v964 = vmul.f32 %v743, %v950
    %v965 = vmul.f32 %v748, %v950
    %v966 = vmul.f32 %v751, %v950
    %v967 = vmul.f32 %v756, %v950
    %v968 = vmul.f32 %v759, %v950
    %v969 = vmul.f32 %v764, %v950
    %v970 = vmul.f32 %v767, %v950
    %v971 = vmul.f32 %v772, %v950
    %v972 = vmul.f32 %v775, %v950
    %v973 = vmul.f32 %v780, %v950
    %v974 = vmul.f32 %v783, %v950
    %v975 = vmul.f32 %v788, %v950
    %v976 = vmul.f32 %v791, %v950
    %v977 = vmul.f32 %v796, %v950
    %v978 = vmul.f32 %v799, %v950
    %v979 = vmul.f32 %v804, %v950
    %v980 = vmul.f32 %v807, %v950
    %v981 = vmul.f32 %v812, %v950
    %v982 = vmul.f32 %v815, %v950
    %v983 = vmul.f32 %v820, %v950
    %v984 = vmul.f32 %v823, %v950
    %v985 = vmul.f32 %v828, %v950
    %v986 = vmul.f32 %v831, %v950
    %v987 = vmul.f32 %v836, %v950
    %v988 = vmul.f32 %v839, %v950
    %v989 = vmul.f32 %v844, %v950
    %v990 = vmul.f32 %v847, %v950
    %v991 = vmul.f32 %v852, %v950
    %v992 = vmul.f32 %v855, %v950
    %v993 = vmul.f32 %v860, %v950
    %v994 = vmul.f32 %v863, %v950
    %v995 = vmul.f32 %v868, %v950
    %v996 = vmul.f32 %v871, %v950
    %v997 = vmul.f32 %v876, %v950
    %v998 = vmul.f32 %v879, %v950
    %v999 = vmul.f32 %v884, %v950
    %v1000 = vmul.f32 %v887, %v950
    %v1001 = vmul.f32 %v892, %v950
    %v1002 = vmul.f32 %v895, %v950
    %v1003 = vmul.f32 %v900, %v950
    %v1004 = vmul.f32 %v903, %v950
    %v1005 = vmul.f32 %v908, %v950
    %v1006 = vmul.f32 %v911, %v950
    %v1007 = vmul.f32 %v916, %v950
    %v1008 = vmul.f32 %v919, %v950
    %v1009 = vmul.f32 %v924, %v950
    %v1010 = vmul.f32 %v927, %v950
    %v1011 = vmul.f32 %v932, %v950
    %v1012 = vmul.f32 %v935, %v950
    %v1013 = vmul.f32 %v940, %v950
    %v1014 = vmul.f32 %v943, %v950
    %v1015 = vld [vmem:[#allocation10 + $0x1] sm:$0x1]
    %v1016 = vlaneseq
    %v1017 = vshrl.u32 %v1016, 7
    %v1018 = vsub.s32 0, %v1017
    %v1019 = vrot.slane %v1015, %v1018
    %v1020 = vadd.f32 %v951, %v1019
    %v1021 = vadd.f32 %v952, %v1019
    %v1022 = vadd.f32 %v953, %v1019
    %v1023 = vadd.f32 %v954, %v1019
    %v1024 = vadd.f32 %v955, %v1019
    %v1025 = vadd.f32 %v956, %v1019
    %v1026 = vadd.f32 %v957, %v1019
    %v1027 = vadd.f32 %v958, %v1019
    %v1028 = vadd.f32 %v959, %v1019
    %v1029 = vadd.f32 %v960, %v1019
    %v1030 = vadd.f32 %v961, %v1019
    %v1031 = vadd.f32 %v962, %v1019
    %v1032 = vadd.f32 %v963, %v1019
    %v1033 = vadd.f32 %v964, %v1019
    %v1034 = vadd.f32 %v965, %v1019
    %v1035 = vadd.f32 %v966, %v1019
    %v1036 = vadd.f32 %v967, %v1019
    %v1037 = vadd.f32 %v968, %v1019
    %v1038 = vadd.f32 %v969, %v1019
    %v1039 = vadd.f32 %v970, %v1019
    %v1040 = vadd.f32 %v971, %v1019
    %v1041 = vadd.f32 %v972, %v1019
    %v1042 = vadd.f32 %v973, %v1019
    %v1043 = vadd.f32 %v974, %v1019
    %v1044 = vadd.f32 %v975, %v1019
    %v1045 = vadd.f32 %v976, %v1019
    %v1046 = vadd.f32 %v977, %v1019
    %v1047 = vadd.f32 %v978, %v1019
    %v1048 = vadd.f32 %v979, %v1019
    %v1049 = vadd.f32 %v980, %v1019
    %v1050 = vadd.f32 %v981, %v1019
    %v1051 = vadd.f32 %v982, %v1019
    %v1052 = vadd.f32 %v983, %v1019
    %v1053 = vadd.f32 %v984, %v1019
    %v1054 = vadd.f32 %v985, %v1019
    %v1055 = vadd.f32 %v986, %v1019
    %v1056 = vadd.f32 %v987, %v1019
    %v1057 = vadd.f32 %v988, %v1019
    %v1058 = vadd.f32 %v989, %v1019
    %v1059 = vadd.f32 %v990, %v1019
    %v1060 = vadd.f32 %v991, %v1019
    %v1061 = vadd.f32 %v992, %v1019
    %v1062 = vadd.f32 %v993, %v1019
    %v1063 = vadd.f32 %v994, %v1019
    %v1064 = vadd.f32 %v995, %v1019
    %v1065 = vadd.f32 %v996, %v1019
    %v1066 = vadd.f32 %v997, %v1019
    %v1067 = vadd.f32 %v998, %v1019
    %v1068 = vadd.f32 %v999, %v1019
    %v1069 = vadd.f32 %v1000, %v1019
    %v1070 = vadd.f32 %v1001, %v1019
    %v1071 = vadd.f32 %v1002, %v1019
    %v1072 = vadd.f32 %v1003, %v1019
    %v1073 = vadd.f32 %v1004, %v1019
    %v1074 = vadd.f32 %v1005, %v1019
    %v1075 = vadd.f32 %v1006, %v1019
    %v1076 = vadd.f32 %v1007, %v1019
    %v1077 = vadd.f32 %v1008, %v1019
    %v1078 = vadd.f32 %v1009, %v1019
    %v1079 = vadd.f32 %v1010, %v1019
    %v1080 = vadd.f32 %v1011, %v1019
    %v1081 = vadd.f32 %v1012, %v1019
    %v1082 = vadd.f32 %v1013, %v1019
    %v1083 = vadd.f32 %v1014, %v1019
    %v1084 = vmax.f32 %v1020, 0.0
    %v1085 = vmax.f32 %v1021, 0.0
    %v1086 = vmax.f32 %v1022, 0.0
    %v1087 = vmax.f32 %v1023, 0.0
    %v1088 = vmax.f32 %v1024, 0.0
    %v1089 = vmax.f32 %v1025, 0.0
    %v1090 = vmax.f32 %v1026, 0.0
    %v1091 = vmax.f32 %v1027, 0.0
    %v1092 = vmax.f32 %v1028, 0.0
    %v1093 = vmax.f32 %v1029, 0.0
    %v1094 = vmax.f32 %v1030, 0.0
    %v1095 = vmax.f32 %v1031, 0.0
    %v1096 = vmax.f32 %v1032, 0.0
    %v1097 = vmax.f32 %v1033, 0.0
    %v1098 = vmax.f32 %v1034, 0.0
    %v1099 = vmax.f32 %v1035, 0.0
    %v1100 = vmax.f32 %v1036, 0.0
    %v1101 = vmax.f32 %v1037, 0.0
    %v1102 = vmax.f32 %v1038, 0.0
    %v1103 = vmax.f32 %v1039, 0.0
    %v1104 = vmax.f32 %v1040, 0.0
    %v1105 = vmax.f32 %v1041, 0.0
    %v1106 = vmax.f32 %v1042, 0.0
    %v1107 = vmax.f32 %v1043, 0.0
    %v1108 = vmax.f32 %v1044, 0.0
    %v1109 = vmax.f32 %v1045, 0.0
    %v1110 = vmax.f32 %v1046, 0.0
    %v1111 = vmax.f32 %v1047, 0.0
    %v1112 = vmax.f32 %v1048, 0.0
    %v1113 = vmax.f32 %v1049, 0.0
    %v1114 = vmax.f32 %v1050, 0.0
    %v1115 = vmax.f32 %v1051, 0.0
    %v1116 = vmax.f32 %v1052, 0.0
    %v1117 = vmax.f32 %v1053, 0.0
    %v1118 = vmax.f32 %v1054, 0.0
    %v1119 = vmax.f32 %v1055, 0.0
    %v1120 = vmax.f32 %v1056, 0.0
    %v1121 = vmax.f32 %v1057, 0.0
    %v1122 = vmax.f32 %v1058, 0.0
    %v1123 = vmax.f32 %v1059, 0.0
    %v1124 = vmax.f32 %v1060, 0.0
    %v1125 = vmax.f32 %v1061, 0.0
    %v1126 = vmax.f32 %v1062, 0.0
    %v1127 = vmax.f32 %v1063, 0.0
    %v1128 = vmax.f32 %v1064, 0.0
    %v1129 = vmax.f32 %v1065, 0.0
    %v1130 = vmax.f32 %v1066, 0.0
    %v1131 = vmax.f32 %v1067, 0.0
    %v1132 = vmax.f32 %v1068, 0.0
    %v1133 = vmax.f32 %v1069, 0.0
    %v1134 = vmax.f32 %v1070, 0.0
    %v1135 = vmax.f32 %v1071, 0.0
    %v1136 = vmax.f32 %v1072, 0.0
    %v1137 = vmax.f32 %v1073, 0.0
    %v1138 = vmax.f32 %v1074, 0.0
    %v1139 = vmax.f32 %v1075, 0.0
    %v1140 = vmax.f32 %v1076, 0.0
    %v1141 = vmax.f32 %v1077, 0.0
    %v1142 = vmax.f32 %v1078, 0.0
    %v1143 = vmax.f32 %v1079, 0.0
    %v1144 = vmax.f32 %v1080, 0.0
    %v1145 = vmax.f32 %v1081, 0.0
    %v1146 = vmax.f32 %v1082, 0.0
    %v1147 = vmax.f32 %v1083, 0.0
    %v1212 = vcombine.high %v1084, %v1084
    %v1214 = vunpack.c.l.s4 1983009808
    %v1215 = vunpack.c.0.s8 %v1214
    %v1216 = vlaneseq
    %v1217 = vshrl.u32 %v1216, 7
    %v1218 = vsub.s32 %v1215, %v1217
    %v1219 = vrot.slane %v1084, %v1218
    %v1221 = vunpack.c.l.s4 1983009808
    %v1222 = vunpack.c.0.s8 %v1221
    %v1223 = vlaneseq
    %v1224 = vshrl.u32 %v1223, 7
    %v1225 = vsub.s32 %v1222, %v1224
    %v1226 = vrot.slane %v1212, %v1225
    %v1227 = vcombine.high %v1219, %v1219
    %v1228 = vcombine.high %v1226, %v1226
    %v1229 = vcombine.high %v1085, %v1085
    %v1231 = vunpack.c.l.s4 1983009808
    %v1232 = vunpack.c.0.s8 %v1231
    %v1233 = vlaneseq
    %v1234 = vshrl.u32 %v1233, 7
    %v1235 = vsub.s32 %v1232, %v1234
    %v1236 = vrot.slane %v1085, %v1235
    %v1238 = vunpack.c.l.s4 1983009808
    %v1239 = vunpack.c.0.s8 %v1238
    %v1240 = vlaneseq
    %v1241 = vshrl.u32 %v1240, 7
    %v1242 = vsub.s32 %v1239, %v1241
    %v1243 = vrot.slane %v1229, %v1242
    %v1244 = vcombine.high %v1236, %v1236
    %v1245 = vcombine.high %v1243, %v1243
    %v1246 = vcombine.high %v1086, %v1086
    %v1248 = vunpack.c.l.s4 1983009808
    %v1249 = vunpack.c.0.s8 %v1248
    %v1250 = vlaneseq
    %v1251 = vshrl.u32 %v1250, 7
    %v1252 = vsub.s32 %v1249, %v1251
    %v1253 = vrot.slane %v1086, %v1252
    %v1255 = vunpack.c.l.s4 1983009808
    %v1256 = vunpack.c.0.s8 %v1255
    %v1257 = vlaneseq
    %v1258 = vshrl.u32 %v1257, 7
    %v1259 = vsub.s32 %v1256, %v1258
    %v1260 = vrot.slane %v1246, %v1259
    %v1261 = vcombine.high %v1253, %v1253
    %v1262 = vcombine.high %v1260, %v1260
    %v1263 = vcombine.high %v1087, %v1087
    %v1265 = vunpack.c.l.s4 1983009808
    %v1266 = vunpack.c.0.s8 %v1265
    %v1267 = vlaneseq
    %v1268 = vshrl.u32 %v1267, 7
    %v1269 = vsub.s32 %v1266, %v1268
    %v1270 = vrot.slane %v1087, %v1269
    %v1272 = vunpack.c.l.s4 1983009808
    %v1273 = vunpack.c.0.s8 %v1272
    %v1274 = vlaneseq
    %v1275 = vshrl.u32 %v1274, 7
    %v1276 = vsub.s32 %v1273, %v1275
    %v1277 = vrot.slane %v1263, %v1276
    %v1278 = vcombine.high %v1270, %v1270
    %v1279 = vcombine.high %v1277, %v1277
    %v1280 = vcombine.high %v1088, %v1088
    %v1282 = vunpack.c.l.s4 1983009808
    %v1283 = vunpack.c.0.s8 %v1282
    %v1284 = vlaneseq
    %v1285 = vshrl.u32 %v1284, 7
    %v1286 = vsub.s32 %v1283, %v1285
    %v1287 = vrot.slane %v1088, %v1286
    %v1289 = vunpack.c.l.s4 1983009808
    %v1290 = vunpack.c.0.s8 %v1289
    %v1291 = vlaneseq
    %v1292 = vshrl.u32 %v1291, 7
    %v1293 = vsub.s32 %v1290, %v1292
    %v1294 = vrot.slane %v1280, %v1293
    %v1295 = vcombine.high %v1287, %v1287
    %v1296 = vcombine.high %v1294, %v1294
    %v1297 = vcombine.high %v1089, %v1089
    %v1299 = vunpack.c.l.s4 1983009808
    %v1300 = vunpack.c.0.s8 %v1299
    %v1301 = vlaneseq
    %v1302 = vshrl.u32 %v1301, 7
    %v1303 = vsub.s32 %v1300, %v1302
    %v1304 = vrot.slane %v1089, %v1303
    %v1306 = vunpack.c.l.s4 1983009808
    %v1307 = vunpack.c.0.s8 %v1306
    %v1308 = vlaneseq
    %v1309 = vshrl.u32 %v1308, 7
    %v1310 = vsub.s32 %v1307, %v1309
    %v1311 = vrot.slane %v1297, %v1310
    %v1312 = vcombine.high %v1304, %v1304
    %v1313 = vcombine.high %v1311, %v1311
    %v1314 = vcombine.high %v1090, %v1090
    %v1316 = vunpack.c.l.s4 1983009808
    %v1317 = vunpack.c.0.s8 %v1316
    %v1318 = vlaneseq
    %v1319 = vshrl.u32 %v1318, 7
    %v1320 = vsub.s32 %v1317, %v1319
    %v1321 = vrot.slane %v1090, %v1320
    %v1323 = vunpack.c.l.s4 1983009808
    %v1324 = vunpack.c.0.s8 %v1323
    %v1325 = vlaneseq
    %v1326 = vshrl.u32 %v1325, 7
    %v1327 = vsub.s32 %v1324, %v1326
    %v1328 = vrot.slane %v1314, %v1327
    %v1329 = vcombine.high %v1321, %v1321
    %v1330 = vcombine.high %v1328, %v1328
    %v1331 = vcombine.high %v1091, %v1091
    %v1333 = vunpack.c.l.s4 1983009808
    %v1334 = vunpack.c.0.s8 %v1333
    %v1335 = vlaneseq
    %v1336 = vshrl.u32 %v1335, 7
    %v1337 = vsub.s32 %v1334, %v1336
    %v1338 = vrot.slane %v1091, %v1337
    %v1340 = vunpack.c.l.s4 1983009808
    %v1341 = vunpack.c.0.s8 %v1340
    %v1342 = vlaneseq
    %v1343 = vshrl.u32 %v1342, 7
    %v1344 = vsub.s32 %v1341, %v1343
    %v1345 = vrot.slane %v1331, %v1344
    %v1346 = vcombine.high %v1338, %v1338
    %v1347 = vcombine.high %v1345, %v1345
    %v1348 = vcombine.high %v1092, %v1092
    %v1350 = vunpack.c.l.s4 1983009808
    %v1351 = vunpack.c.0.s8 %v1350
    %v1352 = vlaneseq
    %v1353 = vshrl.u32 %v1352, 7
    %v1354 = vsub.s32 %v1351, %v1353
    %v1355 = vrot.slane %v1092, %v1354
    %v1357 = vunpack.c.l.s4 1983009808
    %v1358 = vunpack.c.0.s8 %v1357
    %v1359 = vlaneseq
    %v1360 = vshrl.u32 %v1359, 7
    %v1361 = vsub.s32 %v1358, %v1360
    %v1362 = vrot.slane %v1348, %v1361
    %v1363 = vcombine.high %v1355, %v1355
    %v1364 = vcombine.high %v1362, %v1362
    %v1365 = vcombine.high %v1093, %v1093
    %v1367 = vunpack.c.l.s4 1983009808
    %v1368 = vunpack.c.0.s8 %v1367
    %v1369 = vlaneseq
    %v1370 = vshrl.u32 %v1369, 7
    %v1371 = vsub.s32 %v1368, %v1370
    %v1372 = vrot.slane %v1093, %v1371
    %v1374 = vunpack.c.l.s4 1983009808
    %v1375 = vunpack.c.0.s8 %v1374
    %v1376 = vlaneseq
    %v1377 = vshrl.u32 %v1376, 7
    %v1378 = vsub.s32 %v1375, %v1377
    %v1379 = vrot.slane %v1365, %v1378
    %v1380 = vcombine.high %v1372, %v1372
    %v1381 = vcombine.high %v1379, %v1379
    %v1382 = vcombine.high %v1094, %v1094
    %v1384 = vunpack.c.l.s4 1983009808
    %v1385 = vunpack.c.0.s8 %v1384
    %v1386 = vlaneseq
    %v1387 = vshrl.u32 %v1386, 7
    %v1388 = vsub.s32 %v1385, %v1387
    %v1389 = vrot.slane %v1094, %v1388
    %v1391 = vunpack.c.l.s4 1983009808
    %v1392 = vunpack.c.0.s8 %v1391
    %v1393 = vlaneseq
    %v1394 = vshrl.u32 %v1393, 7
    %v1395 = vsub.s32 %v1392, %v1394
    %v1396 = vrot.slane %v1382, %v1395
    %v1397 = vcombine.high %v1389, %v1389
    %v1398 = vcombine.high %v1396, %v1396
    %v1399 = vcombine.high %v1095, %v1095
    %v1401 = vunpack.c.l.s4 1983009808
    %v1402 = vunpack.c.0.s8 %v1401
    %v1403 = vlaneseq
    %v1404 = vshrl.u32 %v1403, 7
    %v1405 = vsub.s32 %v1402, %v1404
    %v1406 = vrot.slane %v1095, %v1405
    %v1408 = vunpack.c.l.s4 1983009808
    %v1409 = vunpack.c.0.s8 %v1408
    %v1410 = vlaneseq
    %v1411 = vshrl.u32 %v1410, 7
    %v1412 = vsub.s32 %v1409, %v1411
    %v1413 = vrot.slane %v1399, %v1412
    %v1414 = vcombine.high %v1406, %v1406
    %v1415 = vcombine.high %v1413, %v1413
    %v1416 = vcombine.high %v1096, %v1096
    %v1418 = vunpack.c.l.s4 1983009808
    %v1419 = vunpack.c.0.s8 %v1418
    %v1420 = vlaneseq
    %v1421 = vshrl.u32 %v1420, 7
    %v1422 = vsub.s32 %v1419, %v1421
    %v1423 = vrot.slane %v1096, %v1422
    %v1425 = vunpack.c.l.s4 1983009808
    %v1426 = vunpack.c.0.s8 %v1425
    %v1427 = vlaneseq
    %v1428 = vshrl.u32 %v1427, 7
    %v1429 = vsub.s32 %v1426, %v1428
    %v1430 = vrot.slane %v1416, %v1429
    %v1431 = vcombine.high %v1423, %v1423
    %v1432 = vcombine.high %v1430, %v1430
    %v1433 = vcombine.high %v1097, %v1097
    %v1435 = vunpack.c.l.s4 1983009808
    %v1436 = vunpack.c.0.s8 %v1435
    %v1437 = vlaneseq
    %v1438 = vshrl.u32 %v1437, 7
    %v1439 = vsub.s32 %v1436, %v1438
    %v1440 = vrot.slane %v1097, %v1439
    %v1442 = vunpack.c.l.s4 1983009808
    %v1443 = vunpack.c.0.s8 %v1442
    %v1444 = vlaneseq
    %v1445 = vshrl.u32 %v1444, 7
    %v1446 = vsub.s32 %v1443, %v1445
    %v1447 = vrot.slane %v1433, %v1446
    %v1448 = vcombine.high %v1440, %v1440
    %v1449 = vcombine.high %v1447, %v1447
    %v1450 = vcombine.high %v1098, %v1098
    %v1452 = vunpack.c.l.s4 1983009808
    %v1453 = vunpack.c.0.s8 %v1452
    %v1454 = vlaneseq
    %v1455 = vshrl.u32 %v1454, 7
    %v1456 = vsub.s32 %v1453, %v1455
    %v1457 = vrot.slane %v1098, %v1456
    %v1459 = vunpack.c.l.s4 1983009808
    %v1460 = vunpack.c.0.s8 %v1459
    %v1461 = vlaneseq
    %v1462 = vshrl.u32 %v1461, 7
    %v1463 = vsub.s32 %v1460, %v1462
    %v1464 = vrot.slane %v1450, %v1463
    %v1465 = vcombine.high %v1457, %v1457
    %v1466 = vcombine.high %v1464, %v1464
    %v1467 = vcombine.high %v1099, %v1099
    %v1469 = vunpack.c.l.s4 1983009808
    %v1470 = vunpack.c.0.s8 %v1469
    %v1471 = vlaneseq
    %v1472 = vshrl.u32 %v1471, 7
    %v1473 = vsub.s32 %v1470, %v1472
    %v1474 = vrot.slane %v1099, %v1473
    %v1476 = vunpack.c.l.s4 1983009808
    %v1477 = vunpack.c.0.s8 %v1476
    %v1478 = vlaneseq
    %v1479 = vshrl.u32 %v1478, 7
    %v1480 = vsub.s32 %v1477, %v1479
    %v1481 = vrot.slane %v1467, %v1480
    %v1482 = vcombine.high %v1474, %v1474
    %v1483 = vcombine.high %v1481, %v1481
    %v1484 = vcombine.high %v1100, %v1100
    %v1486 = vunpack.c.l.s4 1983009808
    %v1487 = vunpack.c.0.s8 %v1486
    %v1488 = vlaneseq
    %v1489 = vshrl.u32 %v1488, 7
    %v1490 = vsub.s32 %v1487, %v1489
    %v1491 = vrot.slane %v1100, %v1490
    %v1493 = vunpack.c.l.s4 1983009808
    %v1494 = vunpack.c.0.s8 %v1493
    %v1495 = vlaneseq
    %v1496 = vshrl.u32 %v1495, 7
    %v1497 = vsub.s32 %v1494, %v1496
    %v1498 = vrot.slane %v1484, %v1497
    %v1499 = vcombine.high %v1491, %v1491
    %v1500 = vcombine.high %v1498, %v1498
    %v1501 = vcombine.high %v1101, %v1101
    %v1503 = vunpack.c.l.s4 1983009808
    %v1504 = vunpack.c.0.s8 %v1503
    %v1505 = vlaneseq
    %v1506 = vshrl.u32 %v1505, 7
    %v1507 = vsub.s32 %v1504, %v1506
    %v1508 = vrot.slane %v1101, %v1507
    %v1510 = vunpack.c.l.s4 1983009808
    %v1511 = vunpack.c.0.s8 %v1510
    %v1512 = vlaneseq
    %v1513 = vshrl.u32 %v1512, 7
    %v1514 = vsub.s32 %v1511, %v1513
    %v1515 = vrot.slane %v1501, %v1514
    %v1516 = vcombine.high %v1508, %v1508
    %v1517 = vcombine.high %v1515, %v1515
    %v1518 = vcombine.high %v1102, %v1102
    %v1520 = vunpack.c.l.s4 1983009808
    %v1521 = vunpack.c.0.s8 %v1520
    %v1522 = vlaneseq
    %v1523 = vshrl.u32 %v1522, 7
    %v1524 = vsub.s32 %v1521, %v1523
    %v1525 = vrot.slane %v1102, %v1524
    %v1527 = vunpack.c.l.s4 1983009808
    %v1528 = vunpack.c.0.s8 %v1527
    %v1529 = vlaneseq
    %v1530 = vshrl.u32 %v1529, 7
    %v1531 = vsub.s32 %v1528, %v1530
    %v1532 = vrot.slane %v1518, %v1531
    %v1533 = vcombine.high %v1525, %v1525
    %v1534 = vcombine.high %v1532, %v1532
    %v1535 = vcombine.high %v1103, %v1103
    %v1537 = vunpack.c.l.s4 1983009808
    %v1538 = vunpack.c.0.s8 %v1537
    %v1539 = vlaneseq
    %v1540 = vshrl.u32 %v1539, 7
    %v1541 = vsub.s32 %v1538, %v1540
    %v1542 = vrot.slane %v1103, %v1541
    %v1544 = vunpack.c.l.s4 1983009808
    %v1545 = vunpack.c.0.s8 %v1544
    %v1546 = vlaneseq
    %v1547 = vshrl.u32 %v1546, 7
    %v1548 = vsub.s32 %v1545, %v1547
    %v1549 = vrot.slane %v1535, %v1548
    %v1550 = vcombine.high %v1542, %v1542
    %v1551 = vcombine.high %v1549, %v1549
    %v1552 = vcombine.high %v1104, %v1104
    %v1554 = vunpack.c.l.s4 1983009808
    %v1555 = vunpack.c.0.s8 %v1554
    %v1556 = vlaneseq
    %v1557 = vshrl.u32 %v1556, 7
    %v1558 = vsub.s32 %v1555, %v1557
    %v1559 = vrot.slane %v1104, %v1558
    %v1561 = vunpack.c.l.s4 1983009808
    %v1562 = vunpack.c.0.s8 %v1561
    %v1563 = vlaneseq
    %v1564 = vshrl.u32 %v1563, 7
    %v1565 = vsub.s32 %v1562, %v1564
    %v1566 = vrot.slane %v1552, %v1565
    %v1567 = vcombine.high %v1559, %v1559
    %v1568 = vcombine.high %v1566, %v1566
    %v1569 = vcombine.high %v1105, %v1105
    %v1571 = vunpack.c.l.s4 1983009808
    %v1572 = vunpack.c.0.s8 %v1571
    %v1573 = vlaneseq
    %v1574 = vshrl.u32 %v1573, 7
    %v1575 = vsub.s32 %v1572, %v1574
    %v1576 = vrot.slane %v1105, %v1575
    %v1578 = vunpack.c.l.s4 1983009808
    %v1579 = vunpack.c.0.s8 %v1578
    %v1580 = vlaneseq
    %v1581 = vshrl.u32 %v1580, 7
    %v1582 = vsub.s32 %v1579, %v1581
    %v1583 = vrot.slane %v1569, %v1582
    %v1584 = vcombine.high %v1576, %v1576
    %v1585 = vcombine.high %v1583, %v1583
    %v1586 = vcombine.high %v1106, %v1106
    %v1588 = vunpack.c.l.s4 1983009808
    %v1589 = vunpack.c.0.s8 %v1588
    %v1590 = vlaneseq
    %v1591 = vshrl.u32 %v1590, 7
    %v1592 = vsub.s32 %v1589, %v1591
    %v1593 = vrot.slane %v1106, %v1592
    %v1595 = vunpack.c.l.s4 1983009808
    %v1596 = vunpack.c.0.s8 %v1595
    %v1597 = vlaneseq
    %v1598 = vshrl.u32 %v1597, 7
    %v1599 = vsub.s32 %v1596, %v1598
    %v1600 = vrot.slane %v1586, %v1599
    %v1601 = vcombine.high %v1593, %v1593
    %v1602 = vcombine.high %v1600, %v1600
    %v1603 = vcombine.high %v1107, %v1107
    %v1605 = vunpack.c.l.s4 1983009808
    %v1606 = vunpack.c.0.s8 %v1605
    %v1607 = vlaneseq
    %v1608 = vshrl.u32 %v1607, 7
    %v1609 = vsub.s32 %v1606, %v1608
    %v1610 = vrot.slane %v1107, %v1609
    %v1612 = vunpack.c.l.s4 1983009808
    %v1613 = vunpack.c.0.s8 %v1612
    %v1614 = vlaneseq
    %v1615 = vshrl.u32 %v1614, 7
    %v1616 = vsub.s32 %v1613, %v1615
    %v1617 = vrot.slane %v1603, %v1616
    %v1618 = vcombine.high %v1610, %v1610
    %v1619 = vcombine.high %v1617, %v1617
    %v1620 = vcombine.high %v1108, %v1108
    %v1622 = vunpack.c.l.s4 1983009808
    %v1623 = vunpack.c.0.s8 %v1622
    %v1624 = vlaneseq
    %v1625 = vshrl.u32 %v1624, 7
    %v1626 = vsub.s32 %v1623, %v1625
    %v1627 = vrot.slane %v1108, %v1626
    %v1629 = vunpack.c.l.s4 1983009808
    %v1630 = vunpack.c.0.s8 %v1629
    %v1631 = vlaneseq
    %v1632 = vshrl.u32 %v1631, 7
    %v1633 = vsub.s32 %v1630, %v1632
    %v1634 = vrot.slane %v1620, %v1633
    %v1635 = vcombine.high %v1627, %v1627
    %v1636 = vcombine.high %v1634, %v1634
    %v1637 = vcombine.high %v1109, %v1109
    %v1639 = vunpack.c.l.s4 1983009808
    %v1640 = vunpack.c.0.s8 %v1639
    %v1641 = vlaneseq
    %v1642 = vshrl.u32 %v1641, 7
    %v1643 = vsub.s32 %v1640, %v1642
    %v1644 = vrot.slane %v1109, %v1643
    %v1646 = vunpack.c.l.s4 1983009808
    %v1647 = vunpack.c.0.s8 %v1646
    %v1648 = vlaneseq
    %v1649 = vshrl.u32 %v1648, 7
    %v1650 = vsub.s32 %v1647, %v1649
    %v1651 = vrot.slane %v1637, %v1650
    %v1652 = vcombine.high %v1644, %v1644
    %v1653 = vcombine.high %v1651, %v1651
    %v1654 = vcombine.high %v1110, %v1110
    %v1656 = vunpack.c.l.s4 1983009808
    %v1657 = vunpack.c.0.s8 %v1656
    %v1658 = vlaneseq
    %v1659 = vshrl.u32 %v1658, 7
    %v1660 = vsub.s32 %v1657, %v1659
    %v1661 = vrot.slane %v1110, %v1660
    %v1663 = vunpack.c.l.s4 1983009808
    %v1664 = vunpack.c.0.s8 %v1663
    %v1665 = vlaneseq
    %v1666 = vshrl.u32 %v1665, 7
    %v1667 = vsub.s32 %v1664, %v1666
    %v1668 = vrot.slane %v1654, %v1667
    %v1669 = vcombine.high %v1661, %v1661
    %v1670 = vcombine.high %v1668, %v1668
    %v1671 = vcombine.high %v1111, %v1111
    %v1673 = vunpack.c.l.s4 1983009808
    %v1674 = vunpack.c.0.s8 %v1673
    %v1675 = vlaneseq
    %v1676 = vshrl.u32 %v1675, 7
    %v1677 = vsub.s32 %v1674, %v1676
    %v1678 = vrot.slane %v1111, %v1677
    %v1680 = vunpack.c.l.s4 1983009808
    %v1681 = vunpack.c.0.s8 %v1680
    %v1682 = vlaneseq
    %v1683 = vshrl.u32 %v1682, 7
    %v1684 = vsub.s32 %v1681, %v1683
    %v1685 = vrot.slane %v1671, %v1684
    %v1686 = vcombine.high %v1678, %v1678
    %v1687 = vcombine.high %v1685, %v1685
    %v1688 = vcombine.high %v1112, %v1112
    %v1690 = vunpack.c.l.s4 1983009808
    %v1691 = vunpack.c.0.s8 %v1690
    %v1692 = vlaneseq
    %v1693 = vshrl.u32 %v1692, 7
    %v1694 = vsub.s32 %v1691, %v1693
    %v1695 = vrot.slane %v1112, %v1694
    %v1697 = vunpack.c.l.s4 1983009808
    %v1698 = vunpack.c.0.s8 %v1697
    %v1699 = vlaneseq
    %v1700 = vshrl.u32 %v1699, 7
    %v1701 = vsub.s32 %v1698, %v1700
    %v1702 = vrot.slane %v1688, %v1701
    %v1703 = vcombine.high %v1695, %v1695
    %v1704 = vcombine.high %v1702, %v1702
    %v1705 = vcombine.high %v1113, %v1113
    %v1707 = vunpack.c.l.s4 1983009808
    %v1708 = vunpack.c.0.s8 %v1707
    %v1709 = vlaneseq
    %v1710 = vshrl.u32 %v1709, 7
    %v1711 = vsub.s32 %v1708, %v1710
    %v1712 = vrot.slane %v1113, %v1711
    %v1714 = vunpack.c.l.s4 1983009808
    %v1715 = vunpack.c.0.s8 %v1714
    %v1716 = vlaneseq
    %v1717 = vshrl.u32 %v1716, 7
    %v1718 = vsub.s32 %v1715, %v1717
    %v1719 = vrot.slane %v1705, %v1718
    %v1720 = vcombine.high %v1712, %v1712
    %v1721 = vcombine.high %v1719, %v1719
    %v1722 = vcombine.high %v1114, %v1114
    %v1724 = vunpack.c.l.s4 1983009808
    %v1725 = vunpack.c.0.s8 %v1724
    %v1726 = vlaneseq
    %v1727 = vshrl.u32 %v1726, 7
    %v1728 = vsub.s32 %v1725, %v1727
    %v1729 = vrot.slane %v1114, %v1728
    %v1731 = vunpack.c.l.s4 1983009808
    %v1732 = vunpack.c.0.s8 %v1731
    %v1733 = vlaneseq
    %v1734 = vshrl.u32 %v1733, 7
    %v1735 = vsub.s32 %v1732, %v1734
    %v1736 = vrot.slane %v1722, %v1735
    %v1737 = vcombine.high %v1729, %v1729
    %v1738 = vcombine.high %v1736, %v1736
    %v1739 = vcombine.high %v1115, %v1115
    %v1741 = vunpack.c.l.s4 1983009808
    %v1742 = vunpack.c.0.s8 %v1741
    %v1743 = vlaneseq
    %v1744 = vshrl.u32 %v1743, 7
    %v1745 = vsub.s32 %v1742, %v1744
    %v1746 = vrot.slane %v1115, %v1745
    %v1748 = vunpack.c.l.s4 1983009808
    %v1749 = vunpack.c.0.s8 %v1748
    %v1750 = vlaneseq
    %v1751 = vshrl.u32 %v1750, 7
    %v1752 = vsub.s32 %v1749, %v1751
    %v1753 = vrot.slane %v1739, %v1752
    %v1754 = vcombine.high %v1746, %v1746
    %v1755 = vcombine.high %v1753, %v1753
    %v1756 = vcombine.high %v1116, %v1116
    %v1758 = vunpack.c.l.s4 1983009808
    %v1759 = vunpack.c.0.s8 %v1758
    %v1760 = vlaneseq
    %v1761 = vshrl.u32 %v1760, 7
    %v1762 = vsub.s32 %v1759, %v1761
    %v1763 = vrot.slane %v1116, %v1762
    %v1765 = vunpack.c.l.s4 1983009808
    %v1766 = vunpack.c.0.s8 %v1765
    %v1767 = vlaneseq
    %v1768 = vshrl.u32 %v1767, 7
    %v1769 = vsub.s32 %v1766, %v1768
    %v1770 = vrot.slane %v1756, %v1769
    %v1771 = vcombine.high %v1763, %v1763
    %v1772 = vcombine.high %v1770, %v1770
    %v1773 = vcombine.high %v1117, %v1117
    %v1775 = vunpack.c.l.s4 1983009808
    %v1776 = vunpack.c.0.s8 %v1775
    %v1777 = vlaneseq
    %v1778 = vshrl.u32 %v1777, 7
    %v1779 = vsub.s32 %v1776, %v1778
    %v1780 = vrot.slane %v1117, %v1779
    %v1782 = vunpack.c.l.s4 1983009808
    %v1783 = vunpack.c.0.s8 %v1782
    %v1784 = vlaneseq
    %v1785 = vshrl.u32 %v1784, 7
    %v1786 = vsub.s32 %v1783, %v1785
    %v1787 = vrot.slane %v1773, %v1786
    %v1788 = vcombine.high %v1780, %v1780
    %v1789 = vcombine.high %v1787, %v1787
    %v1790 = vcombine.high %v1118, %v1118
    %v1792 = vunpack.c.l.s4 1983009808
    %v1793 = vunpack.c.0.s8 %v1792
    %v1794 = vlaneseq
    %v1795 = vshrl.u32 %v1794, 7
    %v1796 = vsub.s32 %v1793, %v1795
    %v1797 = vrot.slane %v1118, %v1796
    %v1799 = vunpack.c.l.s4 1983009808
    %v1800 = vunpack.c.0.s8 %v1799
    %v1801 = vlaneseq
    %v1802 = vshrl.u32 %v1801, 7
    %v1803 = vsub.s32 %v1800, %v1802
    %v1804 = vrot.slane %v1790, %v1803
    %v1805 = vcombine.high %v1797, %v1797
    %v1806 = vcombine.high %v1804, %v1804
    %v1807 = vcombine.high %v1119, %v1119
    %v1809 = vunpack.c.l.s4 1983009808
    %v1810 = vunpack.c.0.s8 %v1809
    %v1811 = vlaneseq
    %v1812 = vshrl.u32 %v1811, 7
    %v1813 = vsub.s32 %v1810, %v1812
    %v1814 = vrot.slane %v1119, %v1813
    %v1816 = vunpack.c.l.s4 1983009808
    %v1817 = vunpack.c.0.s8 %v1816
    %v1818 = vlaneseq
    %v1819 = vshrl.u32 %v1818, 7
    %v1820 = vsub.s32 %v1817, %v1819
    %v1821 = vrot.slane %v1807, %v1820
    %v1822 = vcombine.high %v1814, %v1814
    %v1823 = vcombine.high %v1821, %v1821
    %v1824 = vcombine.high %v1120, %v1120
    %v1826 = vunpack.c.l.s4 1983009808
    %v1827 = vunpack.c.0.s8 %v1826
    %v1828 = vlaneseq
    %v1829 = vshrl.u32 %v1828, 7
    %v1830 = vsub.s32 %v1827, %v1829
    %v1831 = vrot.slane %v1120, %v1830
    %v1833 = vunpack.c.l.s4 1983009808
    %v1834 = vunpack.c.0.s8 %v1833
    %v1835 = vlaneseq
    %v1836 = vshrl.u32 %v1835, 7
    %v1837 = vsub.s32 %v1834, %v1836
    %v1838 = vrot.slane %v1824, %v1837
    %v1839 = vcombine.high %v1831, %v1831
    %v1840 = vcombine.high %v1838, %v1838
    %v1841 = vcombine.high %v1121, %v1121
    %v1843 = vunpack.c.l.s4 1983009808
    %v1844 = vunpack.c.0.s8 %v1843
    %v1845 = vlaneseq
    %v1846 = vshrl.u32 %v1845, 7
    %v1847 = vsub.s32 %v1844, %v1846
    %v1848 = vrot.slane %v1121, %v1847
    %v1850 = vunpack.c.l.s4 1983009808
    %v1851 = vunpack.c.0.s8 %v1850
    %v1852 = vlaneseq
    %v1853 = vshrl.u32 %v1852, 7
    %v1854 = vsub.s32 %v1851, %v1853
    %v1855 = vrot.slane %v1841, %v1854
    %v1856 = vcombine.high %v1848, %v1848
    %v1857 = vcombine.high %v1855, %v1855
    %v1858 = vcombine.high %v1122, %v1122
    %v1860 = vunpack.c.l.s4 1983009808
    %v1861 = vunpack.c.0.s8 %v1860
    %v1862 = vlaneseq
    %v1863 = vshrl.u32 %v1862, 7
    %v1864 = vsub.s32 %v1861, %v1863
    %v1865 = vrot.slane %v1122, %v1864
    %v1867 = vunpack.c.l.s4 1983009808
    %v1868 = vunpack.c.0.s8 %v1867
    %v1869 = vlaneseq
    %v1870 = vshrl.u32 %v1869, 7
    %v1871 = vsub.s32 %v1868, %v1870
    %v1872 = vrot.slane %v1858, %v1871
    %v1873 = vcombine.high %v1865, %v1865
    %v1874 = vcombine.high %v1872, %v1872
    %v1875 = vcombine.high %v1123, %v1123
    %v1877 = vunpack.c.l.s4 1983009808
    %v1878 = vunpack.c.0.s8 %v1877
    %v1879 = vlaneseq
    %v1880 = vshrl.u32 %v1879, 7
    %v1881 = vsub.s32 %v1878, %v1880
    %v1882 = vrot.slane %v1123, %v1881
    %v1884 = vunpack.c.l.s4 1983009808
    %v1885 = vunpack.c.0.s8 %v1884
    %v1886 = vlaneseq
    %v1887 = vshrl.u32 %v1886, 7
    %v1888 = vsub.s32 %v1885, %v1887
    %v1889 = vrot.slane %v1875, %v1888
    %v1890 = vcombine.high %v1882, %v1882
    %v1891 = vcombine.high %v1889, %v1889
    %v1892 = vcombine.high %v1124, %v1124
    %v1894 = vunpack.c.l.s4 1983009808
    %v1895 = vunpack.c.0.s8 %v1894
    %v1896 = vlaneseq
    %v1897 = vshrl.u32 %v1896, 7
    %v1898 = vsub.s32 %v1895, %v1897
    %v1899 = vrot.slane %v1124, %v1898
    %v1901 = vunpack.c.l.s4 1983009808
    %v1902 = vunpack.c.0.s8 %v1901
    %v1903 = vlaneseq
    %v1904 = vshrl.u32 %v1903, 7
    %v1905 = vsub.s32 %v1902, %v1904
    %v1906 = vrot.slane %v1892, %v1905
    %v1907 = vcombine.high %v1899, %v1899
    %v1908 = vcombine.high %v1906, %v1906
    %v1909 = vcombine.high %v1125, %v1125
    %v1911 = vunpack.c.l.s4 1983009808
    %v1912 = vunpack.c.0.s8 %v1911
    %v1913 = vlaneseq
    %v1914 = vshrl.u32 %v1913, 7
    %v1915 = vsub.s32 %v1912, %v1914
    %v1916 = vrot.slane %v1125, %v1915
    %v1918 = vunpack.c.l.s4 1983009808
    %v1919 = vunpack.c.0.s8 %v1918
    %v1920 = vlaneseq
    %v1921 = vshrl.u32 %v1920, 7
    %v1922 = vsub.s32 %v1919, %v1921
    %v1923 = vrot.slane %v1909, %v1922
    %v1924 = vcombine.high %v1916, %v1916
    %v1925 = vcombine.high %v1923, %v1923
    %v1926 = vcombine.high %v1126, %v1126
    %v1928 = vunpack.c.l.s4 1983009808
    %v1929 = vunpack.c.0.s8 %v1928
    %v1930 = vlaneseq
    %v1931 = vshrl.u32 %v1930, 7
    %v1932 = vsub.s32 %v1929, %v1931
    %v1933 = vrot.slane %v1126, %v1932
    %v1935 = vunpack.c.l.s4 1983009808
    %v1936 = vunpack.c.0.s8 %v1935
    %v1937 = vlaneseq
    %v1938 = vshrl.u32 %v1937, 7
    %v1939 = vsub.s32 %v1936, %v1938
    %v1940 = vrot.slane %v1926, %v1939
    %v1941 = vcombine.high %v1933, %v1933
    %v1942 = vcombine.high %v1940, %v1940
    %v1943 = vcombine.high %v1127, %v1127
    %v1945 = vunpack.c.l.s4 1983009808
    %v1946 = vunpack.c.0.s8 %v1945
    %v1947 = vlaneseq
    %v1948 = vshrl.u32 %v1947, 7
    %v1949 = vsub.s32 %v1946, %v1948
    %v1950 = vrot.slane %v1127, %v1949
    %v1952 = vunpack.c.l.s4 1983009808
    %v1953 = vunpack.c.0.s8 %v1952
    %v1954 = vlaneseq
    %v1955 = vshrl.u32 %v1954, 7
    %v1956 = vsub.s32 %v1953, %v1955
    %v1957 = vrot.slane %v1943, %v1956
    %v1958 = vcombine.high %v1950, %v1950
    %v1959 = vcombine.high %v1957, %v1957
    %v1960 = vcombine.high %v1128, %v1128
    %v1962 = vunpack.c.l.s4 1983009808
    %v1963 = vunpack.c.0.s8 %v1962
    %v1964 = vlaneseq
    %v1965 = vshrl.u32 %v1964, 7
    %v1966 = vsub.s32 %v1963, %v1965
    %v1967 = vrot.slane %v1128, %v1966
    %v1969 = vunpack.c.l.s4 1983009808
    %v1970 = vunpack.c.0.s8 %v1969
    %v1971 = vlaneseq
    %v1972 = vshrl.u32 %v1971, 7
    %v1973 = vsub.s32 %v1970, %v1972
    %v1974 = vrot.slane %v1960, %v1973
    %v1975 = vcombine.high %v1967, %v1967
    %v1976 = vcombine.high %v1974, %v1974
    %v1977 = vcombine.high %v1129, %v1129
    %v1979 = vunpack.c.l.s4 1983009808
    %v1980 = vunpack.c.0.s8 %v1979
    %v1981 = vlaneseq
    %v1982 = vshrl.u32 %v1981, 7
    %v1983 = vsub.s32 %v1980, %v1982
    %v1984 = vrot.slane %v1129, %v1983
    %v1986 = vunpack.c.l.s4 1983009808
    %v1987 = vunpack.c.0.s8 %v1986
    %v1988 = vlaneseq
    %v1989 = vshrl.u32 %v1988, 7
    %v1990 = vsub.s32 %v1987, %v1989
    %v1991 = vrot.slane %v1977, %v1990
    %v1992 = vcombine.high %v1984, %v1984
    %v1993 = vcombine.high %v1991, %v1991
    %v1994 = vcombine.high %v1130, %v1130
    %v1996 = vunpack.c.l.s4 1983009808
    %v1997 = vunpack.c.0.s8 %v1996
    %v1998 = vlaneseq
    %v1999 = vshrl.u32 %v1998, 7
    %v2000 = vsub.s32 %v1997, %v1999
    %v2001 = vrot.slane %v1130, %v2000
    %v2003 = vunpack.c.l.s4 1983009808
    %v2004 = vunpack.c.0.s8 %v2003
    %v2005 = vlaneseq
    %v2006 = vshrl.u32 %v2005, 7
    %v2007 = vsub.s32 %v2004, %v2006
    %v2008 = vrot.slane %v1994, %v2007
    %v2009 = vcombine.high %v2001, %v2001
    %v2010 = vcombine.high %v2008, %v2008
    %v2011 = vcombine.high %v1131, %v1131
    %v2013 = vunpack.c.l.s4 1983009808
    %v2014 = vunpack.c.0.s8 %v2013
    %v2015 = vlaneseq
    %v2016 = vshrl.u32 %v2015, 7
    %v2017 = vsub.s32 %v2014, %v2016
    %v2018 = vrot.slane %v1131, %v2017
    %v2020 = vunpack.c.l.s4 1983009808
    %v2021 = vunpack.c.0.s8 %v2020
    %v2022 = vlaneseq
    %v2023 = vshrl.u32 %v2022, 7
    %v2024 = vsub.s32 %v2021, %v2023
    %v2025 = vrot.slane %v2011, %v2024
    %v2026 = vcombine.high %v2018, %v2018
    %v2027 = vcombine.high %v2025, %v2025
    %v2028 = vcombine.high %v1132, %v1132
    %v2030 = vunpack.c.l.s4 1983009808
    %v2031 = vunpack.c.0.s8 %v2030
    %v2032 = vlaneseq
    %v2033 = vshrl.u32 %v2032, 7
    %v2034 = vsub.s32 %v2031, %v2033
    %v2035 = vrot.slane %v1132, %v2034
    %v2037 = vunpack.c.l.s4 1983009808
    %v2038 = vunpack.c.0.s8 %v2037
    %v2039 = vlaneseq
    %v2040 = vshrl.u32 %v2039, 7
    %v2041 = vsub.s32 %v2038, %v2040
    %v2042 = vrot.slane %v2028, %v2041
    %v2043 = vcombine.high %v2035, %v2035
    %v2044 = vcombine.high %v2042, %v2042
    %v2045 = vcombine.high %v1133, %v1133
    %v2047 = vunpack.c.l.s4 1983009808
    %v2048 = vunpack.c.0.s8 %v2047
    %v2049 = vlaneseq
    %v2050 = vshrl.u32 %v2049, 7
    %v2051 = vsub.s32 %v2048, %v2050
    %v2052 = vrot.slane %v1133, %v2051
    %v2054 = vunpack.c.l.s4 1983009808
    %v2055 = vunpack.c.0.s8 %v2054
    %v2056 = vlaneseq
    %v2057 = vshrl.u32 %v2056, 7
    %v2058 = vsub.s32 %v2055, %v2057
    %v2059 = vrot.slane %v2045, %v2058
    %v2060 = vcombine.high %v2052, %v2052
    %v2061 = vcombine.high %v2059, %v2059
    %v2062 = vcombine.high %v1134, %v1134
    %v2064 = vunpack.c.l.s4 1983009808
    %v2065 = vunpack.c.0.s8 %v2064
    %v2066 = vlaneseq
    %v2067 = vshrl.u32 %v2066, 7
    %v2068 = vsub.s32 %v2065, %v2067
    %v2069 = vrot.slane %v1134, %v2068
    %v2071 = vunpack.c.l.s4 1983009808
    %v2072 = vunpack.c.0.s8 %v2071
    %v2073 = vlaneseq
    %v2074 = vshrl.u32 %v2073, 7
    %v2075 = vsub.s32 %v2072, %v2074
    %v2076 = vrot.slane %v2062, %v2075
    %v2077 = vcombine.high %v2069, %v2069
    %v2078 = vcombine.high %v2076, %v2076
    %v2079 = vcombine.high %v1135, %v1135
    %v2081 = vunpack.c.l.s4 1983009808
    %v2082 = vunpack.c.0.s8 %v2081
    %v2083 = vlaneseq
    %v2084 = vshrl.u32 %v2083, 7
    %v2085 = vsub.s32 %v2082, %v2084
    %v2086 = vrot.slane %v1135, %v2085
    %v2088 = vunpack.c.l.s4 1983009808
    %v2089 = vunpack.c.0.s8 %v2088
    %v2090 = vlaneseq
    %v2091 = vshrl.u32 %v2090, 7
    %v2092 = vsub.s32 %v2089, %v2091
    %v2093 = vrot.slane %v2079, %v2092
    %v2094 = vcombine.high %v2086, %v2086
    %v2095 = vcombine.high %v2093, %v2093
    %v2096 = vcombine.high %v1136, %v1136
    %v2098 = vunpack.c.l.s4 1983009808
    %v2099 = vunpack.c.0.s8 %v2098
    %v2100 = vlaneseq
    %v2101 = vshrl.u32 %v2100, 7
    %v2102 = vsub.s32 %v2099, %v2101
    %v2103 = vrot.slane %v1136, %v2102
    %v2105 = vunpack.c.l.s4 1983009808
    %v2106 = vunpack.c.0.s8 %v2105
    %v2107 = vlaneseq
    %v2108 = vshrl.u32 %v2107, 7
    %v2109 = vsub.s32 %v2106, %v2108
    %v2110 = vrot.slane %v2096, %v2109
    %v2111 = vcombine.high %v2103, %v2103
    %v2112 = vcombine.high %v2110, %v2110
    %v2113 = vcombine.high %v1137, %v1137
    %v2115 = vunpack.c.l.s4 1983009808
    %v2116 = vunpack.c.0.s8 %v2115
    %v2117 = vlaneseq
    %v2118 = vshrl.u32 %v2117, 7
    %v2119 = vsub.s32 %v2116, %v2118
    %v2120 = vrot.slane %v1137, %v2119
    %v2122 = vunpack.c.l.s4 1983009808
    %v2123 = vunpack.c.0.s8 %v2122
    %v2124 = vlaneseq
    %v2125 = vshrl.u32 %v2124, 7
    %v2126 = vsub.s32 %v2123, %v2125
    %v2127 = vrot.slane %v2113, %v2126
    %v2128 = vcombine.high %v2120, %v2120
    %v2129 = vcombine.high %v2127, %v2127
    %v2130 = vcombine.high %v1138, %v1138
    %v2132 = vunpack.c.l.s4 1983009808
    %v2133 = vunpack.c.0.s8 %v2132
    %v2134 = vlaneseq
    %v2135 = vshrl.u32 %v2134, 7
    %v2136 = vsub.s32 %v2133, %v2135
    %v2137 = vrot.slane %v1138, %v2136
    %v2139 = vunpack.c.l.s4 1983009808
    %v2140 = vunpack.c.0.s8 %v2139
    %v2141 = vlaneseq
    %v2142 = vshrl.u32 %v2141, 7
    %v2143 = vsub.s32 %v2140, %v2142
    %v2144 = vrot.slane %v2130, %v2143
    %v2145 = vcombine.high %v2137, %v2137
    %v2146 = vcombine.high %v2144, %v2144
    %v2147 = vcombine.high %v1139, %v1139
    %v2149 = vunpack.c.l.s4 1983009808
    %v2150 = vunpack.c.0.s8 %v2149
    %v2151 = vlaneseq
    %v2152 = vshrl.u32 %v2151, 7
    %v2153 = vsub.s32 %v2150, %v2152
    %v2154 = vrot.slane %v1139, %v2153
    %v2156 = vunpack.c.l.s4 1983009808
    %v2157 = vunpack.c.0.s8 %v2156
    %v2158 = vlaneseq
    %v2159 = vshrl.u32 %v2158, 7
    %v2160 = vsub.s32 %v2157, %v2159
    %v2161 = vrot.slane %v2147, %v2160
    %v2162 = vcombine.high %v2154, %v2154
    %v2163 = vcombine.high %v2161, %v2161
    %v2164 = vcombine.high %v1140, %v1140
    %v2166 = vunpack.c.l.s4 1983009808
    %v2167 = vunpack.c.0.s8 %v2166
    %v2168 = vlaneseq
    %v2169 = vshrl.u32 %v2168, 7
    %v2170 = vsub.s32 %v2167, %v2169
    %v2171 = vrot.slane %v1140, %v2170
    %v2173 = vunpack.c.l.s4 1983009808
    %v2174 = vunpack.c.0.s8 %v2173
    %v2175 = vlaneseq
    %v2176 = vshrl.u32 %v2175, 7
    %v2177 = vsub.s32 %v2174, %v2176
    %v2178 = vrot.slane %v2164, %v2177
    %v2179 = vcombine.high %v2171, %v2171
    %v2180 = vcombine.high %v2178, %v2178
    %v2181 = vcombine.high %v1141, %v1141
    %v2183 = vunpack.c.l.s4 1983009808
    %v2184 = vunpack.c.0.s8 %v2183
    %v2185 = vlaneseq
    %v2186 = vshrl.u32 %v2185, 7
    %v2187 = vsub.s32 %v2184, %v2186
    %v2188 = vrot.slane %v1141, %v2187
    %v2190 = vunpack.c.l.s4 1983009808
    %v2191 = vunpack.c.0.s8 %v2190
    %v2192 = vlaneseq
    %v2193 = vshrl.u32 %v2192, 7
    %v2194 = vsub.s32 %v2191, %v2193
    %v2195 = vrot.slane %v2181, %v2194
    %v2196 = vcombine.high %v2188, %v2188
    %v2197 = vcombine.high %v2195, %v2195
    %v2198 = vcombine.high %v1142, %v1142
    %v2200 = vunpack.c.l.s4 1983009808
    %v2201 = vunpack.c.0.s8 %v2200
    %v2202 = vlaneseq
    %v2203 = vshrl.u32 %v2202, 7
    %v2204 = vsub.s32 %v2201, %v2203
    %v2205 = vrot.slane %v1142, %v2204
    %v2207 = vunpack.c.l.s4 1983009808
    %v2208 = vunpack.c.0.s8 %v2207
    %v2209 = vlaneseq
    %v2210 = vshrl.u32 %v2209, 7
    %v2211 = vsub.s32 %v2208, %v2210
    %v2212 = vrot.slane %v2198, %v2211
    %v2213 = vcombine.high %v2205, %v2205
    %v2214 = vcombine.high %v2212, %v2212
    %v2215 = vcombine.high %v1143, %v1143
    %v2217 = vunpack.c.l.s4 1983009808
    %v2218 = vunpack.c.0.s8 %v2217
    %v2219 = vlaneseq
    %v2220 = vshrl.u32 %v2219, 7
    %v2221 = vsub.s32 %v2218, %v2220
    %v2222 = vrot.slane %v1143, %v2221
    %v2224 = vunpack.c.l.s4 1983009808
    %v2225 = vunpack.c.0.s8 %v2224
    %v2226 = vlaneseq
    %v2227 = vshrl.u32 %v2226, 7
    %v2228 = vsub.s32 %v2225, %v2227
    %v2229 = vrot.slane %v2215, %v2228
    %v2230 = vcombine.high %v2222, %v2222
    %v2231 = vcombine.high %v2229, %v2229
    %v2232 = vcombine.high %v1144, %v1144
    %v2234 = vunpack.c.l.s4 1983009808
    %v2235 = vunpack.c.0.s8 %v2234
    %v2236 = vlaneseq
    %v2237 = vshrl.u32 %v2236, 7
    %v2238 = vsub.s32 %v2235, %v2237
    %v2239 = vrot.slane %v1144, %v2238
    %v2241 = vunpack.c.l.s4 1983009808
    %v2242 = vunpack.c.0.s8 %v2241
    %v2243 = vlaneseq
    %v2244 = vshrl.u32 %v2243, 7
    %v2245 = vsub.s32 %v2242, %v2244
    %v2246 = vrot.slane %v2232, %v2245
    %v2247 = vcombine.high %v2239, %v2239
    %v2248 = vcombine.high %v2246, %v2246
    %v2249 = vcombine.high %v1145, %v1145
    %v2251 = vunpack.c.l.s4 1983009808
    %v2252 = vunpack.c.0.s8 %v2251
    %v2253 = vlaneseq
    %v2254 = vshrl.u32 %v2253, 7
    %v2255 = vsub.s32 %v2252, %v2254
    %v2256 = vrot.slane %v1145, %v2255
    %v2258 = vunpack.c.l.s4 1983009808
    %v2259 = vunpack.c.0.s8 %v2258
    %v2260 = vlaneseq
    %v2261 = vshrl.u32 %v2260, 7
    %v2262 = vsub.s32 %v2259, %v2261
    %v2263 = vrot.slane %v2249, %v2262
    %v2264 = vcombine.high %v2256, %v2256
    %v2265 = vcombine.high %v2263, %v2263
    %v2266 = vcombine.high %v1146, %v1146
    %v2268 = vunpack.c.l.s4 1983009808
    %v2269 = vunpack.c.0.s8 %v2268
    %v2270 = vlaneseq
    %v2271 = vshrl.u32 %v2270, 7
    %v2272 = vsub.s32 %v2269, %v2271
    %v2273 = vrot.slane %v1146, %v2272
    %v2275 = vunpack.c.l.s4 1983009808
    %v2276 = vunpack.c.0.s8 %v2275
    %v2277 = vlaneseq
    %v2278 = vshrl.u32 %v2277, 7
    %v2279 = vsub.s32 %v2276, %v2278
    %v2280 = vrot.slane %v2266, %v2279
    %v2281 = vcombine.high %v2273, %v2273
    %v2282 = vcombine.high %v2280, %v2280
    %v2283 = vcombine.high %v1147, %v1147
    %v2285 = vunpack.c.l.s4 1983009808
    %v2286 = vunpack.c.0.s8 %v2285
    %v2287 = vlaneseq
    %v2288 = vshrl.u32 %v2287, 7
    %v2289 = vsub.s32 %v2286, %v2288
    %v2290 = vrot.slane %v1147, %v2289
    %v2292 = vunpack.c.l.s4 1983009808
    %v2293 = vunpack.c.0.s8 %v2292
    %v2294 = vlaneseq
    %v2295 = vshrl.u32 %v2294, 7
    %v2296 = vsub.s32 %v2293, %v2295
    %v2297 = vrot.slane %v2283, %v2296
    %v2298 = vcombine.high %v2290, %v2290
    %v2299 = vcombine.high %v2297, %v2297
    %v2556 = vsel %vm212, %v1219, -inf
    %v2557 = vrot.slane %v2556, 4
    %v2558 = vmax.f32 %v2556, %v2557
    %v2559 = vrot.slane %v2558, 2
    %v2560 = vmax.f32 %v2558, %v2559
    %v2561 = vrot.slane %v2560, 1
    %v2562 = vmax.f32 %v2560, %v2561
    %v2563 = vsel %vm212, %v1227, -inf
    %v2564 = vrot.slane %v2563, 4
    %v2565 = vmax.f32 %v2563, %v2564
    %v2566 = vrot.slane %v2565, 2
    %v2567 = vmax.f32 %v2565, %v2566
    %v2568 = vrot.slane %v2567, 1
    %v2569 = vmax.f32 %v2567, %v2568
    %v2570 = vsel %vm212, %v1226, -inf
    %v2571 = vrot.slane %v2570, 4
    %v2572 = vmax.f32 %v2570, %v2571
    %v2573 = vrot.slane %v2572, 2
    %v2574 = vmax.f32 %v2572, %v2573
    %v2575 = vrot.slane %v2574, 1
    %v2576 = vmax.f32 %v2574, %v2575
    %v2577 = vsel %vm212, %v1228, -inf
    %v2578 = vrot.slane %v2577, 4
    %v2579 = vmax.f32 %v2577, %v2578
    %v2580 = vrot.slane %v2579, 2
    %v2581 = vmax.f32 %v2579, %v2580
    %v2582 = vrot.slane %v2581, 1
    %v2583 = vmax.f32 %v2581, %v2582
    %v2584 = vsel %vm212, %v1236, -inf
    %v2585 = vrot.slane %v2584, 4
    %v2586 = vmax.f32 %v2584, %v2585
    %v2587 = vrot.slane %v2586, 2
    %v2588 = vmax.f32 %v2586, %v2587
    %v2589 = vrot.slane %v2588, 1
    %v2590 = vmax.f32 %v2588, %v2589
    %v2591 = vsel %vm212, %v1244, -inf
    %v2592 = vrot.slane %v2591, 4
    %v2593 = vmax.f32 %v2591, %v2592
    %v2594 = vrot.slane %v2593, 2
    %v2595 = vmax.f32 %v2593, %v2594
    %v2596 = vrot.slane %v2595, 1
    %v2597 = vmax.f32 %v2595, %v2596
    %v2598 = vsel %vm212, %v1243, -inf
    %v2599 = vrot.slane %v2598, 4
    %v2600 = vmax.f32 %v2598, %v2599
    %v2601 = vrot.slane %v2600, 2
    %v2602 = vmax.f32 %v2600, %v2601
    %v2603 = vrot.slane %v2602, 1
    %v2604 = vmax.f32 %v2602, %v2603
    %v2605 = vsel %vm212, %v1245, -inf
    %v2606 = vrot.slane %v2605, 4
    %v2607 = vmax.f32 %v2605, %v2606
    %v2608 = vrot.slane %v2607, 2
    %v2609 = vmax.f32 %v2607, %v2608
    %v2610 = vrot.slane %v2609, 1
    %v2611 = vmax.f32 %v2609, %v2610
    %v2612 = vsel %vm212, %v1253, -inf
    %v2613 = vrot.slane %v2612, 4
    %v2614 = vmax.f32 %v2612, %v2613
    %v2615 = vrot.slane %v2614, 2
    %v2616 = vmax.f32 %v2614, %v2615
    %v2617 = vrot.slane %v2616, 1
    %v2618 = vmax.f32 %v2616, %v2617
    %v2619 = vsel %vm212, %v1261, -inf
    %v2620 = vrot.slane %v2619, 4
    %v2621 = vmax.f32 %v2619, %v2620
    %v2622 = vrot.slane %v2621, 2
    %v2623 = vmax.f32 %v2621, %v2622
    %v2624 = vrot.slane %v2623, 1
    %v2625 = vmax.f32 %v2623, %v2624
    %v2626 = vsel %vm212, %v1260, -inf
    %v2627 = vrot.slane %v2626, 4
    %v2628 = vmax.f32 %v2626, %v2627
    %v2629 = vrot.slane %v2628, 2
    %v2630 = vmax.f32 %v2628, %v2629
    %v2631 = vrot.slane %v2630, 1
    %v2632 = vmax.f32 %v2630, %v2631
    %v2633 = vsel %vm212, %v1262, -inf
    %v2634 = vrot.slane %v2633, 4
    %v2635 = vmax.f32 %v2633, %v2634
    %v2636 = vrot.slane %v2635, 2
    %v2637 = vmax.f32 %v2635, %v2636
    %v2638 = vrot.slane %v2637, 1
    %v2639 = vmax.f32 %v2637, %v2638
    %v2640 = vsel %vm212, %v1270, -inf
    %v2641 = vrot.slane %v2640, 4
    %v2642 = vmax.f32 %v2640, %v2641
    %v2643 = vrot.slane %v2642, 2
    %v2644 = vmax.f32 %v2642, %v2643
    %v2645 = vrot.slane %v2644, 1
    %v2646 = vmax.f32 %v2644, %v2645
    %v2647 = vsel %vm212, %v1278, -inf
    %v2648 = vrot.slane %v2647, 4
    %v2649 = vmax.f32 %v2647, %v2648
    %v2650 = vrot.slane %v2649, 2
    %v2651 = vmax.f32 %v2649, %v2650
    %v2652 = vrot.slane %v2651, 1
    %v2653 = vmax.f32 %v2651, %v2652
    %v2654 = vsel %vm212, %v1277, -inf
    %v2655 = vrot.slane %v2654, 4
    %v2656 = vmax.f32 %v2654, %v2655
    %v2657 = vrot.slane %v2656, 2
    %v2658 = vmax.f32 %v2656, %v2657
    %v2659 = vrot.slane %v2658, 1
    %v2660 = vmax.f32 %v2658, %v2659
    %v2661 = vsel %vm212, %v1279, -inf
    %v2662 = vrot.slane %v2661, 4
    %v2663 = vmax.f32 %v2661, %v2662
    %v2664 = vrot.slane %v2663, 2
    %v2665 = vmax.f32 %v2663, %v2664
    %v2666 = vrot.slane %v2665, 1
    %v2667 = vmax.f32 %v2665, %v2666
    %v2668 = vsel %vm212, %v1287, -inf
    %v2669 = vrot.slane %v2668, 4
    %v2670 = vmax.f32 %v2668, %v2669
    %v2671 = vrot.slane %v2670, 2
    %v2672 = vmax.f32 %v2670, %v2671
    %v2673 = vrot.slane %v2672, 1
    %v2674 = vmax.f32 %v2672, %v2673
    %v2675 = vsel %vm212, %v1295, -inf
    %v2676 = vrot.slane %v2675, 4
    %v2677 = vmax.f32 %v2675, %v2676
    %v2678 = vrot.slane %v2677, 2
    %v2679 = vmax.f32 %v2677, %v2678
    %v2680 = vrot.slane %v2679, 1
    %v2681 = vmax.f32 %v2679, %v2680
    %v2682 = vsel %vm212, %v1294, -inf
    %v2683 = vrot.slane %v2682, 4
    %v2684 = vmax.f32 %v2682, %v2683
    %v2685 = vrot.slane %v2684, 2
    %v2686 = vmax.f32 %v2684, %v2685
    %v2687 = vrot.slane %v2686, 1
    %v2688 = vmax.f32 %v2686, %v2687
    %v2689 = vsel %vm212, %v1296, -inf
    %v2690 = vrot.slane %v2689, 4
    %v2691 = vmax.f32 %v2689, %v2690
    %v2692 = vrot.slane %v2691, 2
    %v2693 = vmax.f32 %v2691, %v2692
    %v2694 = vrot.slane %v2693, 1
    %v2695 = vmax.f32 %v2693, %v2694
    %v2696 = vsel %vm212, %v1304, -inf
    %v2697 = vrot.slane %v2696, 4
    %v2698 = vmax.f32 %v2696, %v2697
    %v2699 = vrot.slane %v2698, 2
    %v2700 = vmax.f32 %v2698, %v2699
    %v2701 = vrot.slane %v2700, 1
    %v2702 = vmax.f32 %v2700, %v2701
    %v2703 = vsel %vm212, %v1312, -inf
    %v2704 = vrot.slane %v2703, 4
    %v2705 = vmax.f32 %v2703, %v2704
    %v2706 = vrot.slane %v2705, 2
    %v2707 = vmax.f32 %v2705, %v2706
    %v2708 = vrot.slane %v2707, 1
    %v2709 = vmax.f32 %v2707, %v2708
    %v2710 = vsel %vm212, %v1311, -inf
    %v2711 = vrot.slane %v2710, 4
    %v2712 = vmax.f32 %v2710, %v2711
    %v2713 = vrot.slane %v2712, 2
    %v2714 = vmax.f32 %v2712, %v2713
    %v2715 = vrot.slane %v2714, 1
    %v2716 = vmax.f32 %v2714, %v2715
    %v2717 = vsel %vm212, %v1313, -inf
    %v2718 = vrot.slane %v2717, 4
    %v2719 = vmax.f32 %v2717, %v2718
    %v2720 = vrot.slane %v2719, 2
    %v2721 = vmax.f32 %v2719, %v2720
    %v2722 = vrot.slane %v2721, 1
    %v2723 = vmax.f32 %v2721, %v2722
    %v2724 = vsel %vm212, %v1321, -inf
    %v2725 = vrot.slane %v2724, 4
    %v2726 = vmax.f32 %v2724, %v2725
    %v2727 = vrot.slane %v2726, 2
    %v2728 = vmax.f32 %v2726, %v2727
    %v2729 = vrot.slane %v2728, 1
    %v2730 = vmax.f32 %v2728, %v2729
    %v2731 = vsel %vm212, %v1329, -inf
    %v2732 = vrot.slane %v2731, 4
    %v2733 = vmax.f32 %v2731, %v2732
    %v2734 = vrot.slane %v2733, 2
    %v2735 = vmax.f32 %v2733, %v2734
    %v2736 = vrot.slane %v2735, 1
    %v2737 = vmax.f32 %v2735, %v2736
    %v2738 = vsel %vm212, %v1328, -inf
    %v2739 = vrot.slane %v2738, 4
    %v2740 = vmax.f32 %v2738, %v2739
    %v2741 = vrot.slane %v2740, 2
    %v2742 = vmax.f32 %v2740, %v2741
    %v2743 = vrot.slane %v2742, 1
    %v2744 = vmax.f32 %v2742, %v2743
    %v2745 = vsel %vm212, %v1330, -inf
    %v2746 = vrot.slane %v2745, 4
    %v2747 = vmax.f32 %v2745, %v2746
    %v2748 = vrot.slane %v2747, 2
    %v2749 = vmax.f32 %v2747, %v2748
    %v2750 = vrot.slane %v2749, 1
    %v2751 = vmax.f32 %v2749, %v2750
    %v2752 = vsel %vm212, %v1338, -inf
    %v2753 = vrot.slane %v2752, 4
    %v2754 = vmax.f32 %v2752, %v2753
    %v2755 = vrot.slane %v2754, 2
    %v2756 = vmax.f32 %v2754, %v2755
    %v2757 = vrot.slane %v2756, 1
    %v2758 = vmax.f32 %v2756, %v2757
    %v2759 = vsel %vm212, %v1346, -inf
    %v2760 = vrot.slane %v2759, 4
    %v2761 = vmax.f32 %v2759, %v2760
    %v2762 = vrot.slane %v2761, 2
    %v2763 = vmax.f32 %v2761, %v2762
    %v2764 = vrot.slane %v2763, 1
    %v2765 = vmax.f32 %v2763, %v2764
    %v2766 = vsel %vm212, %v1345, -inf
    %v2767 = vrot.slane %v2766, 4
    %v2768 = vmax.f32 %v2766, %v2767
    %v2769 = vrot.slane %v2768, 2
    %v2770 = vmax.f32 %v2768, %v2769
    %v2771 = vrot.slane %v2770, 1
    %v2772 = vmax.f32 %v2770, %v2771
    %v2773 = vsel %vm212, %v1347, -inf
    %v2774 = vrot.slane %v2773, 4
    %v2775 = vmax.f32 %v2773, %v2774
    %v2776 = vrot.slane %v2775, 2
    %v2777 = vmax.f32 %v2775, %v2776
    %v2778 = vrot.slane %v2777, 1
    %v2779 = vmax.f32 %v2777, %v2778
    %v2780 = vsel %vm212, %v1355, -inf
    %v2781 = vrot.slane %v2780, 4
    %v2782 = vmax.f32 %v2780, %v2781
    %v2783 = vrot.slane %v2782, 2
    %v2784 = vmax.f32 %v2782, %v2783
    %v2785 = vrot.slane %v2784, 1
    %v2786 = vmax.f32 %v2784, %v2785
    %v2787 = vsel %vm212, %v1363, -inf
    %v2788 = vrot.slane %v2787, 4
    %v2789 = vmax.f32 %v2787, %v2788
    %v2790 = vrot.slane %v2789, 2
    %v2791 = vmax.f32 %v2789, %v2790
    %v2792 = vrot.slane %v2791, 1
    %v2793 = vmax.f32 %v2791, %v2792
    %v2794 = vsel %vm212, %v1362, -inf
    %v2795 = vrot.slane %v2794, 4
    %v2796 = vmax.f32 %v2794, %v2795
    %v2797 = vrot.slane %v2796, 2
    %v2798 = vmax.f32 %v2796, %v2797
    %v2799 = vrot.slane %v2798, 1
    %v2800 = vmax.f32 %v2798, %v2799
    %v2801 = vsel %vm212, %v1364, -inf
    %v2802 = vrot.slane %v2801, 4
    %v2803 = vmax.f32 %v2801, %v2802
    %v2804 = vrot.slane %v2803, 2
    %v2805 = vmax.f32 %v2803, %v2804
    %v2806 = vrot.slane %v2805, 1
    %v2807 = vmax.f32 %v2805, %v2806
    %v2808 = vsel %vm212, %v1372, -inf
    %v2809 = vrot.slane %v2808, 4
    %v2810 = vmax.f32 %v2808, %v2809
    %v2811 = vrot.slane %v2810, 2
    %v2812 = vmax.f32 %v2810, %v2811
    %v2813 = vrot.slane %v2812, 1
    %v2814 = vmax.f32 %v2812, %v2813
    %v2815 = vsel %vm212, %v1380, -inf
    %v2816 = vrot.slane %v2815, 4
    %v2817 = vmax.f32 %v2815, %v2816
    %v2818 = vrot.slane %v2817, 2
    %v2819 = vmax.f32 %v2817, %v2818
    %v2820 = vrot.slane %v2819, 1
    %v2821 = vmax.f32 %v2819, %v2820
    %v2822 = vsel %vm212, %v1379, -inf
    %v2823 = vrot.slane %v2822, 4
    %v2824 = vmax.f32 %v2822, %v2823
    %v2825 = vrot.slane %v2824, 2
    %v2826 = vmax.f32 %v2824, %v2825
    %v2827 = vrot.slane %v2826, 1
    %v2828 = vmax.f32 %v2826, %v2827
    %v2829 = vsel %vm212, %v1381, -inf
    %v2830 = vrot.slane %v2829, 4
    %v2831 = vmax.f32 %v2829, %v2830
    %v2832 = vrot.slane %v2831, 2
    %v2833 = vmax.f32 %v2831, %v2832
    %v2834 = vrot.slane %v2833, 1
    %v2835 = vmax.f32 %v2833, %v2834
    %v2836 = vsel %vm212, %v1389, -inf
    %v2837 = vrot.slane %v2836, 4
    %v2838 = vmax.f32 %v2836, %v2837
    %v2839 = vrot.slane %v2838, 2
    %v2840 = vmax.f32 %v2838, %v2839
    %v2841 = vrot.slane %v2840, 1
    %v2842 = vmax.f32 %v2840, %v2841
    %v2843 = vsel %vm212, %v1397, -inf
    %v2844 = vrot.slane %v2843, 4
    %v2845 = vmax.f32 %v2843, %v2844
    %v2846 = vrot.slane %v2845, 2
    %v2847 = vmax.f32 %v2845, %v2846
    %v2848 = vrot.slane %v2847, 1
    %v2849 = vmax.f32 %v2847, %v2848
    %v2850 = vsel %vm212, %v1396, -inf
    %v2851 = vrot.slane %v2850, 4
    %v2852 = vmax.f32 %v2850, %v2851
    %v2853 = vrot.slane %v2852, 2
    %v2854 = vmax.f32 %v2852, %v2853
    %v2855 = vrot.slane %v2854, 1
    %v2856 = vmax.f32 %v2854, %v2855
    %v2857 = vsel %vm212, %v1398, -inf
    %v2858 = vrot.slane %v2857, 4
    %v2859 = vmax.f32 %v2857, %v2858
    %v2860 = vrot.slane %v2859, 2
    %v2861 = vmax.f32 %v2859, %v2860
    %v2862 = vrot.slane %v2861, 1
    %v2863 = vmax.f32 %v2861, %v2862
    %v2864 = vsel %vm212, %v1406, -inf
    %v2865 = vrot.slane %v2864, 4
    %v2866 = vmax.f32 %v2864, %v2865
    %v2867 = vrot.slane %v2866, 2
    %v2868 = vmax.f32 %v2866, %v2867
    %v2869 = vrot.slane %v2868, 1
    %v2870 = vmax.f32 %v2868, %v2869
    %v2871 = vsel %vm212, %v1414, -inf
    %v2872 = vrot.slane %v2871, 4
    %v2873 = vmax.f32 %v2871, %v2872
    %v2874 = vrot.slane %v2873, 2
    %v2875 = vmax.f32 %v2873, %v2874
    %v2876 = vrot.slane %v2875, 1
    %v2877 = vmax.f32 %v2875, %v2876
    %v2878 = vsel %vm212, %v1413, -inf
    %v2879 = vrot.slane %v2878, 4
    %v2880 = vmax.f32 %v2878, %v2879
    %v2881 = vrot.slane %v2880, 2
    %v2882 = vmax.f32 %v2880, %v2881
    %v2883 = vrot.slane %v2882, 1
    %v2884 = vmax.f32 %v2882, %v2883
    %v2885 = vsel %vm212, %v1415, -inf
    %v2886 = vrot.slane %v2885, 4
    %v2887 = vmax.f32 %v2885, %v2886
    %v2888 = vrot.slane %v2887, 2
    %v2889 = vmax.f32 %v2887, %v2888
    %v2890 = vrot.slane %v2889, 1
    %v2891 = vmax.f32 %v2889, %v2890
    %v2892 = vsel %vm212, %v1423, -inf
    %v2893 = vrot.slane %v2892, 4
    %v2894 = vmax.f32 %v2892, %v2893
    %v2895 = vrot.slane %v2894, 2
    %v2896 = vmax.f32 %v2894, %v2895
    %v2897 = vrot.slane %v2896, 1
    %v2898 = vmax.f32 %v2896, %v2897
    %v2899 = vsel %vm212, %v1431, -inf
    %v2900 = vrot.slane %v2899, 4
    %v2901 = vmax.f32 %v2899, %v2900
    %v2902 = vrot.slane %v2901, 2
    %v2903 = vmax.f32 %v2901, %v2902
    %v2904 = vrot.slane %v2903, 1
    %v2905 = vmax.f32 %v2903, %v2904
    %v2906 = vsel %vm212, %v1430, -inf
    %v2907 = vrot.slane %v2906, 4
    %v2908 = vmax.f32 %v2906, %v2907
    %v2909 = vrot.slane %v2908, 2
    %v2910 = vmax.f32 %v2908, %v2909
    %v2911 = vrot.slane %v2910, 1
    %v2912 = vmax.f32 %v2910, %v2911
    %v2913 = vsel %vm212, %v1432, -inf
    %v2914 = vrot.slane %v2913, 4
    %v2915 = vmax.f32 %v2913, %v2914
    %v2916 = vrot.slane %v2915, 2
    %v2917 = vmax.f32 %v2915, %v2916
    %v2918 = vrot.slane %v2917, 1
    %v2919 = vmax.f32 %v2917, %v2918
    %v2920 = vsel %vm212, %v1440, -inf
    %v2921 = vrot.slane %v2920, 4
    %v2922 = vmax.f32 %v2920, %v2921
    %v2923 = vrot.slane %v2922, 2
    %v2924 = vmax.f32 %v2922, %v2923
    %v2925 = vrot.slane %v2924, 1
    %v2926 = vmax.f32 %v2924, %v2925
    %v2927 = vsel %vm212, %v1448, -inf
    %v2928 = vrot.slane %v2927, 4
    %v2929 = vmax.f32 %v2927, %v2928
    %v2930 = vrot.slane %v2929, 2
    %v2931 = vmax.f32 %v2929, %v2930
    %v2932 = vrot.slane %v2931, 1
    %v2933 = vmax.f32 %v2931, %v2932
    %v2934 = vsel %vm212, %v1447, -inf
    %v2935 = vrot.slane %v2934, 4
    %v2936 = vmax.f32 %v2934, %v2935
    %v2937 = vrot.slane %v2936, 2
    %v2938 = vmax.f32 %v2936, %v2937
    %v2939 = vrot.slane %v2938, 1
    %v2940 = vmax.f32 %v2938, %v2939
    %v2941 = vsel %vm212, %v1449, -inf
    %v2942 = vrot.slane %v2941, 4
    %v2943 = vmax.f32 %v2941, %v2942
    %v2944 = vrot.slane %v2943, 2
    %v2945 = vmax.f32 %v2943, %v2944
    %v2946 = vrot.slane %v2945, 1
    %v2947 = vmax.f32 %v2945, %v2946
    %v2948 = vsel %vm212, %v1457, -inf
    %v2949 = vrot.slane %v2948, 4
    %v2950 = vmax.f32 %v2948, %v2949
    %v2951 = vrot.slane %v2950, 2
    %v2952 = vmax.f32 %v2950, %v2951
    %v2953 = vrot.slane %v2952, 1
    %v2954 = vmax.f32 %v2952, %v2953
    %v2955 = vsel %vm212, %v1465, -inf
    %v2956 = vrot.slane %v2955, 4
    %v2957 = vmax.f32 %v2955, %v2956
    %v2958 = vrot.slane %v2957, 2
    %v2959 = vmax.f32 %v2957, %v2958
    %v2960 = vrot.slane %v2959, 1
    %v2961 = vmax.f32 %v2959, %v2960
    %v2962 = vsel %vm212, %v1464, -inf
    %v2963 = vrot.slane %v2962, 4
    %v2964 = vmax.f32 %v2962, %v2963
    %v2965 = vrot.slane %v2964, 2
    %v2966 = vmax.f32 %v2964, %v2965
    %v2967 = vrot.slane %v2966, 1
    %v2968 = vmax.f32 %v2966, %v2967
    %v2969 = vsel %vm212, %v1466, -inf
    %v2970 = vrot.slane %v2969, 4
    %v2971 = vmax.f32 %v2969, %v2970
    %v2972 = vrot.slane %v2971, 2
    %v2973 = vmax.f32 %v2971, %v2972
    %v2974 = vrot.slane %v2973, 1
    %v2975 = vmax.f32 %v2973, %v2974
    %v2976 = vsel %vm212, %v1474, -inf
    %v2977 = vrot.slane %v2976, 4
    %v2978 = vmax.f32 %v2976, %v2977
    %v2979 = vrot.slane %v2978, 2
    %v2980 = vmax.f32 %v2978, %v2979
    %v2981 = vrot.slane %v2980, 1
    %v2982 = vmax.f32 %v2980, %v2981
    %v2983 = vsel %vm212, %v1482, -inf
    %v2984 = vrot.slane %v2983, 4
    %v2985 = vmax.f32 %v2983, %v2984
    %v2986 = vrot.slane %v2985, 2
    %v2987 = vmax.f32 %v2985, %v2986
    %v2988 = vrot.slane %v2987, 1
    %v2989 = vmax.f32 %v2987, %v2988
    %v2990 = vsel %vm212, %v1481, -inf
    %v2991 = vrot.slane %v2990, 4
    %v2992 = vmax.f32 %v2990, %v2991
    %v2993 = vrot.slane %v2992, 2
    %v2994 = vmax.f32 %v2992, %v2993
    %v2995 = vrot.slane %v2994, 1
    %v2996 = vmax.f32 %v2994, %v2995
    %v2997 = vsel %vm212, %v1483, -inf
    %v2998 = vrot.slane %v2997, 4
    %v2999 = vmax.f32 %v2997, %v2998
    %v3000 = vrot.slane %v2999, 2
    %v3001 = vmax.f32 %v2999, %v3000
    %v3002 = vrot.slane %v3001, 1
    %v3003 = vmax.f32 %v3001, %v3002
    %v3004 = vsel %vm212, %v1491, -inf
    %v3005 = vrot.slane %v3004, 4
    %v3006 = vmax.f32 %v3004, %v3005
    %v3007 = vrot.slane %v3006, 2
    %v3008 = vmax.f32 %v3006, %v3007
    %v3009 = vrot.slane %v3008, 1
    %v3010 = vmax.f32 %v3008, %v3009
    %v3011 = vsel %vm212, %v1499, -inf
    %v3012 = vrot.slane %v3011, 4
    %v3013 = vmax.f32 %v3011, %v3012
    %v3014 = vrot.slane %v3013, 2
    %v3015 = vmax.f32 %v3013, %v3014
    %v3016 = vrot.slane %v3015, 1
    %v3017 = vmax.f32 %v3015, %v3016
    %v3018 = vsel %vm212, %v1498, -inf
    %v3019 = vrot.slane %v3018, 4
    %v3020 = vmax.f32 %v3018, %v3019
    %v3021 = vrot.slane %v3020, 2
    %v3022 = vmax.f32 %v3020, %v3021
    %v3023 = vrot.slane %v3022, 1
    %v3024 = vmax.f32 %v3022, %v3023
    %v3025 = vsel %vm212, %v1500, -inf
    %v3026 = vrot.slane %v3025, 4
    %v3027 = vmax.f32 %v3025, %v3026
    %v3028 = vrot.slane %v3027, 2
    %v3029 = vmax.f32 %v3027, %v3028
    %v3030 = vrot.slane %v3029, 1
    %v3031 = vmax.f32 %v3029, %v3030
    %v3032 = vsel %vm212, %v1508, -inf
    %v3033 = vrot.slane %v3032, 4
    %v3034 = vmax.f32 %v3032, %v3033
    %v3035 = vrot.slane %v3034, 2
    %v3036 = vmax.f32 %v3034, %v3035
    %v3037 = vrot.slane %v3036, 1
    %v3038 = vmax.f32 %v3036, %v3037
    %v3039 = vsel %vm212, %v1516, -inf
    %v3040 = vrot.slane %v3039, 4
    %v3041 = vmax.f32 %v3039, %v3040
    %v3042 = vrot.slane %v3041, 2
    %v3043 = vmax.f32 %v3041, %v3042
    %v3044 = vrot.slane %v3043, 1
    %v3045 = vmax.f32 %v3043, %v3044
    %v3046 = vsel %vm212, %v1515, -inf
    %v3047 = vrot.slane %v3046, 4
    %v3048 = vmax.f32 %v3046, %v3047
    %v3049 = vrot.slane %v3048, 2
    %v3050 = vmax.f32 %v3048, %v3049
    %v3051 = vrot.slane %v3050, 1
    %v3052 = vmax.f32 %v3050, %v3051
    %v3053 = vsel %vm212, %v1517, -inf
    %v3054 = vrot.slane %v3053, 4
    %v3055 = vmax.f32 %v3053, %v3054
    %v3056 = vrot.slane %v3055, 2
    %v3057 = vmax.f32 %v3055, %v3056
    %v3058 = vrot.slane %v3057, 1
    %v3059 = vmax.f32 %v3057, %v3058
    %v3060 = vsel %vm212, %v1525, -inf
    %v3061 = vrot.slane %v3060, 4
    %v3062 = vmax.f32 %v3060, %v3061
    %v3063 = vrot.slane %v3062, 2
    %v3064 = vmax.f32 %v3062, %v3063
    %v3065 = vrot.slane %v3064, 1
    %v3066 = vmax.f32 %v3064, %v3065
    %v3067 = vsel %vm212, %v1533, -inf
    %v3068 = vrot.slane %v3067, 4
    %v3069 = vmax.f32 %v3067, %v3068
    %v3070 = vrot.slane %v3069, 2
    %v3071 = vmax.f32 %v3069, %v3070
    %v3072 = vrot.slane %v3071, 1
    %v3073 = vmax.f32 %v3071, %v3072
    %v3074 = vsel %vm212, %v1532, -inf
    %v3075 = vrot.slane %v3074, 4
    %v3076 = vmax.f32 %v3074, %v3075
    %v3077 = vrot.slane %v3076, 2
    %v3078 = vmax.f32 %v3076, %v3077
    %v3079 = vrot.slane %v3078, 1
    %v3080 = vmax.f32 %v3078, %v3079
    %v3081 = vsel %vm212, %v1534, -inf
    %v3082 = vrot.slane %v3081, 4
    %v3083 = vmax.f32 %v3081, %v3082
    %v3084 = vrot.slane %v3083, 2
    %v3085 = vmax.f32 %v3083, %v3084
    %v3086 = vrot.slane %v3085, 1
    %v3087 = vmax.f32 %v3085, %v3086
    %v3088 = vsel %vm212, %v1542, -inf
    %v3089 = vrot.slane %v3088, 4
    %v3090 = vmax.f32 %v3088, %v3089
    %v3091 = vrot.slane %v3090, 2
    %v3092 = vmax.f32 %v3090, %v3091
    %v3093 = vrot.slane %v3092, 1
    %v3094 = vmax.f32 %v3092, %v3093
    %v3095 = vsel %vm212, %v1550, -inf
    %v3096 = vrot.slane %v3095, 4
    %v3097 = vmax.f32 %v3095, %v3096
    %v3098 = vrot.slane %v3097, 2
    %v3099 = vmax.f32 %v3097, %v3098
    %v3100 = vrot.slane %v3099, 1
    %v3101 = vmax.f32 %v3099, %v3100
    %v3102 = vsel %vm212, %v1549, -inf
    %v3103 = vrot.slane %v3102, 4
    %v3104 = vmax.f32 %v3102, %v3103
    %v3105 = vrot.slane %v3104, 2
    %v3106 = vmax.f32 %v3104, %v3105
    %v3107 = vrot.slane %v3106, 1
    %v3108 = vmax.f32 %v3106, %v3107
    %v3109 = vsel %vm212, %v1551, -inf
    %v3110 = vrot.slane %v3109, 4
    %v3111 = vmax.f32 %v3109, %v3110
    %v3112 = vrot.slane %v3111, 2
    %v3113 = vmax.f32 %v3111, %v3112
    %v3114 = vrot.slane %v3113, 1
    %v3115 = vmax.f32 %v3113, %v3114
    %v3116 = vsel %vm212, %v1559, -inf
    %v3117 = vrot.slane %v3116, 4
    %v3118 = vmax.f32 %v3116, %v3117
    %v3119 = vrot.slane %v3118, 2
    %v3120 = vmax.f32 %v3118, %v3119
    %v3121 = vrot.slane %v3120, 1
    %v3122 = vmax.f32 %v3120, %v3121
    %v3123 = vsel %vm212, %v1567, -inf
    %v3124 = vrot.slane %v3123, 4
    %v3125 = vmax.f32 %v3123, %v3124
    %v3126 = vrot.slane %v3125, 2
    %v3127 = vmax.f32 %v3125, %v3126
    %v3128 = vrot.slane %v3127, 1
    %v3129 = vmax.f32 %v3127, %v3128
    %v3130 = vsel %vm212, %v1566, -inf
    %v3131 = vrot.slane %v3130, 4
    %v3132 = vmax.f32 %v3130, %v3131
    %v3133 = vrot.slane %v3132, 2
    %v3134 = vmax.f32 %v3132, %v3133
    %v3135 = vrot.slane %v3134, 1
    %v3136 = vmax.f32 %v3134, %v3135
    %v3137 = vsel %vm212, %v1568, -inf
    %v3138 = vrot.slane %v3137, 4
    %v3139 = vmax.f32 %v3137, %v3138
    %v3140 = vrot.slane %v3139, 2
    %v3141 = vmax.f32 %v3139, %v3140
    %v3142 = vrot.slane %v3141, 1
    %v3143 = vmax.f32 %v3141, %v3142
    %v3144 = vsel %vm212, %v1576, -inf
    %v3145 = vrot.slane %v3144, 4
    %v3146 = vmax.f32 %v3144, %v3145
    %v3147 = vrot.slane %v3146, 2
    %v3148 = vmax.f32 %v3146, %v3147
    %v3149 = vrot.slane %v3148, 1
    %v3150 = vmax.f32 %v3148, %v3149
    %v3151 = vsel %vm212, %v1584, -inf
    %v3152 = vrot.slane %v3151, 4
    %v3153 = vmax.f32 %v3151, %v3152
    %v3154 = vrot.slane %v3153, 2
    %v3155 = vmax.f32 %v3153, %v3154
    %v3156 = vrot.slane %v3155, 1
    %v3157 = vmax.f32 %v3155, %v3156
    %v3158 = vsel %vm212, %v1583, -inf
    %v3159 = vrot.slane %v3158, 4
    %v3160 = vmax.f32 %v3158, %v3159
    %v3161 = vrot.slane %v3160, 2
    %v3162 = vmax.f32 %v3160, %v3161
    %v3163 = vrot.slane %v3162, 1
    %v3164 = vmax.f32 %v3162, %v3163
    %v3165 = vsel %vm212, %v1585, -inf
    %v3166 = vrot.slane %v3165, 4
    %v3167 = vmax.f32 %v3165, %v3166
    %v3168 = vrot.slane %v3167, 2
    %v3169 = vmax.f32 %v3167, %v3168
    %v3170 = vrot.slane %v3169, 1
    %v3171 = vmax.f32 %v3169, %v3170
    %v3172 = vsel %vm212, %v1593, -inf
    %v3173 = vrot.slane %v3172, 4
    %v3174 = vmax.f32 %v3172, %v3173
    %v3175 = vrot.slane %v3174, 2
    %v3176 = vmax.f32 %v3174, %v3175
    %v3177 = vrot.slane %v3176, 1
    %v3178 = vmax.f32 %v3176, %v3177
    %v3179 = vsel %vm212, %v1601, -inf
    %v3180 = vrot.slane %v3179, 4
    %v3181 = vmax.f32 %v3179, %v3180
    %v3182 = vrot.slane %v3181, 2
    %v3183 = vmax.f32 %v3181, %v3182
    %v3184 = vrot.slane %v3183, 1
    %v3185 = vmax.f32 %v3183, %v3184
    %v3186 = vsel %vm212, %v1600, -inf
    %v3187 = vrot.slane %v3186, 4
    %v3188 = vmax.f32 %v3186, %v3187
    %v3189 = vrot.slane %v3188, 2
    %v3190 = vmax.f32 %v3188, %v3189
    %v3191 = vrot.slane %v3190, 1
    %v3192 = vmax.f32 %v3190, %v3191
    %v3193 = vsel %vm212, %v1602, -inf
    %v3194 = vrot.slane %v3193, 4
    %v3195 = vmax.f32 %v3193, %v3194
    %v3196 = vrot.slane %v3195, 2
    %v3197 = vmax.f32 %v3195, %v3196
    %v3198 = vrot.slane %v3197, 1
    %v3199 = vmax.f32 %v3197, %v3198
    %v3200 = vsel %vm212, %v1610, -inf
    %v3201 = vrot.slane %v3200, 4
    %v3202 = vmax.f32 %v3200, %v3201
    %v3203 = vrot.slane %v3202, 2
    %v3204 = vmax.f32 %v3202, %v3203
    %v3205 = vrot.slane %v3204, 1
    %v3206 = vmax.f32 %v3204, %v3205
    %v3207 = vsel %vm212, %v1618, -inf
    %v3208 = vrot.slane %v3207, 4
    %v3209 = vmax.f32 %v3207, %v3208
    %v3210 = vrot.slane %v3209, 2
    %v3211 = vmax.f32 %v3209, %v3210
    %v3212 = vrot.slane %v3211, 1
    %v3213 = vmax.f32 %v3211, %v3212
    %v3214 = vsel %vm212, %v1617, -inf
    %v3215 = vrot.slane %v3214, 4
    %v3216 = vmax.f32 %v3214, %v3215
    %v3217 = vrot.slane %v3216, 2
    %v3218 = vmax.f32 %v3216, %v3217
    %v3219 = vrot.slane %v3218, 1
    %v3220 = vmax.f32 %v3218, %v3219
    %v3221 = vsel %vm212, %v1619, -inf
    %v3222 = vrot.slane %v3221, 4
    %v3223 = vmax.f32 %v3221, %v3222
    %v3224 = vrot.slane %v3223, 2
    %v3225 = vmax.f32 %v3223, %v3224
    %v3226 = vrot.slane %v3225, 1
    %v3227 = vmax.f32 %v3225, %v3226
    %v3228 = vsel %vm212, %v1627, -inf
    %v3229 = vrot.slane %v3228, 4
    %v3230 = vmax.f32 %v3228, %v3229
    %v3231 = vrot.slane %v3230, 2
    %v3232 = vmax.f32 %v3230, %v3231
    %v3233 = vrot.slane %v3232, 1
    %v3234 = vmax.f32 %v3232, %v3233
    %v3235 = vsel %vm212, %v1635, -inf
    %v3236 = vrot.slane %v3235, 4
    %v3237 = vmax.f32 %v3235, %v3236
    %v3238 = vrot.slane %v3237, 2
    %v3239 = vmax.f32 %v3237, %v3238
    %v3240 = vrot.slane %v3239, 1
    %v3241 = vmax.f32 %v3239, %v3240
    %v3242 = vsel %vm212, %v1634, -inf
    %v3243 = vrot.slane %v3242, 4
    %v3244 = vmax.f32 %v3242, %v3243
    %v3245 = vrot.slane %v3244, 2
    %v3246 = vmax.f32 %v3244, %v3245
    %v3247 = vrot.slane %v3246, 1
    %v3248 = vmax.f32 %v3246, %v3247
    %v3249 = vsel %vm212, %v1636, -inf
    %v3250 = vrot.slane %v3249, 4
    %v3251 = vmax.f32 %v3249, %v3250
    %v3252 = vrot.slane %v3251, 2
    %v3253 = vmax.f32 %v3251, %v3252
    %v3254 = vrot.slane %v3253, 1
    %v3255 = vmax.f32 %v3253, %v3254
    %v3256 = vsel %vm212, %v1644, -inf
    %v3257 = vrot.slane %v3256, 4
    %v3258 = vmax.f32 %v3256, %v3257
    %v3259 = vrot.slane %v3258, 2
    %v3260 = vmax.f32 %v3258, %v3259
    %v3261 = vrot.slane %v3260, 1
    %v3262 = vmax.f32 %v3260, %v3261
    %v3263 = vsel %vm212, %v1652, -inf
    %v3264 = vrot.slane %v3263, 4
    %v3265 = vmax.f32 %v3263, %v3264
    %v3266 = vrot.slane %v3265, 2
    %v3267 = vmax.f32 %v3265, %v3266
    %v3268 = vrot.slane %v3267, 1
    %v3269 = vmax.f32 %v3267, %v3268
    %v3270 = vsel %vm212, %v1651, -inf
    %v3271 = vrot.slane %v3270, 4
    %v3272 = vmax.f32 %v3270, %v3271
    %v3273 = vrot.slane %v3272, 2
    %v3274 = vmax.f32 %v3272, %v3273
    %v3275 = vrot.slane %v3274, 1
    %v3276 = vmax.f32 %v3274, %v3275
    %v3277 = vsel %vm212, %v1653, -inf
    %v3278 = vrot.slane %v3277, 4
    %v3279 = vmax.f32 %v3277, %v3278
    %v3280 = vrot.slane %v3279, 2
    %v3281 = vmax.f32 %v3279, %v3280
    %v3282 = vrot.slane %v3281, 1
    %v3283 = vmax.f32 %v3281, %v3282
    %v3284 = vsel %vm212, %v1661, -inf
    %v3285 = vrot.slane %v3284, 4
    %v3286 = vmax.f32 %v3284, %v3285
    %v3287 = vrot.slane %v3286, 2
    %v3288 = vmax.f32 %v3286, %v3287
    %v3289 = vrot.slane %v3288, 1
    %v3290 = vmax.f32 %v3288, %v3289
    %v3291 = vsel %vm212, %v1669, -inf
    %v3292 = vrot.slane %v3291, 4
    %v3293 = vmax.f32 %v3291, %v3292
    %v3294 = vrot.slane %v3293, 2
    %v3295 = vmax.f32 %v3293, %v3294
    %v3296 = vrot.slane %v3295, 1
    %v3297 = vmax.f32 %v3295, %v3296
    %v3298 = vsel %vm212, %v1668, -inf
    %v3299 = vrot.slane %v3298, 4
    %v3300 = vmax.f32 %v3298, %v3299
    %v3301 = vrot.slane %v3300, 2
    %v3302 = vmax.f32 %v3300, %v3301
    %v3303 = vrot.slane %v3302, 1
    %v3304 = vmax.f32 %v3302, %v3303
    %v3305 = vsel %vm212, %v1670, -inf
    %v3306 = vrot.slane %v3305, 4
    %v3307 = vmax.f32 %v3305, %v3306
    %v3308 = vrot.slane %v3307, 2
    %v3309 = vmax.f32 %v3307, %v3308
    %v3310 = vrot.slane %v3309, 1
    %v3311 = vmax.f32 %v3309, %v3310
    %v3312 = vsel %vm212, %v1678, -inf
    %v3313 = vrot.slane %v3312, 4
    %v3314 = vmax.f32 %v3312, %v3313
    %v3315 = vrot.slane %v3314, 2
    %v3316 = vmax.f32 %v3314, %v3315
    %v3317 = vrot.slane %v3316, 1
    %v3318 = vmax.f32 %v3316, %v3317
    %v3319 = vsel %vm212, %v1686, -inf
    %v3320 = vrot.slane %v3319, 4
    %v3321 = vmax.f32 %v3319, %v3320
    %v3322 = vrot.slane %v3321, 2
    %v3323 = vmax.f32 %v3321, %v3322
    %v3324 = vrot.slane %v3323, 1
    %v3325 = vmax.f32 %v3323, %v3324
    %v3326 = vsel %vm212, %v1685, -inf
    %v3327 = vrot.slane %v3326, 4
    %v3328 = vmax.f32 %v3326, %v3327
    %v3329 = vrot.slane %v3328, 2
    %v3330 = vmax.f32 %v3328, %v3329
    %v3331 = vrot.slane %v3330, 1
    %v3332 = vmax.f32 %v3330, %v3331
    %v3333 = vsel %vm212, %v1687, -inf
    %v3334 = vrot.slane %v3333, 4
    %v3335 = vmax.f32 %v3333, %v3334
    %v3336 = vrot.slane %v3335, 2
    %v3337 = vmax.f32 %v3335, %v3336
    %v3338 = vrot.slane %v3337, 1
    %v3339 = vmax.f32 %v3337, %v3338
    %v3340 = vsel %vm212, %v1695, -inf
    %v3341 = vrot.slane %v3340, 4
    %v3342 = vmax.f32 %v3340, %v3341
    %v3343 = vrot.slane %v3342, 2
    %v3344 = vmax.f32 %v3342, %v3343
    %v3345 = vrot.slane %v3344, 1
    %v3346 = vmax.f32 %v3344, %v3345
    %v3347 = vsel %vm212, %v1703, -inf
    %v3348 = vrot.slane %v3347, 4
    %v3349 = vmax.f32 %v3347, %v3348
    %v3350 = vrot.slane %v3349, 2
    %v3351 = vmax.f32 %v3349, %v3350
    %v3352 = vrot.slane %v3351, 1
    %v3353 = vmax.f32 %v3351, %v3352
    %v3354 = vsel %vm212, %v1702, -inf
    %v3355 = vrot.slane %v3354, 4
    %v3356 = vmax.f32 %v3354, %v3355
    %v3357 = vrot.slane %v3356, 2
    %v3358 = vmax.f32 %v3356, %v3357
    %v3359 = vrot.slane %v3358, 1
    %v3360 = vmax.f32 %v3358, %v3359
    %v3361 = vsel %vm212, %v1704, -inf
    %v3362 = vrot.slane %v3361, 4
    %v3363 = vmax.f32 %v3361, %v3362
    %v3364 = vrot.slane %v3363, 2
    %v3365 = vmax.f32 %v3363, %v3364
    %v3366 = vrot.slane %v3365, 1
    %v3367 = vmax.f32 %v3365, %v3366
    %v3368 = vsel %vm212, %v1712, -inf
    %v3369 = vrot.slane %v3368, 4
    %v3370 = vmax.f32 %v3368, %v3369
    %v3371 = vrot.slane %v3370, 2
    %v3372 = vmax.f32 %v3370, %v3371
    %v3373 = vrot.slane %v3372, 1
    %v3374 = vmax.f32 %v3372, %v3373
    %v3375 = vsel %vm212, %v1720, -inf
    %v3376 = vrot.slane %v3375, 4
    %v3377 = vmax.f32 %v3375, %v3376
    %v3378 = vrot.slane %v3377, 2
    %v3379 = vmax.f32 %v3377, %v3378
    %v3380 = vrot.slane %v3379, 1
    %v3381 = vmax.f32 %v3379, %v3380
    %v3382 = vsel %vm212, %v1719, -inf
    %v3383 = vrot.slane %v3382, 4
    %v3384 = vmax.f32 %v3382, %v3383
    %v3385 = vrot.slane %v3384, 2
    %v3386 = vmax.f32 %v3384, %v3385
    %v3387 = vrot.slane %v3386, 1
    %v3388 = vmax.f32 %v3386, %v3387
    %v3389 = vsel %vm212, %v1721, -inf
    %v3390 = vrot.slane %v3389, 4
    %v3391 = vmax.f32 %v3389, %v3390
    %v3392 = vrot.slane %v3391, 2
    %v3393 = vmax.f32 %v3391, %v3392
    %v3394 = vrot.slane %v3393, 1
    %v3395 = vmax.f32 %v3393, %v3394
    %v3396 = vsel %vm212, %v1729, -inf
    %v3397 = vrot.slane %v3396, 4
    %v3398 = vmax.f32 %v3396, %v3397
    %v3399 = vrot.slane %v3398, 2
    %v3400 = vmax.f32 %v3398, %v3399
    %v3401 = vrot.slane %v3400, 1
    %v3402 = vmax.f32 %v3400, %v3401
    %v3403 = vsel %vm212, %v1737, -inf
    %v3404 = vrot.slane %v3403, 4
    %v3405 = vmax.f32 %v3403, %v3404
    %v3406 = vrot.slane %v3405, 2
    %v3407 = vmax.f32 %v3405, %v3406
    %v3408 = vrot.slane %v3407, 1
    %v3409 = vmax.f32 %v3407, %v3408
    %v3410 = vsel %vm212, %v1736, -inf
    %v3411 = vrot.slane %v3410, 4
    %v3412 = vmax.f32 %v3410, %v3411
    %v3413 = vrot.slane %v3412, 2
    %v3414 = vmax.f32 %v3412, %v3413
    %v3415 = vrot.slane %v3414, 1
    %v3416 = vmax.f32 %v3414, %v3415
    %v3417 = vsel %vm212, %v1738, -inf
    %v3418 = vrot.slane %v3417, 4
    %v3419 = vmax.f32 %v3417, %v3418
    %v3420 = vrot.slane %v3419, 2
    %v3421 = vmax.f32 %v3419, %v3420
    %v3422 = vrot.slane %v3421, 1
    %v3423 = vmax.f32 %v3421, %v3422
    %v3424 = vsel %vm212, %v1746, -inf
    %v3425 = vrot.slane %v3424, 4
    %v3426 = vmax.f32 %v3424, %v3425
    %v3427 = vrot.slane %v3426, 2
    %v3428 = vmax.f32 %v3426, %v3427
    %v3429 = vrot.slane %v3428, 1
    %v3430 = vmax.f32 %v3428, %v3429
    %v3431 = vsel %vm212, %v1754, -inf
    %v3432 = vrot.slane %v3431, 4
    %v3433 = vmax.f32 %v3431, %v3432
    %v3434 = vrot.slane %v3433, 2
    %v3435 = vmax.f32 %v3433, %v3434
    %v3436 = vrot.slane %v3435, 1
    %v3437 = vmax.f32 %v3435, %v3436
    %v3438 = vsel %vm212, %v1753, -inf
    %v3439 = vrot.slane %v3438, 4
    %v3440 = vmax.f32 %v3438, %v3439
    %v3441 = vrot.slane %v3440, 2
    %v3442 = vmax.f32 %v3440, %v3441
    %v3443 = vrot.slane %v3442, 1
    %v3444 = vmax.f32 %v3442, %v3443
    %v3445 = vsel %vm212, %v1755, -inf
    %v3446 = vrot.slane %v3445, 4
    %v3447 = vmax.f32 %v3445, %v3446
    %v3448 = vrot.slane %v3447, 2
    %v3449 = vmax.f32 %v3447, %v3448
    %v3450 = vrot.slane %v3449, 1
    %v3451 = vmax.f32 %v3449, %v3450
    %v3452 = vsel %vm212, %v1763, -inf
    %v3453 = vrot.slane %v3452, 4
    %v3454 = vmax.f32 %v3452, %v3453
    %v3455 = vrot.slane %v3454, 2
    %v3456 = vmax.f32 %v3454, %v3455
    %v3457 = vrot.slane %v3456, 1
    %v3458 = vmax.f32 %v3456, %v3457
    %v3459 = vsel %vm212, %v1771, -inf
    %v3460 = vrot.slane %v3459, 4
    %v3461 = vmax.f32 %v3459, %v3460
    %v3462 = vrot.slane %v3461, 2
    %v3463 = vmax.f32 %v3461, %v3462
    %v3464 = vrot.slane %v3463, 1
    %v3465 = vmax.f32 %v3463, %v3464
    %v3466 = vsel %vm212, %v1770, -inf
    %v3467 = vrot.slane %v3466, 4
    %v3468 = vmax.f32 %v3466, %v3467
    %v3469 = vrot.slane %v3468, 2
    %v3470 = vmax.f32 %v3468, %v3469
    %v3471 = vrot.slane %v3470, 1
    %v3472 = vmax.f32 %v3470, %v3471
    %v3473 = vsel %vm212, %v1772, -inf
    %v3474 = vrot.slane %v3473, 4
    %v3475 = vmax.f32 %v3473, %v3474
    %v3476 = vrot.slane %v3475, 2
    %v3477 = vmax.f32 %v3475, %v3476
    %v3478 = vrot.slane %v3477, 1
    %v3479 = vmax.f32 %v3477, %v3478
    %v3480 = vsel %vm212, %v1780, -inf
    %v3481 = vrot.slane %v3480, 4
    %v3482 = vmax.f32 %v3480, %v3481
    %v3483 = vrot.slane %v3482, 2
    %v3484 = vmax.f32 %v3482, %v3483
    %v3485 = vrot.slane %v3484, 1
    %v3486 = vmax.f32 %v3484, %v3485
    %v3487 = vsel %vm212, %v1788, -inf
    %v3488 = vrot.slane %v3487, 4
    %v3489 = vmax.f32 %v3487, %v3488
    %v3490 = vrot.slane %v3489, 2
    %v3491 = vmax.f32 %v3489, %v3490
    %v3492 = vrot.slane %v3491, 1
    %v3493 = vmax.f32 %v3491, %v3492
    %v3494 = vsel %vm212, %v1787, -inf
    %v3495 = vrot.slane %v3494, 4
    %v3496 = vmax.f32 %v3494, %v3495
    %v3497 = vrot.slane %v3496, 2
    %v3498 = vmax.f32 %v3496, %v3497
    %v3499 = vrot.slane %v3498, 1
    %v3500 = vmax.f32 %v3498, %v3499
    %v3501 = vsel %vm212, %v1789, -inf
    %v3502 = vrot.slane %v3501, 4
    %v3503 = vmax.f32 %v3501, %v3502
    %v3504 = vrot.slane %v3503, 2
    %v3505 = vmax.f32 %v3503, %v3504
    %v3506 = vrot.slane %v3505, 1
    %v3507 = vmax.f32 %v3505, %v3506
    %v3508 = vsel %vm212, %v1797, -inf
    %v3509 = vrot.slane %v3508, 4
    %v3510 = vmax.f32 %v3508, %v3509
    %v3511 = vrot.slane %v3510, 2
    %v3512 = vmax.f32 %v3510, %v3511
    %v3513 = vrot.slane %v3512, 1
    %v3514 = vmax.f32 %v3512, %v3513
    %v3515 = vsel %vm212, %v1805, -inf
    %v3516 = vrot.slane %v3515, 4
    %v3517 = vmax.f32 %v3515, %v3516
    %v3518 = vrot.slane %v3517, 2
    %v3519 = vmax.f32 %v3517, %v3518
    %v3520 = vrot.slane %v3519, 1
    %v3521 = vmax.f32 %v3519, %v3520
    %v3522 = vsel %vm212, %v1804, -inf
    %v3523 = vrot.slane %v3522, 4
    %v3524 = vmax.f32 %v3522, %v3523
    %v3525 = vrot.slane %v3524, 2
    %v3526 = vmax.f32 %v3524, %v3525
    %v3527 = vrot.slane %v3526, 1
    %v3528 = vmax.f32 %v3526, %v3527
    %v3529 = vsel %vm212, %v1806, -inf
    %v3530 = vrot.slane %v3529, 4
    %v3531 = vmax.f32 %v3529, %v3530
    %v3532 = vrot.slane %v3531, 2
    %v3533 = vmax.f32 %v3531, %v3532
    %v3534 = vrot.slane %v3533, 1
    %v3535 = vmax.f32 %v3533, %v3534
    %v3536 = vsel %vm212, %v1814, -inf
    %v3537 = vrot.slane %v3536, 4
    %v3538 = vmax.f32 %v3536, %v3537
    %v3539 = vrot.slane %v3538, 2
    %v3540 = vmax.f32 %v3538, %v3539
    %v3541 = vrot.slane %v3540, 1
    %v3542 = vmax.f32 %v3540, %v3541
    %v3543 = vsel %vm212, %v1822, -inf
    %v3544 = vrot.slane %v3543, 4
    %v3545 = vmax.f32 %v3543, %v3544
    %v3546 = vrot.slane %v3545, 2
    %v3547 = vmax.f32 %v3545, %v3546
    %v3548 = vrot.slane %v3547, 1
    %v3549 = vmax.f32 %v3547, %v3548
    %v3550 = vsel %vm212, %v1821, -inf
    %v3551 = vrot.slane %v3550, 4
    %v3552 = vmax.f32 %v3550, %v3551
    %v3553 = vrot.slane %v3552, 2
    %v3554 = vmax.f32 %v3552, %v3553
    %v3555 = vrot.slane %v3554, 1
    %v3556 = vmax.f32 %v3554, %v3555
    %v3557 = vsel %vm212, %v1823, -inf
    %v3558 = vrot.slane %v3557, 4
    %v3559 = vmax.f32 %v3557, %v3558
    %v3560 = vrot.slane %v3559, 2
    %v3561 = vmax.f32 %v3559, %v3560
    %v3562 = vrot.slane %v3561, 1
    %v3563 = vmax.f32 %v3561, %v3562
    %v3564 = vsel %vm212, %v1831, -inf
    %v3565 = vrot.slane %v3564, 4
    %v3566 = vmax.f32 %v3564, %v3565
    %v3567 = vrot.slane %v3566, 2
    %v3568 = vmax.f32 %v3566, %v3567
    %v3569 = vrot.slane %v3568, 1
    %v3570 = vmax.f32 %v3568, %v3569
    %v3571 = vsel %vm212, %v1839, -inf
    %v3572 = vrot.slane %v3571, 4
    %v3573 = vmax.f32 %v3571, %v3572
    %v3574 = vrot.slane %v3573, 2
    %v3575 = vmax.f32 %v3573, %v3574
    %v3576 = vrot.slane %v3575, 1
    %v3577 = vmax.f32 %v3575, %v3576
    %v3578 = vsel %vm212, %v1838, -inf
    %v3579 = vrot.slane %v3578, 4
    %v3580 = vmax.f32 %v3578, %v3579
    %v3581 = vrot.slane %v3580, 2
    %v3582 = vmax.f32 %v3580, %v3581
    %v3583 = vrot.slane %v3582, 1
    %v3584 = vmax.f32 %v3582, %v3583
    %v3585 = vsel %vm212, %v1840, -inf
    %v3586 = vrot.slane %v3585, 4
    %v3587 = vmax.f32 %v3585, %v3586
    %v3588 = vrot.slane %v3587, 2
    %v3589 = vmax.f32 %v3587, %v3588
    %v3590 = vrot.slane %v3589, 1
    %v3591 = vmax.f32 %v3589, %v3590
    %v3592 = vsel %vm212, %v1848, -inf
    %v3593 = vrot.slane %v3592, 4
    %v3594 = vmax.f32 %v3592, %v3593
    %v3595 = vrot.slane %v3594, 2
    %v3596 = vmax.f32 %v3594, %v3595
    %v3597 = vrot.slane %v3596, 1
    %v3598 = vmax.f32 %v3596, %v3597
    %v3599 = vsel %vm212, %v1856, -inf
    %v3600 = vrot.slane %v3599, 4
    %v3601 = vmax.f32 %v3599, %v3600
    %v3602 = vrot.slane %v3601, 2
    %v3603 = vmax.f32 %v3601, %v3602
    %v3604 = vrot.slane %v3603, 1
    %v3605 = vmax.f32 %v3603, %v3604
    %v3606 = vsel %vm212, %v1855, -inf
    %v3607 = vrot.slane %v3606, 4
    %v3608 = vmax.f32 %v3606, %v3607
    %v3609 = vrot.slane %v3608, 2
    %v3610 = vmax.f32 %v3608, %v3609
    %v3611 = vrot.slane %v3610, 1
    %v3612 = vmax.f32 %v3610, %v3611
    %v3613 = vsel %vm212, %v1857, -inf
    %v3614 = vrot.slane %v3613, 4
    %v3615 = vmax.f32 %v3613, %v3614
    %v3616 = vrot.slane %v3615, 2
    %v3617 = vmax.f32 %v3615, %v3616
    %v3618 = vrot.slane %v3617, 1
    %v3619 = vmax.f32 %v3617, %v3618
    %v3620 = vsel %vm212, %v1865, -inf
    %v3621 = vrot.slane %v3620, 4
    %v3622 = vmax.f32 %v3620, %v3621
    %v3623 = vrot.slane %v3622, 2
    %v3624 = vmax.f32 %v3622, %v3623
    %v3625 = vrot.slane %v3624, 1
    %v3626 = vmax.f32 %v3624, %v3625
    %v3627 = vsel %vm212, %v1873, -inf
    %v3628 = vrot.slane %v3627, 4
    %v3629 = vmax.f32 %v3627, %v3628
    %v3630 = vrot.slane %v3629, 2
    %v3631 = vmax.f32 %v3629, %v3630
    %v3632 = vrot.slane %v3631, 1
    %v3633 = vmax.f32 %v3631, %v3632
    %v3634 = vsel %vm212, %v1872, -inf
    %v3635 = vrot.slane %v3634, 4
    %v3636 = vmax.f32 %v3634, %v3635
    %v3637 = vrot.slane %v3636, 2
    %v3638 = vmax.f32 %v3636, %v3637
    %v3639 = vrot.slane %v3638, 1
    %v3640 = vmax.f32 %v3638, %v3639
    %v3641 = vsel %vm212, %v1874, -inf
    %v3642 = vrot.slane %v3641, 4
    %v3643 = vmax.f32 %v3641, %v3642
    %v3644 = vrot.slane %v3643, 2
    %v3645 = vmax.f32 %v3643, %v3644
    %v3646 = vrot.slane %v3645, 1
    %v3647 = vmax.f32 %v3645, %v3646
    %v3648 = vsel %vm212, %v1882, -inf
    %v3649 = vrot.slane %v3648, 4
    %v3650 = vmax.f32 %v3648, %v3649
    %v3651 = vrot.slane %v3650, 2
    %v3652 = vmax.f32 %v3650, %v3651
    %v3653 = vrot.slane %v3652, 1
    %v3654 = vmax.f32 %v3652, %v3653
    %v3655 = vsel %vm212, %v1890, -inf
    %v3656 = vrot.slane %v3655, 4
    %v3657 = vmax.f32 %v3655, %v3656
    %v3658 = vrot.slane %v3657, 2
    %v3659 = vmax.f32 %v3657, %v3658
    %v3660 = vrot.slane %v3659, 1
    %v3661 = vmax.f32 %v3659, %v3660
    %v3662 = vsel %vm212, %v1889, -inf
    %v3663 = vrot.slane %v3662, 4
    %v3664 = vmax.f32 %v3662, %v3663
    %v3665 = vrot.slane %v3664, 2
    %v3666 = vmax.f32 %v3664, %v3665
    %v3667 = vrot.slane %v3666, 1
    %v3668 = vmax.f32 %v3666, %v3667
    %v3669 = vsel %vm212, %v1891, -inf
    %v3670 = vrot.slane %v3669, 4
    %v3671 = vmax.f32 %v3669, %v3670
    %v3672 = vrot.slane %v3671, 2
    %v3673 = vmax.f32 %v3671, %v3672
    %v3674 = vrot.slane %v3673, 1
    %v3675 = vmax.f32 %v3673, %v3674
    %v3676 = vsel %vm212, %v1899, -inf
    %v3677 = vrot.slane %v3676, 4
    %v3678 = vmax.f32 %v3676, %v3677
    %v3679 = vrot.slane %v3678, 2
    %v3680 = vmax.f32 %v3678, %v3679
    %v3681 = vrot.slane %v3680, 1
    %v3682 = vmax.f32 %v3680, %v3681
    %v3683 = vsel %vm212, %v1907, -inf
    %v3684 = vrot.slane %v3683, 4
    %v3685 = vmax.f32 %v3683, %v3684
    %v3686 = vrot.slane %v3685, 2
    %v3687 = vmax.f32 %v3685, %v3686
    %v3688 = vrot.slane %v3687, 1
    %v3689 = vmax.f32 %v3687, %v3688
    %v3690 = vsel %vm212, %v1906, -inf
    %v3691 = vrot.slane %v3690, 4
    %v3692 = vmax.f32 %v3690, %v3691
    %v3693 = vrot.slane %v3692, 2
    %v3694 = vmax.f32 %v3692, %v3693
    %v3695 = vrot.slane %v3694, 1
    %v3696 = vmax.f32 %v3694, %v3695
    %v3697 = vsel %vm212, %v1908, -inf
    %v3698 = vrot.slane %v3697, 4
    %v3699 = vmax.f32 %v3697, %v3698
    %v3700 = vrot.slane %v3699, 2
    %v3701 = vmax.f32 %v3699, %v3700
    %v3702 = vrot.slane %v3701, 1
    %v3703 = vmax.f32 %v3701, %v3702
    %v3704 = vsel %vm212, %v1916, -inf
    %v3705 = vrot.slane %v3704, 4
    %v3706 = vmax.f32 %v3704, %v3705
    %v3707 = vrot.slane %v3706, 2
    %v3708 = vmax.f32 %v3706, %v3707
    %v3709 = vrot.slane %v3708, 1
    %v3710 = vmax.f32 %v3708, %v3709
    %v3711 = vsel %vm212, %v1924, -inf
    %v3712 = vrot.slane %v3711, 4
    %v3713 = vmax.f32 %v3711, %v3712
    %v3714 = vrot.slane %v3713, 2
    %v3715 = vmax.f32 %v3713, %v3714
    %v3716 = vrot.slane %v3715, 1
    %v3717 = vmax.f32 %v3715, %v3716
    %v3718 = vsel %vm212, %v1923, -inf
    %v3719 = vrot.slane %v3718, 4
    %v3720 = vmax.f32 %v3718, %v3719
    %v3721 = vrot.slane %v3720, 2
    %v3722 = vmax.f32 %v3720, %v3721
    %v3723 = vrot.slane %v3722, 1
    %v3724 = vmax.f32 %v3722, %v3723
    %v3725 = vsel %vm212, %v1925, -inf
    %v3726 = vrot.slane %v3725, 4
    %v3727 = vmax.f32 %v3725, %v3726
    %v3728 = vrot.slane %v3727, 2
    %v3729 = vmax.f32 %v3727, %v3728
    %v3730 = vrot.slane %v3729, 1
    %v3731 = vmax.f32 %v3729, %v3730
    %v3732 = vsel %vm212, %v1933, -inf
    %v3733 = vrot.slane %v3732, 4
    %v3734 = vmax.f32 %v3732, %v3733
    %v3735 = vrot.slane %v3734, 2
    %v3736 = vmax.f32 %v3734, %v3735
    %v3737 = vrot.slane %v3736, 1
    %v3738 = vmax.f32 %v3736, %v3737
    %v3739 = vsel %vm212, %v1941, -inf
    %v3740 = vrot.slane %v3739, 4
    %v3741 = vmax.f32 %v3739, %v3740
    %v3742 = vrot.slane %v3741, 2
    %v3743 = vmax.f32 %v3741, %v3742
    %v3744 = vrot.slane %v3743, 1
    %v3745 = vmax.f32 %v3743, %v3744
    %v3746 = vsel %vm212, %v1940, -inf
    %v3747 = vrot.slane %v3746, 4
    %v3748 = vmax.f32 %v3746, %v3747
    %v3749 = vrot.slane %v3748, 2
    %v3750 = vmax.f32 %v3748, %v3749
    %v3751 = vrot.slane %v3750, 1
    %v3752 = vmax.f32 %v3750, %v3751
    %v3753 = vsel %vm212, %v1942, -inf
    %v3754 = vrot.slane %v3753, 4
    %v3755 = vmax.f32 %v3753, %v3754
    %v3756 = vrot.slane %v3755, 2
    %v3757 = vmax.f32 %v3755, %v3756
    %v3758 = vrot.slane %v3757, 1
    %v3759 = vmax.f32 %v3757, %v3758
    %v3760 = vsel %vm212, %v1950, -inf
    %v3761 = vrot.slane %v3760, 4
    %v3762 = vmax.f32 %v3760, %v3761
    %v3763 = vrot.slane %v3762, 2
    %v3764 = vmax.f32 %v3762, %v3763
    %v3765 = vrot.slane %v3764, 1
    %v3766 = vmax.f32 %v3764, %v3765
    %v3767 = vsel %vm212, %v1958, -inf
    %v3768 = vrot.slane %v3767, 4
    %v3769 = vmax.f32 %v3767, %v3768
    %v3770 = vrot.slane %v3769, 2
    %v3771 = vmax.f32 %v3769, %v3770
    %v3772 = vrot.slane %v3771, 1
    %v3773 = vmax.f32 %v3771, %v3772
    %v3774 = vsel %vm212, %v1957, -inf
    %v3775 = vrot.slane %v3774, 4
    %v3776 = vmax.f32 %v3774, %v3775
    %v3777 = vrot.slane %v3776, 2
    %v3778 = vmax.f32 %v3776, %v3777
    %v3779 = vrot.slane %v3778, 1
    %v3780 = vmax.f32 %v3778, %v3779
    %v3781 = vsel %vm212, %v1959, -inf
    %v3782 = vrot.slane %v3781, 4
    %v3783 = vmax.f32 %v3781, %v3782
    %v3784 = vrot.slane %v3783, 2
    %v3785 = vmax.f32 %v3783, %v3784
    %v3786 = vrot.slane %v3785, 1
    %v3787 = vmax.f32 %v3785, %v3786
    %v3788 = vsel %vm212, %v1967, -inf
    %v3789 = vrot.slane %v3788, 4
    %v3790 = vmax.f32 %v3788, %v3789
    %v3791 = vrot.slane %v3790, 2
    %v3792 = vmax.f32 %v3790, %v3791
    %v3793 = vrot.slane %v3792, 1
    %v3794 = vmax.f32 %v3792, %v3793
    %v3795 = vsel %vm212, %v1975, -inf
    %v3796 = vrot.slane %v3795, 4
    %v3797 = vmax.f32 %v3795, %v3796
    %v3798 = vrot.slane %v3797, 2
    %v3799 = vmax.f32 %v3797, %v3798
    %v3800 = vrot.slane %v3799, 1
    %v3801 = vmax.f32 %v3799, %v3800
    %v3802 = vsel %vm212, %v1974, -inf
    %v3803 = vrot.slane %v3802, 4
    %v3804 = vmax.f32 %v3802, %v3803
    %v3805 = vrot.slane %v3804, 2
    %v3806 = vmax.f32 %v3804, %v3805
    %v3807 = vrot.slane %v3806, 1
    %v3808 = vmax.f32 %v3806, %v3807
    %v3809 = vsel %vm212, %v1976, -inf
    %v3810 = vrot.slane %v3809, 4
    %v3811 = vmax.f32 %v3809, %v3810
    %v3812 = vrot.slane %v3811, 2
    %v3813 = vmax.f32 %v3811, %v3812
    %v3814 = vrot.slane %v3813, 1
    %v3815 = vmax.f32 %v3813, %v3814
    %v3816 = vsel %vm212, %v1984, -inf
    %v3817 = vrot.slane %v3816, 4
    %v3818 = vmax.f32 %v3816, %v3817
    %v3819 = vrot.slane %v3818, 2
    %v3820 = vmax.f32 %v3818, %v3819
    %v3821 = vrot.slane %v3820, 1
    %v3822 = vmax.f32 %v3820, %v3821
    %v3823 = vsel %vm212, %v1992, -inf
    %v3824 = vrot.slane %v3823, 4
    %v3825 = vmax.f32 %v3823, %v3824
    %v3826 = vrot.slane %v3825, 2
    %v3827 = vmax.f32 %v3825, %v3826
    %v3828 = vrot.slane %v3827, 1
    %v3829 = vmax.f32 %v3827, %v3828
    %v3830 = vsel %vm212, %v1991, -inf
    %v3831 = vrot.slane %v3830, 4
    %v3832 = vmax.f32 %v3830, %v3831
    %v3833 = vrot.slane %v3832, 2
    %v3834 = vmax.f32 %v3832, %v3833
    %v3835 = vrot.slane %v3834, 1
    %v3836 = vmax.f32 %v3834, %v3835
    %v3837 = vsel %vm212, %v1993, -inf
    %v3838 = vrot.slane %v3837, 4
    %v3839 = vmax.f32 %v3837, %v3838
    %v3840 = vrot.slane %v3839, 2
    %v3841 = vmax.f32 %v3839, %v3840
    %v3842 = vrot.slane %v3841, 1
    %v3843 = vmax.f32 %v3841, %v3842
    %v3844 = vsel %vm212, %v2001, -inf
    %v3845 = vrot.slane %v3844, 4
    %v3846 = vmax.f32 %v3844, %v3845
    %v3847 = vrot.slane %v3846, 2
    %v3848 = vmax.f32 %v3846, %v3847
    %v3849 = vrot.slane %v3848, 1
    %v3850 = vmax.f32 %v3848, %v3849
    %v3851 = vsel %vm212, %v2009, -inf
    %v3852 = vrot.slane %v3851, 4
    %v3853 = vmax.f32 %v3851, %v3852
    %v3854 = vrot.slane %v3853, 2
    %v3855 = vmax.f32 %v3853, %v3854
    %v3856 = vrot.slane %v3855, 1
    %v3857 = vmax.f32 %v3855, %v3856
    %v3858 = vsel %vm212, %v2008, -inf
    %v3859 = vrot.slane %v3858, 4
    %v3860 = vmax.f32 %v3858, %v3859
    %v3861 = vrot.slane %v3860, 2
    %v3862 = vmax.f32 %v3860, %v3861
    %v3863 = vrot.slane %v3862, 1
    %v3864 = vmax.f32 %v3862, %v3863
    %v3865 = vsel %vm212, %v2010, -inf
    %v3866 = vrot.slane %v3865, 4
    %v3867 = vmax.f32 %v3865, %v3866
    %v3868 = vrot.slane %v3867, 2
    %v3869 = vmax.f32 %v3867, %v3868
    %v3870 = vrot.slane %v3869, 1
    %v3871 = vmax.f32 %v3869, %v3870
    %v3872 = vsel %vm212, %v2018, -inf
    %v3873 = vrot.slane %v3872, 4
    %v3874 = vmax.f32 %v3872, %v3873
    %v3875 = vrot.slane %v3874, 2
    %v3876 = vmax.f32 %v3874, %v3875
    %v3877 = vrot.slane %v3876, 1
    %v3878 = vmax.f32 %v3876, %v3877
    %v3879 = vsel %vm212, %v2026, -inf
    %v3880 = vrot.slane %v3879, 4
    %v3881 = vmax.f32 %v3879, %v3880
    %v3882 = vrot.slane %v3881, 2
    %v3883 = vmax.f32 %v3881, %v3882
    %v3884 = vrot.slane %v3883, 1
    %v3885 = vmax.f32 %v3883, %v3884
    %v3886 = vsel %vm212, %v2025, -inf
    %v3887 = vrot.slane %v3886, 4
    %v3888 = vmax.f32 %v3886, %v3887
    %v3889 = vrot.slane %v3888, 2
    %v3890 = vmax.f32 %v3888, %v3889
    %v3891 = vrot.slane %v3890, 1
    %v3892 = vmax.f32 %v3890, %v3891
    %v3893 = vsel %vm212, %v2027, -inf
    %v3894 = vrot.slane %v3893, 4
    %v3895 = vmax.f32 %v3893, %v3894
    %v3896 = vrot.slane %v3895, 2
    %v3897 = vmax.f32 %v3895, %v3896
    %v3898 = vrot.slane %v3897, 1
    %v3899 = vmax.f32 %v3897, %v3898
    %v3900 = vsel %vm212, %v2035, -inf
    %v3901 = vrot.slane %v3900, 4
    %v3902 = vmax.f32 %v3900, %v3901
    %v3903 = vrot.slane %v3902, 2
    %v3904 = vmax.f32 %v3902, %v3903
    %v3905 = vrot.slane %v3904, 1
    %v3906 = vmax.f32 %v3904, %v3905
    %v3907 = vsel %vm212, %v2043, -inf
    %v3908 = vrot.slane %v3907, 4
    %v3909 = vmax.f32 %v3907, %v3908
    %v3910 = vrot.slane %v3909, 2
    %v3911 = vmax.f32 %v3909, %v3910
    %v3912 = vrot.slane %v3911, 1
    %v3913 = vmax.f32 %v3911, %v3912
    %v3914 = vsel %vm212, %v2042, -inf
    %v3915 = vrot.slane %v3914, 4
    %v3916 = vmax.f32 %v3914, %v3915
    %v3917 = vrot.slane %v3916, 2
    %v3918 = vmax.f32 %v3916, %v3917
    %v3919 = vrot.slane %v3918, 1
    %v3920 = vmax.f32 %v3918, %v3919
    %v3921 = vsel %vm212, %v2044, -inf
    %v3922 = vrot.slane %v3921, 4
    %v3923 = vmax.f32 %v3921, %v3922
    %v3924 = vrot.slane %v3923, 2
    %v3925 = vmax.f32 %v3923, %v3924
    %v3926 = vrot.slane %v3925, 1
    %v3927 = vmax.f32 %v3925, %v3926
    %v3928 = vsel %vm212, %v2052, -inf
    %v3929 = vrot.slane %v3928, 4
    %v3930 = vmax.f32 %v3928, %v3929
    %v3931 = vrot.slane %v3930, 2
    %v3932 = vmax.f32 %v3930, %v3931
    %v3933 = vrot.slane %v3932, 1
    %v3934 = vmax.f32 %v3932, %v3933
    %v3935 = vsel %vm212, %v2060, -inf
    %v3936 = vrot.slane %v3935, 4
    %v3937 = vmax.f32 %v3935, %v3936
    %v3938 = vrot.slane %v3937, 2
    %v3939 = vmax.f32 %v3937, %v3938
    %v3940 = vrot.slane %v3939, 1
    %v3941 = vmax.f32 %v3939, %v3940
    %v3942 = vsel %vm212, %v2059, -inf
    %v3943 = vrot.slane %v3942, 4
    %v3944 = vmax.f32 %v3942, %v3943
    %v3945 = vrot.slane %v3944, 2
    %v3946 = vmax.f32 %v3944, %v3945
    %v3947 = vrot.slane %v3946, 1
    %v3948 = vmax.f32 %v3946, %v3947
    %v3949 = vsel %vm212, %v2061, -inf
    %v3950 = vrot.slane %v3949, 4
    %v3951 = vmax.f32 %v3949, %v3950
    %v3952 = vrot.slane %v3951, 2
    %v3953 = vmax.f32 %v3951, %v3952
    %v3954 = vrot.slane %v3953, 1
    %v3955 = vmax.f32 %v3953, %v3954
    %v3956 = vsel %vm212, %v2069, -inf
    %v3957 = vrot.slane %v3956, 4
    %v3958 = vmax.f32 %v3956, %v3957
    %v3959 = vrot.slane %v3958, 2
    %v3960 = vmax.f32 %v3958, %v3959
    %v3961 = vrot.slane %v3960, 1
    %v3962 = vmax.f32 %v3960, %v3961
    %v3963 = vsel %vm212, %v2077, -inf
    %v3964 = vrot.slane %v3963, 4
    %v3965 = vmax.f32 %v3963, %v3964
    %v3966 = vrot.slane %v3965, 2
    %v3967 = vmax.f32 %v3965, %v3966
    %v3968 = vrot.slane %v3967, 1
    %v3969 = vmax.f32 %v3967, %v3968
    %v3970 = vsel %vm212, %v2076, -inf
    %v3971 = vrot.slane %v3970, 4
    %v3972 = vmax.f32 %v3970, %v3971
    %v3973 = vrot.slane %v3972, 2
    %v3974 = vmax.f32 %v3972, %v3973
    %v3975 = vrot.slane %v3974, 1
    %v3976 = vmax.f32 %v3974, %v3975
    %v3977 = vsel %vm212, %v2078, -inf
    %v3978 = vrot.slane %v3977, 4
    %v3979 = vmax.f32 %v3977, %v3978
    %v3980 = vrot.slane %v3979, 2
    %v3981 = vmax.f32 %v3979, %v3980
    %v3982 = vrot.slane %v3981, 1
    %v3983 = vmax.f32 %v3981, %v3982
    %v3984 = vsel %vm212, %v2086, -inf
    %v3985 = vrot.slane %v3984, 4
    %v3986 = vmax.f32 %v3984, %v3985
    %v3987 = vrot.slane %v3986, 2
    %v3988 = vmax.f32 %v3986, %v3987
    %v3989 = vrot.slane %v3988, 1
    %v3990 = vmax.f32 %v3988, %v3989
    %v3991 = vsel %vm212, %v2094, -inf
    %v3992 = vrot.slane %v3991, 4
    %v3993 = vmax.f32 %v3991, %v3992
    %v3994 = vrot.slane %v3993, 2
    %v3995 = vmax.f32 %v3993, %v3994
    %v3996 = vrot.slane %v3995, 1
    %v3997 = vmax.f32 %v3995, %v3996
    %v3998 = vsel %vm212, %v2093, -inf
    %v3999 = vrot.slane %v3998, 4
    %v4000 = vmax.f32 %v3998, %v3999
    %v4001 = vrot.slane %v4000, 2
    %v4002 = vmax.f32 %v4000, %v4001
    %v4003 = vrot.slane %v4002, 1
    %v4004 = vmax.f32 %v4002, %v4003
    %v4005 = vsel %vm212, %v2095, -inf
    %v4006 = vrot.slane %v4005, 4
    %v4007 = vmax.f32 %v4005, %v4006
    %v4008 = vrot.slane %v4007, 2
    %v4009 = vmax.f32 %v4007, %v4008
    %v4010 = vrot.slane %v4009, 1
    %v4011 = vmax.f32 %v4009, %v4010
    %v4012 = vsel %vm212, %v2103, -inf
    %v4013 = vrot.slane %v4012, 4
    %v4014 = vmax.f32 %v4012, %v4013
    %v4015 = vrot.slane %v4014, 2
    %v4016 = vmax.f32 %v4014, %v4015
    %v4017 = vrot.slane %v4016, 1
    %v4018 = vmax.f32 %v4016, %v4017
    %v4019 = vsel %vm212, %v2111, -inf
    %v4020 = vrot.slane %v4019, 4
    %v4021 = vmax.f32 %v4019, %v4020
    %v4022 = vrot.slane %v4021, 2
    %v4023 = vmax.f32 %v4021, %v4022
    %v4024 = vrot.slane %v4023, 1
    %v4025 = vmax.f32 %v4023, %v4024
    %v4026 = vsel %vm212, %v2110, -inf
    %v4027 = vrot.slane %v4026, 4
    %v4028 = vmax.f32 %v4026, %v4027
    %v4029 = vrot.slane %v4028, 2
    %v4030 = vmax.f32 %v4028, %v4029
    %v4031 = vrot.slane %v4030, 1
    %v4032 = vmax.f32 %v4030, %v4031
    %v4033 = vsel %vm212, %v2112, -inf
    %v4034 = vrot.slane %v4033, 4
    %v4035 = vmax.f32 %v4033, %v4034
    %v4036 = vrot.slane %v4035, 2
    %v4037 = vmax.f32 %v4035, %v4036
    %v4038 = vrot.slane %v4037, 1
    %v4039 = vmax.f32 %v4037, %v4038
    %v4040 = vsel %vm212, %v2120, -inf
    %v4041 = vrot.slane %v4040, 4
    %v4042 = vmax.f32 %v4040, %v4041
    %v4043 = vrot.slane %v4042, 2
    %v4044 = vmax.f32 %v4042, %v4043
    %v4045 = vrot.slane %v4044, 1
    %v4046 = vmax.f32 %v4044, %v4045
    %v4047 = vsel %vm212, %v2128, -inf
    %v4048 = vrot.slane %v4047, 4
    %v4049 = vmax.f32 %v4047, %v4048
    %v4050 = vrot.slane %v4049, 2
    %v4051 = vmax.f32 %v4049, %v4050
    %v4052 = vrot.slane %v4051, 1
    %v4053 = vmax.f32 %v4051, %v4052
    %v4054 = vsel %vm212, %v2127, -inf
    %v4055 = vrot.slane %v4054, 4
    %v4056 = vmax.f32 %v4054, %v4055
    %v4057 = vrot.slane %v4056, 2
    %v4058 = vmax.f32 %v4056, %v4057
    %v4059 = vrot.slane %v4058, 1
    %v4060 = vmax.f32 %v4058, %v4059
    %v4061 = vsel %vm212, %v2129, -inf
    %v4062 = vrot.slane %v4061, 4
    %v4063 = vmax.f32 %v4061, %v4062
    %v4064 = vrot.slane %v4063, 2
    %v4065 = vmax.f32 %v4063, %v4064
    %v4066 = vrot.slane %v4065, 1
    %v4067 = vmax.f32 %v4065, %v4066
    %v4068 = vsel %vm212, %v2137, -inf
    %v4069 = vrot.slane %v4068, 4
    %v4070 = vmax.f32 %v4068, %v4069
    %v4071 = vrot.slane %v4070, 2
    %v4072 = vmax.f32 %v4070, %v4071
    %v4073 = vrot.slane %v4072, 1
    %v4074 = vmax.f32 %v4072, %v4073
    %v4075 = vsel %vm212, %v2145, -inf
    %v4076 = vrot.slane %v4075, 4
    %v4077 = vmax.f32 %v4075, %v4076
    %v4078 = vrot.slane %v4077, 2
    %v4079 = vmax.f32 %v4077, %v4078
    %v4080 = vrot.slane %v4079, 1
    %v4081 = vmax.f32 %v4079, %v4080
    %v4082 = vsel %vm212, %v2144, -inf
    %v4083 = vrot.slane %v4082, 4
    %v4084 = vmax.f32 %v4082, %v4083
    %v4085 = vrot.slane %v4084, 2
    %v4086 = vmax.f32 %v4084, %v4085
    %v4087 = vrot.slane %v4086, 1
    %v4088 = vmax.f32 %v4086, %v4087
    %v4089 = vsel %vm212, %v2146, -inf
    %v4090 = vrot.slane %v4089, 4
    %v4091 = vmax.f32 %v4089, %v4090
    %v4092 = vrot.slane %v4091, 2
    %v4093 = vmax.f32 %v4091, %v4092
    %v4094 = vrot.slane %v4093, 1
    %v4095 = vmax.f32 %v4093, %v4094
    %v4096 = vsel %vm212, %v2154, -inf
    %v4097 = vrot.slane %v4096, 4
    %v4098 = vmax.f32 %v4096, %v4097
    %v4099 = vrot.slane %v4098, 2
    %v4100 = vmax.f32 %v4098, %v4099
    %v4101 = vrot.slane %v4100, 1
    %v4102 = vmax.f32 %v4100, %v4101
    %v4103 = vsel %vm212, %v2162, -inf
    %v4104 = vrot.slane %v4103, 4
    %v4105 = vmax.f32 %v4103, %v4104
    %v4106 = vrot.slane %v4105, 2
    %v4107 = vmax.f32 %v4105, %v4106
    %v4108 = vrot.slane %v4107, 1
    %v4109 = vmax.f32 %v4107, %v4108
    %v4110 = vsel %vm212, %v2161, -inf
    %v4111 = vrot.slane %v4110, 4
    %v4112 = vmax.f32 %v4110, %v4111
    %v4113 = vrot.slane %v4112, 2
    %v4114 = vmax.f32 %v4112, %v4113
    %v4115 = vrot.slane %v4114, 1
    %v4116 = vmax.f32 %v4114, %v4115
    %v4117 = vsel %vm212, %v2163, -inf
    %v4118 = vrot.slane %v4117, 4
    %v4119 = vmax.f32 %v4117, %v4118
    %v4120 = vrot.slane %v4119, 2
    %v4121 = vmax.f32 %v4119, %v4120
    %v4122 = vrot.slane %v4121, 1
    %v4123 = vmax.f32 %v4121, %v4122
    %v4124 = vsel %vm212, %v2171, -inf
    %v4125 = vrot.slane %v4124, 4
    %v4126 = vmax.f32 %v4124, %v4125
    %v4127 = vrot.slane %v4126, 2
    %v4128 = vmax.f32 %v4126, %v4127
    %v4129 = vrot.slane %v4128, 1
    %v4130 = vmax.f32 %v4128, %v4129
    %v4131 = vsel %vm212, %v2179, -inf
    %v4132 = vrot.slane %v4131, 4
    %v4133 = vmax.f32 %v4131, %v4132
    %v4134 = vrot.slane %v4133, 2
    %v4135 = vmax.f32 %v4133, %v4134
    %v4136 = vrot.slane %v4135, 1
    %v4137 = vmax.f32 %v4135, %v4136
    %v4138 = vsel %vm212, %v2178, -inf
    %v4139 = vrot.slane %v4138, 4
    %v4140 = vmax.f32 %v4138, %v4139
    %v4141 = vrot.slane %v4140, 2
    %v4142 = vmax.f32 %v4140, %v4141
    %v4143 = vrot.slane %v4142, 1
    %v4144 = vmax.f32 %v4142, %v4143
    %v4145 = vsel %vm212, %v2180, -inf
    %v4146 = vrot.slane %v4145, 4
    %v4147 = vmax.f32 %v4145, %v4146
    %v4148 = vrot.slane %v4147, 2
    %v4149 = vmax.f32 %v4147, %v4148
    %v4150 = vrot.slane %v4149, 1
    %v4151 = vmax.f32 %v4149, %v4150
    %v4152 = vsel %vm212, %v2188, -inf
    %v4153 = vrot.slane %v4152, 4
    %v4154 = vmax.f32 %v4152, %v4153
    %v4155 = vrot.slane %v4154, 2
    %v4156 = vmax.f32 %v4154, %v4155
    %v4157 = vrot.slane %v4156, 1
    %v4158 = vmax.f32 %v4156, %v4157
    %v4159 = vsel %vm212, %v2196, -inf
    %v4160 = vrot.slane %v4159, 4
    %v4161 = vmax.f32 %v4159, %v4160
    %v4162 = vrot.slane %v4161, 2
    %v4163 = vmax.f32 %v4161, %v4162
    %v4164 = vrot.slane %v4163, 1
    %v4165 = vmax.f32 %v4163, %v4164
    %v4166 = vsel %vm212, %v2195, -inf
    %v4167 = vrot.slane %v4166, 4
    %v4168 = vmax.f32 %v4166, %v4167
    %v4169 = vrot.slane %v4168, 2
    %v4170 = vmax.f32 %v4168, %v4169
    %v4171 = vrot.slane %v4170, 1
    %v4172 = vmax.f32 %v4170, %v4171
    %v4173 = vsel %vm212, %v2197, -inf
    %v4174 = vrot.slane %v4173, 4
    %v4175 = vmax.f32 %v4173, %v4174
    %v4176 = vrot.slane %v4175, 2
    %v4177 = vmax.f32 %v4175, %v4176
    %v4178 = vrot.slane %v4177, 1
    %v4179 = vmax.f32 %v4177, %v4178
    %v4180 = vsel %vm212, %v2205, -inf
    %v4181 = vrot.slane %v4180, 4
    %v4182 = vmax.f32 %v4180, %v4181
    %v4183 = vrot.slane %v4182, 2
    %v4184 = vmax.f32 %v4182, %v4183
    %v4185 = vrot.slane %v4184, 1
    %v4186 = vmax.f32 %v4184, %v4185
    %v4187 = vsel %vm212, %v2213, -inf
    %v4188 = vrot.slane %v4187, 4
    %v4189 = vmax.f32 %v4187, %v4188
    %v4190 = vrot.slane %v4189, 2
    %v4191 = vmax.f32 %v4189, %v4190
    %v4192 = vrot.slane %v4191, 1
    %v4193 = vmax.f32 %v4191, %v4192
    %v4194 = vsel %vm212, %v2212, -inf
    %v4195 = vrot.slane %v4194, 4
    %v4196 = vmax.f32 %v4194, %v4195
    %v4197 = vrot.slane %v4196, 2
    %v4198 = vmax.f32 %v4196, %v4197
    %v4199 = vrot.slane %v4198, 1
    %v4200 = vmax.f32 %v4198, %v4199
    %v4201 = vsel %vm212, %v2214, -inf
    %v4202 = vrot.slane %v4201, 4
    %v4203 = vmax.f32 %v4201, %v4202
    %v4204 = vrot.slane %v4203, 2
    %v4205 = vmax.f32 %v4203, %v4204
    %v4206 = vrot.slane %v4205, 1
    %v4207 = vmax.f32 %v4205, %v4206
    %v4208 = vsel %vm212, %v2222, -inf
    %v4209 = vrot.slane %v4208, 4
    %v4210 = vmax.f32 %v4208, %v4209
    %v4211 = vrot.slane %v4210, 2
    %v4212 = vmax.f32 %v4210, %v4211
    %v4213 = vrot.slane %v4212, 1
    %v4214 = vmax.f32 %v4212, %v4213
    %v4215 = vsel %vm212, %v2230, -inf
    %v4216 = vrot.slane %v4215, 4
    %v4217 = vmax.f32 %v4215, %v4216
    %v4218 = vrot.slane %v4217, 2
    %v4219 = vmax.f32 %v4217, %v4218
    %v4220 = vrot.slane %v4219, 1
    %v4221 = vmax.f32 %v4219, %v4220
    %v4222 = vsel %vm212, %v2229, -inf
    %v4223 = vrot.slane %v4222, 4
    %v4224 = vmax.f32 %v4222, %v4223
    %v4225 = vrot.slane %v4224, 2
    %v4226 = vmax.f32 %v4224, %v4225
    %v4227 = vrot.slane %v4226, 1
    %v4228 = vmax.f32 %v4226, %v4227
    %v4229 = vsel %vm212, %v2231, -inf
    %v4230 = vrot.slane %v4229, 4
    %v4231 = vmax.f32 %v4229, %v4230
    %v4232 = vrot.slane %v4231, 2
    %v4233 = vmax.f32 %v4231, %v4232
    %v4234 = vrot.slane %v4233, 1
    %v4235 = vmax.f32 %v4233, %v4234
    %v4236 = vsel %vm212, %v2239, -inf
    %v4237 = vrot.slane %v4236, 4
    %v4238 = vmax.f32 %v4236, %v4237
    %v4239 = vrot.slane %v4238, 2
    %v4240 = vmax.f32 %v4238, %v4239
    %v4241 = vrot.slane %v4240, 1
    %v4242 = vmax.f32 %v4240, %v4241
    %v4243 = vsel %vm212, %v2247, -inf
    %v4244 = vrot.slane %v4243, 4
    %v4245 = vmax.f32 %v4243, %v4244
    %v4246 = vrot.slane %v4245, 2
    %v4247 = vmax.f32 %v4245, %v4246
    %v4248 = vrot.slane %v4247, 1
    %v4249 = vmax.f32 %v4247, %v4248
    %v4250 = vsel %vm212, %v2246, -inf
    %v4251 = vrot.slane %v4250, 4
    %v4252 = vmax.f32 %v4250, %v4251
    %v4253 = vrot.slane %v4252, 2
    %v4254 = vmax.f32 %v4252, %v4253
    %v4255 = vrot.slane %v4254, 1
    %v4256 = vmax.f32 %v4254, %v4255
    %v4257 = vsel %vm212, %v2248, -inf
    %v4258 = vrot.slane %v4257, 4
    %v4259 = vmax.f32 %v4257, %v4258
    %v4260 = vrot.slane %v4259, 2
    %v4261 = vmax.f32 %v4259, %v4260
    %v4262 = vrot.slane %v4261, 1
    %v4263 = vmax.f32 %v4261, %v4262
    %v4264 = vsel %vm212, %v2256, -inf
    %v4265 = vrot.slane %v4264, 4
    %v4266 = vmax.f32 %v4264, %v4265
    %v4267 = vrot.slane %v4266, 2
    %v4268 = vmax.f32 %v4266, %v4267
    %v4269 = vrot.slane %v4268, 1
    %v4270 = vmax.f32 %v4268, %v4269
    %v4271 = vsel %vm212, %v2264, -inf
    %v4272 = vrot.slane %v4271, 4
    %v4273 = vmax.f32 %v4271, %v4272
    %v4274 = vrot.slane %v4273, 2
    %v4275 = vmax.f32 %v4273, %v4274
    %v4276 = vrot.slane %v4275, 1
    %v4277 = vmax.f32 %v4275, %v4276
    %v4278 = vsel %vm212, %v2263, -inf
    %v4279 = vrot.slane %v4278, 4
    %v4280 = vmax.f32 %v4278, %v4279
    %v4281 = vrot.slane %v4280, 2
    %v4282 = vmax.f32 %v4280, %v4281
    %v4283 = vrot.slane %v4282, 1
    %v4284 = vmax.f32 %v4282, %v4283
    %v4285 = vsel %vm212, %v2265, -inf
    %v4286 = vrot.slane %v4285, 4
    %v4287 = vmax.f32 %v4285, %v4286
    %v4288 = vrot.slane %v4287, 2
    %v4289 = vmax.f32 %v4287, %v4288
    %v4290 = vrot.slane %v4289, 1
    %v4291 = vmax.f32 %v4289, %v4290
    %v4292 = vsel %vm212, %v2273, -inf
    %v4293 = vrot.slane %v4292, 4
    %v4294 = vmax.f32 %v4292, %v4293
    %v4295 = vrot.slane %v4294, 2
    %v4296 = vmax.f32 %v4294, %v4295
    %v4297 = vrot.slane %v4296, 1
    %v4298 = vmax.f32 %v4296, %v4297
    %v4299 = vsel %vm212, %v2281, -inf
    %v4300 = vrot.slane %v4299, 4
    %v4301 = vmax.f32 %v4299, %v4300
    %v4302 = vrot.slane %v4301, 2
    %v4303 = vmax.f32 %v4301, %v4302
    %v4304 = vrot.slane %v4303, 1
    %v4305 = vmax.f32 %v4303, %v4304
    %v4306 = vsel %vm212, %v2280, -inf
    %v4307 = vrot.slane %v4306, 4
    %v4308 = vmax.f32 %v4306, %v4307
    %v4309 = vrot.slane %v4308, 2
    %v4310 = vmax.f32 %v4308, %v4309
    %v4311 = vrot.slane %v4310, 1
    %v4312 = vmax.f32 %v4310, %v4311
    %v4313 = vsel %vm212, %v2282, -inf
    %v4314 = vrot.slane %v4313, 4
    %v4315 = vmax.f32 %v4313, %v4314
    %v4316 = vrot.slane %v4315, 2
    %v4317 = vmax.f32 %v4315, %v4316
    %v4318 = vrot.slane %v4317, 1
    %v4319 = vmax.f32 %v4317, %v4318
    %v4320 = vsel %vm212, %v2290, -inf
    %v4321 = vrot.slane %v4320, 4
    %v4322 = vmax.f32 %v4320, %v4321
    %v4323 = vrot.slane %v4322, 2
    %v4324 = vmax.f32 %v4322, %v4323
    %v4325 = vrot.slane %v4324, 1
    %v4326 = vmax.f32 %v4324, %v4325
    %v4327 = vsel %vm212, %v2298, -inf
    %v4328 = vrot.slane %v4327, 4
    %v4329 = vmax.f32 %v4327, %v4328
    %v4330 = vrot.slane %v4329, 2
    %v4331 = vmax.f32 %v4329, %v4330
    %v4332 = vrot.slane %v4331, 1
    %v4333 = vmax.f32 %v4331, %v4332
    %v4334 = vsel %vm212, %v2297, -inf
    %v4335 = vrot.slane %v4334, 4
    %v4336 = vmax.f32 %v4334, %v4335
    %v4337 = vrot.slane %v4336, 2
    %v4338 = vmax.f32 %v4336, %v4337
    %v4339 = vrot.slane %v4338, 1
    %v4340 = vmax.f32 %v4338, %v4339
    %v4341 = vsel %vm212, %v2299, -inf
    %v4342 = vrot.slane %v4341, 4
    %v4343 = vmax.f32 %v4341, %v4342
    %v4344 = vrot.slane %v4343, 2
    %v4345 = vmax.f32 %v4343, %v4344
    %v4346 = vrot.slane %v4345, 1
    %v4347 = vmax.f32 %v4345, %v4346
    %v4348 = vsel %vm210, %v2562, -inf
    %v4349 = vsel %vm210, %v2618, -inf
    %v4350 = vmax.f32 %v4348, %v4349
    %v4351 = vsel %vm210, %v2569, -inf
    %v4352 = vsel %vm210, %v2625, -inf
    %v4353 = vmax.f32 %v4351, %v4352
    %v4354 = vsel %vm210, %v2576, -inf
    %v4355 = vsel %vm210, %v2632, -inf
    %v4356 = vmax.f32 %v4354, %v4355
    %v4357 = vsel %vm210, %v2583, -inf
    %v4358 = vsel %vm210, %v2639, -inf
    %v4359 = vmax.f32 %v4357, %v4358
    %v4360 = vsel %vm210, %v2590, -inf
    %v4361 = vsel %vm210, %v2646, -inf
    %v4362 = vmax.f32 %v4360, %v4361
    %v4363 = vsel %vm210, %v2597, -inf
    %v4364 = vsel %vm210, %v2653, -inf
    %v4365 = vmax.f32 %v4363, %v4364
    %v4366 = vsel %vm210, %v2604, -inf
    %v4367 = vsel %vm210, %v2660, -inf
    %v4368 = vmax.f32 %v4366, %v4367
    %v4369 = vsel %vm210, %v2611, -inf
    %v4370 = vsel %vm210, %v2667, -inf
    %v4371 = vmax.f32 %v4369, %v4370
    %v4372 = vsel %vm210, %v2674, -inf
    %v4373 = vsel %vm210, %v2730, -inf
    %v4374 = vmax.f32 %v4372, %v4373
    %v4375 = vsel %vm210, %v2681, -inf
    %v4376 = vsel %vm210, %v2737, -inf
    %v4377 = vmax.f32 %v4375, %v4376
    %v4378 = vsel %vm210, %v2688, -inf
    %v4379 = vsel %vm210, %v2744, -inf
    %v4380 = vmax.f32 %v4378, %v4379
    %v4381 = vsel %vm210, %v2695, -inf
    %v4382 = vsel %vm210, %v2751, -inf
    %v4383 = vmax.f32 %v4381, %v4382
    %v4384 = vsel %vm210, %v2702, -inf
    %v4385 = vsel %vm210, %v2758, -inf
    %v4386 = vmax.f32 %v4384, %v4385
    %v4387 = vsel %vm210, %v2709, -inf
    %v4388 = vsel %vm210, %v2765, -inf
    %v4389 = vmax.f32 %v4387, %v4388
    %v4390 = vsel %vm210, %v2716, -inf
    %v4391 = vsel %vm210, %v2772, -inf
    %v4392 = vmax.f32 %v4390, %v4391
    %v4393 = vsel %vm210, %v2723, -inf
    %v4394 = vsel %vm210, %v2779, -inf
    %v4395 = vmax.f32 %v4393, %v4394
    %v4396 = vsel %vm210, %v2786, -inf
    %v4397 = vsel %vm210, %v2842, -inf
    %v4398 = vmax.f32 %v4396, %v4397
    %v4399 = vsel %vm210, %v2793, -inf
    %v4400 = vsel %vm210, %v2849, -inf
    %v4401 = vmax.f32 %v4399, %v4400
    %v4402 = vsel %vm210, %v2800, -inf
    %v4403 = vsel %vm210, %v2856, -inf
    %v4404 = vmax.f32 %v4402, %v4403
    %v4405 = vsel %vm210, %v2807, -inf
    %v4406 = vsel %vm210, %v2863, -inf
    %v4407 = vmax.f32 %v4405, %v4406
    %v4408 = vsel %vm210, %v2814, -inf
    %v4409 = vsel %vm210, %v2870, -inf
    %v4410 = vmax.f32 %v4408, %v4409
    %v4411 = vsel %vm210, %v2821, -inf
    %v4412 = vsel %vm210, %v2877, -inf
    %v4413 = vmax.f32 %v4411, %v4412
    %v4414 = vsel %vm210, %v2828, -inf
    %v4415 = vsel %vm210, %v2884, -inf
    %v4416 = vmax.f32 %v4414, %v4415
    %v4417 = vsel %vm210, %v2835, -inf
    %v4418 = vsel %vm210, %v2891, -inf
    %v4419 = vmax.f32 %v4417, %v4418
    %v4420 = vsel %vm210, %v2898, -inf
    %v4421 = vsel %vm210, %v2954, -inf
    %v4422 = vmax.f32 %v4420, %v4421
    %v4423 = vsel %vm210, %v2905, -inf
    %v4424 = vsel %vm210, %v2961, -inf
    %v4425 = vmax.f32 %v4423, %v4424
    %v4426 = vsel %vm210, %v2912, -inf
    %v4427 = vsel %vm210, %v2968, -inf
    %v4428 = vmax.f32 %v4426, %v4427
    %v4429 = vsel %vm210, %v2919, -inf
    %v4430 = vsel %vm210, %v2975, -inf
    %v4431 = vmax.f32 %v4429, %v4430
    %v4432 = vsel %vm210, %v2926, -inf
    %v4433 = vsel %vm210, %v2982, -inf
    %v4434 = vmax.f32 %v4432, %v4433
    %v4435 = vsel %vm210, %v2933, -inf
    %v4436 = vsel %vm210, %v2989, -inf
    %v4437 = vmax.f32 %v4435, %v4436
    %v4438 = vsel %vm210, %v2940, -inf
    %v4439 = vsel %vm210, %v2996, -inf
    %v4440 = vmax.f32 %v4438, %v4439
    %v4441 = vsel %vm210, %v2947, -inf
    %v4442 = vsel %vm210, %v3003, -inf
    %v4443 = vmax.f32 %v4441, %v4442
    %v4444 = vsel %vm210, %v3010, -inf
    %v4445 = vsel %vm210, %v3066, -inf
    %v4446 = vmax.f32 %v4444, %v4445
    %v4447 = vsel %vm210, %v3017, -inf
    %v4448 = vsel %vm210, %v3073, -inf
    %v4449 = vmax.f32 %v4447, %v4448
    %v4450 = vsel %vm210, %v3024, -inf
    %v4451 = vsel %vm210, %v3080, -inf
    %v4452 = vmax.f32 %v4450, %v4451
    %v4453 = vsel %vm210, %v3031, -inf
    %v4454 = vsel %vm210, %v3087, -inf
    %v4455 = vmax.f32 %v4453, %v4454
    %v4456 = vsel %vm210, %v3038, -inf
    %v4457 = vsel %vm210, %v3094, -inf
    %v4458 = vmax.f32 %v4456, %v4457
    %v4459 = vsel %vm210, %v3045, -inf
    %v4460 = vsel %vm210, %v3101, -inf
    %v4461 = vmax.f32 %v4459, %v4460
    %v4462 = vsel %vm210, %v3052, -inf
    %v4463 = vsel %vm210, %v3108, -inf
    %v4464 = vmax.f32 %v4462, %v4463
    %v4465 = vsel %vm210, %v3059, -inf
    %v4466 = vsel %vm210, %v3115, -inf
    %v4467 = vmax.f32 %v4465, %v4466
    %v4468 = vsel %vm210, %v3122, -inf
    %v4469 = vsel %vm210, %v3178, -inf
    %v4470 = vmax.f32 %v4468, %v4469
    %v4471 = vsel %vm210, %v3129, -inf
    %v4472 = vsel %vm210, %v3185, -inf
    %v4473 = vmax.f32 %v4471, %v4472
    %v4474 = vsel %vm210, %v3136, -inf
    %v4475 = vsel %vm210, %v3192, -inf
    %v4476 = vmax.f32 %v4474, %v4475
    %v4477 = vsel %vm210, %v3143, -inf
    %v4478 = vsel %vm210, %v3199, -inf
    %v4479 = vmax.f32 %v4477, %v4478
    %v4480 = vsel %vm210, %v3150, -inf
    %v4481 = vsel %vm210, %v3206, -inf
    %v4482 = vmax.f32 %v4480, %v4481
    %v4483 = vsel %vm210, %v3157, -inf
    %v4484 = vsel %vm210, %v3213, -inf
    %v4485 = vmax.f32 %v4483, %v4484
    %v4486 = vsel %vm210, %v3164, -inf
    %v4487 = vsel %vm210, %v3220, -inf
    %v4488 = vmax.f32 %v4486, %v4487
    %v4489 = vsel %vm210, %v3171, -inf
    %v4490 = vsel %vm210, %v3227, -inf
    %v4491 = vmax.f32 %v4489, %v4490
    %v4492 = vsel %vm210, %v3234, -inf
    %v4493 = vsel %vm210, %v3290, -inf
    %v4494 = vmax.f32 %v4492, %v4493
    %v4495 = vsel %vm210, %v3241, -inf
    %v4496 = vsel %vm210, %v3297, -inf
    %v4497 = vmax.f32 %v4495, %v4496
    %v4498 = vsel %vm210, %v3248, -inf
    %v4499 = vsel %vm210, %v3304, -inf
    %v4500 = vmax.f32 %v4498, %v4499
    %v4501 = vsel %vm210, %v3255, -inf
    %v4502 = vsel %vm210, %v3311, -inf
    %v4503 = vmax.f32 %v4501, %v4502
    %v4504 = vsel %vm210, %v3262, -inf
    %v4505 = vsel %vm210, %v3318, -inf
    %v4506 = vmax.f32 %v4504, %v4505
    %v4507 = vsel %vm210, %v3269, -inf
    %v4508 = vsel %vm210, %v3325, -inf
    %v4509 = vmax.f32 %v4507, %v4508
    %v4510 = vsel %vm210, %v3276, -inf
    %v4511 = vsel %vm210, %v3332, -inf
    %v4512 = vmax.f32 %v4510, %v4511
    %v4513 = vsel %vm210, %v3283, -inf
    %v4514 = vsel %vm210, %v3339, -inf
    %v4515 = vmax.f32 %v4513, %v4514
    %v4516 = vsel %vm210, %v3346, -inf
    %v4517 = vsel %vm210, %v3402, -inf
    %v4518 = vmax.f32 %v4516, %v4517
    %v4519 = vsel %vm210, %v3353, -inf
    %v4520 = vsel %vm210, %v3409, -inf
    %v4521 = vmax.f32 %v4519, %v4520
    %v4522 = vsel %vm210, %v3360, -inf
    %v4523 = vsel %vm210, %v3416, -inf
    %v4524 = vmax.f32 %v4522, %v4523
    %v4525 = vsel %vm210, %v3367, -inf
    %v4526 = vsel %vm210, %v3423, -inf
    %v4527 = vmax.f32 %v4525, %v4526
    %v4528 = vsel %vm210, %v3374, -inf
    %v4529 = vsel %vm210, %v3430, -inf
    %v4530 = vmax.f32 %v4528, %v4529
    %v4531 = vsel %vm210, %v3381, -inf
    %v4532 = vsel %vm210, %v3437, -inf
    %v4533 = vmax.f32 %v4531, %v4532
    %v4534 = vsel %vm210, %v3388, -inf
    %v4535 = vsel %vm210, %v3444, -inf
    %v4536 = vmax.f32 %v4534, %v4535
    %v4537 = vsel %vm210, %v3395, -inf
    %v4538 = vsel %vm210, %v3451, -inf
    %v4539 = vmax.f32 %v4537, %v4538
    %v4540 = vsel %vm210, %v3458, -inf
    %v4541 = vsel %vm210, %v3514, -inf
    %v4542 = vmax.f32 %v4540, %v4541
    %v4543 = vsel %vm210, %v3465, -inf
    %v4544 = vsel %vm210, %v3521, -inf
    %v4545 = vmax.f32 %v4543, %v4544
    %v4546 = vsel %vm210, %v3472, -inf
    %v4547 = vsel %vm210, %v3528, -inf
    %v4548 = vmax.f32 %v4546, %v4547
    %v4549 = vsel %vm210, %v3479, -inf
    %v4550 = vsel %vm210, %v3535, -inf
    %v4551 = vmax.f32 %v4549, %v4550
    %v4552 = vsel %vm210, %v3486, -inf
    %v4553 = vsel %vm210, %v3542, -inf
    %v4554 = vmax.f32 %v4552, %v4553
    %v4555 = vsel %vm210, %v3493, -inf
    %v4556 = vsel %vm210, %v3549, -inf
    %v4557 = vmax.f32 %v4555, %v4556
    %v4558 = vsel %vm210, %v3500, -inf
    %v4559 = vsel %vm210, %v3556, -inf
    %v4560 = vmax.f32 %v4558, %v4559
    %v4561 = vsel %vm210, %v3507, -inf
    %v4562 = vsel %vm210, %v3563, -inf
    %v4563 = vmax.f32 %v4561, %v4562
    %v4564 = vsel %vm210, %v3570, -inf
    %v4565 = vsel %vm210, %v3626, -inf
    %v4566 = vmax.f32 %v4564, %v4565
    %v4567 = vsel %vm210, %v3577, -inf
    %v4568 = vsel %vm210, %v3633, -inf
    %v4569 = vmax.f32 %v4567, %v4568
    %v4570 = vsel %vm210, %v3584, -inf
    %v4571 = vsel %vm210, %v3640, -inf
    %v4572 = vmax.f32 %v4570, %v4571
    %v4573 = vsel %vm210, %v3591, -inf
    %v4574 = vsel %vm210, %v3647, -inf
    %v4575 = vmax.f32 %v4573, %v4574
    %v4576 = vsel %vm210, %v3598, -inf
    %v4577 = vsel %vm210, %v3654, -inf
    %v4578 = vmax.f32 %v4576, %v4577
    %v4579 = vsel %vm210, %v3605, -inf
    %v4580 = vsel %vm210, %v3661, -inf
    %v4581 = vmax.f32 %v4579, %v4580
    %v4582 = vsel %vm210, %v3612, -inf
    %v4583 = vsel %vm210, %v3668, -inf
    %v4584 = vmax.f32 %v4582, %v4583
    %v4585 = vsel %vm210, %v3619, -inf
    %v4586 = vsel %vm210, %v3675, -inf
    %v4587 = vmax.f32 %v4585, %v4586
    %v4588 = vsel %vm210, %v3682, -inf
    %v4589 = vsel %vm210, %v3738, -inf
    %v4590 = vmax.f32 %v4588, %v4589
    %v4591 = vsel %vm210, %v3689, -inf
    %v4592 = vsel %vm210, %v3745, -inf
    %v4593 = vmax.f32 %v4591, %v4592
    %v4594 = vsel %vm210, %v3696, -inf
    %v4595 = vsel %vm210, %v3752, -inf
    %v4596 = vmax.f32 %v4594, %v4595
    %v4597 = vsel %vm210, %v3703, -inf
    %v4598 = vsel %vm210, %v3759, -inf
    %v4599 = vmax.f32 %v4597, %v4598
    %v4600 = vsel %vm210, %v3710, -inf
    %v4601 = vsel %vm210, %v3766, -inf
    %v4602 = vmax.f32 %v4600, %v4601
    %v4603 = vsel %vm210, %v3717, -inf
    %v4604 = vsel %vm210, %v3773, -inf
    %v4605 = vmax.f32 %v4603, %v4604
    %v4606 = vsel %vm210, %v3724, -inf
    %v4607 = vsel %vm210, %v3780, -inf
    %v4608 = vmax.f32 %v4606, %v4607
    %v4609 = vsel %vm210, %v3731, -inf
    %v4610 = vsel %vm210, %v3787, -inf
    %v4611 = vmax.f32 %v4609, %v4610
    %v4612 = vsel %vm210, %v3794, -inf
    %v4613 = vsel %vm210, %v3850, -inf
    %v4614 = vmax.f32 %v4612, %v4613
    %v4615 = vsel %vm210, %v3801, -inf
    %v4616 = vsel %vm210, %v3857, -inf
    %v4617 = vmax.f32 %v4615, %v4616
    %v4618 = vsel %vm210, %v3808, -inf
    %v4619 = vsel %vm210, %v3864, -inf
    %v4620 = vmax.f32 %v4618, %v4619
    %v4621 = vsel %vm210, %v3815, -inf
    %v4622 = vsel %vm210, %v3871, -inf
    %v4623 = vmax.f32 %v4621, %v4622
    %v4624 = vsel %vm210, %v3822, -inf
    %v4625 = vsel %vm210, %v3878, -inf
    %v4626 = vmax.f32 %v4624, %v4625
    %v4627 = vsel %vm210, %v3829, -inf
    %v4628 = vsel %vm210, %v3885, -inf
    %v4629 = vmax.f32 %v4627, %v4628
    %v4630 = vsel %vm210, %v3836, -inf
    %v4631 = vsel %vm210, %v3892, -inf
    %v4632 = vmax.f32 %v4630, %v4631
    %v4633 = vsel %vm210, %v3843, -inf
    %v4634 = vsel %vm210, %v3899, -inf
    %v4635 = vmax.f32 %v4633, %v4634
    %v4636 = vsel %vm210, %v3906, -inf
    %v4637 = vsel %vm210, %v3962, -inf
    %v4638 = vmax.f32 %v4636, %v4637
    %v4639 = vsel %vm210, %v3913, -inf
    %v4640 = vsel %vm210, %v3969, -inf
    %v4641 = vmax.f32 %v4639, %v4640
    %v4642 = vsel %vm210, %v3920, -inf
    %v4643 = vsel %vm210, %v3976, -inf
    %v4644 = vmax.f32 %v4642, %v4643
    %v4645 = vsel %vm210, %v3927, -inf
    %v4646 = vsel %vm210, %v3983, -inf
    %v4647 = vmax.f32 %v4645, %v4646
    %v4648 = vsel %vm210, %v3934, -inf
    %v4649 = vsel %vm210, %v3990, -inf
    %v4650 = vmax.f32 %v4648, %v4649
    %v4651 = vsel %vm210, %v3941, -inf
    %v4652 = vsel %vm210, %v3997, -inf
    %v4653 = vmax.f32 %v4651, %v4652
    %v4654 = vsel %vm210, %v3948, -inf
    %v4655 = vsel %vm210, %v4004, -inf
    %v4656 = vmax.f32 %v4654, %v4655
    %v4657 = vsel %vm210, %v3955, -inf
    %v4658 = vsel %vm210, %v4011, -inf
    %v4659 = vmax.f32 %v4657, %v4658
    %v4660 = vsel %vm210, %v4018, -inf
    %v4661 = vsel %vm210, %v4074, -inf
    %v4662 = vmax.f32 %v4660, %v4661
    %v4663 = vsel %vm210, %v4025, -inf
    %v4664 = vsel %vm210, %v4081, -inf
    %v4665 = vmax.f32 %v4663, %v4664
    %v4666 = vsel %vm210, %v4032, -inf
    %v4667 = vsel %vm210, %v4088, -inf
    %v4668 = vmax.f32 %v4666, %v4667
    %v4669 = vsel %vm210, %v4039, -inf
    %v4670 = vsel %vm210, %v4095, -inf
    %v4671 = vmax.f32 %v4669, %v4670
    %v4672 = vsel %vm210, %v4046, -inf
    %v4673 = vsel %vm210, %v4102, -inf
    %v4674 = vmax.f32 %v4672, %v4673
    %v4675 = vsel %vm210, %v4053, -inf
    %v4676 = vsel %vm210, %v4109, -inf
    %v4677 = vmax.f32 %v4675, %v4676
    %v4678 = vsel %vm210, %v4060, -inf
    %v4679 = vsel %vm210, %v4116, -inf
    %v4680 = vmax.f32 %v4678, %v4679
    %v4681 = vsel %vm210, %v4067, -inf
    %v4682 = vsel %vm210, %v4123, -inf
    %v4683 = vmax.f32 %v4681, %v4682
    %v4684 = vsel %vm210, %v4130, -inf
    %v4685 = vsel %vm210, %v4186, -inf
    %v4686 = vmax.f32 %v4684, %v4685
    %v4687 = vsel %vm210, %v4137, -inf
    %v4688 = vsel %vm210, %v4193, -inf
    %v4689 = vmax.f32 %v4687, %v4688
    %v4690 = vsel %vm210, %v4144, -inf
    %v4691 = vsel %vm210, %v4200, -inf
    %v4692 = vmax.f32 %v4690, %v4691
    %v4693 = vsel %vm210, %v4151, -inf
    %v4694 = vsel %vm210, %v4207, -inf
    %v4695 = vmax.f32 %v4693, %v4694
    %v4696 = vsel %vm210, %v4158, -inf
    %v4697 = vsel %vm210, %v4214, -inf
    %v4698 = vmax.f32 %v4696, %v4697
    %v4699 = vsel %vm210, %v4165, -inf
    %v4700 = vsel %vm210, %v4221, -inf
    %v4701 = vmax.f32 %v4699, %v4700
    %v4702 = vsel %vm210, %v4172, -inf
    %v4703 = vsel %vm210, %v4228, -inf
    %v4704 = vmax.f32 %v4702, %v4703
    %v4705 = vsel %vm210, %v4179, -inf
    %v4706 = vsel %vm210, %v4235, -inf
    %v4707 = vmax.f32 %v4705, %v4706
    %v4708 = vsel %vm210, %v4242, -inf
    %v4709 = vsel %vm210, %v4298, -inf
    %v4710 = vmax.f32 %v4708, %v4709
    %v4711 = vsel %vm210, %v4249, -inf
    %v4712 = vsel %vm210, %v4305, -inf
    %v4713 = vmax.f32 %v4711, %v4712
    %v4714 = vsel %vm210, %v4256, -inf
    %v4715 = vsel %vm210, %v4312, -inf
    %v4716 = vmax.f32 %v4714, %v4715
    %v4717 = vsel %vm210, %v4263, -inf
    %v4718 = vsel %vm210, %v4319, -inf
    %v4719 = vmax.f32 %v4717, %v4718
    %v4720 = vsel %vm210, %v4270, -inf
    %v4721 = vsel %vm210, %v4326, -inf
    %v4722 = vmax.f32 %v4720, %v4721
    %v4723 = vsel %vm210, %v4277, -inf
    %v4724 = vsel %vm210, %v4333, -inf
    %v4725 = vmax.f32 %v4723, %v4724
    %v4726 = vsel %vm210, %v4284, -inf
    %v4727 = vsel %vm210, %v4340, -inf
    %v4728 = vmax.f32 %v4726, %v4727
    %v4729 = vsel %vm210, %v4291, -inf
    %v4730 = vsel %vm210, %v4347, -inf
    %v4731 = vmax.f32 %v4729, %v4730
    %vm4860 = vcmask 1041409
    %v4861 = vsel %vm4860, %v4353, %v4350
    %vm4862 = vcmask 1042434
    %v4863 = vsel %vm4862, %v4356, %v4861
    %vm4864 = vcmask 1043459
    %v4865 = vsel %vm4864, %v4359, %v4863
    %vm4866 = vcmask 1044484
    %v4867 = vsel %vm4866, %v4362, %v4865
    %vm4868 = vcmask 1045509
    %v4869 = vsel %vm4868, %v4365, %v4867
    %vm4870 = vcmask 1046534
    %v4871 = vsel %vm4870, %v4368, %v4869
    %vm4872 = vcmask 1047559
    %v4873 = vsel %vm4872, %v4371, %v4871
    %v4874 = vsel %vm4860, %v4377, %v4374
    %v4875 = vsel %vm4862, %v4380, %v4874
    %v4876 = vsel %vm4864, %v4383, %v4875
    %v4877 = vsel %vm4866, %v4386, %v4876
    %v4878 = vsel %vm4868, %v4389, %v4877
    %v4879 = vsel %vm4870, %v4392, %v4878
    %v4880 = vsel %vm4872, %v4395, %v4879
    %v4881 = vsel %vm4860, %v4401, %v4398
    %v4882 = vsel %vm4862, %v4404, %v4881
    %v4883 = vsel %vm4864, %v4407, %v4882
    %v4884 = vsel %vm4866, %v4410, %v4883
    %v4885 = vsel %vm4868, %v4413, %v4884
    %v4886 = vsel %vm4870, %v4416, %v4885
    %v4887 = vsel %vm4872, %v4419, %v4886
    %v4888 = vsel %vm4860, %v4425, %v4422
    %v4889 = vsel %vm4862, %v4428, %v4888
    %v4890 = vsel %vm4864, %v4431, %v4889
    %v4891 = vsel %vm4866, %v4434, %v4890
    %v4892 = vsel %vm4868, %v4437, %v4891
    %v4893 = vsel %vm4870, %v4440, %v4892
    %v4894 = vsel %vm4872, %v4443, %v4893
    %v4895 = vsel %vm4860, %v4449, %v4446
    %v4896 = vsel %vm4862, %v4452, %v4895
    %v4897 = vsel %vm4864, %v4455, %v4896
    %v4898 = vsel %vm4866, %v4458, %v4897
    %v4899 = vsel %vm4868, %v4461, %v4898
    %v4900 = vsel %vm4870, %v4464, %v4899
    %v4901 = vsel %vm4872, %v4467, %v4900
    %v4902 = vsel %vm4860, %v4473, %v4470
    %v4903 = vsel %vm4862, %v4476, %v4902
    %v4904 = vsel %vm4864, %v4479, %v4903
    %v4905 = vsel %vm4866, %v4482, %v4904
    %v4906 = vsel %vm4868, %v4485, %v4905
    %v4907 = vsel %vm4870, %v4488, %v4906
    %v4908 = vsel %vm4872, %v4491, %v4907
    %v4909 = vsel %vm4860, %v4497, %v4494
    %v4910 = vsel %vm4862, %v4500, %v4909
    %v4911 = vsel %vm4864, %v4503, %v4910
    %v4912 = vsel %vm4866, %v4506, %v4911
    %v4913 = vsel %vm4868, %v4509, %v4912
    %v4914 = vsel %vm4870, %v4512, %v4913
    %v4915 = vsel %vm4872, %v4515, %v4914
    %v4916 = vsel %vm4860, %v4521, %v4518
    %v4917 = vsel %vm4862, %v4524, %v4916
    %v4918 = vsel %vm4864, %v4527, %v4917
    %v4919 = vsel %vm4866, %v4530, %v4918
    %v4920 = vsel %vm4868, %v4533, %v4919
    %v4921 = vsel %vm4870, %v4536, %v4920
    %v4922 = vsel %vm4872, %v4539, %v4921
    %v4923 = vsel %vm4860, %v4545, %v4542
    %v4924 = vsel %vm4862, %v4548, %v4923
    %v4925 = vsel %vm4864, %v4551, %v4924
    %v4926 = vsel %vm4866, %v4554, %v4925
    %v4927 = vsel %vm4868, %v4557, %v4926
    %v4928 = vsel %vm4870, %v4560, %v4927
    %v4929 = vsel %vm4872, %v4563, %v4928
    %v4930 = vsel %vm4860, %v4569, %v4566
    %v4931 = vsel %vm4862, %v4572, %v4930
    %v4932 = vsel %vm4864, %v4575, %v4931
    %v4933 = vsel %vm4866, %v4578, %v4932
    %v4934 = vsel %vm4868, %v4581, %v4933
    %v4935 = vsel %vm4870, %v4584, %v4934
    %v4936 = vsel %vm4872, %v4587, %v4935
    %v4937 = vsel %vm4860, %v4593, %v4590
    %v4938 = vsel %vm4862, %v4596, %v4937
    %v4939 = vsel %vm4864, %v4599, %v4938
    %v4940 = vsel %vm4866, %v4602, %v4939
    %v4941 = vsel %vm4868, %v4605, %v4940
    %v4942 = vsel %vm4870, %v4608, %v4941
    %v4943 = vsel %vm4872, %v4611, %v4942
    %v4944 = vsel %vm4860, %v4617, %v4614
    %v4945 = vsel %vm4862, %v4620, %v4944
    %v4946 = vsel %vm4864, %v4623, %v4945
    %v4947 = vsel %vm4866, %v4626, %v4946
    %v4948 = vsel %vm4868, %v4629, %v4947
    %v4949 = vsel %vm4870, %v4632, %v4948
    %v4950 = vsel %vm4872, %v4635, %v4949
    %v4951 = vsel %vm4860, %v4641, %v4638
    %v4952 = vsel %vm4862, %v4644, %v4951
    %v4953 = vsel %vm4864, %v4647, %v4952
    %v4954 = vsel %vm4866, %v4650, %v4953
    %v4955 = vsel %vm4868, %v4653, %v4954
    %v4956 = vsel %vm4870, %v4656, %v4955
    %v4957 = vsel %vm4872, %v4659, %v4956
    %v4958 = vsel %vm4860, %v4665, %v4662
    %v4959 = vsel %vm4862, %v4668, %v4958
    %v4960 = vsel %vm4864, %v4671, %v4959
    %v4961 = vsel %vm4866, %v4674, %v4960
    %v4962 = vsel %vm4868, %v4677, %v4961
    %v4963 = vsel %vm4870, %v4680, %v4962
    %v4964 = vsel %vm4872, %v4683, %v4963
    %v4965 = vsel %vm4860, %v4689, %v4686
    %v4966 = vsel %vm4862, %v4692, %v4965
    %v4967 = vsel %vm4864, %v4695, %v4966
    %v4968 = vsel %vm4866, %v4698, %v4967
    %v4969 = vsel %vm4868, %v4701, %v4968
    %v4970 = vsel %vm4870, %v4704, %v4969
    %v4971 = vsel %vm4872, %v4707, %v4970
    %v4972 = vsel %vm4860, %v4713, %v4710
    %v4973 = vsel %vm4862, %v4716, %v4972
    %v4974 = vsel %vm4864, %v4719, %v4973
    %v4975 = vsel %vm4866, %v4722, %v4974
    %v4976 = vsel %vm4868, %v4725, %v4975
    %v4977 = vsel %vm4870, %v4728, %v4976
    %v4978 = vsel %vm4872, %v4731, %v4977
    %s4995 = scalar_lea.vmem [#allocation2], 16
    %4996 = vst.msk [vmem:[%s4995 + $0x1] sm:$0xff] %vm210, %v4873
    %4997 = vst.msk [vmem:[%s4995 + $0x11] sm:$0xff] %vm210, %v4880
    %4998 = vst.msk [vmem:[%s4995 + $0x21] sm:$0xff] %vm210, %v4887
    %4999 = vst.msk [vmem:[%s4995 + $0x31] sm:$0xff] %vm210, %v4894
    %5000 = vst.msk [vmem:[%s4995 + $0x41] sm:$0xff] %vm210, %v4901
    %5001 = vst.msk [vmem:[%s4995 + $0x51] sm:$0xff] %vm210, %v4908
    %5002 = vst.msk [vmem:[%s4995 + $0x61] sm:$0xff] %vm210, %v4915
    %5003 = vst.msk [vmem:[%s4995 + $0x71] sm:$0xff] %vm210, %v4922
    %5004 = vst.msk [vmem:[%s4995 + $0xa1] sm:$0xff] %vm210, %v4929
    %5005 = vst.msk [vmem:[%s4995 + $0xb1] sm:$0xff] %vm210, %v4936
    %5006 = vst.msk [vmem:[%s4995 + $0xc1] sm:$0xff] %vm210, %v4943
    %5007 = vst.msk [vmem:[%s4995 + $0xd1] sm:$0xff] %vm210, %v4950
    %5008 = vst.msk [vmem:[%s4995 + $0xe1] sm:$0xff] %vm210, %v4957
    %5009 = vst.msk [vmem:[%s4995 + $0xf1] sm:$0xff] %vm210, %v4964
    %5010 = vst.msk [vmem:[%s4995 + $0x101] sm:$0xff] %vm210, %v4971
    %5011 = vst.msk [vmem:[%s4995 + $0x111] sm:$0xff] %vm210, %v4978
    %v5012 = vld [vmem:[#allocation2] sm:$0xff]
    %v5013 = vld [vmem:[#allocation2 + $0x8] sm:$0x3]
    %v5014 = vld [vmem:[#allocation2 + $0x10] sm:$0xff]
    %v5015 = vld [vmem:[#allocation2 + $0x18] sm:$0x3]
    %v5016 = vld [vmem:[#allocation2 + $0x20] sm:$0xff]
    %v5017 = vld [vmem:[#allocation2 + $0x28] sm:$0x3]
    %v5018 = vld [vmem:[#allocation2 + $0x30] sm:$0xff]
    %v5019 = vld [vmem:[#allocation2 + $0x38] sm:$0x3]
    %v5020 = vld [vmem:[#allocation2 + $0x40] sm:$0xff]
    %v5021 = vld [vmem:[#allocation2 + $0x48] sm:$0x3]
    %v5022 = vld [vmem:[#allocation2 + $0x50] sm:$0xff]
    %v5023 = vld [vmem:[#allocation2 + $0x58] sm:$0x3]
    %v5024 = vld [vmem:[#allocation2 + $0x60] sm:$0xff]
    %v5025 = vld [vmem:[#allocation2 + $0x68] sm:$0x3]
    %v5026 = vld [vmem:[#allocation2 + $0x70] sm:$0xff]
    %v5027 = vld [vmem:[#allocation2 + $0x78] sm:$0x3]
    %v5028 = vld [vmem:[#allocation2 + $0xa0] sm:$0xff]
    %v5029 = vld [vmem:[#allocation2 + $0xa8] sm:$0x3]
    %v5030 = vld [vmem:[#allocation2 + $0xb0] sm:$0xff]
    %v5031 = vld [vmem:[#allocation2 + $0xb8] sm:$0x3]
    %v5032 = vld [vmem:[#allocation2 + $0xc0] sm:$0xff]
    %v5033 = vld [vmem:[#allocation2 + $0xc8] sm:$0x3]
    %v5034 = vld [vmem:[#allocation2 + $0xd0] sm:$0xff]
    %v5035 = vld [vmem:[#allocation2 + $0xd8] sm:$0x3]
    %v5036 = vld [vmem:[#allocation2 + $0xe0] sm:$0xff]
    %v5037 = vld [vmem:[#allocation2 + $0xe8] sm:$0x3]
    %v5038 = vld [vmem:[#allocation2 + $0xf0] sm:$0xff]
    %v5039 = vld [vmem:[#allocation2 + $0xf8] sm:$0x3]
    %v5040 = vld [vmem:[#allocation2 + $0x100] sm:$0xff]
    %v5041 = vld [vmem:[#allocation2 + $0x108] sm:$0x3]
    %v5042 = vld [vmem:[#allocation2 + $0x110] sm:$0xff]
    %v5043 = vld [vmem:[#allocation2 + $0x118] sm:$0x3]
    %v5044 = vpack.c.bf16 %v5013, %v5012
    %v5045 = vpack.c.bf16 %v5015, %v5014
    %v5046 = vpack.c.bf16 %v5017, %v5016
    %v5047 = vpack.c.bf16 %v5019, %v5018
    %v5048 = vpack.c.bf16 %v5021, %v5020
    %v5049 = vpack.c.bf16 %v5023, %v5022
    %v5050 = vpack.c.bf16 %v5025, %v5024
    %v5051 = vpack.c.bf16 %v5027, %v5026
    %v5052 = vpack.c.bf16 %v5029, %v5028
    %v5053 = vpack.c.bf16 %v5031, %v5030
    %v5054 = vpack.c.bf16 %v5033, %v5032
    %v5055 = vpack.c.bf16 %v5035, %v5034
    %v5056 = vpack.c.bf16 %v5037, %v5036
    %v5057 = vpack.c.bf16 %v5039, %v5038
    %v5058 = vpack.c.bf16 %v5041, %v5040
    %v5059 = vpack.c.bf16 %v5043, %v5042
    %v5061 = vshrl.u32 %v5044, 16
    %v5063 = vshll.u32 %v5044, 16
    %v5065 = vrot.slane %v5063, 1
    %v5066 = vor.u32 %v5061, %v5065
    %v5068 = vshrl.u32 %v5045, 16
    %v5070 = vshll.u32 %v5045, 16
    %v5072 = vrot.slane %v5070, 1
    %v5073 = vor.u32 %v5068, %v5072
    %v5075 = vshrl.u32 %v5046, 16
    %v5077 = vshll.u32 %v5046, 16
    %v5079 = vrot.slane %v5077, 1
    %v5080 = vor.u32 %v5075, %v5079
    %v5082 = vshrl.u32 %v5047, 16
    %v5084 = vshll.u32 %v5047, 16
    %v5086 = vrot.slane %v5084, 1
    %v5087 = vor.u32 %v5082, %v5086
    %v5089 = vshrl.u32 %v5048, 16
    %v5091 = vshll.u32 %v5048, 16
    %v5093 = vrot.slane %v5091, 1
    %v5094 = vor.u32 %v5089, %v5093
    %v5096 = vshrl.u32 %v5049, 16
    %v5098 = vshll.u32 %v5049, 16
    %v5100 = vrot.slane %v5098, 1
    %v5101 = vor.u32 %v5096, %v5100
    %v5103 = vshrl.u32 %v5050, 16
    %v5105 = vshll.u32 %v5050, 16
    %v5107 = vrot.slane %v5105, 1
    %v5108 = vor.u32 %v5103, %v5107
    %v5110 = vshrl.u32 %v5051, 16
    %v5112 = vshll.u32 %v5051, 16
    %v5114 = vrot.slane %v5112, 1
    %v5115 = vor.u32 %v5110, %v5114
    %v5117 = vshrl.u32 %v5052, 16
    %v5119 = vshll.u32 %v5052, 16
    %v5121 = vrot.slane %v5119, 1
    %v5122 = vor.u32 %v5117, %v5121
    %v5124 = vshrl.u32 %v5053, 16
    %v5126 = vshll.u32 %v5053, 16
    %v5128 = vrot.slane %v5126, 1
    %v5129 = vor.u32 %v5124, %v5128
    %v5131 = vshrl.u32 %v5054, 16
    %v5133 = vshll.u32 %v5054, 16
    %v5135 = vrot.slane %v5133, 1
    %v5136 = vor.u32 %v5131, %v5135
    %v5138 = vshrl.u32 %v5055, 16
    %v5140 = vshll.u32 %v5055, 16
    %v5142 = vrot.slane %v5140, 1
    %v5143 = vor.u32 %v5138, %v5142
    %v5145 = vshrl.u32 %v5056, 16
    %v5147 = vshll.u32 %v5056, 16
    %v5149 = vrot.slane %v5147, 1
    %v5150 = vor.u32 %v5145, %v5149
    %v5152 = vshrl.u32 %v5057, 16
    %v5154 = vshll.u32 %v5057, 16
    %v5156 = vrot.slane %v5154, 1
    %v5157 = vor.u32 %v5152, %v5156
    %v5159 = vshrl.u32 %v5058, 16
    %v5161 = vshll.u32 %v5058, 16
    %v5163 = vrot.slane %v5161, 1
    %v5164 = vor.u32 %v5159, %v5163
    %v5166 = vshrl.u32 %v5059, 16
    %v5168 = vshll.u32 %v5059, 16
    %v5170 = vrot.slane %v5168, 1
    %v5171 = vor.u32 %v5166, %v5170
    %5172 = vrot.lane.b32.xlu0 %v5066, 32
    %v5173 = vpop.permute.xlu0 %5172
    %5174 = vrot.lane.b32.xlu0 %v5073, 32
    %v5175 = vpop.permute.xlu0 %5174
    %5176 = vrot.lane.b32.xlu0 %v5080, 32
    %v5177 = vpop.permute.xlu0 %5176
    %5178 = vrot.lane.b32.xlu0 %v5087, 32
    %v5179 = vpop.permute.xlu0 %5178
    %5180 = vrot.lane.b32.xlu0 %v5094, 32
    %v5181 = vpop.permute.xlu0 %5180
    %5182 = vrot.lane.b32.xlu0 %v5101, 32
    %v5183 = vpop.permute.xlu0 %5182
    %5184 = vrot.lane.b32.xlu0 %v5108, 32
    %v5185 = vpop.permute.xlu0 %5184
    %5186 = vrot.lane.b32.xlu0 %v5115, 32
    %v5187 = vpop.permute.xlu0 %5186
    %5188 = vrot.lane.b32.xlu0 %v5122, 32
    %v5189 = vpop.permute.xlu0 %5188
    %5190 = vrot.lane.b32.xlu0 %v5129, 32
    %v5191 = vpop.permute.xlu0 %5190
    %5192 = vrot.lane.b32.xlu0 %v5136, 32
    %v5193 = vpop.permute.xlu0 %5192
    %5194 = vrot.lane.b32.xlu0 %v5143, 32
    %v5195 = vpop.permute.xlu0 %5194
    %5196 = vrot.lane.b32.xlu0 %v5150, 32
    %v5197 = vpop.permute.xlu0 %5196
    %5198 = vrot.lane.b32.xlu0 %v5157, 32
    %v5199 = vpop.permute.xlu0 %5198
    %5200 = vrot.lane.b32.xlu0 %v5164, 32
    %v5201 = vpop.permute.xlu0 %5200
    %5202 = vrot.lane.b32.xlu0 %v5171, 32
    %v5203 = vpop.permute.xlu0 %5202
    %v5220 = vrot.slane %v5044, 1
    %v5221 = vrot.slane %v5045, 1
    %v5222 = vrot.slane %v5046, 1
    %v5223 = vrot.slane %v5047, 1
    %v5224 = vrot.slane %v5048, 1
    %v5225 = vrot.slane %v5049, 1
    %v5226 = vrot.slane %v5050, 1
    %v5227 = vrot.slane %v5051, 1
    %v5228 = vrot.slane %v5052, 1
    %v5229 = vrot.slane %v5053, 1
    %v5230 = vrot.slane %v5054, 1
    %v5231 = vrot.slane %v5055, 1
    %v5232 = vrot.slane %v5056, 1
    %v5233 = vrot.slane %v5057, 1
    %v5234 = vrot.slane %v5058, 1
    %v5235 = vrot.slane %v5059, 1
    %5236 = vrot.lane.b32.xlu0 %v5220, 64
    %v5237 = vpop.permute.xlu0 %5236
    %5238 = vrot.lane.b32.xlu0 %v5221, 64
    %v5239 = vpop.permute.xlu0 %5238
    %5240 = vrot.lane.b32.xlu0 %v5222, 64
    %v5241 = vpop.permute.xlu0 %5240
    %5242 = vrot.lane.b32.xlu0 %v5223, 64
    %v5243 = vpop.permute.xlu0 %5242
    %5244 = vrot.lane.b32.xlu0 %v5224, 64
    %v5245 = vpop.permute.xlu0 %5244
    %5246 = vrot.lane.b32.xlu0 %v5225, 64
    %v5247 = vpop.permute.xlu0 %5246
    %5248 = vrot.lane.b32.xlu0 %v5226, 64
    %v5249 = vpop.permute.xlu0 %5248
    %5250 = vrot.lane.b32.xlu0 %v5227, 64
    %v5251 = vpop.permute.xlu0 %5250
    %5252 = vrot.lane.b32.xlu0 %v5228, 64
    %v5253 = vpop.permute.xlu0 %5252
    %5254 = vrot.lane.b32.xlu0 %v5229, 64
    %v5255 = vpop.permute.xlu0 %5254
    %5256 = vrot.lane.b32.xlu0 %v5230, 64
    %v5257 = vpop.permute.xlu0 %5256
    %5258 = vrot.lane.b32.xlu0 %v5231, 64
    %v5259 = vpop.permute.xlu0 %5258
    %5260 = vrot.lane.b32.xlu0 %v5232, 64
    %v5261 = vpop.permute.xlu0 %5260
    %5262 = vrot.lane.b32.xlu0 %v5233, 64
    %v5263 = vpop.permute.xlu0 %5262
    %5264 = vrot.lane.b32.xlu0 %v5234, 64
    %v5265 = vpop.permute.xlu0 %5264
    %5266 = vrot.lane.b32.xlu0 %v5235, 64
    %v5267 = vpop.permute.xlu0 %5266
    %v5269 = vsel %vm210, %v5044, %v5173
    %v5271 = vsel %vm210, %v5045, %v5175
    %v5273 = vsel %vm210, %v5046, %v5177
    %v5275 = vsel %vm210, %v5047, %v5179
    %v5277 = vsel %vm210, %v5048, %v5181
    %v5279 = vsel %vm210, %v5049, %v5183
    %v5281 = vsel %vm210, %v5050, %v5185
    %v5283 = vsel %vm210, %v5051, %v5187
    %v5285 = vsel %vm210, %v5052, %v5189
    %v5287 = vsel %vm210, %v5053, %v5191
    %v5289 = vsel %vm210, %v5054, %v5193
    %v5291 = vsel %vm210, %v5055, %v5195
    %v5293 = vsel %vm210, %v5056, %v5197
    %v5295 = vsel %vm210, %v5057, %v5199
    %v5297 = vsel %vm210, %v5058, %v5201
    %v5299 = vsel %vm210, %v5059, %v5203
    %vm5300 = vcmask 523264
    %v5302 = vsel %vm5300, %v5269, %v5237
    %v5304 = vsel %vm5300, %v5271, %v5239
    %v5306 = vsel %vm5300, %v5273, %v5241
    %v5308 = vsel %vm5300, %v5275, %v5243
    %v5310 = vsel %vm5300, %v5277, %v5245
    %v5312 = vsel %vm5300, %v5279, %v5247
    %v5314 = vsel %vm5300, %v5281, %v5249
    %v5316 = vsel %vm5300, %v5283, %v5251
    %v5318 = vsel %vm5300, %v5285, %v5253
    %v5320 = vsel %vm5300, %v5287, %v5255
    %v5322 = vsel %vm5300, %v5289, %v5257
    %v5324 = vsel %vm5300, %v5291, %v5259
    %v5326 = vsel %vm5300, %v5293, %v5261
    %v5328 = vsel %vm5300, %v5295, %v5263
    %v5330 = vsel %vm5300, %v5297, %v5265
    %v5332 = vsel %vm5300, %v5299, %v5267
    %v5333 = vld [vmem:[#allocation11] sm:$0xf]
    %v5334 = vld [vmem:[#allocation11 + $0x4] sm:$0xf]
    %v5335 = vld [vmem:[#allocation11 + $0x8] sm:$0xf]
    %v5336 = vld [vmem:[#allocation11 + $0xc] sm:$0xf]
    %v5337 = vld [vmem:[#allocation11 + $0x10] sm:$0xf]
    %v5338 = vld [vmem:[#allocation11 + $0x14] sm:$0xf]
    %v5339 = vld [vmem:[#allocation11 + $0x18] sm:$0xf]
    %v5340 = vld [vmem:[#allocation11 + $0x1c] sm:$0xf]
    %v5341 = vld [vmem:[#allocation11 + $0x20] sm:$0xf]
    %v5342 = vld [vmem:[#allocation11 + $0x24] sm:$0xf]
    %v5343 = vld [vmem:[#allocation11 + $0x28] sm:$0xf]
    %v5344 = vld [vmem:[#allocation11 + $0x2c] sm:$0xf]
    %v5345 = vld [vmem:[%s4995] sm:$0xff]
    %v5346 = vld [vmem:[%s4995 + $0x8] sm:$0x3]
    %v5347 = vld [vmem:[%s4995 + $0x10] sm:$0xff]
    %v5348 = vld [vmem:[%s4995 + $0x18] sm:$0x3]
    %v5349 = vld [vmem:[%s4995 + $0x20] sm:$0xff]
    %v5350 = vld [vmem:[%s4995 + $0x28] sm:$0x3]
    %v5351 = vld [vmem:[%s4995 + $0x30] sm:$0xff]
    %v5352 = vld [vmem:[%s4995 + $0x38] sm:$0x3]
    %v5353 = vld [vmem:[%s4995 + $0x40] sm:$0xff]
    %v5354 = vld [vmem:[%s4995 + $0x48] sm:$0x3]
    %v5355 = vld [vmem:[%s4995 + $0x50] sm:$0xff]
    %v5356 = vld [vmem:[%s4995 + $0x58] sm:$0x3]
    %v5357 = vld [vmem:[%s4995 + $0x60] sm:$0xff]
    %v5358 = vld [vmem:[%s4995 + $0x68] sm:$0x3]
    %v5359 = vld [vmem:[%s4995 + $0x70] sm:$0xff]
    %v5360 = vld [vmem:[%s4995 + $0x78] sm:$0x3]
    %v5361 = vld [vmem:[%s4995 + $0xa0] sm:$0xff]
    %v5362 = vld [vmem:[%s4995 + $0xa8] sm:$0x3]
    %v5363 = vld [vmem:[%s4995 + $0xb0] sm:$0xff]
    %v5364 = vld [vmem:[%s4995 + $0xb8] sm:$0x3]
    %v5365 = vld [vmem:[%s4995 + $0xc0] sm:$0xff]
    %v5366 = vld [vmem:[%s4995 + $0xc8] sm:$0x3]
    %v5367 = vld [vmem:[%s4995 + $0xd0] sm:$0xff]
    %v5368 = vld [vmem:[%s4995 + $0xd8] sm:$0x3]
    %v5369 = vld [vmem:[%s4995 + $0xe0] sm:$0xff]
    %v5370 = vld [vmem:[%s4995 + $0xe8] sm:$0x3]
    %v5371 = vld [vmem:[%s4995 + $0xf0] sm:$0xff]
    %v5372 = vld [vmem:[%s4995 + $0xf8] sm:$0x3]
    %v5373 = vld [vmem:[%s4995 + $0x100] sm:$0xff]
    %v5374 = vld [vmem:[%s4995 + $0x108] sm:$0x3]
    %v5375 = vld [vmem:[%s4995 + $0x110] sm:$0xff]
    %v5376 = vld [vmem:[%s4995 + $0x118] sm:$0x3]
    %v5377 = vpack.c.bf16 %v5346, %v5345
    %v5378 = vpack.c.bf16 %v5348, %v5347
    %v5379 = vpack.c.bf16 %v5350, %v5349
    %v5380 = vpack.c.bf16 %v5352, %v5351
    %v5381 = vpack.c.bf16 %v5354, %v5353
    %v5382 = vpack.c.bf16 %v5356, %v5355
    %v5383 = vpack.c.bf16 %v5358, %v5357
    %v5384 = vpack.c.bf16 %v5360, %v5359
    %v5385 = vpack.c.bf16 %v5362, %v5361
    %v5386 = vpack.c.bf16 %v5364, %v5363
    %v5387 = vpack.c.bf16 %v5366, %v5365
    %v5388 = vpack.c.bf16 %v5368, %v5367
    %v5389 = vpack.c.bf16 %v5370, %v5369
    %v5390 = vpack.c.bf16 %v5372, %v5371
    %v5391 = vpack.c.bf16 %v5374, %v5373
    %v5392 = vpack.c.bf16 %v5376, %v5375
    %v5394 = vshrl.u32 %v5377, 16
    %v5396 = vshll.u32 %v5377, 16
    %v5398 = vrot.slane %v5396, 1
    %v5399 = vor.u32 %v5394, %v5398
    %v5401 = vshrl.u32 %v5378, 16
    %v5403 = vshll.u32 %v5378, 16
    %v5405 = vrot.slane %v5403, 1
    %v5406 = vor.u32 %v5401, %v5405
    %v5408 = vshrl.u32 %v5379, 16
    %v5410 = vshll.u32 %v5379, 16
    %v5412 = vrot.slane %v5410, 1
    %v5413 = vor.u32 %v5408, %v5412
    %v5415 = vshrl.u32 %v5380, 16
    %v5417 = vshll.u32 %v5380, 16
    %v5419 = vrot.slane %v5417, 1
    %v5420 = vor.u32 %v5415, %v5419
    %v5422 = vshrl.u32 %v5381, 16
    %v5424 = vshll.u32 %v5381, 16
    %v5426 = vrot.slane %v5424, 1
    %v5427 = vor.u32 %v5422, %v5426
    %v5429 = vshrl.u32 %v5382, 16
    %v5431 = vshll.u32 %v5382, 16
    %v5433 = vrot.slane %v5431, 1
    %v5434 = vor.u32 %v5429, %v5433
    %v5436 = vshrl.u32 %v5383, 16
    %v5438 = vshll.u32 %v5383, 16
    %v5440 = vrot.slane %v5438, 1
    %v5441 = vor.u32 %v5436, %v5440
    %v5443 = vshrl.u32 %v5384, 16
    %v5445 = vshll.u32 %v5384, 16
    %v5447 = vrot.slane %v5445, 1
    %v5448 = vor.u32 %v5443, %v5447
    %v5450 = vshrl.u32 %v5385, 16
    %v5452 = vshll.u32 %v5385, 16
    %v5454 = vrot.slane %v5452, 1
    %v5455 = vor.u32 %v5450, %v5454
    %v5457 = vshrl.u32 %v5386, 16
    %v5459 = vshll.u32 %v5386, 16
    %v5461 = vrot.slane %v5459, 1
    %v5462 = vor.u32 %v5457, %v5461
    %v5464 = vshrl.u32 %v5387, 16
    %v5466 = vshll.u32 %v5387, 16
    %v5468 = vrot.slane %v5466, 1
    %v5469 = vor.u32 %v5464, %v5468
    %v5471 = vshrl.u32 %v5388, 16
    %v5473 = vshll.u32 %v5388, 16
    %v5475 = vrot.slane %v5473, 1
    %v5476 = vor.u32 %v5471, %v5475
    %v5478 = vshrl.u32 %v5389, 16
    %v5480 = vshll.u32 %v5389, 16
    %v5482 = vrot.slane %v5480, 1
    %v5483 = vor.u32 %v5478, %v5482
    %v5485 = vshrl.u32 %v5390, 16
    %v5487 = vshll.u32 %v5390, 16
    %v5489 = vrot.slane %v5487, 1
    %v5490 = vor.u32 %v5485, %v5489
    %v5492 = vshrl.u32 %v5391, 16
    %v5494 = vshll.u32 %v5391, 16
    %v5496 = vrot.slane %v5494, 1
    %v5497 = vor.u32 %v5492, %v5496
    %v5499 = vshrl.u32 %v5392, 16
    %v5501 = vshll.u32 %v5392, 16
    %v5503 = vrot.slane %v5501, 1
    %v5504 = vor.u32 %v5499, %v5503
    %5505 = vrot.lane.b32.xlu0 %v5399, 32
    %v5506 = vpop.permute.xlu0 %5505
    %5507 = vrot.lane.b32.xlu0 %v5406, 32
    %v5508 = vpop.permute.xlu0 %5507
    %5509 = vrot.lane.b32.xlu0 %v5413, 32
    %v5510 = vpop.permute.xlu0 %5509
    %5511 = vrot.lane.b32.xlu0 %v5420, 32
    %v5512 = vpop.permute.xlu0 %5511
    %5513 = vrot.lane.b32.xlu0 %v5427, 32
    %v5514 = vpop.permute.xlu0 %5513
    %5515 = vrot.lane.b32.xlu0 %v5434, 32
    %v5516 = vpop.permute.xlu0 %5515
    %5517 = vrot.lane.b32.xlu0 %v5441, 32
    %v5518 = vpop.permute.xlu0 %5517
    %5519 = vrot.lane.b32.xlu0 %v5448, 32
    %v5520 = vpop.permute.xlu0 %5519
    %5521 = vrot.lane.b32.xlu0 %v5455, 32
    %v5522 = vpop.permute.xlu0 %5521
    %5523 = vrot.lane.b32.xlu0 %v5462, 32
    %v5524 = vpop.permute.xlu0 %5523
    %5525 = vrot.lane.b32.xlu0 %v5469, 32
    %v5526 = vpop.permute.xlu0 %5525
    %5527 = vrot.lane.b32.xlu0 %v5476, 32
    %v5528 = vpop.permute.xlu0 %5527
    %5529 = vrot.lane.b32.xlu0 %v5483, 32
    %v5530 = vpop.permute.xlu0 %5529
    %5531 = vrot.lane.b32.xlu0 %v5490, 32
    %v5532 = vpop.permute.xlu0 %5531
    %5533 = vrot.lane.b32.xlu0 %v5497, 32
    %v5534 = vpop.permute.xlu0 %5533
    %5535 = vrot.lane.b32.xlu0 %v5504, 32
    %v5536 = vpop.permute.xlu0 %5535
    %v5553 = vrot.slane %v5377, 1
    %v5554 = vrot.slane %v5378, 1
    %v5555 = vrot.slane %v5379, 1
    %v5556 = vrot.slane %v5380, 1
    %v5557 = vrot.slane %v5381, 1
    %v5558 = vrot.slane %v5382, 1
    %v5559 = vrot.slane %v5383, 1
    %v5560 = vrot.slane %v5384, 1
    %v5561 = vrot.slane %v5385, 1
    %v5562 = vrot.slane %v5386, 1
    %v5563 = vrot.slane %v5387, 1
    %v5564 = vrot.slane %v5388, 1
    %v5565 = vrot.slane %v5389, 1
    %v5566 = vrot.slane %v5390, 1
    %v5567 = vrot.slane %v5391, 1
    %v5568 = vrot.slane %v5392, 1
    %5569 = vrot.lane.b32.xlu0 %v5553, 64
    %v5570 = vpop.permute.xlu0 %5569
    %5571 = vrot.lane.b32.xlu0 %v5554, 64
    %v5572 = vpop.permute.xlu0 %5571
    %5573 = vrot.lane.b32.xlu0 %v5555, 64
    %v5574 = vpop.permute.xlu0 %5573
    %5575 = vrot.lane.b32.xlu0 %v5556, 64
    %v5576 = vpop.permute.xlu0 %5575
    %5577 = vrot.lane.b32.xlu0 %v5557, 64
    %v5578 = vpop.permute.xlu0 %5577
    %5579 = vrot.lane.b32.xlu0 %v5558, 64
    %v5580 = vpop.permute.xlu0 %5579
    %5581 = vrot.lane.b32.xlu0 %v5559, 64
    %v5582 = vpop.permute.xlu0 %5581
    %5583 = vrot.lane.b32.xlu0 %v5560, 64
    %v5584 = vpop.permute.xlu0 %5583
    %5585 = vrot.lane.b32.xlu0 %v5561, 64
    %v5586 = vpop.permute.xlu0 %5585
    %5587 = vrot.lane.b32.xlu0 %v5562, 64
    %v5588 = vpop.permute.xlu0 %5587
    %5589 = vrot.lane.b32.xlu0 %v5563, 64
    %v5590 = vpop.permute.xlu0 %5589
    %5591 = vrot.lane.b32.xlu0 %v5564, 64
    %v5592 = vpop.permute.xlu0 %5591
    %5593 = vrot.lane.b32.xlu0 %v5565, 64
    %v5594 = vpop.permute.xlu0 %5593
    %5595 = vrot.lane.b32.xlu0 %v5566, 64
    %v5596 = vpop.permute.xlu0 %5595
    %5597 = vrot.lane.b32.xlu0 %v5567, 64
    %v5598 = vpop.permute.xlu0 %5597
    %5599 = vrot.lane.b32.xlu0 %v5568, 64
    %v5600 = vpop.permute.xlu0 %5599
    %v5602 = vsel %vm210, %v5377, %v5506
    %v5604 = vsel %vm210, %v5378, %v5508
    %v5606 = vsel %vm210, %v5379, %v5510
    %v5608 = vsel %vm210, %v5380, %v5512
    %v5610 = vsel %vm210, %v5381, %v5514
    %v5612 = vsel %vm210, %v5382, %v5516
    %v5614 = vsel %vm210, %v5383, %v5518
    %v5616 = vsel %vm210, %v5384, %v5520
    %v5618 = vsel %vm210, %v5385, %v5522
    %v5620 = vsel %vm210, %v5386, %v5524
    %v5622 = vsel %vm210, %v5387, %v5526
    %v5624 = vsel %vm210, %v5388, %v5528
    %v5626 = vsel %vm210, %v5389, %v5530
    %v5628 = vsel %vm210, %v5390, %v5532
    %v5630 = vsel %vm210, %v5391, %v5534
    %v5632 = vsel %vm210, %v5392, %v5536
    %v5634 = vsel %vm5300, %v5602, %v5570
    %v5636 = vsel %vm5300, %v5604, %v5572
    %v5638 = vsel %vm5300, %v5606, %v5574
    %v5640 = vsel %vm5300, %v5608, %v5576
    %v5642 = vsel %vm5300, %v5610, %v5578
    %v5644 = vsel %vm5300, %v5612, %v5580
    %v5646 = vsel %vm5300, %v5614, %v5582
    %v5648 = vsel %vm5300, %v5616, %v5584
    %v5650 = vsel %vm5300, %v5618, %v5586
    %v5652 = vsel %vm5300, %v5620, %v5588
    %v5654 = vsel %vm5300, %v5622, %v5590
    %v5656 = vsel %vm5300, %v5624, %v5592
    %v5658 = vsel %vm5300, %v5626, %v5594
    %v5660 = vsel %vm5300, %v5628, %v5596
    %v5662 = vsel %vm5300, %v5630, %v5598
    %v5664 = vsel %vm5300, %v5632, %v5600
    %s5665 = scalar_lea.vmem [#allocation11], 48
    %v5666 = vld [vmem:[%s5665] sm:$0xf]
    %v5667 = vld [vmem:[%s5665 + $0x4] sm:$0xf]
    %v5668 = vld [vmem:[%s5665 + $0x8] sm:$0xf]
    %v5669 = vld [vmem:[%s5665 + $0xc] sm:$0xf]
    %v5670 = vld [vmem:[%s5665 + $0x10] sm:$0xf]
    %v5671 = vld [vmem:[%s5665 + $0x14] sm:$0xf]
    %v5672 = vld [vmem:[%s5665 + $0x18] sm:$0xf]
    %v5673 = vld [vmem:[%s5665 + $0x1c] sm:$0xf]
    %v5674 = vld [vmem:[%s5665 + $0x20] sm:$0xf]
    %v5675 = vld [vmem:[%s5665 + $0x24] sm:$0xf]
    %v5676 = vld [vmem:[%s5665 + $0x28] sm:$0xf]
    %v5677 = vld [vmem:[%s5665 + $0x2c] sm:$0xf]
    %v5694 = vunpack.c.l.b16 %v5634
    %v5695 = vunpack.c.l.b16 %v5636
    %v5696 = vunpack.c.l.b16 %v5638
    %v5697 = vunpack.c.l.b16 %v5640
    %v5698 = vunpack.c.l.b16 %v5642
    %v5699 = vunpack.c.l.b16 %v5644
    %v5700 = vunpack.c.l.b16 %v5646
    %v5701 = vunpack.c.l.b16 %v5648
    %v5702 = vunpack.c.l.b16 %v5650
    %v5703 = vunpack.c.l.b16 %v5652
    %v5704 = vunpack.c.l.b16 %v5654
    %v5705 = vunpack.c.l.b16 %v5656
    %v5706 = vunpack.c.l.b16 %v5658
    %v5707 = vunpack.c.l.b16 %v5660
    %v5708 = vunpack.c.l.b16 %v5662
    %v5709 = vunpack.c.l.b16 %v5664
    %v5710 = vpack.c.b16 %v5695, %v5694
    %v5711 = vpack.c.b16 %v5697, %v5696
    %v5712 = vpack.c.b16 %v5699, %v5698
    %v5713 = vpack.c.b16 %v5701, %v5700
    %v5714 = vpack.c.b16 %v5703, %v5702
    %v5715 = vpack.c.b16 %v5705, %v5704
    %v5716 = vpack.c.b16 %v5707, %v5706
    %v5717 = vpack.c.b16 %v5709, %v5708
    %v5730 = vunpack.c.l.b16 %v5666
    %v5731 = vunpack.c.l.b16 %v5667
    %v5732 = vunpack.c.l.b16 %v5668
    %v5733 = vunpack.c.l.b16 %v5669
    %v5734 = vunpack.c.l.b16 %v5670
    %v5735 = vunpack.c.l.b16 %v5671
    %v5736 = vunpack.c.l.b16 %v5672
    %v5737 = vunpack.c.l.b16 %v5673
    %v5738 = vunpack.c.l.b16 %v5674
    %v5739 = vunpack.c.l.b16 %v5675
    %v5740 = vunpack.c.l.b16 %v5676
    %v5741 = vunpack.c.l.b16 %v5677
    %v5742 = vpack.c.b16 %v5731, %v5730
    %v5743 = vpack.c.b16 %v5733, %v5732
    %v5744 = vpack.c.b16 %v5735, %v5734
    %v5745 = vpack.c.b16 %v5737, %v5736
    %v5746 = vpack.c.b16 %v5739, %v5738
    %v5747 = vpack.c.b16 %v5741, %v5740
    %vm5754 = vcmask 785408
    %v5756 = vsel %vm5754, %v5710, 0
    %v5759 = vsel %vm5754, %v5711, 0
    %v5762 = vsel %vm5754, %v5712, 0
    %v5765 = vsel %vm5754, %v5713, 0
    %v5768 = vsel %vm5754, %v5714, 0
    %v5771 = vsel %vm5754, %v5715, 0
    %v5774 = vsel %vm5754, %v5716, 0
    %v5777 = vsel %vm5754, %v5717, 0
    %5779 = vmatprep.subr.bf16.mxu0 0
    %5780 = vmatpush1.bf16.msra.mxu0 %v5742
    %5781 = vmatprep.subr.bf16.mxu0 0
    %5782 = vmatpush1.bf16.msra.mxu0 %v5743
    %5783 = vmatprep.subr.bf16.mxu0 0
    %5784 = vmatpush1.bf16.msra.mxu0 %v5744
    %5785 = vmatprep.subr.bf16.mxu0 0
    %5786 = vmatpush1.bf16.msra.mxu0 %v5745
    %5787 = vmatprep.subr.bf16.mxu0 0
    %5788 = vmatpush1.bf16.msra.mxu0 %v5746
    %5789 = vmatprep.subr.bf16.mxu0 0
    %5790 = vmatpush1.bf16.msra.mxu0 %v5747
    %5791 = vmatprep.subr.bf16.mxu0 0
    %5792 = vmatpush1.bf16.msra.mxu0 0
    %5793 = vmatprep.subr.bf16.mxu0 0
    %5794 = vmatpush1.bf16.msra.mxu0 0
    %5795 = vmatprep.subr.bf16.mxu0 0
    %5796 = vmatpush1.bf16.msra.mxu0 0
    %5797 = vmatprep.subr.bf16.mxu0 0
    %5798 = vmatpush1.bf16.msra.mxu0 0
    %5799 = vmatprep.subr.bf16.mxu0 0
    %5800 = vmatpush1.bf16.msra.mxu0 0
    %5801 = vmatprep.subr.bf16.mxu0 0
    %5802 = vmatpush1.bf16.msra.mxu0 0
    %5803 = vmatprep.subr.bf16.mxu0 0
    %5804 = vmatpush1.bf16.msra.mxu0 0
    %5805 = vmatprep.subr.bf16.mxu0 0
    %5806 = vmatpush1.bf16.msra.mxu0 0
    %5807 = vmatprep.subr.bf16.mxu0 0
    %5808 = vmatpush1.bf16.msra.mxu0 0
    %5809 = vmatprep.subr.bf16.mxu0 0
    %5810 = vmatpush1.bf16.msra.mxu0 0
    %5811 = vmatprep.mubr.bf16.mxu0 0
    %5812 = vmatmul.mubr.bf16.gmra.mrb[0].mxu0 %v5756
    %v5813 = vpop.f32.mrb[0].mxu0
    %v5814 = vadd.f32 0.0, %v5813
    %v5815 = vpop.f32.mrb[0].mxu0
    %v5816 = vpop.f32.mrb[0].mxu0
    %v5817 = vadd.f32 0.0, %v5816
    %v5818 = vpop.f32.mrb[0].mxu0
    %5819 = vmatprep.mubr.bf16.mxu0 0
    %5820 = vmatmul.mubr.bf16.gmra.mrb[0].mxu0 %v5759
    %v5821 = vpop.f32.mrb[0].mxu0
    %v5822 = vadd.f32 0.0, %v5821
    %v5823 = vpop.f32.mrb[0].mxu0
    %v5824 = vpop.f32.mrb[0].mxu0
    %v5825 = vadd.f32 0.0, %v5824
    %v5826 = vpop.f32.mrb[0].mxu0
    %5827 = vmatprep.mubr.bf16.mxu0 0
    %5828 = vmatmul.mubr.bf16.gmra.mrb[0].mxu0 %v5762
    %v5829 = vpop.f32.mrb[0].mxu0
    %v5830 = vadd.f32 0.0, %v5829
    %v5831 = vpop.f32.mrb[0].mxu0
    %v5832 = vpop.f32.mrb[0].mxu0
    %v5833 = vadd.f32 0.0, %v5832
    %v5834 = vpop.f32.mrb[0].mxu0
    %5835 = vmatprep.mubr.bf16.mxu0 0
    %5836 = vmatmul.mubr.bf16.gmra.mrb[0].mxu0 %v5765
    %v5837 = vpop.f32.mrb[0].mxu0
    %v5838 = vadd.f32 0.0, %v5837
    %v5839 = vpop.f32.mrb[0].mxu0
    %v5840 = vpop.f32.mrb[0].mxu0
    %v5841 = vadd.f32 0.0, %v5840
    %v5842 = vpop.f32.mrb[0].mxu0
    %5843 = vmatprep.mubr.bf16.mxu0 0
    %5844 = vmatmul.mubr.bf16.gmra.mrb[0].mxu0 %v5768
    %v5845 = vpop.f32.mrb[0].mxu0
    %v5846 = vadd.f32 0.0, %v5845
    %v5847 = vpop.f32.mrb[0].mxu0
    %v5848 = vpop.f32.mrb[0].mxu0
    %v5849 = vadd.f32 0.0, %v5848
    %v5850 = vpop.f32.mrb[0].mxu0
    %5851 = vmatprep.mubr.bf16.mxu0 0
    %5852 = vmatmul.mubr.bf16.gmra.mrb[0].mxu0 %v5771
    %v5853 = vpop.f32.mrb[0].mxu0
    %v5854 = vadd.f32 0.0, %v5853
    %v5855 = vpop.f32.mrb[0].mxu0
    %v5856 = vpop.f32.mrb[0].mxu0
    %v5857 = vadd.f32 0.0, %v5856
    %v5858 = vpop.f32.mrb[0].mxu0
    %5859 = vmatprep.mubr.bf16.mxu0 0
    %5860 = vmatmul.mubr.bf16.gmra.mrb[0].mxu0 %v5774
    %v5861 = vpop.f32.mrb[0].mxu0
    %v5862 = vadd.f32 0.0, %v5861
    %v5863 = vpop.f32.mrb[0].mxu0
    %v5864 = vpop.f32.mrb[0].mxu0
    %v5865 = vadd.f32 0.0, %v5864
    %v5866 = vpop.f32.mrb[0].mxu0
    %5867 = vmatprep.mubr.bf16.mxu0 0
    %5868 = vmatmul.mubr.bf16.gmra.mrb[0].mxu0 %v5777
    %v5869 = vpop.f32.mrb[0].mxu0
    %v5870 = vadd.f32 0.0, %v5869
    %v5871 = vpop.f32.mrb[0].mxu0
    %v5872 = vpop.f32.mrb[0].mxu0
    %v5873 = vadd.f32 0.0, %v5872
    %v5874 = vpop.f32.mrb[0].mxu0
    %5875 = vdwg.mxu0
    %v5892 = vunpack.c.l.b16 %v5302
    %v5893 = vunpack.c.l.b16 %v5304
    %v5894 = vunpack.c.l.b16 %v5306
    %v5895 = vunpack.c.l.b16 %v5308
    %v5896 = vunpack.c.l.b16 %v5310
    %v5897 = vunpack.c.l.b16 %v5312
    %v5898 = vunpack.c.l.b16 %v5314
    %v5899 = vunpack.c.l.b16 %v5316
    %v5900 = vunpack.c.l.b16 %v5318
    %v5901 = vunpack.c.l.b16 %v5320
    %v5902 = vunpack.c.l.b16 %v5322
    %v5903 = vunpack.c.l.b16 %v5324
    %v5904 = vunpack.c.l.b16 %v5326
    %v5905 = vunpack.c.l.b16 %v5328
    %v5906 = vunpack.c.l.b16 %v5330
    %v5907 = vunpack.c.l.b16 %v5332
    %v5908 = vpack.c.b16 %v5893, %v5892
    %v5909 = vpack.c.b16 %v5895, %v5894
    %v5910 = vpack.c.b16 %v5897, %v5896
    %v5911 = vpack.c.b16 %v5899, %v5898
    %v5912 = vpack.c.b16 %v5901, %v5900
    %v5913 = vpack.c.b16 %v5903, %v5902
    %v5914 = vpack.c.b16 %v5905, %v5904
    %v5915 = vpack.c.b16 %v5907, %v5906
    %v5928 = vunpack.c.l.b16 %v5333
    %v5929 = vunpack.c.l.b16 %v5334
    %v5930 = vunpack.c.l.b16 %v5335
    %v5931 = vunpack.c.l.b16 %v5336
    %v5932 = vunpack.c.l.b16 %v5337
    %v5933 = vunpack.c.l.b16 %v5338
    %v5934 = vunpack.c.l.b16 %v5339
    %v5935 = vunpack.c.l.b16 %v5340
    %v5936 = vunpack.c.l.b16 %v5341
    %v5937 = vunpack.c.l.b16 %v5342
    %v5938 = vunpack.c.l.b16 %v5343
    %v5939 = vunpack.c.l.b16 %v5344
    %v5940 = vpack.c.b16 %v5929, %v5928
    %v5941 = vpack.c.b16 %v5931, %v5930
    %v5942 = vpack.c.b16 %v5933, %v5932
    %v5943 = vpack.c.b16 %v5935, %v5934
    %v5944 = vpack.c.b16 %v5937, %v5936
    %v5945 = vpack.c.b16 %v5939, %v5938
    %v5953 = vsel %vm5754, %v5908, 0
    %v5956 = vsel %vm5754, %v5909, 0
    %v5959 = vsel %vm5754, %v5910, 0
    %v5962 = vsel %vm5754, %v5911, 0
    %v5965 = vsel %vm5754, %v5912, 0
    %v5968 = vsel %vm5754, %v5913, 0
    %v5971 = vsel %vm5754, %v5914, 0
    %v5974 = vsel %vm5754, %v5915, 0
    %5976 = vmatprep.subr.bf16.mxu0 0
    %5977 = vmatpush1.bf16.msra.mxu0 %v5940
    %5978 = vmatprep.subr.bf16.mxu0 0
    %5979 = vmatpush1.bf16.msra.mxu0 %v5941
    %5980 = vmatprep.subr.bf16.mxu0 0
    %5981 = vmatpush1.bf16.msra.mxu0 %v5942
    %5982 = vmatprep.subr.bf16.mxu0 0
    %5983 = vmatpush1.bf16.msra.mxu0 %v5943
    %5984 = vmatprep.subr.bf16.mxu0 0
    %5985 = vmatpush1.bf16.msra.mxu0 %v5944
    %5986 = vmatprep.subr.bf16.mxu0 0
    %5987 = vmatpush1.bf16.msra.mxu0 %v5945
    %5988 = vmatprep.subr.bf16.mxu0 0
    %5989 = vmatpush1.bf16.msra.mxu0 0
    %5990 = vmatprep.subr.bf16.mxu0 0
    %5991 = vmatpush1.bf16.msra.mxu0 0
    %5992 = vmatprep.subr.bf16.mxu0 0
    %5993 = vmatpush1.bf16.msra.mxu0 0
    %5994 = vmatprep.subr.bf16.mxu0 0
    %5995 = vmatpush1.bf16.msra.mxu0 0
    %5996 = vmatprep.subr.bf16.mxu0 0
    %5997 = vmatpush1.bf16.msra.mxu0 0
    %5998 = vmatprep.subr.bf16.mxu0 0
    %5999 = vmatpush1.bf16.msra.mxu0 0
    %6000 = vmatprep.subr.bf16.mxu0 0
    %6001 = vmatpush1.bf16.msra.mxu0 0
    %6002 = vmatprep.subr.bf16.mxu0 0
    %6003 = vmatpush1.bf16.msra.mxu0 0
    %6004 = vmatprep.subr.bf16.mxu0 0
    %6005 = vmatpush1.bf16.msra.mxu0 0
    %6006 = vmatprep.subr.bf16.mxu0 0
    %6007 = vmatpush1.bf16.msra.mxu0 0
    %6008 = vmatprep.mubr.bf16.mxu0 0
    %6009 = vmatmul.mubr.bf16.gmra.mrb[0].mxu0 %v5953
    %v6010 = vpop.f32.mrb[0].mxu0
    %v6011 = vadd.f32 %v5814, %v6010
    %v6012 = vpop.f32.mrb[0].mxu0
    %v6013 = vpop.f32.mrb[0].mxu0
    %v6014 = vadd.f32 %v5817, %v6013
    %v6015 = vpop.f32.mrb[0].mxu0
    %6016 = vmatprep.mubr.bf16.mxu0 0
    %6017 = vmatmul.mubr.bf16.gmra.mrb[0].mxu0 %v5956
    %v6018 = vpop.f32.mrb[0].mxu0
    %v6019 = vadd.f32 %v5822, %v6018
    %v6020 = vpop.f32.mrb[0].mxu0
    %v6021 = vpop.f32.mrb[0].mxu0
    %v6022 = vadd.f32 %v5825, %v6021
    %v6023 = vpop.f32.mrb[0].mxu0
    %6024 = vmatprep.mubr.bf16.mxu0 0
    %6025 = vmatmul.mubr.bf16.gmra.mrb[0].mxu0 %v5959
    %v6026 = vpop.f32.mrb[0].mxu0
    %v6027 = vadd.f32 %v5830, %v6026
    %v6028 = vpop.f32.mrb[0].mxu0
    %v6029 = vpop.f32.mrb[0].mxu0
    %v6030 = vadd.f32 %v5833, %v6029
    %v6031 = vpop.f32.mrb[0].mxu0
    %6032 = vmatprep.mubr.bf16.mxu0 0
    %6033 = vmatmul.mubr.bf16.gmra.mrb[0].mxu0 %v5962
    %v6034 = vpop.f32.mrb[0].mxu0
    %v6035 = vadd.f32 %v5838, %v6034
    %v6036 = vpop.f32.mrb[0].mxu0
    %v6037 = vpop.f32.mrb[0].mxu0
    %v6038 = vadd.f32 %v5841, %v6037
    %v6039 = vpop.f32.mrb[0].mxu0
    %6040 = vmatprep.mubr.bf16.mxu0 0
    %6041 = vmatmul.mubr.bf16.gmra.mrb[0].mxu0 %v5965
    %v6042 = vpop.f32.mrb[0].mxu0
    %v6043 = vadd.f32 %v5846, %v6042
    %v6044 = vpop.f32.mrb[0].mxu0
    %v6045 = vpop.f32.mrb[0].mxu0
    %v6046 = vadd.f32 %v5849, %v6045
    %v6047 = vpop.f32.mrb[0].mxu0
    %6048 = vmatprep.mubr.bf16.mxu0 0
    %6049 = vmatmul.mubr.bf16.gmra.mrb[0].mxu0 %v5968
    %v6050 = vpop.f32.mrb[0].mxu0
    %v6051 = vadd.f32 %v5854, %v6050
    %v6052 = vpop.f32.mrb[0].mxu0
    %v6053 = vpop.f32.mrb[0].mxu0
    %v6054 = vadd.f32 %v5857, %v6053
    %v6055 = vpop.f32.mrb[0].mxu0
    %6056 = vmatprep.mubr.bf16.mxu0 0
    %6057 = vmatmul.mubr.bf16.gmra.mrb[0].mxu0 %v5971
    %v6058 = vpop.f32.mrb[0].mxu0
    %v6059 = vadd.f32 %v5862, %v6058
    %v6060 = vpop.f32.mrb[0].mxu0
    %v6061 = vpop.f32.mrb[0].mxu0
    %v6062 = vadd.f32 %v5865, %v6061
    %v6063 = vpop.f32.mrb[0].mxu0
    %6064 = vmatprep.mubr.bf16.mxu0 0
    %6065 = vmatmul.mubr.bf16.gmra.mrb[0].mxu0 %v5974
    %v6066 = vpop.f32.mrb[0].mxu0
    %v6067 = vadd.f32 %v5870, %v6066
    %v6068 = vpop.f32.mrb[0].mxu0
    %v6069 = vpop.f32.mrb[0].mxu0
    %v6070 = vadd.f32 %v5873, %v6069
    %v6071 = vpop.f32.mrb[0].mxu0
    %6072 = vdwg.mxu0
    %s6073 = scalar_lea.vmem [#allocation2], 32
    %v6074 = vld [vmem:[%s6073] sm:$0xff]
    %v6075 = vld [vmem:[%s6073 + $0x8] sm:$0x3]
    %v6076 = vld [vmem:[%s6073 + $0x10] sm:$0xff]
    %v6077 = vld [vmem:[%s6073 + $0x18] sm:$0x3]
    %v6078 = vld [vmem:[%s6073 + $0x20] sm:$0xff]
    %v6079 = vld [vmem:[%s6073 + $0x28] sm:$0x3]
    %v6080 = vld [vmem:[%s6073 + $0x30] sm:$0xff]
    %v6081 = vld [vmem:[%s6073 + $0x38] sm:$0x3]
    %v6082 = vld [vmem:[%s6073 + $0x40] sm:$0xff]
    %v6083 = vld [vmem:[%s6073 + $0x48] sm:$0x3]
    %v6084 = vld [vmem:[%s6073 + $0x50] sm:$0xff]
    %v6085 = vld [vmem:[%s6073 + $0x58] sm:$0x3]
    %v6086 = vld [vmem:[%s6073 + $0x60] sm:$0xff]
    %v6087 = vld [vmem:[%s6073 + $0x68] sm:$0x3]
    %v6088 = vld [vmem:[%s6073 + $0x70] sm:$0xff]
    %v6089 = vld [vmem:[%s6073 + $0x78] sm:$0x3]
    %v6090 = vld [vmem:[%s6073 + $0xa0] sm:$0xff]
    %v6091 = vld [vmem:[%s6073 + $0xa8] sm:$0x3]
    %v6092 = vld [vmem:[%s6073 + $0xb0] sm:$0xff]
    %v6093 = vld [vmem:[%s6073 + $0xb8] sm:$0x3]
    %v6094 = vld [vmem:[%s6073 + $0xc0] sm:$0xff]
    %v6095 = vld [vmem:[%s6073 + $0xc8] sm:$0x3]
    %v6096 = vld [vmem:[%s6073 + $0xd0] sm:$0xff]
    %v6097 = vld [vmem:[%s6073 + $0xd8] sm:$0x3]
    %v6098 = vld [vmem:[%s6073 + $0xe0] sm:$0xff]
    %v6099 = vld [vmem:[%s6073 + $0xe8] sm:$0x3]
    %v6100 = vld [vmem:[%s6073 + $0xf0] sm:$0xff]
    %v6101 = vld [vmem:[%s6073 + $0xf8] sm:$0x3]
    %v6102 = vld [vmem:[%s6073 + $0x100] sm:$0xff]
    %v6103 = vld [vmem:[%s6073 + $0x108] sm:$0x3]
    %v6104 = vld [vmem:[%s6073 + $0x110] sm:$0xff]
    %v6105 = vld [vmem:[%s6073 + $0x118] sm:$0x3]
    %v6106 = vpack.c.bf16 %v6075, %v6074
    %v6107 = vpack.c.bf16 %v6077, %v6076
    %v6108 = vpack.c.bf16 %v6079, %v6078
    %v6109 = vpack.c.bf16 %v6081, %v6080
    %v6110 = vpack.c.bf16 %v6083, %v6082
    %v6111 = vpack.c.bf16 %v6085, %v6084
    %v6112 = vpack.c.bf16 %v6087, %v6086
    %v6113 = vpack.c.bf16 %v6089, %v6088
    %v6114 = vpack.c.bf16 %v6091, %v6090
    %v6115 = vpack.c.bf16 %v6093, %v6092
    %v6116 = vpack.c.bf16 %v6095, %v6094
    %v6117 = vpack.c.bf16 %v6097, %v6096
    %v6118 = vpack.c.bf16 %v6099, %v6098
    %v6119 = vpack.c.bf16 %v6101, %v6100
    %v6120 = vpack.c.bf16 %v6103, %v6102
    %v6121 = vpack.c.bf16 %v6105, %v6104
    %v6123 = vshrl.u32 %v6106, 16
    %v6125 = vshll.u32 %v6106, 16
    %v6127 = vrot.slane %v6125, 1
    %v6128 = vor.u32 %v6123, %v6127
    %v6130 = vshrl.u32 %v6107, 16
    %v6132 = vshll.u32 %v6107, 16
    %v6134 = vrot.slane %v6132, 1
    %v6135 = vor.u32 %v6130, %v6134
    %v6137 = vshrl.u32 %v6108, 16
    %v6139 = vshll.u32 %v6108, 16
    %v6141 = vrot.slane %v6139, 1
    %v6142 = vor.u32 %v6137, %v6141
    %v6144 = vshrl.u32 %v6109, 16
    %v6146 = vshll.u32 %v6109, 16
    %v6148 = vrot.slane %v6146, 1
    %v6149 = vor.u32 %v6144, %v6148
    %v6151 = vshrl.u32 %v6110, 16
    %v6153 = vshll.u32 %v6110, 16
    %v6155 = vrot.slane %v6153, 1
    %v6156 = vor.u32 %v6151, %v6155
    %v6158 = vshrl.u32 %v6111, 16
    %v6160 = vshll.u32 %v6111, 16
    %v6162 = vrot.slane %v6160, 1
    %v6163 = vor.u32 %v6158, %v6162
    %v6165 = vshrl.u32 %v6112, 16
    %v6167 = vshll.u32 %v6112, 16
    %v6169 = vrot.slane %v6167, 1
    %v6170 = vor.u32 %v6165, %v6169
    %v6172 = vshrl.u32 %v6113, 16
    %v6174 = vshll.u32 %v6113, 16
    %v6176 = vrot.slane %v6174, 1
    %v6177 = vor.u32 %v6172, %v6176
    %v6179 = vshrl.u32 %v6114, 16
    %v6181 = vshll.u32 %v6114, 16
    %v6183 = vrot.slane %v6181, 1
    %v6184 = vor.u32 %v6179, %v6183
    %v6186 = vshrl.u32 %v6115, 16
    %v6188 = vshll.u32 %v6115, 16
    %v6190 = vrot.slane %v6188, 1
    %v6191 = vor.u32 %v6186, %v6190
    %v6193 = vshrl.u32 %v6116, 16
    %v6195 = vshll.u32 %v6116, 16
    %v6197 = vrot.slane %v6195, 1
    %v6198 = vor.u32 %v6193, %v6197
    %v6200 = vshrl.u32 %v6117, 16
    %v6202 = vshll.u32 %v6117, 16
    %v6204 = vrot.slane %v6202, 1
    %v6205 = vor.u32 %v6200, %v6204
    %v6207 = vshrl.u32 %v6118, 16
    %v6209 = vshll.u32 %v6118, 16
    %v6211 = vrot.slane %v6209, 1
    %v6212 = vor.u32 %v6207, %v6211
    %v6214 = vshrl.u32 %v6119, 16
    %v6216 = vshll.u32 %v6119, 16
    %v6218 = vrot.slane %v6216, 1
    %v6219 = vor.u32 %v6214, %v6218
    %v6221 = vshrl.u32 %v6120, 16
    %v6223 = vshll.u32 %v6120, 16
    %v6225 = vrot.slane %v6223, 1
    %v6226 = vor.u32 %v6221, %v6225
    %v6228 = vshrl.u32 %v6121, 16
    %v6230 = vshll.u32 %v6121, 16
    %v6232 = vrot.slane %v6230, 1
    %v6233 = vor.u32 %v6228, %v6232
    %6234 = vrot.lane.b32.xlu0 %v6128, 32
    %v6235 = vpop.permute.xlu0 %6234
    %6236 = vrot.lane.b32.xlu0 %v6135, 32
    %v6237 = vpop.permute.xlu0 %6236
    %6238 = vrot.lane.b32.xlu0 %v6142, 32
    %v6239 = vpop.permute.xlu0 %6238
    %6240 = vrot.lane.b32.xlu0 %v6149, 32
    %v6241 = vpop.permute.xlu0 %6240
    %6242 = vrot.lane.b32.xlu0 %v6156, 32
    %v6243 = vpop.permute.xlu0 %6242
    %6244 = vrot.lane.b32.xlu0 %v6163, 32
    %v6245 = vpop.permute.xlu0 %6244
    %6246 = vrot.lane.b32.xlu0 %v6170, 32
    %v6247 = vpop.permute.xlu0 %6246
    %6248 = vrot.lane.b32.xlu0 %v6177, 32
    %v6249 = vpop.permute.xlu0 %6248
    %6250 = vrot.lane.b32.xlu0 %v6184, 32
    %v6251 = vpop.permute.xlu0 %6250
    %6252 = vrot.lane.b32.xlu0 %v6191, 32
    %v6253 = vpop.permute.xlu0 %6252
    %6254 = vrot.lane.b32.xlu0 %v6198, 32
    %v6255 = vpop.permute.xlu0 %6254
    %6256 = vrot.lane.b32.xlu0 %v6205, 32
    %v6257 = vpop.permute.xlu0 %6256
    %6258 = vrot.lane.b32.xlu0 %v6212, 32
    %v6259 = vpop.permute.xlu0 %6258
    %6260 = vrot.lane.b32.xlu0 %v6219, 32
    %v6261 = vpop.permute.xlu0 %6260
    %6262 = vrot.lane.b32.xlu0 %v6226, 32
    %v6263 = vpop.permute.xlu0 %6262
    %6264 = vrot.lane.b32.xlu0 %v6233, 32
    %v6265 = vpop.permute.xlu0 %6264
    %v6282 = vrot.slane %v6106, 1
    %v6283 = vrot.slane %v6107, 1
    %v6284 = vrot.slane %v6108, 1
    %v6285 = vrot.slane %v6109, 1
    %v6286 = vrot.slane %v6110, 1
    %v6287 = vrot.slane %v6111, 1
    %v6288 = vrot.slane %v6112, 1
    %v6289 = vrot.slane %v6113, 1
    %v6290 = vrot.slane %v6114, 1
    %v6291 = vrot.slane %v6115, 1
    %v6292 = vrot.slane %v6116, 1
    %v6293 = vrot.slane %v6117, 1
    %v6294 = vrot.slane %v6118, 1
    %v6295 = vrot.slane %v6119, 1
    %v6296 = vrot.slane %v6120, 1
    %v6297 = vrot.slane %v6121, 1
    %6298 = vrot.lane.b32.xlu0 %v6282, 64
    %v6299 = vpop.permute.xlu0 %6298
    %6300 = vrot.lane.b32.xlu0 %v6283, 64
    %v6301 = vpop.permute.xlu0 %6300
    %6302 = vrot.lane.b32.xlu0 %v6284, 64
    %v6303 = vpop.permute.xlu0 %6302
    %6304 = vrot.lane.b32.xlu0 %v6285, 64
    %v6305 = vpop.permute.xlu0 %6304
    %6306 = vrot.lane.b32.xlu0 %v6286, 64
    %v6307 = vpop.permute.xlu0 %6306
    %6308 = vrot.lane.b32.xlu0 %v6287, 64
    %v6309 = vpop.permute.xlu0 %6308
    %6310 = vrot.lane.b32.xlu0 %v6288, 64
    %v6311 = vpop.permute.xlu0 %6310
    %6312 = vrot.lane.b32.xlu0 %v6289, 64
    %v6313 = vpop.permute.xlu0 %6312
    %6314 = vrot.lane.b32.xlu0 %v6290, 64
    %v6315 = vpop.permute.xlu0 %6314
    %6316 = vrot.lane.b32.xlu0 %v6291, 64
    %v6317 = vpop.permute.xlu0 %6316
    %6318 = vrot.lane.b32.xlu0 %v6292, 64
    %v6319 = vpop.permute.xlu0 %6318
    %6320 = vrot.lane.b32.xlu0 %v6293, 64
    %v6321 = vpop.permute.xlu0 %6320
    %6322 = vrot.lane.b32.xlu0 %v6294, 64
    %v6323 = vpop.permute.xlu0 %6322
    %6324 = vrot.lane.b32.xlu0 %v6295, 64
    %v6325 = vpop.permute.xlu0 %6324
    %6326 = vrot.lane.b32.xlu0 %v6296, 64
    %v6327 = vpop.permute.xlu0 %6326
    %6328 = vrot.lane.b32.xlu0 %v6297, 64
    %v6329 = vpop.permute.xlu0 %6328
    %v6331 = vsel %vm210, %v6106, %v6235
    %v6333 = vsel %vm210, %v6107, %v6237
    %v6335 = vsel %vm210, %v6108, %v6239
    %v6337 = vsel %vm210, %v6109, %v6241
    %v6339 = vsel %vm210, %v6110, %v6243
    %v6341 = vsel %vm210, %v6111, %v6245
    %v6343 = vsel %vm210, %v6112, %v6247
    %v6345 = vsel %vm210, %v6113, %v6249
    %v6347 = vsel %vm210, %v6114, %v6251
    %v6349 = vsel %vm210, %v6115, %v6253
    %v6351 = vsel %vm210, %v6116, %v6255
    %v6353 = vsel %vm210, %v6117, %v6257
    %v6355 = vsel %vm210, %v6118, %v6259
    %v6357 = vsel %vm210, %v6119, %v6261
    %v6359 = vsel %vm210, %v6120, %v6263
    %v6361 = vsel %vm210, %v6121, %v6265
    %v6363 = vsel %vm5300, %v6331, %v6299
    %v6365 = vsel %vm5300, %v6333, %v6301
    %v6367 = vsel %vm5300, %v6335, %v6303
    %v6369 = vsel %vm5300, %v6337, %v6305
    %v6371 = vsel %vm5300, %v6339, %v6307
    %v6373 = vsel %vm5300, %v6341, %v6309
    %v6375 = vsel %vm5300, %v6343, %v6311
    %v6377 = vsel %vm5300, %v6345, %v6313
    %v6379 = vsel %vm5300, %v6347, %v6315
    %v6381 = vsel %vm5300, %v6349, %v6317
    %v6383 = vsel %vm5300, %v6351, %v6319
    %v6385 = vsel %vm5300, %v6353, %v6321
    %v6387 = vsel %vm5300, %v6355, %v6323
    %v6389 = vsel %vm5300, %v6357, %v6325
    %v6391 = vsel %vm5300, %v6359, %v6327
    %v6393 = vsel %vm5300, %v6361, %v6329
    %s6394 = scalar_lea.vmem [#allocation11], 96
    %v6395 = vld [vmem:[%s6394] sm:$0xf]
    %v6396 = vld [vmem:[%s6394 + $0x4] sm:$0xf]
    %v6397 = vld [vmem:[%s6394 + $0x8] sm:$0xf]
    %v6398 = vld [vmem:[%s6394 + $0xc] sm:$0xf]
    %v6399 = vld [vmem:[%s6394 + $0x10] sm:$0xf]
    %v6400 = vld [vmem:[%s6394 + $0x14] sm:$0xf]
    %v6401 = vld [vmem:[%s6394 + $0x18] sm:$0xf]
    %v6402 = vld [vmem:[%s6394 + $0x1c] sm:$0xf]
    %v6403 = vld [vmem:[%s6394 + $0x20] sm:$0xf]
    %v6404 = vld [vmem:[%s6394 + $0x24] sm:$0xf]
    %v6405 = vld [vmem:[%s6394 + $0x28] sm:$0xf]
    %v6406 = vld [vmem:[%s6394 + $0x2c] sm:$0xf]
    %v6423 = vunpack.c.l.b16 %v6363
    %v6424 = vunpack.c.l.b16 %v6365
    %v6425 = vunpack.c.l.b16 %v6367
    %v6426 = vunpack.c.l.b16 %v6369
    %v6427 = vunpack.c.l.b16 %v6371
    %v6428 = vunpack.c.l.b16 %v6373
    %v6429 = vunpack.c.l.b16 %v6375
    %v6430 = vunpack.c.l.b16 %v6377
    %v6431 = vunpack.c.l.b16 %v6379
    %v6432 = vunpack.c.l.b16 %v6381
    %v6433 = vunpack.c.l.b16 %v6383
    %v6434 = vunpack.c.l.b16 %v6385
    %v6435 = vunpack.c.l.b16 %v6387
    %v6436 = vunpack.c.l.b16 %v6389
    %v6437 = vunpack.c.l.b16 %v6391
    %v6438 = vunpack.c.l.b16 %v6393
    %v6439 = vpack.c.b16 %v6424, %v6423
    %v6440 = vpack.c.b16 %v6426, %v6425
    %v6441 = vpack.c.b16 %v6428, %v6427
    %v6442 = vpack.c.b16 %v6430, %v6429
    %v6443 = vpack.c.b16 %v6432, %v6431
    %v6444 = vpack.c.b16 %v6434, %v6433
    %v6445 = vpack.c.b16 %v6436, %v6435
    %v6446 = vpack.c.b16 %v6438, %v6437
    %v6459 = vunpack.c.l.b16 %v6395
    %v6460 = vunpack.c.l.b16 %v6396
    %v6461 = vunpack.c.l.b16 %v6397
    %v6462 = vunpack.c.l.b16 %v6398
    %v6463 = vunpack.c.l.b16 %v6399
    %v6464 = vunpack.c.l.b16 %v6400
    %v6465 = vunpack.c.l.b16 %v6401
    %v6466 = vunpack.c.l.b16 %v6402
    %v6467 = vunpack.c.l.b16 %v6403
    %v6468 = vunpack.c.l.b16 %v6404
    %v6469 = vunpack.c.l.b16 %v6405
    %v6470 = vunpack.c.l.b16 %v6406
    %v6471 = vpack.c.b16 %v6460, %v6459
    %v6472 = vpack.c.b16 %v6462, %v6461
    %v6473 = vpack.c.b16 %v6464, %v6463
    %v6474 = vpack.c.b16 %v6466, %v6465
    %v6475 = vpack.c.b16 %v6468, %v6467
    %v6476 = vpack.c.b16 %v6470, %v6469
    %v6484 = vsel %vm5754, %v6439, 0
    %v6487 = vsel %vm5754, %v6440, 0
    %v6490 = vsel %vm5754, %v6441, 0
    %v6493 = vsel %vm5754, %v6442, 0
    %v6496 = vsel %vm5754, %v6443, 0
    %v6499 = vsel %vm5754, %v6444, 0
    %v6502 = vsel %vm5754, %v6445, 0
    %v6505 = vsel %vm5754, %v6446, 0
    %6507 = vmatprep.subr.bf16.mxu0 0
    %6508 = vmatpush1.bf16.msra.mxu0 %v6471
    %6509 = vmatprep.subr.bf16.mxu0 0
    %6510 = vmatpush1.bf16.msra.mxu0 %v6472
    %6511 = vmatprep.subr.bf16.mxu0 0
    %6512 = vmatpush1.bf16.msra.mxu0 %v6473
    %6513 = vmatprep.subr.bf16.mxu0 0
    %6514 = vmatpush1.bf16.msra.mxu0 %v6474
    %6515 = vmatprep.subr.bf16.mxu0 0
    %6516 = vmatpush1.bf16.msra.mxu0 %v6475
    %6517 = vmatprep.subr.bf16.mxu0 0
    %6518 = vmatpush1.bf16.msra.mxu0 %v6476
    %6519 = vmatprep.subr.bf16.mxu0 0
    %6520 = vmatpush1.bf16.msra.mxu0 0
    %6521 = vmatprep.subr.bf16.mxu0 0
    %6522 = vmatpush1.bf16.msra.mxu0 0
    %6523 = vmatprep.subr.bf16.mxu0 0
    %6524 = vmatpush1.bf16.msra.mxu0 0
    %6525 = vmatprep.subr.bf16.mxu0 0
    %6526 = vmatpush1.bf16.msra.mxu0 0
    %6527 = vmatprep.subr.bf16.mxu0 0
    %6528 = vmatpush1.bf16.msra.mxu0 0
    %6529 = vmatprep.subr.bf16.mxu0 0
    %6530 = vmatpush1.bf16.msra.mxu0 0
    %6531 = vmatprep.subr.bf16.mxu0 0
    %6532 = vmatpush1.bf16.msra.mxu0 0
    %6533 = vmatprep.subr.bf16.mxu0 0
    %6534 = vmatpush1.bf16.msra.mxu0 0
    %6535 = vmatprep.subr.bf16.mxu0 0
    %6536 = vmatpush1.bf16.msra.mxu0 0
    %6537 = vmatprep.subr.bf16.mxu0 0
    %6538 = vmatpush1.bf16.msra.mxu0 0
    %6539 = vmatprep.mubr.bf16.mxu0 0
    %6540 = vmatmul.mubr.bf16.gmra.mrb[0].mxu0 %v6484
    %v6541 = vpop.f32.mrb[0].mxu0
    %v6542 = vadd.f32 0.0, %v6541
    %v6543 = vpop.f32.mrb[0].mxu0
    %v6544 = vpop.f32.mrb[0].mxu0
    %v6545 = vadd.f32 0.0, %v6544
    %v6546 = vpop.f32.mrb[0].mxu0
    %6547 = vmatprep.mubr.bf16.mxu0 0
    %6548 = vmatmul.mubr.bf16.gmra.mrb[0].mxu0 %v6487
    %v6549 = vpop.f32.mrb[0].mxu0
    %v6550 = vadd.f32 0.0, %v6549
    %v6551 = vpop.f32.mrb[0].mxu0
    %v6552 = vpop.f32.mrb[0].mxu0
    %v6553 = vadd.f32 0.0, %v6552
    %v6554 = vpop.f32.mrb[0].mxu0
    %6555 = vmatprep.mubr.bf16.mxu0 0
    %6556 = vmatmul.mubr.bf16.gmra.mrb[0].mxu0 %v6490
    %v6557 = vpop.f32.mrb[0].mxu0
    %v6558 = vadd.f32 0.0, %v6557
    %v6559 = vpop.f32.mrb[0].mxu0
    %v6560 = vpop.f32.mrb[0].mxu0
    %v6561 = vadd.f32 0.0, %v6560
    %v6562 = vpop.f32.mrb[0].mxu0
    %6563 = vmatprep.mubr.bf16.mxu0 0
    %6564 = vmatmul.mubr.bf16.gmra.mrb[0].mxu0 %v6493
    %v6565 = vpop.f32.mrb[0].mxu0
    %v6566 = vadd.f32 0.0, %v6565
    %v6567 = vpop.f32.mrb[0].mxu0
    %v6568 = vpop.f32.mrb[0].mxu0
    %v6569 = vadd.f32 0.0, %v6568
    %v6570 = vpop.f32.mrb[0].mxu0
    %6571 = vmatprep.mubr.bf16.mxu0 0
    %6572 = vmatmul.mubr.bf16.gmra.mrb[0].mxu0 %v6496
    %v6573 = vpop.f32.mrb[0].mxu0
    %v6574 = vadd.f32 0.0, %v6573
    %v6575 = vpop.f32.mrb[0].mxu0
    %v6576 = vpop.f32.mrb[0].mxu0
    %v6577 = vadd.f32 0.0, %v6576
    %v6578 = vpop.f32.mrb[0].mxu0
    %6579 = vmatprep.mubr.bf16.mxu0 0
    %6580 = vmatmul.mubr.bf16.gmra.mrb[0].mxu0 %v6499
    %v6581 = vpop.f32.mrb[0].mxu0
    %v6582 = vadd.f32 0.0, %v6581
    %v6583 = vpop.f32.mrb[0].mxu0
    %v6584 = vpop.f32.mrb[0].mxu0
    %v6585 = vadd.f32 0.0, %v6584
    %v6586 = vpop.f32.mrb[0].mxu0
    %6587 = vmatprep.mubr.bf16.mxu0 0
    %6588 = vmatmul.mubr.bf16.gmra.mrb[0].mxu0 %v6502
    %v6589 = vpop.f32.mrb[0].mxu0
    %v6590 = vadd.f32 0.0, %v6589
    %v6591 = vpop.f32.mrb[0].mxu0
    %v6592 = vpop.f32.mrb[0].mxu0
    %v6593 = vadd.f32 0.0, %v6592
    %v6594 = vpop.f32.mrb[0].mxu0
    %6595 = vmatprep.mubr.bf16.mxu0 0
    %6596 = vmatmul.mubr.bf16.gmra.mrb[0].mxu0 %v6505
    %v6597 = vpop.f32.mrb[0].mxu0
    %v6598 = vadd.f32 0.0, %v6597
    %v6599 = vpop.f32.mrb[0].mxu0
    %v6600 = vpop.f32.mrb[0].mxu0
    %v6601 = vadd.f32 0.0, %v6600
    %v6602 = vpop.f32.mrb[0].mxu0
    %6603 = vdwg.mxu0
    %v6604 = vadd.f32 %v6011, %v6542
    %v6605 = vadd.f32 %v6014, %v6545
    %v6606 = vadd.f32 %v6019, %v6550
    %v6607 = vadd.f32 %v6022, %v6553
    %v6608 = vadd.f32 %v6027, %v6558
    %v6609 = vadd.f32 %v6030, %v6561
    %v6610 = vadd.f32 %v6035, %v6566
    %v6611 = vadd.f32 %v6038, %v6569
    %v6612 = vadd.f32 %v6043, %v6574
    %v6613 = vadd.f32 %v6046, %v6577
    %v6614 = vadd.f32 %v6051, %v6582
    %v6615 = vadd.f32 %v6054, %v6585
    %v6616 = vadd.f32 %v6059, %v6590
    %v6617 = vadd.f32 %v6062, %v6593
    %v6618 = vadd.f32 %v6067, %v6598
    %v6619 = vadd.f32 %v6070, %v6601
    %v6620 = vld [vmem:[#allocation13] sm:$0x1]
    %v6621 = vlaneseq
    %v6622 = vshrl.u32 %v6621, 7
    %v6623 = vsub.s32 0, %v6622
    %v6624 = vrot.slane %v6620, %v6623
    %v6625 = vmul.f32 %v6604, %v6624
    %v6626 = vmul.f32 %v6605, %v6624
    %v6627 = vmul.f32 %v6606, %v6624
    %v6628 = vmul.f32 %v6607, %v6624
    %v6629 = vmul.f32 %v6608, %v6624
    %v6630 = vmul.f32 %v6609, %v6624
    %v6631 = vmul.f32 %v6610, %v6624
    %v6632 = vmul.f32 %v6611, %v6624
    %v6633 = vmul.f32 %v6612, %v6624
    %v6634 = vmul.f32 %v6613, %v6624
    %v6635 = vmul.f32 %v6614, %v6624
    %v6636 = vmul.f32 %v6615, %v6624
    %v6637 = vmul.f32 %v6616, %v6624
    %v6638 = vmul.f32 %v6617, %v6624
    %v6639 = vmul.f32 %v6618, %v6624
    %v6640 = vmul.f32 %v6619, %v6624
    %v6641 = vld [vmem:[#allocation13 + $0x1] sm:$0x1]
    %v6642 = vlaneseq
    %v6643 = vshrl.u32 %v6642, 7
    %v6644 = vsub.s32 0, %v6643
    %v6645 = vrot.slane %v6641, %v6644
    %v6646 = vadd.f32 %v6625, %v6645
    %v6647 = vadd.f32 %v6626, %v6645
    %v6648 = vadd.f32 %v6627, %v6645
    %v6649 = vadd.f32 %v6628, %v6645
    %v6650 = vadd.f32 %v6629, %v6645
    %v6651 = vadd.f32 %v6630, %v6645
    %v6652 = vadd.f32 %v6631, %v6645
    %v6653 = vadd.f32 %v6632, %v6645
    %v6654 = vadd.f32 %v6633, %v6645
    %v6655 = vadd.f32 %v6634, %v6645
    %v6656 = vadd.f32 %v6635, %v6645
    %v6657 = vadd.f32 %v6636, %v6645
    %v6658 = vadd.f32 %v6637, %v6645
    %v6659 = vadd.f32 %v6638, %v6645
    %v6660 = vadd.f32 %v6639, %v6645
    %v6661 = vadd.f32 %v6640, %v6645
    %v6662 = vmax.f32 %v6646, 0.0
    %v6663 = vmax.f32 %v6647, 0.0
    %v6664 = vmax.f32 %v6648, 0.0
    %v6665 = vmax.f32 %v6649, 0.0
    %v6666 = vmax.f32 %v6650, 0.0
    %v6667 = vmax.f32 %v6651, 0.0
    %v6668 = vmax.f32 %v6652, 0.0
    %v6669 = vmax.f32 %v6653, 0.0
    %v6670 = vmax.f32 %v6654, 0.0
    %v6671 = vmax.f32 %v6655, 0.0
    %v6672 = vmax.f32 %v6656, 0.0
    %v6673 = vmax.f32 %v6657, 0.0
    %v6674 = vmax.f32 %v6658, 0.0
    %v6675 = vmax.f32 %v6659, 0.0
    %v6676 = vmax.f32 %v6660, 0.0
    %v6677 = vmax.f32 %v6661, 0.0
    %v6694 = vcombine.high %v6662, %v6662
    %v6696 = vunpack.c.l.s4 1983009808
    %v6697 = vunpack.c.0.s8 %v6696
    %v6698 = vlaneseq
    %v6699 = vshrl.u32 %v6698, 7
    %v6700 = vsub.s32 %v6697, %v6699
    %v6701 = vrot.slane %v6662, %v6700
    %v6703 = vunpack.c.l.s4 1983009808
    %v6704 = vunpack.c.0.s8 %v6703
    %v6705 = vlaneseq
    %v6706 = vshrl.u32 %v6705, 7
    %v6707 = vsub.s32 %v6704, %v6706
    %v6708 = vrot.slane %v6694, %v6707
    %v6709 = vcombine.high %v6701, %v6701
    %v6710 = vcombine.high %v6708, %v6708
    %v6711 = vcombine.high %v6663, %v6663
    %v6713 = vunpack.c.l.s4 1983009808
    %v6714 = vunpack.c.0.s8 %v6713
    %v6715 = vlaneseq
    %v6716 = vshrl.u32 %v6715, 7
    %v6717 = vsub.s32 %v6714, %v6716
    %v6718 = vrot.slane %v6663, %v6717
    %v6720 = vunpack.c.l.s4 1983009808
    %v6721 = vunpack.c.0.s8 %v6720
    %v6722 = vlaneseq
    %v6723 = vshrl.u32 %v6722, 7
    %v6724 = vsub.s32 %v6721, %v6723
    %v6725 = vrot.slane %v6711, %v6724
    %v6726 = vcombine.high %v6718, %v6718
    %v6727 = vcombine.high %v6725, %v6725
    %v6728 = vcombine.high %v6664, %v6664
    %v6730 = vunpack.c.l.s4 1983009808
    %v6731 = vunpack.c.0.s8 %v6730
    %v6732 = vlaneseq
    %v6733 = vshrl.u32 %v6732, 7
    %v6734 = vsub.s32 %v6731, %v6733
    %v6735 = vrot.slane %v6664, %v6734
    %v6737 = vunpack.c.l.s4 1983009808
    %v6738 = vunpack.c.0.s8 %v6737
    %v6739 = vlaneseq
    %v6740 = vshrl.u32 %v6739, 7
    %v6741 = vsub.s32 %v6738, %v6740
    %v6742 = vrot.slane %v6728, %v6741
    %v6743 = vcombine.high %v6735, %v6735
    %v6744 = vcombine.high %v6742, %v6742
    %v6745 = vcombine.high %v6665, %v6665
    %v6747 = vunpack.c.l.s4 1983009808
    %v6748 = vunpack.c.0.s8 %v6747
    %v6749 = vlaneseq
    %v6750 = vshrl.u32 %v6749, 7
    %v6751 = vsub.s32 %v6748, %v6750
    %v6752 = vrot.slane %v6665, %v6751
    %v6754 = vunpack.c.l.s4 1983009808
    %v6755 = vunpack.c.0.s8 %v6754
    %v6756 = vlaneseq
    %v6757 = vshrl.u32 %v6756, 7
    %v6758 = vsub.s32 %v6755, %v6757
    %v6759 = vrot.slane %v6745, %v6758
    %v6760 = vcombine.high %v6752, %v6752
    %v6761 = vcombine.high %v6759, %v6759
    %v6762 = vcombine.high %v6666, %v6666
    %v6764 = vunpack.c.l.s4 1983009808
    %v6765 = vunpack.c.0.s8 %v6764
    %v6766 = vlaneseq
    %v6767 = vshrl.u32 %v6766, 7
    %v6768 = vsub.s32 %v6765, %v6767
    %v6769 = vrot.slane %v6666, %v6768
    %v6771 = vunpack.c.l.s4 1983009808
    %v6772 = vunpack.c.0.s8 %v6771
    %v6773 = vlaneseq
    %v6774 = vshrl.u32 %v6773, 7
    %v6775 = vsub.s32 %v6772, %v6774
    %v6776 = vrot.slane %v6762, %v6775
    %v6777 = vcombine.high %v6769, %v6769
    %v6778 = vcombine.high %v6776, %v6776
    %v6779 = vcombine.high %v6667, %v6667
    %v6781 = vunpack.c.l.s4 1983009808
    %v6782 = vunpack.c.0.s8 %v6781
    %v6783 = vlaneseq
    %v6784 = vshrl.u32 %v6783, 7
    %v6785 = vsub.s32 %v6782, %v6784
    %v6786 = vrot.slane %v6667, %v6785
    %v6788 = vunpack.c.l.s4 1983009808
    %v6789 = vunpack.c.0.s8 %v6788
    %v6790 = vlaneseq
    %v6791 = vshrl.u32 %v6790, 7
    %v6792 = vsub.s32 %v6789, %v6791
    %v6793 = vrot.slane %v6779, %v6792
    %v6794 = vcombine.high %v6786, %v6786
    %v6795 = vcombine.high %v6793, %v6793
    %v6796 = vcombine.high %v6668, %v6668
    %v6798 = vunpack.c.l.s4 1983009808
    %v6799 = vunpack.c.0.s8 %v6798
    %v6800 = vlaneseq
    %v6801 = vshrl.u32 %v6800, 7
    %v6802 = vsub.s32 %v6799, %v6801
    %v6803 = vrot.slane %v6668, %v6802
    %v6805 = vunpack.c.l.s4 1983009808
    %v6806 = vunpack.c.0.s8 %v6805
    %v6807 = vlaneseq
    %v6808 = vshrl.u32 %v6807, 7
    %v6809 = vsub.s32 %v6806, %v6808
    %v6810 = vrot.slane %v6796, %v6809
    %v6811 = vcombine.high %v6803, %v6803
    %v6812 = vcombine.high %v6810, %v6810
    %v6813 = vcombine.high %v6669, %v6669
    %v6815 = vunpack.c.l.s4 1983009808
    %v6816 = vunpack.c.0.s8 %v6815
    %v6817 = vlaneseq
    %v6818 = vshrl.u32 %v6817, 7
    %v6819 = vsub.s32 %v6816, %v6818
    %v6820 = vrot.slane %v6669, %v6819
    %v6822 = vunpack.c.l.s4 1983009808
    %v6823 = vunpack.c.0.s8 %v6822
    %v6824 = vlaneseq
    %v6825 = vshrl.u32 %v6824, 7
    %v6826 = vsub.s32 %v6823, %v6825
    %v6827 = vrot.slane %v6813, %v6826
    %v6828 = vcombine.high %v6820, %v6820
    %v6829 = vcombine.high %v6827, %v6827
    %v6830 = vcombine.high %v6670, %v6670
    %v6832 = vunpack.c.l.s4 1983009808
    %v6833 = vunpack.c.0.s8 %v6832
    %v6834 = vlaneseq
    %v6835 = vshrl.u32 %v6834, 7
    %v6836 = vsub.s32 %v6833, %v6835
    %v6837 = vrot.slane %v6670, %v6836
    %v6839 = vunpack.c.l.s4 1983009808
    %v6840 = vunpack.c.0.s8 %v6839
    %v6841 = vlaneseq
    %v6842 = vshrl.u32 %v6841, 7
    %v6843 = vsub.s32 %v6840, %v6842
    %v6844 = vrot.slane %v6830, %v6843
    %v6845 = vcombine.high %v6837, %v6837
    %v6846 = vcombine.high %v6844, %v6844
    %v6847 = vcombine.high %v6671, %v6671
    %v6849 = vunpack.c.l.s4 1983009808
    %v6850 = vunpack.c.0.s8 %v6849
    %v6851 = vlaneseq
    %v6852 = vshrl.u32 %v6851, 7
    %v6853 = vsub.s32 %v6850, %v6852
    %v6854 = vrot.slane %v6671, %v6853
    %v6856 = vunpack.c.l.s4 1983009808
    %v6857 = vunpack.c.0.s8 %v6856
    %v6858 = vlaneseq
    %v6859 = vshrl.u32 %v6858, 7
    %v6860 = vsub.s32 %v6857, %v6859
    %v6861 = vrot.slane %v6847, %v6860
    %v6862 = vcombine.high %v6854, %v6854
    %v6863 = vcombine.high %v6861, %v6861
    %v6864 = vcombine.high %v6672, %v6672
    %v6866 = vunpack.c.l.s4 1983009808
    %v6867 = vunpack.c.0.s8 %v6866
    %v6868 = vlaneseq
    %v6869 = vshrl.u32 %v6868, 7
    %v6870 = vsub.s32 %v6867, %v6869
    %v6871 = vrot.slane %v6672, %v6870
    %v6873 = vunpack.c.l.s4 1983009808
    %v6874 = vunpack.c.0.s8 %v6873
    %v6875 = vlaneseq
    %v6876 = vshrl.u32 %v6875, 7
    %v6877 = vsub.s32 %v6874, %v6876
    %v6878 = vrot.slane %v6864, %v6877
    %v6879 = vcombine.high %v6871, %v6871
    %v6880 = vcombine.high %v6878, %v6878
    %v6881 = vcombine.high %v6673, %v6673
    %v6883 = vunpack.c.l.s4 1983009808
    %v6884 = vunpack.c.0.s8 %v6883
    %v6885 = vlaneseq
    %v6886 = vshrl.u32 %v6885, 7
    %v6887 = vsub.s32 %v6884, %v6886
    %v6888 = vrot.slane %v6673, %v6887
    %v6890 = vunpack.c.l.s4 1983009808
    %v6891 = vunpack.c.0.s8 %v6890
    %v6892 = vlaneseq
    %v6893 = vshrl.u32 %v6892, 7
    %v6894 = vsub.s32 %v6891, %v6893
    %v6895 = vrot.slane %v6881, %v6894
    %v6896 = vcombine.high %v6888, %v6888
    %v6897 = vcombine.high %v6895, %v6895
    %v6898 = vcombine.high %v6674, %v6674
    %v6900 = vunpack.c.l.s4 1983009808
    %v6901 = vunpack.c.0.s8 %v6900
    %v6902 = vlaneseq
    %v6903 = vshrl.u32 %v6902, 7
    %v6904 = vsub.s32 %v6901, %v6903
    %v6905 = vrot.slane %v6674, %v6904
    %v6907 = vunpack.c.l.s4 1983009808
    %v6908 = vunpack.c.0.s8 %v6907
    %v6909 = vlaneseq
    %v6910 = vshrl.u32 %v6909, 7
    %v6911 = vsub.s32 %v6908, %v6910
    %v6912 = vrot.slane %v6898, %v6911
    %v6913 = vcombine.high %v6905, %v6905
    %v6914 = vcombine.high %v6912, %v6912
    %v6915 = vcombine.high %v6675, %v6675
    %v6917 = vunpack.c.l.s4 1983009808
    %v6918 = vunpack.c.0.s8 %v6917
    %v6919 = vlaneseq
    %v6920 = vshrl.u32 %v6919, 7
    %v6921 = vsub.s32 %v6918, %v6920
    %v6922 = vrot.slane %v6675, %v6921
    %v6924 = vunpack.c.l.s4 1983009808
    %v6925 = vunpack.c.0.s8 %v6924
    %v6926 = vlaneseq
    %v6927 = vshrl.u32 %v6926, 7
    %v6928 = vsub.s32 %v6925, %v6927
    %v6929 = vrot.slane %v6915, %v6928
    %v6930 = vcombine.high %v6922, %v6922
    %v6931 = vcombine.high %v6929, %v6929
    %v6932 = vcombine.high %v6676, %v6676
    %v6934 = vunpack.c.l.s4 1983009808
    %v6935 = vunpack.c.0.s8 %v6934
    %v6936 = vlaneseq
    %v6937 = vshrl.u32 %v6936, 7
    %v6938 = vsub.s32 %v6935, %v6937
    %v6939 = vrot.slane %v6676, %v6938
    %v6941 = vunpack.c.l.s4 1983009808
    %v6942 = vunpack.c.0.s8 %v6941
    %v6943 = vlaneseq
    %v6944 = vshrl.u32 %v6943, 7
    %v6945 = vsub.s32 %v6942, %v6944
    %v6946 = vrot.slane %v6932, %v6945
    %v6947 = vcombine.high %v6939, %v6939
    %v6948 = vcombine.high %v6946, %v6946
    %v6949 = vcombine.high %v6677, %v6677
    %v6951 = vunpack.c.l.s4 1983009808
    %v6952 = vunpack.c.0.s8 %v6951
    %v6953 = vlaneseq
    %v6954 = vshrl.u32 %v6953, 7
    %v6955 = vsub.s32 %v6952, %v6954
    %v6956 = vrot.slane %v6677, %v6955
    %v6958 = vunpack.c.l.s4 1983009808
    %v6959 = vunpack.c.0.s8 %v6958
    %v6960 = vlaneseq
    %v6961 = vshrl.u32 %v6960, 7
    %v6962 = vsub.s32 %v6959, %v6961
    %v6963 = vrot.slane %v6949, %v6962
    %v6964 = vcombine.high %v6956, %v6956
    %v6965 = vcombine.high %v6963, %v6963
    %vm7030 = vcmask 517120
    %v7031 = vsel %vm7030, %v6701, -inf
    %v7032 = vrot.slane %v7031, 4
    %v7033 = vmax.f32 %v7031, %v7032
    %v7034 = vrot.slane %v7033, 2
    %v7035 = vmax.f32 %v7033, %v7034
    %v7036 = vrot.slane %v7035, 1
    %v7037 = vmax.f32 %v7035, %v7036
    %v7038 = vsel %vm7030, %v6709, -inf
    %v7039 = vrot.slane %v7038, 4
    %v7040 = vmax.f32 %v7038, %v7039
    %v7041 = vrot.slane %v7040, 2
    %v7042 = vmax.f32 %v7040, %v7041
    %v7043 = vrot.slane %v7042, 1
    %v7044 = vmax.f32 %v7042, %v7043
    %v7045 = vsel %vm7030, %v6708, -inf
    %v7046 = vrot.slane %v7045, 4
    %v7047 = vmax.f32 %v7045, %v7046
    %v7048 = vrot.slane %v7047, 2
    %v7049 = vmax.f32 %v7047, %v7048
    %v7050 = vrot.slane %v7049, 1
    %v7051 = vmax.f32 %v7049, %v7050
    %v7052 = vsel %vm7030, %v6710, -inf
    %v7053 = vrot.slane %v7052, 4
    %v7054 = vmax.f32 %v7052, %v7053
    %v7055 = vrot.slane %v7054, 2
    %v7056 = vmax.f32 %v7054, %v7055
    %v7057 = vrot.slane %v7056, 1
    %v7058 = vmax.f32 %v7056, %v7057
    %v7059 = vsel %vm7030, %v6718, -inf
    %v7060 = vrot.slane %v7059, 4
    %v7061 = vmax.f32 %v7059, %v7060
    %v7062 = vrot.slane %v7061, 2
    %v7063 = vmax.f32 %v7061, %v7062
    %v7064 = vrot.slane %v7063, 1
    %v7065 = vmax.f32 %v7063, %v7064
    %v7066 = vsel %vm7030, %v6726, -inf
    %v7067 = vrot.slane %v7066, 4
    %v7068 = vmax.f32 %v7066, %v7067
    %v7069 = vrot.slane %v7068, 2
    %v7070 = vmax.f32 %v7068, %v7069
    %v7071 = vrot.slane %v7070, 1
    %v7072 = vmax.f32 %v7070, %v7071
    %v7073 = vsel %vm7030, %v6725, -inf
    %v7074 = vrot.slane %v7073, 4
    %v7075 = vmax.f32 %v7073, %v7074
    %v7076 = vrot.slane %v7075, 2
    %v7077 = vmax.f32 %v7075, %v7076
    %v7078 = vrot.slane %v7077, 1
    %v7079 = vmax.f32 %v7077, %v7078
    %v7080 = vsel %vm7030, %v6727, -inf
    %v7081 = vrot.slane %v7080, 4
    %v7082 = vmax.f32 %v7080, %v7081
    %v7083 = vrot.slane %v7082, 2
    %v7084 = vmax.f32 %v7082, %v7083
    %v7085 = vrot.slane %v7084, 1
    %v7086 = vmax.f32 %v7084, %v7085
    %v7087 = vsel %vm7030, %v6735, -inf
    %v7088 = vrot.slane %v7087, 4
    %v7089 = vmax.f32 %v7087, %v7088
    %v7090 = vrot.slane %v7089, 2
    %v7091 = vmax.f32 %v7089, %v7090
    %v7092 = vrot.slane %v7091, 1
    %v7093 = vmax.f32 %v7091, %v7092
    %v7094 = vsel %vm7030, %v6743, -inf
    %v7095 = vrot.slane %v7094, 4
    %v7096 = vmax.f32 %v7094, %v7095
    %v7097 = vrot.slane %v7096, 2
    %v7098 = vmax.f32 %v7096, %v7097
    %v7099 = vrot.slane %v7098, 1
    %v7100 = vmax.f32 %v7098, %v7099
    %v7101 = vsel %vm7030, %v6742, -inf
    %v7102 = vrot.slane %v7101, 4
    %v7103 = vmax.f32 %v7101, %v7102
    %v7104 = vrot.slane %v7103, 2
    %v7105 = vmax.f32 %v7103, %v7104
    %v7106 = vrot.slane %v7105, 1
    %v7107 = vmax.f32 %v7105, %v7106
    %v7108 = vsel %vm7030, %v6744, -inf
    %v7109 = vrot.slane %v7108, 4
    %v7110 = vmax.f32 %v7108, %v7109
    %v7111 = vrot.slane %v7110, 2
    %v7112 = vmax.f32 %v7110, %v7111
    %v7113 = vrot.slane %v7112, 1
    %v7114 = vmax.f32 %v7112, %v7113
    %v7115 = vsel %vm7030, %v6752, -inf
    %v7116 = vrot.slane %v7115, 4
    %v7117 = vmax.f32 %v7115, %v7116
    %v7118 = vrot.slane %v7117, 2
    %v7119 = vmax.f32 %v7117, %v7118
    %v7120 = vrot.slane %v7119, 1
    %v7121 = vmax.f32 %v7119, %v7120
    %v7122 = vsel %vm7030, %v6760, -inf
    %v7123 = vrot.slane %v7122, 4
    %v7124 = vmax.f32 %v7122, %v7123
    %v7125 = vrot.slane %v7124, 2
    %v7126 = vmax.f32 %v7124, %v7125
    %v7127 = vrot.slane %v7126, 1
    %v7128 = vmax.f32 %v7126, %v7127
    %v7129 = vsel %vm7030, %v6759, -inf
    %v7130 = vrot.slane %v7129, 4
    %v7131 = vmax.f32 %v7129, %v7130
    %v7132 = vrot.slane %v7131, 2
    %v7133 = vmax.f32 %v7131, %v7132
    %v7134 = vrot.slane %v7133, 1
    %v7135 = vmax.f32 %v7133, %v7134
    %v7136 = vsel %vm7030, %v6761, -inf
    %v7137 = vrot.slane %v7136, 4
    %v7138 = vmax.f32 %v7136, %v7137
    %v7139 = vrot.slane %v7138, 2
    %v7140 = vmax.f32 %v7138, %v7139
    %v7141 = vrot.slane %v7140, 1
    %v7142 = vmax.f32 %v7140, %v7141
    %v7143 = vsel %vm7030, %v6769, -inf
    %v7144 = vrot.slane %v7143, 4
    %v7145 = vmax.f32 %v7143, %v7144
    %v7146 = vrot.slane %v7145, 2
    %v7147 = vmax.f32 %v7145, %v7146
    %v7148 = vrot.slane %v7147, 1
    %v7149 = vmax.f32 %v7147, %v7148
    %v7150 = vsel %vm7030, %v6777, -inf
    %v7151 = vrot.slane %v7150, 4
    %v7152 = vmax.f32 %v7150, %v7151
    %v7153 = vrot.slane %v7152, 2
    %v7154 = vmax.f32 %v7152, %v7153
    %v7155 = vrot.slane %v7154, 1
    %v7156 = vmax.f32 %v7154, %v7155
    %v7157 = vsel %vm7030, %v6776, -inf
    %v7158 = vrot.slane %v7157, 4
    %v7159 = vmax.f32 %v7157, %v7158
    %v7160 = vrot.slane %v7159, 2
    %v7161 = vmax.f32 %v7159, %v7160
    %v7162 = vrot.slane %v7161, 1
    %v7163 = vmax.f32 %v7161, %v7162
    %v7164 = vsel %vm7030, %v6778, -inf
    %v7165 = vrot.slane %v7164, 4
    %v7166 = vmax.f32 %v7164, %v7165
    %v7167 = vrot.slane %v7166, 2
    %v7168 = vmax.f32 %v7166, %v7167
    %v7169 = vrot.slane %v7168, 1
    %v7170 = vmax.f32 %v7168, %v7169
    %v7171 = vsel %vm7030, %v6786, -inf
    %v7172 = vrot.slane %v7171, 4
    %v7173 = vmax.f32 %v7171, %v7172
    %v7174 = vrot.slane %v7173, 2
    %v7175 = vmax.f32 %v7173, %v7174
    %v7176 = vrot.slane %v7175, 1
    %v7177 = vmax.f32 %v7175, %v7176
    %v7178 = vsel %vm7030, %v6794, -inf
    %v7179 = vrot.slane %v7178, 4
    %v7180 = vmax.f32 %v7178, %v7179
    %v7181 = vrot.slane %v7180, 2
    %v7182 = vmax.f32 %v7180, %v7181
    %v7183 = vrot.slane %v7182, 1
    %v7184 = vmax.f32 %v7182, %v7183
    %v7185 = vsel %vm7030, %v6793, -inf
    %v7186 = vrot.slane %v7185, 4
    %v7187 = vmax.f32 %v7185, %v7186
    %v7188 = vrot.slane %v7187, 2
    %v7189 = vmax.f32 %v7187, %v7188
    %v7190 = vrot.slane %v7189, 1
    %v7191 = vmax.f32 %v7189, %v7190
    %v7192 = vsel %vm7030, %v6795, -inf
    %v7193 = vrot.slane %v7192, 4
    %v7194 = vmax.f32 %v7192, %v7193
    %v7195 = vrot.slane %v7194, 2
    %v7196 = vmax.f32 %v7194, %v7195
    %v7197 = vrot.slane %v7196, 1
    %v7198 = vmax.f32 %v7196, %v7197
    %v7199 = vsel %vm7030, %v6803, -inf
    %v7200 = vrot.slane %v7199, 4
    %v7201 = vmax.f32 %v7199, %v7200
    %v7202 = vrot.slane %v7201, 2
    %v7203 = vmax.f32 %v7201, %v7202
    %v7204 = vrot.slane %v7203, 1
    %v7205 = vmax.f32 %v7203, %v7204
    %v7206 = vsel %vm7030, %v6811, -inf
    %v7207 = vrot.slane %v7206, 4
    %v7208 = vmax.f32 %v7206, %v7207
    %v7209 = vrot.slane %v7208, 2
    %v7210 = vmax.f32 %v7208, %v7209
    %v7211 = vrot.slane %v7210, 1
    %v7212 = vmax.f32 %v7210, %v7211
    %v7213 = vsel %vm7030, %v6810, -inf
    %v7214 = vrot.slane %v7213, 4
    %v7215 = vmax.f32 %v7213, %v7214
    %v7216 = vrot.slane %v7215, 2
    %v7217 = vmax.f32 %v7215, %v7216
    %v7218 = vrot.slane %v7217, 1
    %v7219 = vmax.f32 %v7217, %v7218
    %v7220 = vsel %vm7030, %v6812, -inf
    %v7221 = vrot.slane %v7220, 4
    %v7222 = vmax.f32 %v7220, %v7221
    %v7223 = vrot.slane %v7222, 2
    %v7224 = vmax.f32 %v7222, %v7223
    %v7225 = vrot.slane %v7224, 1
    %v7226 = vmax.f32 %v7224, %v7225
    %v7227 = vsel %vm7030, %v6820, -inf
    %v7228 = vrot.slane %v7227, 4
    %v7229 = vmax.f32 %v7227, %v7228
    %v7230 = vrot.slane %v7229, 2
    %v7231 = vmax.f32 %v7229, %v7230
    %v7232 = vrot.slane %v7231, 1
    %v7233 = vmax.f32 %v7231, %v7232
    %v7234 = vsel %vm7030, %v6828, -inf
    %v7235 = vrot.slane %v7234, 4
    %v7236 = vmax.f32 %v7234, %v7235
    %v7237 = vrot.slane %v7236, 2
    %v7238 = vmax.f32 %v7236, %v7237
    %v7239 = vrot.slane %v7238, 1
    %v7240 = vmax.f32 %v7238, %v7239
    %v7241 = vsel %vm7030, %v6827, -inf
    %v7242 = vrot.slane %v7241, 4
    %v7243 = vmax.f32 %v7241, %v7242
    %v7244 = vrot.slane %v7243, 2
    %v7245 = vmax.f32 %v7243, %v7244
    %v7246 = vrot.slane %v7245, 1
    %v7247 = vmax.f32 %v7245, %v7246
    %v7248 = vsel %vm7030, %v6829, -inf
    %v7249 = vrot.slane %v7248, 4
    %v7250 = vmax.f32 %v7248, %v7249
    %v7251 = vrot.slane %v7250, 2
    %v7252 = vmax.f32 %v7250, %v7251
    %v7253 = vrot.slane %v7252, 1
    %v7254 = vmax.f32 %v7252, %v7253
    %v7255 = vsel %vm7030, %v6837, -inf
    %v7256 = vrot.slane %v7255, 4
    %v7257 = vmax.f32 %v7255, %v7256
    %v7258 = vrot.slane %v7257, 2
    %v7259 = vmax.f32 %v7257, %v7258
    %v7260 = vrot.slane %v7259, 1
    %v7261 = vmax.f32 %v7259, %v7260
    %v7262 = vsel %vm7030, %v6845, -inf
    %v7263 = vrot.slane %v7262, 4
    %v7264 = vmax.f32 %v7262, %v7263
    %v7265 = vrot.slane %v7264, 2
    %v7266 = vmax.f32 %v7264, %v7265
    %v7267 = vrot.slane %v7266, 1
    %v7268 = vmax.f32 %v7266, %v7267
    %v7269 = vsel %vm7030, %v6844, -inf
    %v7270 = vrot.slane %v7269, 4
    %v7271 = vmax.f32 %v7269, %v7270
    %v7272 = vrot.slane %v7271, 2
    %v7273 = vmax.f32 %v7271, %v7272
    %v7274 = vrot.slane %v7273, 1
    %v7275 = vmax.f32 %v7273, %v7274
    %v7276 = vsel %vm7030, %v6846, -inf
    %v7277 = vrot.slane %v7276, 4
    %v7278 = vmax.f32 %v7276, %v7277
    %v7279 = vrot.slane %v7278, 2
    %v7280 = vmax.f32 %v7278, %v7279
    %v7281 = vrot.slane %v7280, 1
    %v7282 = vmax.f32 %v7280, %v7281
    %v7283 = vsel %vm7030, %v6854, -inf
    %v7284 = vrot.slane %v7283, 4
    %v7285 = vmax.f32 %v7283, %v7284
    %v7286 = vrot.slane %v7285, 2
    %v7287 = vmax.f32 %v7285, %v7286
    %v7288 = vrot.slane %v7287, 1
    %v7289 = vmax.f32 %v7287, %v7288
    %v7290 = vsel %vm7030, %v6862, -inf
    %v7291 = vrot.slane %v7290, 4
    %v7292 = vmax.f32 %v7290, %v7291
    %v7293 = vrot.slane %v7292, 2
    %v7294 = vmax.f32 %v7292, %v7293
    %v7295 = vrot.slane %v7294, 1
    %v7296 = vmax.f32 %v7294, %v7295
    %v7297 = vsel %vm7030, %v6861, -inf
    %v7298 = vrot.slane %v7297, 4
    %v7299 = vmax.f32 %v7297, %v7298
    %v7300 = vrot.slane %v7299, 2
    %v7301 = vmax.f32 %v7299, %v7300
    %v7302 = vrot.slane %v7301, 1
    %v7303 = vmax.f32 %v7301, %v7302
    %v7304 = vsel %vm7030, %v6863, -inf
    %v7305 = vrot.slane %v7304, 4
    %v7306 = vmax.f32 %v7304, %v7305
    %v7307 = vrot.slane %v7306, 2
    %v7308 = vmax.f32 %v7306, %v7307
    %v7309 = vrot.slane %v7308, 1
    %v7310 = vmax.f32 %v7308, %v7309
    %v7311 = vsel %vm7030, %v6871, -inf
    %v7312 = vrot.slane %v7311, 4
    %v7313 = vmax.f32 %v7311, %v7312
    %v7314 = vrot.slane %v7313, 2
    %v7315 = vmax.f32 %v7313, %v7314
    %v7316 = vrot.slane %v7315, 1
    %v7317 = vmax.f32 %v7315, %v7316
    %v7318 = vsel %vm7030, %v6879, -inf
    %v7319 = vrot.slane %v7318, 4
    %v7320 = vmax.f32 %v7318, %v7319
    %v7321 = vrot.slane %v7320, 2
    %v7322 = vmax.f32 %v7320, %v7321
    %v7323 = vrot.slane %v7322, 1
    %v7324 = vmax.f32 %v7322, %v7323
    %v7325 = vsel %vm7030, %v6878, -inf
    %v7326 = vrot.slane %v7325, 4
    %v7327 = vmax.f32 %v7325, %v7326
    %v7328 = vrot.slane %v7327, 2
    %v7329 = vmax.f32 %v7327, %v7328
    %v7330 = vrot.slane %v7329, 1
    %v7331 = vmax.f32 %v7329, %v7330
    %v7332 = vsel %vm7030, %v6880, -inf
    %v7333 = vrot.slane %v7332, 4
    %v7334 = vmax.f32 %v7332, %v7333
    %v7335 = vrot.slane %v7334, 2
    %v7336 = vmax.f32 %v7334, %v7335
    %v7337 = vrot.slane %v7336, 1
    %v7338 = vmax.f32 %v7336, %v7337
    %v7339 = vsel %vm7030, %v6888, -inf
    %v7340 = vrot.slane %v7339, 4
    %v7341 = vmax.f32 %v7339, %v7340
    %v7342 = vrot.slane %v7341, 2
    %v7343 = vmax.f32 %v7341, %v7342
    %v7344 = vrot.slane %v7343, 1
    %v7345 = vmax.f32 %v7343, %v7344
    %v7346 = vsel %vm7030, %v6896, -inf
    %v7347 = vrot.slane %v7346, 4
    %v7348 = vmax.f32 %v7346, %v7347
    %v7349 = vrot.slane %v7348, 2
    %v7350 = vmax.f32 %v7348, %v7349
    %v7351 = vrot.slane %v7350, 1
    %v7352 = vmax.f32 %v7350, %v7351
    %v7353 = vsel %vm7030, %v6895, -inf
    %v7354 = vrot.slane %v7353, 4
    %v7355 = vmax.f32 %v7353, %v7354
    %v7356 = vrot.slane %v7355, 2
    %v7357 = vmax.f32 %v7355, %v7356
    %v7358 = vrot.slane %v7357, 1
    %v7359 = vmax.f32 %v7357, %v7358
    %v7360 = vsel %vm7030, %v6897, -inf
    %v7361 = vrot.slane %v7360, 4
    %v7362 = vmax.f32 %v7360, %v7361
    %v7363 = vrot.slane %v7362, 2
    %v7364 = vmax.f32 %v7362, %v7363
    %v7365 = vrot.slane %v7364, 1
    %v7366 = vmax.f32 %v7364, %v7365
    %v7367 = vsel %vm7030, %v6905, -inf
    %v7368 = vrot.slane %v7367, 4
    %v7369 = vmax.f32 %v7367, %v7368
    %v7370 = vrot.slane %v7369, 2
    %v7371 = vmax.f32 %v7369, %v7370
    %v7372 = vrot.slane %v7371, 1
    %v7373 = vmax.f32 %v7371, %v7372
    %v7374 = vsel %vm7030, %v6913, -inf
    %v7375 = vrot.slane %v7374, 4
    %v7376 = vmax.f32 %v7374, %v7375
    %v7377 = vrot.slane %v7376, 2
    %v7378 = vmax.f32 %v7376, %v7377
    %v7379 = vrot.slane %v7378, 1
    %v7380 = vmax.f32 %v7378, %v7379
    %v7381 = vsel %vm7030, %v6912, -inf
    %v7382 = vrot.slane %v7381, 4
    %v7383 = vmax.f32 %v7381, %v7382
    %v7384 = vrot.slane %v7383, 2
    %v7385 = vmax.f32 %v7383, %v7384
    %v7386 = vrot.slane %v7385, 1
    %v7387 = vmax.f32 %v7385, %v7386
    %v7388 = vsel %vm7030, %v6914, -inf
    %v7389 = vrot.slane %v7388, 4
    %v7390 = vmax.f32 %v7388, %v7389
    %v7391 = vrot.slane %v7390, 2
    %v7392 = vmax.f32 %v7390, %v7391
    %v7393 = vrot.slane %v7392, 1
    %v7394 = vmax.f32 %v7392, %v7393
    %v7395 = vsel %vm7030, %v6922, -inf
    %v7396 = vrot.slane %v7395, 4
    %v7397 = vmax.f32 %v7395, %v7396
    %v7398 = vrot.slane %v7397, 2
    %v7399 = vmax.f32 %v7397, %v7398
    %v7400 = vrot.slane %v7399, 1
    %v7401 = vmax.f32 %v7399, %v7400
    %v7402 = vsel %vm7030, %v6930, -inf
    %v7403 = vrot.slane %v7402, 4
    %v7404 = vmax.f32 %v7402, %v7403
    %v7405 = vrot.slane %v7404, 2
    %v7406 = vmax.f32 %v7404, %v7405
    %v7407 = vrot.slane %v7406, 1
    %v7408 = vmax.f32 %v7406, %v7407
    %v7409 = vsel %vm7030, %v6929, -inf
    %v7410 = vrot.slane %v7409, 4
    %v7411 = vmax.f32 %v7409, %v7410
    %v7412 = vrot.slane %v7411, 2
    %v7413 = vmax.f32 %v7411, %v7412
    %v7414 = vrot.slane %v7413, 1
    %v7415 = vmax.f32 %v7413, %v7414
    %v7416 = vsel %vm7030, %v6931, -inf
    %v7417 = vrot.slane %v7416, 4
    %v7418 = vmax.f32 %v7416, %v7417
    %v7419 = vrot.slane %v7418, 2
    %v7420 = vmax.f32 %v7418, %v7419
    %v7421 = vrot.slane %v7420, 1
    %v7422 = vmax.f32 %v7420, %v7421
    %v7423 = vsel %vm7030, %v6939, -inf
    %v7424 = vrot.slane %v7423, 4
    %v7425 = vmax.f32 %v7423, %v7424
    %v7426 = vrot.slane %v7425, 2
    %v7427 = vmax.f32 %v7425, %v7426
    %v7428 = vrot.slane %v7427, 1
    %v7429 = vmax.f32 %v7427, %v7428
    %v7430 = vsel %vm7030, %v6947, -inf
    %v7431 = vrot.slane %v7430, 4
    %v7432 = vmax.f32 %v7430, %v7431
    %v7433 = vrot.slane %v7432, 2
    %v7434 = vmax.f32 %v7432, %v7433
    %v7435 = vrot.slane %v7434, 1
    %v7436 = vmax.f32 %v7434, %v7435
    %v7437 = vsel %vm7030, %v6946, -inf
    %v7438 = vrot.slane %v7437, 4
    %v7439 = vmax.f32 %v7437, %v7438
    %v7440 = vrot.slane %v7439, 2
    %v7441 = vmax.f32 %v7439, %v7440
    %v7442 = vrot.slane %v7441, 1
    %v7443 = vmax.f32 %v7441, %v7442
    %v7444 = vsel %vm7030, %v6948, -inf
    %v7445 = vrot.slane %v7444, 4
    %v7446 = vmax.f32 %v7444, %v7445
    %v7447 = vrot.slane %v7446, 2
    %v7448 = vmax.f32 %v7446, %v7447
    %v7449 = vrot.slane %v7448, 1
    %v7450 = vmax.f32 %v7448, %v7449
    %v7451 = vsel %vm7030, %v6956, -inf
    %v7452 = vrot.slane %v7451, 4
    %v7453 = vmax.f32 %v7451, %v7452
    %v7454 = vrot.slane %v7453, 2
    %v7455 = vmax.f32 %v7453, %v7454
    %v7456 = vrot.slane %v7455, 1
    %v7457 = vmax.f32 %v7455, %v7456
    %v7458 = vsel %vm7030, %v6964, -inf
    %v7459 = vrot.slane %v7458, 4
    %v7460 = vmax.f32 %v7458, %v7459
    %v7461 = vrot.slane %v7460, 2
    %v7462 = vmax.f32 %v7460, %v7461
    %v7463 = vrot.slane %v7462, 1
    %v7464 = vmax.f32 %v7462, %v7463
    %v7465 = vsel %vm7030, %v6963, -inf
    %v7466 = vrot.slane %v7465, 4
    %v7467 = vmax.f32 %v7465, %v7466
    %v7468 = vrot.slane %v7467, 2
    %v7469 = vmax.f32 %v7467, %v7468
    %v7470 = vrot.slane %v7469, 1
    %v7471 = vmax.f32 %v7469, %v7470
    %v7472 = vsel %vm7030, %v6965, -inf
    %v7473 = vrot.slane %v7472, 4
    %v7474 = vmax.f32 %v7472, %v7473
    %v7475 = vrot.slane %v7474, 2
    %v7476 = vmax.f32 %v7474, %v7475
    %v7477 = vrot.slane %v7476, 1
    %v7478 = vmax.f32 %v7476, %v7477
    %v7479 = vsel %vm5300, %v7037, -inf
    %v7480 = vsel %vm5300, %v7065, -inf
    %v7481 = vmax.f32 %v7479, %v7480
    %v7482 = vsel %vm5300, %v7044, -inf
    %v7483 = vsel %vm5300, %v7072, -inf
    %v7484 = vmax.f32 %v7482, %v7483
    %v7485 = vsel %vm5300, %v7051, -inf
    %v7486 = vsel %vm5300, %v7079, -inf
    %v7487 = vmax.f32 %v7485, %v7486
    %v7488 = vsel %vm5300, %v7058, -inf
    %v7489 = vsel %vm5300, %v7086, -inf
    %v7490 = vmax.f32 %v7488, %v7489
    %v7491 = vsel %vm5300, %v7093, -inf
    %v7492 = vsel %vm5300, %v7121, -inf
    %v7493 = vmax.f32 %v7491, %v7492
    %v7494 = vsel %vm5300, %v7100, -inf
    %v7495 = vsel %vm5300, %v7128, -inf
    %v7496 = vmax.f32 %v7494, %v7495
    %v7497 = vsel %vm5300, %v7107, -inf
    %v7498 = vsel %vm5300, %v7135, -inf
    %v7499 = vmax.f32 %v7497, %v7498
    %v7500 = vsel %vm5300, %v7114, -inf
    %v7501 = vsel %vm5300, %v7142, -inf
    %v7502 = vmax.f32 %v7500, %v7501
    %v7503 = vsel %vm5300, %v7149, -inf
    %v7504 = vsel %vm5300, %v7177, -inf
    %v7505 = vmax.f32 %v7503, %v7504
    %v7506 = vsel %vm5300, %v7156, -inf
    %v7507 = vsel %vm5300, %v7184, -inf
    %v7508 = vmax.f32 %v7506, %v7507
    %v7509 = vsel %vm5300, %v7163, -inf
    %v7510 = vsel %vm5300, %v7191, -inf
    %v7511 = vmax.f32 %v7509, %v7510
    %v7512 = vsel %vm5300, %v7170, -inf
    %v7513 = vsel %vm5300, %v7198, -inf
    %v7514 = vmax.f32 %v7512, %v7513
    %v7515 = vsel %vm5300, %v7205, -inf
    %v7516 = vsel %vm5300, %v7233, -inf
    %v7517 = vmax.f32 %v7515, %v7516
    %v7518 = vsel %vm5300, %v7212, -inf
    %v7519 = vsel %vm5300, %v7240, -inf
    %v7520 = vmax.f32 %v7518, %v7519
    %v7521 = vsel %vm5300, %v7219, -inf
    %v7522 = vsel %vm5300, %v7247, -inf
    %v7523 = vmax.f32 %v7521, %v7522
    %v7524 = vsel %vm5300, %v7226, -inf
    %v7525 = vsel %vm5300, %v7254, -inf
    %v7526 = vmax.f32 %v7524, %v7525
    %v7527 = vsel %vm5300, %v7261, -inf
    %v7528 = vsel %vm5300, %v7289, -inf
    %v7529 = vmax.f32 %v7527, %v7528
    %v7530 = vsel %vm5300, %v7268, -inf
    %v7531 = vsel %vm5300, %v7296, -inf
    %v7532 = vmax.f32 %v7530, %v7531
    %v7533 = vsel %vm5300, %v7275, -inf
    %v7534 = vsel %vm5300, %v7303, -inf
    %v7535 = vmax.f32 %v7533, %v7534
    %v7536 = vsel %vm5300, %v7282, -inf
    %v7537 = vsel %vm5300, %v7310, -inf
    %v7538 = vmax.f32 %v7536, %v7537
    %v7539 = vsel %vm5300, %v7317, -inf
    %v7540 = vsel %vm5300, %v7345, -inf
    %v7541 = vmax.f32 %v7539, %v7540
    %v7542 = vsel %vm5300, %v7324, -inf
    %v7543 = vsel %vm5300, %v7352, -inf
    %v7544 = vmax.f32 %v7542, %v7543
    %v7545 = vsel %vm5300, %v7331, -inf
    %v7546 = vsel %vm5300, %v7359, -inf
    %v7547 = vmax.f32 %v7545, %v7546
    %v7548 = vsel %vm5300, %v7338, -inf
    %v7549 = vsel %vm5300, %v7366, -inf
    %v7550 = vmax.f32 %v7548, %v7549
    %v7551 = vsel %vm5300, %v7373, -inf
    %v7552 = vsel %vm5300, %v7401, -inf
    %v7553 = vmax.f32 %v7551, %v7552
    %v7554 = vsel %vm5300, %v7380, -inf
    %v7555 = vsel %vm5300, %v7408, -inf
    %v7556 = vmax.f32 %v7554, %v7555
    %v7557 = vsel %vm5300, %v7387, -inf
    %v7558 = vsel %vm5300, %v7415, -inf
    %v7559 = vmax.f32 %v7557, %v7558
    %v7560 = vsel %vm5300, %v7394, -inf
    %v7561 = vsel %vm5300, %v7422, -inf
    %v7562 = vmax.f32 %v7560, %v7561
    %v7563 = vsel %vm5300, %v7429, -inf
    %v7564 = vsel %vm5300, %v7457, -inf
    %v7565 = vmax.f32 %v7563, %v7564
    %v7566 = vsel %vm5300, %v7436, -inf
    %v7567 = vsel %vm5300, %v7464, -inf
    %v7568 = vmax.f32 %v7566, %v7567
    %v7569 = vsel %vm5300, %v7443, -inf
    %v7570 = vsel %vm5300, %v7471, -inf
    %v7571 = vmax.f32 %v7569, %v7570
    %v7572 = vsel %vm5300, %v7450, -inf
    %v7573 = vsel %vm5300, %v7478, -inf
    %v7574 = vmax.f32 %v7572, %v7573
    %v7607 = vsel %vm4860, %v7484, %v7481
    %v7608 = vsel %vm4862, %v7487, %v7607
    %v7609 = vsel %vm4864, %v7490, %v7608
    %v7610 = vsel %vm4860, %v7496, %v7493
    %v7611 = vsel %vm4862, %v7499, %v7610
    %v7612 = vsel %vm4864, %v7502, %v7611
    %v7613 = vsel %vm4860, %v7508, %v7505
    %v7614 = vsel %vm4862, %v7511, %v7613
    %v7615 = vsel %vm4864, %v7514, %v7614
    %v7616 = vsel %vm4860, %v7520, %v7517
    %v7617 = vsel %vm4862, %v7523, %v7616
    %v7618 = vsel %vm4864, %v7526, %v7617
    %v7619 = vsel %vm4860, %v7532, %v7529
    %v7620 = vsel %vm4862, %v7535, %v7619
    %v7621 = vsel %vm4864, %v7538, %v7620
    %v7622 = vsel %vm4860, %v7544, %v7541
    %v7623 = vsel %vm4862, %v7547, %v7622
    %v7624 = vsel %vm4864, %v7550, %v7623
    %v7625 = vsel %vm4860, %v7556, %v7553
    %v7626 = vsel %vm4862, %v7559, %v7625
    %v7627 = vsel %vm4864, %v7562, %v7626
    %v7628 = vsel %vm4860, %v7568, %v7565
    %v7629 = vsel %vm4862, %v7571, %v7628
    %v7630 = vsel %vm4864, %v7574, %v7629
    %s7639 = scalar_lea.vmem [#allocation3], 8
    %vm7640 = vcmask 519168
    %7641 = vst.msk [vmem:[%s7639 + $0x1] sm:$0xf] %vm7640, %v7609
    %7642 = vst.msk [vmem:[%s7639 + $0x9] sm:$0xf] %vm7640, %v7612
    %7643 = vst.msk [vmem:[%s7639 + $0x11] sm:$0xf] %vm7640, %v7615
    %7644 = vst.msk [vmem:[%s7639 + $0x19] sm:$0xf] %vm7640, %v7618
    %7645 = vst.msk [vmem:[%s7639 + $0x31] sm:$0xf] %vm7640, %v7621
    %7646 = vst.msk [vmem:[%s7639 + $0x39] sm:$0xf] %vm7640, %v7624
    %7647 = vst.msk [vmem:[%s7639 + $0x41] sm:$0xf] %vm7640, %v7627
    %7648 = vst.msk [vmem:[%s7639 + $0x49] sm:$0xf] %vm7640, %v7630
    %v7649 = vld [vmem:[#allocation3] sm:$0x3f]
    %v7650 = vld [vmem:[#allocation3 + $0x8] sm:$0x3f]
    %v7651 = vld [vmem:[#allocation3 + $0x10] sm:$0x3f]
    %v7652 = vld [vmem:[#allocation3 + $0x18] sm:$0x3f]
    %v7653 = vld [vmem:[#allocation3 + $0x30] sm:$0x3f]
    %v7654 = vld [vmem:[#allocation3 + $0x38] sm:$0x3f]
    %v7655 = vld [vmem:[#allocation3 + $0x40] sm:$0x3f]
    %v7656 = vld [vmem:[#allocation3 + $0x48] sm:$0x3f]
    %v7657 = vpack.c.bf16 %v7649, %v7649
    %v7658 = vpack.c.bf16 %v7650, %v7650
    %v7659 = vpack.c.bf16 %v7651, %v7651
    %v7660 = vpack.c.bf16 %v7652, %v7652
    %v7661 = vpack.c.bf16 %v7653, %v7653
    %v7662 = vpack.c.bf16 %v7654, %v7654
    %v7663 = vpack.c.bf16 %v7655, %v7655
    %v7664 = vpack.c.bf16 %v7656, %v7656
    %v7666 = vshrl.u32 %v7657, 16
    %v7668 = vshll.u32 %v7657, 16
    %v7670 = vrot.slane %v7668, 1
    %v7671 = vor.u32 %v7666, %v7670
    %v7673 = vshrl.u32 %v7658, 16
    %v7675 = vshll.u32 %v7658, 16
    %v7677 = vrot.slane %v7675, 1
    %v7678 = vor.u32 %v7673, %v7677
    %v7680 = vshrl.u32 %v7659, 16
    %v7682 = vshll.u32 %v7659, 16
    %v7684 = vrot.slane %v7682, 1
    %v7685 = vor.u32 %v7680, %v7684
    %v7687 = vshrl.u32 %v7660, 16
    %v7689 = vshll.u32 %v7660, 16
    %v7691 = vrot.slane %v7689, 1
    %v7692 = vor.u32 %v7687, %v7691
    %v7694 = vshrl.u32 %v7661, 16
    %v7696 = vshll.u32 %v7661, 16
    %v7698 = vrot.slane %v7696, 1
    %v7699 = vor.u32 %v7694, %v7698
    %v7701 = vshrl.u32 %v7662, 16
    %v7703 = vshll.u32 %v7662, 16
    %v7705 = vrot.slane %v7703, 1
    %v7706 = vor.u32 %v7701, %v7705
    %v7708 = vshrl.u32 %v7663, 16
    %v7710 = vshll.u32 %v7663, 16
    %v7712 = vrot.slane %v7710, 1
    %v7713 = vor.u32 %v7708, %v7712
    %v7715 = vshrl.u32 %v7664, 16
    %v7717 = vshll.u32 %v7664, 16
    %v7719 = vrot.slane %v7717, 1
    %v7720 = vor.u32 %v7715, %v7719
    %7721 = vrot.lane.b32.xlu0 %v7671, 64
    %v7722 = vpop.permute.xlu0 %7721
    %7723 = vrot.lane.b32.xlu0 %v7678, 64
    %v7724 = vpop.permute.xlu0 %7723
    %7725 = vrot.lane.b32.xlu0 %v7685, 64
    %v7726 = vpop.permute.xlu0 %7725
    %7727 = vrot.lane.b32.xlu0 %v7692, 64
    %v7728 = vpop.permute.xlu0 %7727
    %7729 = vrot.lane.b32.xlu0 %v7699, 64
    %v7730 = vpop.permute.xlu0 %7729
    %7731 = vrot.lane.b32.xlu0 %v7706, 64
    %v7732 = vpop.permute.xlu0 %7731
    %7733 = vrot.lane.b32.xlu0 %v7713, 64
    %v7734 = vpop.permute.xlu0 %7733
    %7735 = vrot.lane.b32.xlu0 %v7720, 64
    %v7736 = vpop.permute.xlu0 %7735
    %v7745 = vrot.slane %v7657, 1
    %v7746 = vrot.slane %v7658, 1
    %v7747 = vrot.slane %v7659, 1
    %v7748 = vrot.slane %v7660, 1
    %v7749 = vrot.slane %v7661, 1
    %v7750 = vrot.slane %v7662, 1
    %v7751 = vrot.slane %v7663, 1
    %v7752 = vrot.slane %v7664, 1
    %v7754 = vsel %vm5300, %v7657, %v7722
    %v7756 = vsel %vm5300, %v7658, %v7724
    %v7758 = vsel %vm5300, %v7659, %v7726
    %v7760 = vsel %vm5300, %v7660, %v7728
    %v7762 = vsel %vm5300, %v7661, %v7730
    %v7764 = vsel %vm5300, %v7662, %v7732
    %v7766 = vsel %vm5300, %v7663, %v7734
    %v7768 = vsel %vm5300, %v7664, %v7736
    %v7777 = vcombine.low %v7754, %v7745
    %v7779 = vunpack.c.l.s4 1983009808
    %v7780 = vunpack.c.0.s8 %v7779
    %v7781 = vlaneseq
    %v7782 = vshrl.u32 %v7781, 7
    %v7783 = vsub.s32 %v7780, %v7782
    %v7784 = vrot.slane %v7777, %v7783
    %v7785 = vcombine.low %v7756, %v7746
    %v7787 = vunpack.c.l.s4 1983009808
    %v7788 = vunpack.c.0.s8 %v7787
    %v7789 = vlaneseq
    %v7790 = vshrl.u32 %v7789, 7
    %v7791 = vsub.s32 %v7788, %v7790
    %v7792 = vrot.slane %v7785, %v7791
    %v7793 = vcombine.low %v7758, %v7747
    %v7795 = vunpack.c.l.s4 1983009808
    %v7796 = vunpack.c.0.s8 %v7795
    %v7797 = vlaneseq
    %v7798 = vshrl.u32 %v7797, 7
    %v7799 = vsub.s32 %v7796, %v7798
    %v7800 = vrot.slane %v7793, %v7799
    %v7801 = vcombine.low %v7760, %v7748
    %v7803 = vunpack.c.l.s4 1983009808
    %v7804 = vunpack.c.0.s8 %v7803
    %v7805 = vlaneseq
    %v7806 = vshrl.u32 %v7805, 7
    %v7807 = vsub.s32 %v7804, %v7806
    %v7808 = vrot.slane %v7801, %v7807
    %v7809 = vcombine.low %v7762, %v7749
    %v7811 = vunpack.c.l.s4 1983009808
    %v7812 = vunpack.c.0.s8 %v7811
    %v7813 = vlaneseq
    %v7814 = vshrl.u32 %v7813, 7
    %v7815 = vsub.s32 %v7812, %v7814
    %v7816 = vrot.slane %v7809, %v7815
    %v7817 = vcombine.low %v7764, %v7750
    %v7819 = vunpack.c.l.s4 1983009808
    %v7820 = vunpack.c.0.s8 %v7819
    %v7821 = vlaneseq
    %v7822 = vshrl.u32 %v7821, 7
    %v7823 = vsub.s32 %v7820, %v7822
    %v7824 = vrot.slane %v7817, %v7823
    %v7825 = vcombine.low %v7766, %v7751
    %v7827 = vunpack.c.l.s4 1983009808
    %v7828 = vunpack.c.0.s8 %v7827
    %v7829 = vlaneseq
    %v7830 = vshrl.u32 %v7829, 7
    %v7831 = vsub.s32 %v7828, %v7830
    %v7832 = vrot.slane %v7825, %v7831
    %v7833 = vcombine.low %v7768, %v7752
    %v7835 = vunpack.c.l.s4 1983009808
    %v7836 = vunpack.c.0.s8 %v7835
    %v7837 = vlaneseq
    %v7838 = vshrl.u32 %v7837, 7
    %v7839 = vsub.s32 %v7836, %v7838
    %v7840 = vrot.slane %v7833, %v7839
    %v7841 = vld [vmem:[#allocation14] sm:$0xf]
    %v7842 = vld [vmem:[#allocation14 + $0x4] sm:$0xf]
    %v7843 = vld [vmem:[#allocation14 + $0x8] sm:$0xf]
    %v7844 = vld [vmem:[#allocation14 + $0xc] sm:$0xf]
    %v7845 = vld [vmem:[#allocation14 + $0x10] sm:$0xf]
    %v7846 = vld [vmem:[#allocation14 + $0x14] sm:$0xf]
    %v7847 = vld [vmem:[#allocation14 + $0x18] sm:$0xf]
    %v7848 = vld [vmem:[#allocation14 + $0x1c] sm:$0xf]
    %v7849 = vld [vmem:[#allocation14 + $0x20] sm:$0xf]
    %v7850 = vld [vmem:[#allocation14 + $0x24] sm:$0xf]
    %v7851 = vld [vmem:[#allocation14 + $0x28] sm:$0xf]
    %v7852 = vld [vmem:[#allocation14 + $0x2c] sm:$0xf]
    %v7853 = vld [vmem:[#allocation14 + $0x30] sm:$0xf]
    %v7854 = vld [vmem:[#allocation14 + $0x34] sm:$0xf]
    %v7855 = vld [vmem:[#allocation14 + $0x38] sm:$0xf]
    %v7856 = vld [vmem:[#allocation14 + $0x3c] sm:$0xf]
    %v7857 = vld [vmem:[#allocation14 + $0x40] sm:$0xf]
    %v7858 = vld [vmem:[#allocation14 + $0x44] sm:$0xf]
    %v7859 = vld [vmem:[#allocation14 + $0x48] sm:$0xf]
    %v7860 = vld [vmem:[#allocation14 + $0x4c] sm:$0xf]
    %v7861 = vld [vmem:[#allocation14 + $0x50] sm:$0xf]
    %v7862 = vld [vmem:[#allocation14 + $0x54] sm:$0xf]
    %v7863 = vld [vmem:[#allocation14 + $0x58] sm:$0xf]
    %v7864 = vld [vmem:[#allocation14 + $0x5c] sm:$0xf]
    %v7865 = vld [vmem:[%s7639] sm:$0x3f]
    %v7866 = vld [vmem:[%s7639 + $0x8] sm:$0x3f]
    %v7867 = vld [vmem:[%s7639 + $0x10] sm:$0x3f]
    %v7868 = vld [vmem:[%s7639 + $0x18] sm:$0x3f]
    %v7869 = vld [vmem:[%s7639 + $0x30] sm:$0x3f]
    %v7870 = vld [vmem:[%s7639 + $0x38] sm:$0x3f]
    %v7871 = vld [vmem:[%s7639 + $0x40] sm:$0x3f]
    %v7872 = vld [vmem:[%s7639 + $0x48] sm:$0x3f]
    %v7873 = vpack.c.bf16 %v7865, %v7865
    %v7874 = vpack.c.bf16 %v7866, %v7866
    %v7875 = vpack.c.bf16 %v7867, %v7867
    %v7876 = vpack.c.bf16 %v7868, %v7868
    %v7877 = vpack.c.bf16 %v7869, %v7869
    %v7878 = vpack.c.bf16 %v7870, %v7870
    %v7879 = vpack.c.bf16 %v7871, %v7871
    %v7880 = vpack.c.bf16 %v7872, %v7872
    %v7882 = vshrl.u32 %v7873, 16
    %v7884 = vshll.u32 %v7873, 16
    %v7886 = vrot.slane %v7884, 1
    %v7887 = vor.u32 %v7882, %v7886
    %v7889 = vshrl.u32 %v7874, 16
    %v7891 = vshll.u32 %v7874, 16
    %v7893 = vrot.slane %v7891, 1
    %v7894 = vor.u32 %v7889, %v7893
    %v7896 = vshrl.u32 %v7875, 16
    %v7898 = vshll.u32 %v7875, 16
    %v7900 = vrot.slane %v7898, 1
    %v7901 = vor.u32 %v7896, %v7900
    %v7903 = vshrl.u32 %v7876, 16
    %v7905 = vshll.u32 %v7876, 16
    %v7907 = vrot.slane %v7905, 1
    %v7908 = vor.u32 %v7903, %v7907
    %v7910 = vshrl.u32 %v7877, 16
    %v7912 = vshll.u32 %v7877, 16
    %v7914 = vrot.slane %v7912, 1
    %v7915 = vor.u32 %v7910, %v7914
    %v7917 = vshrl.u32 %v7878, 16
    %v7919 = vshll.u32 %v7878, 16
    %v7921 = vrot.slane %v7919, 1
    %v7922 = vor.u32 %v7917, %v7921
    %v7924 = vshrl.u32 %v7879, 16
    %v7926 = vshll.u32 %v7879, 16
    %v7928 = vrot.slane %v7926, 1
    %v7929 = vor.u32 %v7924, %v7928
    %v7931 = vshrl.u32 %v7880, 16
    %v7933 = vshll.u32 %v7880, 16
    %v7935 = vrot.slane %v7933, 1
    %v7936 = vor.u32 %v7931, %v7935
    %7937 = vrot.lane.b32.xlu0 %v7887, 64
    %v7938 = vpop.permute.xlu0 %7937
    %7939 = vrot.lane.b32.xlu0 %v7894, 64
    %v7940 = vpop.permute.xlu0 %7939
    %7941 = vrot.lane.b32.xlu0 %v7901, 64
    %v7942 = vpop.permute.xlu0 %7941
    %7943 = vrot.lane.b32.xlu0 %v7908, 64
    %v7944 = vpop.permute.xlu0 %7943
    %7945 = vrot.lane.b32.xlu0 %v7915, 64
    %v7946 = vpop.permute.xlu0 %7945
    %7947 = vrot.lane.b32.xlu0 %v7922, 64
    %v7948 = vpop.permute.xlu0 %7947
    %7949 = vrot.lane.b32.xlu0 %v7929, 64
    %v7950 = vpop.permute.xlu0 %7949
    %7951 = vrot.lane.b32.xlu0 %v7936, 64
    %v7952 = vpop.permute.xlu0 %7951
    %v7961 = vrot.slane %v7873, 1
    %v7962 = vrot.slane %v7874, 1
    %v7963 = vrot.slane %v7875, 1
    %v7964 = vrot.slane %v7876, 1
    %v7965 = vrot.slane %v7877, 1
    %v7966 = vrot.slane %v7878, 1
    %v7967 = vrot.slane %v7879, 1
    %v7968 = vrot.slane %v7880, 1
    %v7970 = vsel %vm5300, %v7873, %v7938
    %v7972 = vsel %vm5300, %v7874, %v7940
    %v7974 = vsel %vm5300, %v7875, %v7942
    %v7976 = vsel %vm5300, %v7876, %v7944
    %v7978 = vsel %vm5300, %v7877, %v7946
    %v7980 = vsel %vm5300, %v7878, %v7948
    %v7982 = vsel %vm5300, %v7879, %v7950
    %v7984 = vsel %vm5300, %v7880, %v7952
    %v7993 = vcombine.low %v7970, %v7961
    %v7995 = vunpack.c.l.s4 1983009808
    %v7996 = vunpack.c.0.s8 %v7995
    %v7997 = vlaneseq
    %v7998 = vshrl.u32 %v7997, 7
    %v7999 = vsub.s32 %v7996, %v7998
    %v8000 = vrot.slane %v7993, %v7999
    %v8001 = vcombine.low %v7972, %v7962
    %v8003 = vunpack.c.l.s4 1983009808
    %v8004 = vunpack.c.0.s8 %v8003
    %v8005 = vlaneseq
    %v8006 = vshrl.u32 %v8005, 7
    %v8007 = vsub.s32 %v8004, %v8006
    %v8008 = vrot.slane %v8001, %v8007
    %v8009 = vcombine.low %v7974, %v7963
    %v8011 = vunpack.c.l.s4 1983009808
    %v8012 = vunpack.c.0.s8 %v8011
    %v8013 = vlaneseq
    %v8014 = vshrl.u32 %v8013, 7
    %v8015 = vsub.s32 %v8012, %v8014
    %v8016 = vrot.slane %v8009, %v8015
    %v8017 = vcombine.low %v7976, %v7964
    %v8019 = vunpack.c.l.s4 1983009808
    %v8020 = vunpack.c.0.s8 %v8019
    %v8021 = vlaneseq
    %v8022 = vshrl.u32 %v8021, 7
    %v8023 = vsub.s32 %v8020, %v8022
    %v8024 = vrot.slane %v8017, %v8023
    %v8025 = vcombine.low %v7978, %v7965
    %v8027 = vunpack.c.l.s4 1983009808
    %v8028 = vunpack.c.0.s8 %v8027
    %v8029 = vlaneseq
    %v8030 = vshrl.u32 %v8029, 7
    %v8031 = vsub.s32 %v8028, %v8030
    %v8032 = vrot.slane %v8025, %v8031
    %v8033 = vcombine.low %v7980, %v7966
    %v8035 = vunpack.c.l.s4 1983009808
    %v8036 = vunpack.c.0.s8 %v8035
    %v8037 = vlaneseq
    %v8038 = vshrl.u32 %v8037, 7
    %v8039 = vsub.s32 %v8036, %v8038
    %v8040 = vrot.slane %v8033, %v8039
    %v8041 = vcombine.low %v7982, %v7967
    %v8043 = vunpack.c.l.s4 1983009808
    %v8044 = vunpack.c.0.s8 %v8043
    %v8045 = vlaneseq
    %v8046 = vshrl.u32 %v8045, 7
    %v8047 = vsub.s32 %v8044, %v8046
    %v8048 = vrot.slane %v8041, %v8047
    %v8049 = vcombine.low %v7984, %v7968
    %v8051 = vunpack.c.l.s4 1983009808
    %v8052 = vunpack.c.0.s8 %v8051
    %v8053 = vlaneseq
    %v8054 = vshrl.u32 %v8053, 7
    %v8055 = vsub.s32 %v8052, %v8054
    %v8056 = vrot.slane %v8049, %v8055
    %s8057 = scalar_lea.vmem [#allocation14], 96
    %v8058 = vld [vmem:[%s8057] sm:$0xf]
    %v8059 = vld [vmem:[%s8057 + $0x4] sm:$0xf]
    %v8060 = vld [vmem:[%s8057 + $0x8] sm:$0xf]
    %v8061 = vld [vmem:[%s8057 + $0xc] sm:$0xf]
    %v8062 = vld [vmem:[%s8057 + $0x10] sm:$0xf]
    %v8063 = vld [vmem:[%s8057 + $0x14] sm:$0xf]
    %v8064 = vld [vmem:[%s8057 + $0x18] sm:$0xf]
    %v8065 = vld [vmem:[%s8057 + $0x1c] sm:$0xf]
    %v8066 = vld [vmem:[%s8057 + $0x20] sm:$0xf]
    %v8067 = vld [vmem:[%s8057 + $0x24] sm:$0xf]
    %v8068 = vld [vmem:[%s8057 + $0x28] sm:$0xf]
    %v8069 = vld [vmem:[%s8057 + $0x2c] sm:$0xf]
    %v8070 = vld [vmem:[%s8057 + $0x30] sm:$0xf]
    %v8071 = vld [vmem:[%s8057 + $0x34] sm:$0xf]
    %v8072 = vld [vmem:[%s8057 + $0x38] sm:$0xf]
    %v8073 = vld [vmem:[%s8057 + $0x3c] sm:$0xf]
    %v8074 = vld [vmem:[%s8057 + $0x40] sm:$0xf]
    %v8075 = vld [vmem:[%s8057 + $0x44] sm:$0xf]
    %v8076 = vld [vmem:[%s8057 + $0x48] sm:$0xf]
    %v8077 = vld [vmem:[%s8057 + $0x4c] sm:$0xf]
    %v8078 = vld [vmem:[%s8057 + $0x50] sm:$0xf]
    %v8079 = vld [vmem:[%s8057 + $0x54] sm:$0xf]
    %v8080 = vld [vmem:[%s8057 + $0x58] sm:$0xf]
    %v8081 = vld [vmem:[%s8057 + $0x5c] sm:$0xf]
    %v8082 = vcombine.low %v8000, %v8008
    %v8083 = vcombine.low %v8016, %v8024
    %v8085 = vunpack.c.l.s4 1983009808
    %v8086 = vunpack.c.0.s8 %v8085
    %v8087 = vlaneseq
    %v8088 = vshrl.u32 %v8087, 7
    %v8089 = vsub.s32 %v8086, %v8088
    %v8090 = vrot.slane %v8082, %v8089
    %v8092 = vunpack.c.l.s4 1983009808
    %v8093 = vunpack.c.0.s8 %v8092
    %v8094 = vlaneseq
    %v8095 = vshrl.u32 %v8094, 7
    %v8096 = vsub.s32 %v8093, %v8095
    %v8097 = vrot.slane %v8083, %v8096
    %v8098 = vcombine.low %v8090, %v8097
    %v8099 = vcombine.high %v8090, %v8097
    %v8100 = vcombine.low %v8032, %v8040
    %v8101 = vcombine.low %v8048, %v8056
    %v8103 = vunpack.c.l.s4 1983009808
    %v8104 = vunpack.c.0.s8 %v8103
    %v8105 = vlaneseq
    %v8106 = vshrl.u32 %v8105, 7
    %v8107 = vsub.s32 %v8104, %v8106
    %v8108 = vrot.slane %v8100, %v8107
    %v8110 = vunpack.c.l.s4 1983009808
    %v8111 = vunpack.c.0.s8 %v8110
    %v8112 = vlaneseq
    %v8113 = vshrl.u32 %v8112, 7
    %v8114 = vsub.s32 %v8111, %v8113
    %v8115 = vrot.slane %v8101, %v8114
    %v8116 = vcombine.low %v8108, %v8115
    %v8117 = vcombine.high %v8108, %v8115
    %v8144 = vunpack.c.l.b16 %v8058
    %v8145 = vunpack.c.l.b16 %v8059
    %v8146 = vunpack.c.l.b16 %v8060
    %v8147 = vunpack.c.l.b16 %v8061
    %v8148 = vunpack.c.l.b16 %v8062
    %v8149 = vunpack.c.l.b16 %v8063
    %v8150 = vunpack.c.l.b16 %v8064
    %v8151 = vunpack.c.l.b16 %v8065
    %v8152 = vunpack.c.l.b16 %v8066
    %v8153 = vunpack.c.l.b16 %v8067
    %v8154 = vunpack.c.l.b16 %v8068
    %v8155 = vunpack.c.l.b16 %v8069
    %v8156 = vunpack.c.l.b16 %v8070
    %v8157 = vunpack.c.l.b16 %v8071
    %v8158 = vunpack.c.l.b16 %v8072
    %v8159 = vunpack.c.l.b16 %v8073
    %v8160 = vunpack.c.l.b16 %v8074
    %v8161 = vunpack.c.l.b16 %v8075
    %v8162 = vunpack.c.l.b16 %v8076
    %v8163 = vunpack.c.l.b16 %v8077
    %v8164 = vunpack.c.l.b16 %v8078
    %v8165 = vunpack.c.l.b16 %v8079
    %v8166 = vunpack.c.l.b16 %v8080
    %v8167 = vunpack.c.l.b16 %v8081
    %v8168 = vpack.c.b16 %v8145, %v8144
    %v8169 = vpack.c.b16 %v8147, %v8146
    %v8170 = vpack.c.b16 %v8149, %v8148
    %v8171 = vpack.c.b16 %v8151, %v8150
    %v8172 = vpack.c.b16 %v8153, %v8152
    %v8173 = vpack.c.b16 %v8155, %v8154
    %v8174 = vpack.c.b16 %v8157, %v8156
    %v8175 = vpack.c.b16 %v8159, %v8158
    %v8176 = vpack.c.b16 %v8161, %v8160
    %v8177 = vpack.c.b16 %v8163, %v8162
    %v8178 = vpack.c.b16 %v8165, %v8164
    %v8179 = vpack.c.b16 %v8167, %v8166
    %v8193 = vsel %vm5300, %v8099, 0
    %v8196 = vsel %vm5300, %v8117, 0
    %8198 = vmatprep.subr.bf16.mxu0 0
    %8199 = vmatpush1.bf16.msra.mxu0 %v8168
    %8200 = vmatprep.subr.bf16.mxu0 0
    %8201 = vmatpush1.bf16.msra.mxu0 %v8169
    %8202 = vmatprep.subr.bf16.mxu0 0
    %8203 = vmatpush1.bf16.msra.mxu0 %v8170
    %8204 = vmatprep.subr.bf16.mxu0 0
    %8205 = vmatpush1.bf16.msra.mxu0 %v8171
    %8206 = vmatprep.subr.bf16.mxu0 0
    %8207 = vmatpush1.bf16.msra.mxu0 %v8172
    %8208 = vmatprep.subr.bf16.mxu0 0
    %8209 = vmatpush1.bf16.msra.mxu0 %v8173
    %8210 = vmatprep.subr.bf16.mxu0 0
    %8211 = vmatpush1.bf16.msra.mxu0 %v8174
    %8212 = vmatprep.subr.bf16.mxu0 0
    %8213 = vmatpush1.bf16.msra.mxu0 %v8175
    %8214 = vmatprep.subr.bf16.mxu0 0
    %8215 = vmatpush1.bf16.msra.mxu0 %v8176
    %8216 = vmatprep.subr.bf16.mxu0 0
    %8217 = vmatpush1.bf16.msra.mxu0 %v8177
    %8218 = vmatprep.subr.bf16.mxu0 0
    %8219 = vmatpush1.bf16.msra.mxu0 %v8178
    %8220 = vmatprep.subr.bf16.mxu0 0
    %8221 = vmatpush1.bf16.msra.mxu0 %v8179
    %8222 = vmatprep.subr.bf16.mxu0 0
    %8223 = vmatpush1.bf16.msra.mxu0 0
    %8224 = vmatprep.subr.bf16.mxu0 0
    %8225 = vmatpush1.bf16.msra.mxu0 0
    %8226 = vmatprep.subr.bf16.mxu0 0
    %8227 = vmatpush1.bf16.msra.mxu0 0
    %8228 = vmatprep.subr.bf16.mxu0 0
    %8229 = vmatpush1.bf16.msra.mxu0 0
    %8230 = vmatprep.mubr.bf16.mxu0 %v8193
    %8231 = vmatmul.mubr.bf16.gmra.mrb[0].mxu0 %v8098
    %v8232 = vpop.f32.mrb[0].mxu0
    %v8233 = vadd.f32 0.0, %v8232
    %v8234 = vpop.f32.mrb[0].mxu0
    %v8235 = vpop.f32.mrb[0].mxu0
    %v8236 = vadd.f32 0.0, %v8235
    %v8237 = vpop.f32.mrb[0].mxu0
    %8238 = vmatprep.mubr.bf16.mxu0 %v8196
    %8239 = vmatmul.mubr.bf16.gmra.mrb[0].mxu0 %v8116
    %v8240 = vpop.f32.mrb[0].mxu0
    %v8241 = vadd.f32 0.0, %v8240
    %v8242 = vpop.f32.mrb[0].mxu0
    %v8243 = vpop.f32.mrb[0].mxu0
    %v8244 = vadd.f32 0.0, %v8243
    %v8245 = vpop.f32.mrb[0].mxu0
    %8246 = vdwg.mxu0
    %v8247 = vcombine.low %v7784, %v7792
    %v8248 = vcombine.low %v7800, %v7808
    %v8250 = vunpack.c.l.s4 1983009808
    %v8251 = vunpack.c.0.s8 %v8250
    %v8252 = vlaneseq
    %v8253 = vshrl.u32 %v8252, 7
    %v8254 = vsub.s32 %v8251, %v8253
    %v8255 = vrot.slane %v8247, %v8254
    %v8257 = vunpack.c.l.s4 1983009808
    %v8258 = vunpack.c.0.s8 %v8257
    %v8259 = vlaneseq
    %v8260 = vshrl.u32 %v8259, 7
    %v8261 = vsub.s32 %v8258, %v8260
    %v8262 = vrot.slane %v8248, %v8261
    %v8263 = vcombine.low %v8255, %v8262
    %v8264 = vcombine.high %v8255, %v8262
    %v8265 = vcombine.low %v7816, %v7824
    %v8266 = vcombine.low %v7832, %v7840
    %v8268 = vunpack.c.l.s4 1983009808
    %v8269 = vunpack.c.0.s8 %v8268
    %v8270 = vlaneseq
    %v8271 = vshrl.u32 %v8270, 7
    %v8272 = vsub.s32 %v8269, %v8271
    %v8273 = vrot.slane %v8265, %v8272
    %v8275 = vunpack.c.l.s4 1983009808
    %v8276 = vunpack.c.0.s8 %v8275
    %v8277 = vlaneseq
    %v8278 = vshrl.u32 %v8277, 7
    %v8279 = vsub.s32 %v8276, %v8278
    %v8280 = vrot.slane %v8266, %v8279
    %v8281 = vcombine.low %v8273, %v8280
    %v8282 = vcombine.high %v8273, %v8280
    %v8309 = vunpack.c.l.b16 %v7841
    %v8310 = vunpack.c.l.b16 %v7842
    %v8311 = vunpack.c.l.b16 %v7843
    %v8312 = vunpack.c.l.b16 %v7844
    %v8313 = vunpack.c.l.b16 %v7845
    %v8314 = vunpack.c.l.b16 %v7846
    %v8315 = vunpack.c.l.b16 %v7847
    %v8316 = vunpack.c.l.b16 %v7848
    %v8317 = vunpack.c.l.b16 %v7849
    %v8318 = vunpack.c.l.b16 %v7850
    %v8319 = vunpack.c.l.b16 %v7851
    %v8320 = vunpack.c.l.b16 %v7852
    %v8321 = vunpack.c.l.b16 %v7853
    %v8322 = vunpack.c.l.b16 %v7854
    %v8323 = vunpack.c.l.b16 %v7855
    %v8324 = vunpack.c.l.b16 %v7856
    %v8325 = vunpack.c.l.b16 %v7857
    %v8326 = vunpack.c.l.b16 %v7858
    %v8327 = vunpack.c.l.b16 %v7859
    %v8328 = vunpack.c.l.b16 %v7860
    %v8329 = vunpack.c.l.b16 %v7861
    %v8330 = vunpack.c.l.b16 %v7862
    %v8331 = vunpack.c.l.b16 %v7863
    %v8332 = vunpack.c.l.b16 %v7864
    %v8333 = vpack.c.b16 %v8310, %v8309
    %v8334 = vpack.c.b16 %v8312, %v8311
    %v8335 = vpack.c.b16 %v8314, %v8313
    %v8336 = vpack.c.b16 %v8316, %v8315
    %v8337 = vpack.c.b16 %v8318, %v8317
    %v8338 = vpack.c.b16 %v8320, %v8319
    %v8339 = vpack.c.b16 %v8322, %v8321
    %v8340 = vpack.c.b16 %v8324, %v8323
    %v8341 = vpack.c.b16 %v8326, %v8325
    %v8342 = vpack.c.b16 %v8328, %v8327
    %v8343 = vpack.c.b16 %v8330, %v8329
    %v8344 = vpack.c.b16 %v8332, %v8331
    %v8358 = vsel %vm5300, %v8264, 0
    %v8361 = vsel %vm5300, %v8282, 0
    %8363 = vmatprep.subr.bf16.mxu0 0
    %8364 = vmatpush1.bf16.msra.mxu0 %v8333
    %8365 = vmatprep.subr.bf16.mxu0 0
    %8366 = vmatpush1.bf16.msra.mxu0 %v8334
    %8367 = vmatprep.subr.bf16.mxu0 0
    %8368 = vmatpush1.bf16.msra.mxu0 %v8335
    %8369 = vmatprep.subr.bf16.mxu0 0
    %8370 = vmatpush1.bf16.msra.mxu0 %v8336
    %8371 = vmatprep.subr.bf16.mxu0 0
    %8372 = vmatpush1.bf16.msra.mxu0 %v8337
    %8373 = vmatprep.subr.bf16.mxu0 0
    %8374 = vmatpush1.bf16.msra.mxu0 %v8338
    %8375 = vmatprep.subr.bf16.mxu0 0
    %8376 = vmatpush1.bf16.msra.mxu0 %v8339
    %8377 = vmatprep.subr.bf16.mxu0 0
    %8378 = vmatpush1.bf16.msra.mxu0 %v8340
    %8379 = vmatprep.subr.bf16.mxu0 0
    %8380 = vmatpush1.bf16.msra.mxu0 %v8341
    %8381 = vmatprep.subr.bf16.mxu0 0
    %8382 = vmatpush1.bf16.msra.mxu0 %v8342
    %8383 = vmatprep.subr.bf16.mxu0 0
    %8384 = vmatpush1.bf16.msra.mxu0 %v8343
    %8385 = vmatprep.subr.bf16.mxu0 0
    %8386 = vmatpush1.bf16.msra.mxu0 %v8344
    %8387 = vmatprep.subr.bf16.mxu0 0
    %8388 = vmatpush1.bf16.msra.mxu0 0
    %8389 = vmatprep.subr.bf16.mxu0 0
    %8390 = vmatpush1.bf16.msra.mxu0 0
    %8391 = vmatprep.subr.bf16.mxu0 0
    %8392 = vmatpush1.bf16.msra.mxu0 0
    %8393 = vmatprep.subr.bf16.mxu0 0
    %8394 = vmatpush1.bf16.msra.mxu0 0
    %8395 = vmatprep.mubr.bf16.mxu0 %v8358
    %8396 = vmatmul.mubr.bf16.gmra.mrb[0].mxu0 %v8263
    %v8397 = vpop.f32.mrb[0].mxu0
    %v8398 = vadd.f32 %v8233, %v8397
    %v8399 = vpop.f32.mrb[0].mxu0
    %v8400 = vpop.f32.mrb[0].mxu0
    %v8401 = vadd.f32 %v8236, %v8400
    %v8402 = vpop.f32.mrb[0].mxu0
    %8403 = vmatprep.mubr.bf16.mxu0 %v8361
    %8404 = vmatmul.mubr.bf16.gmra.mrb[0].mxu0 %v8281
    %v8405 = vpop.f32.mrb[0].mxu0
    %v8406 = vadd.f32 %v8241, %v8405
    %v8407 = vpop.f32.mrb[0].mxu0
    %v8408 = vpop.f32.mrb[0].mxu0
    %v8409 = vadd.f32 %v8244, %v8408
    %v8410 = vpop.f32.mrb[0].mxu0
    %8411 = vdwg.mxu0
    %s8412 = scalar_lea.vmem [#allocation3], 16
    %v8413 = vld [vmem:[%s8412] sm:$0x3f]
    %v8414 = vld [vmem:[%s8412 + $0x8] sm:$0x3f]
    %v8415 = vld [vmem:[%s8412 + $0x10] sm:$0x3f]
    %v8416 = vld [vmem:[%s8412 + $0x18] sm:$0x3f]
    %v8417 = vld [vmem:[%s8412 + $0x30] sm:$0x3f]
    %v8418 = vld [vmem:[%s8412 + $0x38] sm:$0x3f]
    %v8419 = vld [vmem:[%s8412 + $0x40] sm:$0x3f]
    %v8420 = vld [vmem:[%s8412 + $0x48] sm:$0x3f]
    %v8421 = vpack.c.bf16 %v8413, %v8413
    %v8422 = vpack.c.bf16 %v8414, %v8414
    %v8423 = vpack.c.bf16 %v8415, %v8415
    %v8424 = vpack.c.bf16 %v8416, %v8416
    %v8425 = vpack.c.bf16 %v8417, %v8417
    %v8426 = vpack.c.bf16 %v8418, %v8418
    %v8427 = vpack.c.bf16 %v8419, %v8419
    %v8428 = vpack.c.bf16 %v8420, %v8420
    %v8430 = vshrl.u32 %v8421, 16
    %v8432 = vshll.u32 %v8421, 16
    %v8434 = vrot.slane %v8432, 1
    %v8435 = vor.u32 %v8430, %v8434
    %v8437 = vshrl.u32 %v8422, 16
    %v8439 = vshll.u32 %v8422, 16
    %v8441 = vrot.slane %v8439, 1
    %v8442 = vor.u32 %v8437, %v8441
    %v8444 = vshrl.u32 %v8423, 16
    %v8446 = vshll.u32 %v8423, 16
    %v8448 = vrot.slane %v8446, 1
    %v8449 = vor.u32 %v8444, %v8448
    %v8451 = vshrl.u32 %v8424, 16
    %v8453 = vshll.u32 %v8424, 16
    %v8455 = vrot.slane %v8453, 1
    %v8456 = vor.u32 %v8451, %v8455
    %v8458 = vshrl.u32 %v8425, 16
    %v8460 = vshll.u32 %v8425, 16
    %v8462 = vrot.slane %v8460, 1
    %v8463 = vor.u32 %v8458, %v8462
    %v8465 = vshrl.u32 %v8426, 16
    %v8467 = vshll.u32 %v8426, 16
    %v8469 = vrot.slane %v8467, 1
    %v8470 = vor.u32 %v8465, %v8469
    %v8472 = vshrl.u32 %v8427, 16
    %v8474 = vshll.u32 %v8427, 16
    %v8476 = vrot.slane %v8474, 1
    %v8477 = vor.u32 %v8472, %v8476
    %v8479 = vshrl.u32 %v8428, 16
    %v8481 = vshll.u32 %v8428, 16
    %v8483 = vrot.slane %v8481, 1
    %v8484 = vor.u32 %v8479, %v8483
    %8485 = vrot.lane.b32.xlu0 %v8435, 64
    %v8486 = vpop.permute.xlu0 %8485
    %8487 = vrot.lane.b32.xlu0 %v8442, 64
    %v8488 = vpop.permute.xlu0 %8487
    %8489 = vrot.lane.b32.xlu0 %v8449, 64
    %v8490 = vpop.permute.xlu0 %8489
    %8491 = vrot.lane.b32.xlu0 %v8456, 64
    %v8492 = vpop.permute.xlu0 %8491
    %8493 = vrot.lane.b32.xlu0 %v8463, 64
    %v8494 = vpop.permute.xlu0 %8493
    %8495 = vrot.lane.b32.xlu0 %v8470, 64
    %v8496 = vpop.permute.xlu0 %8495
    %8497 = vrot.lane.b32.xlu0 %v8477, 64
    %v8498 = vpop.permute.xlu0 %8497
    %8499 = vrot.lane.b32.xlu0 %v8484, 64
    %v8500 = vpop.permute.xlu0 %8499
    %v8509 = vrot.slane %v8421, 1
    %v8510 = vrot.slane %v8422, 1
    %v8511 = vrot.slane %v8423, 1
    %v8512 = vrot.slane %v8424, 1
    %v8513 = vrot.slane %v8425, 1
    %v8514 = vrot.slane %v8426, 1
    %v8515 = vrot.slane %v8427, 1
    %v8516 = vrot.slane %v8428, 1
    %v8518 = vsel %vm5300, %v8421, %v8486
    %v8520 = vsel %vm5300, %v8422, %v8488
    %v8522 = vsel %vm5300, %v8423, %v8490
    %v8524 = vsel %vm5300, %v8424, %v8492
    %v8526 = vsel %vm5300, %v8425, %v8494
    %v8528 = vsel %vm5300, %v8426, %v8496
    %v8530 = vsel %vm5300, %v8427, %v8498
    %v8532 = vsel %vm5300, %v8428, %v8500
    %v8541 = vcombine.low %v8518, %v8509
    %v8543 = vunpack.c.l.s4 1983009808
    %v8544 = vunpack.c.0.s8 %v8543
    %v8545 = vlaneseq
    %v8546 = vshrl.u32 %v8545, 7
    %v8547 = vsub.s32 %v8544, %v8546
    %v8548 = vrot.slane %v8541, %v8547
    %v8549 = vcombine.low %v8520, %v8510
    %v8551 = vunpack.c.l.s4 1983009808
    %v8552 = vunpack.c.0.s8 %v8551
    %v8553 = vlaneseq
    %v8554 = vshrl.u32 %v8553, 7
    %v8555 = vsub.s32 %v8552, %v8554
    %v8556 = vrot.slane %v8549, %v8555
    %v8557 = vcombine.low %v8522, %v8511
    %v8559 = vunpack.c.l.s4 1983009808
    %v8560 = vunpack.c.0.s8 %v8559
    %v8561 = vlaneseq
    %v8562 = vshrl.u32 %v8561, 7
    %v8563 = vsub.s32 %v8560, %v8562
    %v8564 = vrot.slane %v8557, %v8563
    %v8565 = vcombine.low %v8524, %v8512
    %v8567 = vunpack.c.l.s4 1983009808
    %v8568 = vunpack.c.0.s8 %v8567
    %v8569 = vlaneseq
    %v8570 = vshrl.u32 %v8569, 7
    %v8571 = vsub.s32 %v8568, %v8570
    %v8572 = vrot.slane %v8565, %v8571
    %v8573 = vcombine.low %v8526, %v8513
    %v8575 = vunpack.c.l.s4 1983009808
    %v8576 = vunpack.c.0.s8 %v8575
    %v8577 = vlaneseq
    %v8578 = vshrl.u32 %v8577, 7
    %v8579 = vsub.s32 %v8576, %v8578
    %v8580 = vrot.slane %v8573, %v8579
    %v8581 = vcombine.low %v8528, %v8514
    %v8583 = vunpack.c.l.s4 1983009808
    %v8584 = vunpack.c.0.s8 %v8583
    %v8585 = vlaneseq
    %v8586 = vshrl.u32 %v8585, 7
    %v8587 = vsub.s32 %v8584, %v8586
    %v8588 = vrot.slane %v8581, %v8587
    %v8589 = vcombine.low %v8530, %v8515
    %v8591 = vunpack.c.l.s4 1983009808
    %v8592 = vunpack.c.0.s8 %v8591
    %v8593 = vlaneseq
    %v8594 = vshrl.u32 %v8593, 7
    %v8595 = vsub.s32 %v8592, %v8594
    %v8596 = vrot.slane %v8589, %v8595
    %v8597 = vcombine.low %v8532, %v8516
    %v8599 = vunpack.c.l.s4 1983009808
    %v8600 = vunpack.c.0.s8 %v8599
    %v8601 = vlaneseq
    %v8602 = vshrl.u32 %v8601, 7
    %v8603 = vsub.s32 %v8600, %v8602
    %v8604 = vrot.slane %v8597, %v8603
    %s8605 = scalar_lea.vmem [#allocation14], 192
    %v8606 = vld [vmem:[%s8605] sm:$0xf]
    %v8607 = vld [vmem:[%s8605 + $0x4] sm:$0xf]
    %v8608 = vld [vmem:[%s8605 + $0x8] sm:$0xf]
    %v8609 = vld [vmem:[%s8605 + $0xc] sm:$0xf]
    %v8610 = vld [vmem:[%s8605 + $0x10] sm:$0xf]
    %v8611 = vld [vmem:[%s8605 + $0x14] sm:$0xf]
    %v8612 = vld [vmem:[%s8605 + $0x18] sm:$0xf]
    %v8613 = vld [vmem:[%s8605 + $0x1c] sm:$0xf]
    %v8614 = vld [vmem:[%s8605 + $0x20] sm:$0xf]
    %v8615 = vld [vmem:[%s8605 + $0x24] sm:$0xf]
    %v8616 = vld [vmem:[%s8605 + $0x28] sm:$0xf]
    %v8617 = vld [vmem:[%s8605 + $0x2c] sm:$0xf]
    %v8618 = vld [vmem:[%s8605 + $0x30] sm:$0xf]
    %v8619 = vld [vmem:[%s8605 + $0x34] sm:$0xf]
    %v8620 = vld [vmem:[%s8605 + $0x38] sm:$0xf]
    %v8621 = vld [vmem:[%s8605 + $0x3c] sm:$0xf]
    %v8622 = vld [vmem:[%s8605 + $0x40] sm:$0xf]
    %v8623 = vld [vmem:[%s8605 + $0x44] sm:$0xf]
    %v8624 = vld [vmem:[%s8605 + $0x48] sm:$0xf]
    %v8625 = vld [vmem:[%s8605 + $0x4c] sm:$0xf]
    %v8626 = vld [vmem:[%s8605 + $0x50] sm:$0xf]
    %v8627 = vld [vmem:[%s8605 + $0x54] sm:$0xf]
    %v8628 = vld [vmem:[%s8605 + $0x58] sm:$0xf]
    %v8629 = vld [vmem:[%s8605 + $0x5c] sm:$0xf]
    %v8630 = vcombine.low %v8548, %v8556
    %v8631 = vcombine.low %v8564, %v8572
    %v8633 = vunpack.c.l.s4 1983009808
    %v8634 = vunpack.c.0.s8 %v8633
    %v8635 = vlaneseq
    %v8636 = vshrl.u32 %v8635, 7
    %v8637 = vsub.s32 %v8634, %v8636
    %v8638 = vrot.slane %v8630, %v8637
    %v8640 = vunpack.c.l.s4 1983009808
    %v8641 = vunpack.c.0.s8 %v8640
    %v8642 = vlaneseq
    %v8643 = vshrl.u32 %v8642, 7
    %v8644 = vsub.s32 %v8641, %v8643
    %v8645 = vrot.slane %v8631, %v8644
    %v8646 = vcombine.low %v8638, %v8645
    %v8647 = vcombine.high %v8638, %v8645
    %v8648 = vcombine.low %v8580, %v8588
    %v8649 = vcombine.low %v8596, %v8604
    %v8651 = vunpack.c.l.s4 1983009808
    %v8652 = vunpack.c.0.s8 %v8651
    %v8653 = vlaneseq
    %v8654 = vshrl.u32 %v8653, 7
    %v8655 = vsub.s32 %v8652, %v8654
    %v8656 = vrot.slane %v8648, %v8655
    %v8658 = vunpack.c.l.s4 1983009808
    %v8659 = vunpack.c.0.s8 %v8658
    %v8660 = vlaneseq
    %v8661 = vshrl.u32 %v8660, 7
    %v8662 = vsub.s32 %v8659, %v8661
    %v8663 = vrot.slane %v8649, %v8662
    %v8664 = vcombine.low %v8656, %v8663
    %v8665 = vcombine.high %v8656, %v8663
    %v8692 = vunpack.c.l.b16 %v8606
    %v8693 = vunpack.c.l.b16 %v8607
    %v8694 = vunpack.c.l.b16 %v8608
    %v8695 = vunpack.c.l.b16 %v8609
    %v8696 = vunpack.c.l.b16 %v8610
    %v8697 = vunpack.c.l.b16 %v8611
    %v8698 = vunpack.c.l.b16 %v8612
    %v8699 = vunpack.c.l.b16 %v8613
    %v8700 = vunpack.c.l.b16 %v8614
    %v8701 = vunpack.c.l.b16 %v8615
    %v8702 = vunpack.c.l.b16 %v8616
    %v8703 = vunpack.c.l.b16 %v8617
    %v8704 = vunpack.c.l.b16 %v8618
    %v8705 = vunpack.c.l.b16 %v8619
    %v8706 = vunpack.c.l.b16 %v8620
    %v8707 = vunpack.c.l.b16 %v8621
    %v8708 = vunpack.c.l.b16 %v8622
    %v8709 = vunpack.c.l.b16 %v8623
    %v8710 = vunpack.c.l.b16 %v8624
    %v8711 = vunpack.c.l.b16 %v8625
    %v8712 = vunpack.c.l.b16 %v8626
    %v8713 = vunpack.c.l.b16 %v8627
    %v8714 = vunpack.c.l.b16 %v8628
    %v8715 = vunpack.c.l.b16 %v8629
    %v8716 = vpack.c.b16 %v8693, %v8692
    %v8717 = vpack.c.b16 %v8695, %v8694
    %v8718 = vpack.c.b16 %v8697, %v8696
    %v8719 = vpack.c.b16 %v8699, %v8698
    %v8720 = vpack.c.b16 %v8701, %v8700
    %v8721 = vpack.c.b16 %v8703, %v8702
    %v8722 = vpack.c.b16 %v8705, %v8704
    %v8723 = vpack.c.b16 %v8707, %v8706
    %v8724 = vpack.c.b16 %v8709, %v8708
    %v8725 = vpack.c.b16 %v8711, %v8710
    %v8726 = vpack.c.b16 %v8713, %v8712
    %v8727 = vpack.c.b16 %v8715, %v8714
    %v8741 = vsel %vm5300, %v8647, 0
    %v8744 = vsel %vm5300, %v8665, 0
    %8746 = vmatprep.subr.bf16.mxu0 0
    %8747 = vmatpush1.bf16.msra.mxu0 %v8716
    %8748 = vmatprep.subr.bf16.mxu0 0
    %8749 = vmatpush1.bf16.msra.mxu0 %v8717
    %8750 = vmatprep.subr.bf16.mxu0 0
    %8751 = vmatpush1.bf16.msra.mxu0 %v8718
    %8752 = vmatprep.subr.bf16.mxu0 0
    %8753 = vmatpush1.bf16.msra.mxu0 %v8719
    %8754 = vmatprep.subr.bf16.mxu0 0
    %8755 = vmatpush1.bf16.msra.mxu0 %v8720
    %8756 = vmatprep.subr.bf16.mxu0 0
    %8757 = vmatpush1.bf16.msra.mxu0 %v8721
    %8758 = vmatprep.subr.bf16.mxu0 0
    %8759 = vmatpush1.bf16.msra.mxu0 %v8722
    %8760 = vmatprep.subr.bf16.mxu0 0
    %8761 = vmatpush1.bf16.msra.mxu0 %v8723
    %8762 = vmatprep.subr.bf16.mxu0 0
    %8763 = vmatpush1.bf16.msra.mxu0 %v8724
    %8764 = vmatprep.subr.bf16.mxu0 0
    %8765 = vmatpush1.bf16.msra.mxu0 %v8725
    %8766 = vmatprep.subr.bf16.mxu0 0
    %8767 = vmatpush1.bf16.msra.mxu0 %v8726
    %8768 = vmatprep.subr.bf16.mxu0 0
    %8769 = vmatpush1.bf16.msra.mxu0 %v8727
    %8770 = vmatprep.subr.bf16.mxu0 0
    %8771 = vmatpush1.bf16.msra.mxu0 0
    %8772 = vmatprep.subr.bf16.mxu0 0
    %8773 = vmatpush1.bf16.msra.mxu0 0
    %8774 = vmatprep.subr.bf16.mxu0 0
    %8775 = vmatpush1.bf16.msra.mxu0 0
    %8776 = vmatprep.subr.bf16.mxu0 0
    %8777 = vmatpush1.bf16.msra.mxu0 0
    %8778 = vmatprep.mubr.bf16.mxu0 %v8741
    %8779 = vmatmul.mubr.bf16.gmra.mrb[0].mxu0 %v8646
    %v8780 = vpop.f32.mrb[0].mxu0
    %v8781 = vadd.f32 0.0, %v8780
    %v8782 = vpop.f32.mrb[0].mxu0
    %v8783 = vpop.f32.mrb[0].mxu0
    %v8784 = vadd.f32 0.0, %v8783
    %v8785 = vpop.f32.mrb[0].mxu0
    %8786 = vmatprep.mubr.bf16.mxu0 %v8744
    %8787 = vmatmul.mubr.bf16.gmra.mrb[0].mxu0 %v8664
    %v8788 = vpop.f32.mrb[0].mxu0
    %v8789 = vadd.f32 0.0, %v8788
    %v8790 = vpop.f32.mrb[0].mxu0
    %v8791 = vpop.f32.mrb[0].mxu0
    %v8792 = vadd.f32 0.0, %v8791
    %v8793 = vpop.f32.mrb[0].mxu0
    %8794 = vdwg.mxu0
    %v8795 = vadd.f32 %v8398, %v8781
    %v8796 = vadd.f32 %v8401, %v8784
    %v8797 = vadd.f32 %v8406, %v8789
    %v8798 = vadd.f32 %v8409, %v8792
    %v8799 = vld [vmem:[#allocation16] sm:$0x1]
    %v8800 = vlaneseq
    %v8801 = vshrl.u32 %v8800, 7
    %v8802 = vsub.s32 0, %v8801
    %v8803 = vrot.slane %v8799, %v8802
    %v8804 = vmul.f32 %v8795, %v8803
    %v8805 = vmul.f32 %v8796, %v8803
    %v8806 = vmul.f32 %v8797, %v8803
    %v8807 = vmul.f32 %v8798, %v8803
    %v8808 = vld [vmem:[#allocation16 + $0x1] sm:$0x1]
    %v8809 = vlaneseq
    %v8810 = vshrl.u32 %v8809, 7
    %v8811 = vsub.s32 0, %v8810
    %v8812 = vrot.slane %v8808, %v8811
    %v8813 = vadd.f32 %v8804, %v8812
    %v8814 = vadd.f32 %v8805, %v8812
    %v8815 = vadd.f32 %v8806, %v8812
    %v8816 = vadd.f32 %v8807, %v8812
    %v8817 = vmax.f32 %v8813, 0.0
    %v8818 = vmax.f32 %v8814, 0.0
    %v8819 = vmax.f32 %v8815, 0.0
    %v8820 = vmax.f32 %v8816, 0.0
    %v8825 = vcombine.high %v8817, %v8817
    %v8827 = vunpack.c.l.s4 1983009808
    %v8828 = vunpack.c.0.s8 %v8827
    %v8829 = vlaneseq
    %v8830 = vshrl.u32 %v8829, 7
    %v8831 = vsub.s32 %v8828, %v8830
    %v8832 = vrot.slane %v8817, %v8831
    %v8834 = vunpack.c.l.s4 1983009808
    %v8835 = vunpack.c.0.s8 %v8834
    %v8836 = vlaneseq
    %v8837 = vshrl.u32 %v8836, 7
    %v8838 = vsub.s32 %v8835, %v8837
    %v8839 = vrot.slane %v8825, %v8838
    %v8840 = vcombine.high %v8832, %v8832
    %v8841 = vcombine.high %v8839, %v8839
    %v8842 = vcombine.high %v8818, %v8818
    %v8844 = vunpack.c.l.s4 1983009808
    %v8845 = vunpack.c.0.s8 %v8844
    %v8846 = vlaneseq
    %v8847 = vshrl.u32 %v8846, 7
    %v8848 = vsub.s32 %v8845, %v8847
    %v8849 = vrot.slane %v8818, %v8848
    %v8851 = vunpack.c.l.s4 1983009808
    %v8852 = vunpack.c.0.s8 %v8851
    %v8853 = vlaneseq
    %v8854 = vshrl.u32 %v8853, 7
    %v8855 = vsub.s32 %v8852, %v8854
    %v8856 = vrot.slane %v8842, %v8855
    %v8857 = vcombine.high %v8849, %v8849
    %v8858 = vcombine.high %v8856, %v8856
    %v8859 = vcombine.high %v8819, %v8819
    %v8861 = vunpack.c.l.s4 1983009808
    %v8862 = vunpack.c.0.s8 %v8861
    %v8863 = vlaneseq
    %v8864 = vshrl.u32 %v8863, 7
    %v8865 = vsub.s32 %v8862, %v8864
    %v8866 = vrot.slane %v8819, %v8865
    %v8868 = vunpack.c.l.s4 1983009808
    %v8869 = vunpack.c.0.s8 %v8868
    %v8870 = vlaneseq
    %v8871 = vshrl.u32 %v8870, 7
    %v8872 = vsub.s32 %v8869, %v8871
    %v8873 = vrot.slane %v8859, %v8872
    %v8874 = vcombine.high %v8866, %v8866
    %v8875 = vcombine.high %v8873, %v8873
    %v8876 = vcombine.high %v8820, %v8820
    %v8878 = vunpack.c.l.s4 1983009808
    %v8879 = vunpack.c.0.s8 %v8878
    %v8880 = vlaneseq
    %v8881 = vshrl.u32 %v8880, 7
    %v8882 = vsub.s32 %v8879, %v8881
    %v8883 = vrot.slane %v8820, %v8882
    %v8885 = vunpack.c.l.s4 1983009808
    %v8886 = vunpack.c.0.s8 %v8885
    %v8887 = vlaneseq
    %v8888 = vshrl.u32 %v8887, 7
    %v8889 = vsub.s32 %v8886, %v8888
    %v8890 = vrot.slane %v8876, %v8889
    %v8891 = vcombine.high %v8883, %v8883
    %v8892 = vcombine.high %v8890, %v8890
    %vm8909 = vcmask 1041408
    %v8910 = vsel %vm8909, %v8832, -inf
    %v8911 = vrot.slane %v8910, 4
    %v8912 = vmax.f32 %v8910, %v8911
    %v8913 = vrot.slane %v8912, 2
    %v8914 = vmax.f32 %v8912, %v8913
    %v8915 = vrot.slane %v8914, 1
    %v8916 = vmax.f32 %v8914, %v8915
    %v8917 = vsel %vm8909, %v8840, -inf
    %v8918 = vrot.slane %v8917, 4
    %v8919 = vmax.f32 %v8917, %v8918
    %v8920 = vrot.slane %v8919, 2
    %v8921 = vmax.f32 %v8919, %v8920
    %v8922 = vrot.slane %v8921, 1
    %v8923 = vmax.f32 %v8921, %v8922
    %v8924 = vsel %vm8909, %v8839, -inf
    %v8925 = vrot.slane %v8924, 4
    %v8926 = vmax.f32 %v8924, %v8925
    %v8927 = vrot.slane %v8926, 2
    %v8928 = vmax.f32 %v8926, %v8927
    %v8929 = vrot.slane %v8928, 1
    %v8930 = vmax.f32 %v8928, %v8929
    %v8931 = vsel %vm8909, %v8841, -inf
    %v8932 = vrot.slane %v8931, 4
    %v8933 = vmax.f32 %v8931, %v8932
    %v8934 = vrot.slane %v8933, 2
    %v8935 = vmax.f32 %v8933, %v8934
    %v8936 = vrot.slane %v8935, 1
    %v8937 = vmax.f32 %v8935, %v8936
    %v8938 = vsel %vm8909, %v8849, -inf
    %v8939 = vrot.slane %v8938, 4
    %v8940 = vmax.f32 %v8938, %v8939
    %v8941 = vrot.slane %v8940, 2
    %v8942 = vmax.f32 %v8940, %v8941
    %v8943 = vrot.slane %v8942, 1
    %v8944 = vmax.f32 %v8942, %v8943
    %v8945 = vsel %vm8909, %v8857, -inf
    %v8946 = vrot.slane %v8945, 4
    %v8947 = vmax.f32 %v8945, %v8946
    %v8948 = vrot.slane %v8947, 2
    %v8949 = vmax.f32 %v8947, %v8948
    %v8950 = vrot.slane %v8949, 1
    %v8951 = vmax.f32 %v8949, %v8950
    %v8952 = vsel %vm8909, %v8856, -inf
    %v8953 = vrot.slane %v8952, 4
    %v8954 = vmax.f32 %v8952, %v8953
    %v8955 = vrot.slane %v8954, 2
    %v8956 = vmax.f32 %v8954, %v8955
    %v8957 = vrot.slane %v8956, 1
    %v8958 = vmax.f32 %v8956, %v8957
    %v8959 = vsel %vm8909, %v8858, -inf
    %v8960 = vrot.slane %v8959, 4
    %v8961 = vmax.f32 %v8959, %v8960
    %v8962 = vrot.slane %v8961, 2
    %v8963 = vmax.f32 %v8961, %v8962
    %v8964 = vrot.slane %v8963, 1
    %v8965 = vmax.f32 %v8963, %v8964
    %v8966 = vsel %vm8909, %v8866, -inf
    %v8967 = vrot.slane %v8966, 4
    %v8968 = vmax.f32 %v8966, %v8967
    %v8969 = vrot.slane %v8968, 2
    %v8970 = vmax.f32 %v8968, %v8969
    %v8971 = vrot.slane %v8970, 1
    %v8972 = vmax.f32 %v8970, %v8971
    %v8973 = vsel %vm8909, %v8874, -inf
    %v8974 = vrot.slane %v8973, 4
    %v8975 = vmax.f32 %v8973, %v8974
    %v8976 = vrot.slane %v8975, 2
    %v8977 = vmax.f32 %v8975, %v8976
    %v8978 = vrot.slane %v8977, 1
    %v8979 = vmax.f32 %v8977, %v8978
    %v8980 = vsel %vm8909, %v8873, -inf
    %v8981 = vrot.slane %v8980, 4
    %v8982 = vmax.f32 %v8980, %v8981
    %v8983 = vrot.slane %v8982, 2
    %v8984 = vmax.f32 %v8982, %v8983
    %v8985 = vrot.slane %v8984, 1
    %v8986 = vmax.f32 %v8984, %v8985
    %v8987 = vsel %vm8909, %v8875, -inf
    %v8988 = vrot.slane %v8987, 4
    %v8989 = vmax.f32 %v8987, %v8988
    %v8990 = vrot.slane %v8989, 2
    %v8991 = vmax.f32 %v8989, %v8990
    %v8992 = vrot.slane %v8991, 1
    %v8993 = vmax.f32 %v8991, %v8992
    %v8994 = vsel %vm8909, %v8883, -inf
    %v8995 = vrot.slane %v8994, 4
    %v8996 = vmax.f32 %v8994, %v8995
    %v8997 = vrot.slane %v8996, 2
    %v8998 = vmax.f32 %v8996, %v8997
    %v8999 = vrot.slane %v8998, 1
    %v9000 = vmax.f32 %v8998, %v8999
    %v9001 = vsel %vm8909, %v8891, -inf
    %v9002 = vrot.slane %v9001, 4
    %v9003 = vmax.f32 %v9001, %v9002
    %v9004 = vrot.slane %v9003, 2
    %v9005 = vmax.f32 %v9003, %v9004
    %v9006 = vrot.slane %v9005, 1
    %v9007 = vmax.f32 %v9005, %v9006
    %v9008 = vsel %vm8909, %v8890, -inf
    %v9009 = vrot.slane %v9008, 4
    %v9010 = vmax.f32 %v9008, %v9009
    %v9011 = vrot.slane %v9010, 2
    %v9012 = vmax.f32 %v9010, %v9011
    %v9013 = vrot.slane %v9012, 1
    %v9014 = vmax.f32 %v9012, %v9013
    %v9015 = vsel %vm8909, %v8892, -inf
    %v9016 = vrot.slane %v9015, 4
    %v9017 = vmax.f32 %v9015, %v9016
    %v9018 = vrot.slane %v9017, 2
    %v9019 = vmax.f32 %v9017, %v9018
    %v9020 = vrot.slane %v9019, 1
    %v9021 = vmax.f32 %v9019, %v9020
    %v9022 = vmax.f32 %v8916, %v8930
    %v9023 = vmax.f32 %v8923, %v8937
    %v9024 = vmax.f32 %v8944, %v8958
    %v9025 = vmax.f32 %v8951, %v8965
    %v9026 = vmax.f32 %v8972, %v8986
    %v9027 = vmax.f32 %v8979, %v8993
    %v9028 = vmax.f32 %v9000, %v9014
    %v9029 = vmax.f32 %v9007, %v9021
    %v9038 = vsel %vm4860, %v9023, %v9022
    %v9039 = vsel %vm4860, %v9025, %v9024
    %v9040 = vsel %vm4860, %v9027, %v9026
    %v9041 = vsel %vm4860, %v9029, %v9028
    %s9046 = scalar_lea.vmem [#allocation4], 4
    %9047 = vst [vmem:[%s9046 + $0x1] sm:$0x3] %v9038
    %9048 = vst [vmem:[%s9046 + $0x5] sm:$0x3] %v9039
    %9049 = vst [vmem:[%s9046 + $0x11] sm:$0x3] %v9040
    %9050 = vst [vmem:[%s9046 + $0x15] sm:$0x3] %v9041
    %v9051 = vld [vmem:[#allocation4] sm:$0xf]
    %v9052 = vld [vmem:[#allocation4 + $0x4] sm:$0xf]
    %v9053 = vld [vmem:[#allocation4 + $0x10] sm:$0xf]
    %v9054 = vld [vmem:[#allocation4 + $0x14] sm:$0xf]
    %v9055 = vpack.c.bf16 %v9051, %v9051
    %v9056 = vpack.c.bf16 %v9052, %v9052
    %v9057 = vpack.c.bf16 %v9053, %v9053
    %v9058 = vpack.c.bf16 %v9054, %v9054
    %v9060 = vshrl.u32 %v9055, 16
    %v9062 = vshll.u32 %v9055, 16
    %v9064 = vrot.slane %v9062, 1
    %v9065 = vor.u32 %v9060, %v9064
    %v9067 = vshrl.u32 %v9056, 16
    %v9069 = vshll.u32 %v9056, 16
    %v9071 = vrot.slane %v9069, 1
    %v9072 = vor.u32 %v9067, %v9071
    %v9074 = vshrl.u32 %v9057, 16
    %v9076 = vshll.u32 %v9057, 16
    %v9078 = vrot.slane %v9076, 1
    %v9079 = vor.u32 %v9074, %v9078
    %v9081 = vshrl.u32 %v9058, 16
    %v9083 = vshll.u32 %v9058, 16
    %v9085 = vrot.slane %v9083, 1
    %v9086 = vor.u32 %v9081, %v9085
    %v9091 = vrot.slane %v9055, 1
    %v9092 = vrot.slane %v9056, 1
    %v9093 = vrot.slane %v9057, 1
    %v9094 = vrot.slane %v9058, 1
    %v9095 = vcombine.low %v9055, %v9065
    %v9097 = vunpack.c.l.s4 1966171168
    %v9098 = vunpack.c.0.s8 %v9097
    %v9099 = vlaneseq
    %v9100 = vshrl.u32 %v9099, 7
    %v9101 = vsub.s32 %v9098, %v9100
    %v9102 = vrot.slane %v9095, %v9101
    %v9104 = vunpack.c.l.s4 1966171168
    %v9105 = vunpack.c.0.s8 %v9104
    %v9106 = vlaneseq
    %v9107 = vshrl.u32 %v9106, 7
    %v9108 = vsub.s32 %v9105, %v9107
    %v9109 = vrot.slane %v9091, %v9108
    %v9110 = vcombine.low %v9102, %v9109
    %v9112 = vunpack.c.l.s4 1966171168
    %v9113 = vunpack.c.0.s8 %v9112
    %v9114 = vlaneseq
    %v9115 = vshrl.u32 %v9114, 7
    %v9116 = vsub.s32 %v9113, %v9115
    %v9117 = vrot.slane %v9110, %v9116
    %v9118 = vcombine.low %v9056, %v9072
    %v9120 = vunpack.c.l.s4 1966171168
    %v9121 = vunpack.c.0.s8 %v9120
    %v9122 = vlaneseq
    %v9123 = vshrl.u32 %v9122, 7
    %v9124 = vsub.s32 %v9121, %v9123
    %v9125 = vrot.slane %v9118, %v9124
    %v9127 = vunpack.c.l.s4 1966171168
    %v9128 = vunpack.c.0.s8 %v9127
    %v9129 = vlaneseq
    %v9130 = vshrl.u32 %v9129, 7
    %v9131 = vsub.s32 %v9128, %v9130
    %v9132 = vrot.slane %v9092, %v9131
    %v9133 = vcombine.low %v9125, %v9132
    %v9135 = vunpack.c.l.s4 1966171168
    %v9136 = vunpack.c.0.s8 %v9135
    %v9137 = vlaneseq
    %v9138 = vshrl.u32 %v9137, 7
    %v9139 = vsub.s32 %v9136, %v9138
    %v9140 = vrot.slane %v9133, %v9139
    %v9141 = vcombine.low %v9057, %v9079
    %v9143 = vunpack.c.l.s4 1966171168
    %v9144 = vunpack.c.0.s8 %v9143
    %v9145 = vlaneseq
    %v9146 = vshrl.u32 %v9145, 7
    %v9147 = vsub.s32 %v9144, %v9146
    %v9148 = vrot.slane %v9141, %v9147
    %v9150 = vunpack.c.l.s4 1966171168
    %v9151 = vunpack.c.0.s8 %v9150
    %v9152 = vlaneseq
    %v9153 = vshrl.u32 %v9152, 7
    %v9154 = vsub.s32 %v9151, %v9153
    %v9155 = vrot.slane %v9093, %v9154
    %v9156 = vcombine.low %v9148, %v9155
    %v9158 = vunpack.c.l.s4 1966171168
    %v9159 = vunpack.c.0.s8 %v9158
    %v9160 = vlaneseq
    %v9161 = vshrl.u32 %v9160, 7
    %v9162 = vsub.s32 %v9159, %v9161
    %v9163 = vrot.slane %v9156, %v9162
    %v9164 = vcombine.low %v9058, %v9086
    %v9166 = vunpack.c.l.s4 1966171168
    %v9167 = vunpack.c.0.s8 %v9166
    %v9168 = vlaneseq
    %v9169 = vshrl.u32 %v9168, 7
    %v9170 = vsub.s32 %v9167, %v9169
    %v9171 = vrot.slane %v9164, %v9170
    %v9173 = vunpack.c.l.s4 1966171168
    %v9174 = vunpack.c.0.s8 %v9173
    %v9175 = vlaneseq
    %v9176 = vshrl.u32 %v9175, 7
    %v9177 = vsub.s32 %v9174, %v9176
    %v9178 = vrot.slane %v9094, %v9177
    %v9179 = vcombine.low %v9171, %v9178
    %v9181 = vunpack.c.l.s4 1966171168
    %v9182 = vunpack.c.0.s8 %v9181
    %v9183 = vlaneseq
    %v9184 = vshrl.u32 %v9183, 7
    %v9185 = vsub.s32 %v9182, %v9184
    %v9186 = vrot.slane %v9179, %v9185
    %v9187 = vld [vmem:[#allocation17] sm:$0xff]
    %v9188 = vld [vmem:[#allocation17 + $0x8] sm:$0xff]
    %v9189 = vld [vmem:[#allocation17 + $0x10] sm:$0xff]
    %v9190 = vld [vmem:[#allocation17 + $0x18] sm:$0xff]
    %v9191 = vld [vmem:[#allocation17 + $0x20] sm:$0xff]
    %v9192 = vld [vmem:[#allocation17 + $0x28] sm:$0xff]
    %v9193 = vld [vmem:[#allocation17 + $0x30] sm:$0xff]
    %v9194 = vld [vmem:[#allocation17 + $0x38] sm:$0xff]
    %v9195 = vld [vmem:[#allocation17 + $0x40] sm:$0xff]
    %v9196 = vld [vmem:[#allocation17 + $0x48] sm:$0xff]
    %v9197 = vld [vmem:[#allocation17 + $0x50] sm:$0xff]
    %v9198 = vld [vmem:[#allocation17 + $0x58] sm:$0xff]
    %v9199 = vld [vmem:[#allocation17 + $0x60] sm:$0xff]
    %v9200 = vld [vmem:[#allocation17 + $0x68] sm:$0xff]
    %v9201 = vld [vmem:[#allocation17 + $0x70] sm:$0xff]
    %v9202 = vld [vmem:[#allocation17 + $0x78] sm:$0xff]
    %v9203 = vld [vmem:[#allocation17 + $0x80] sm:$0xff]
    %v9204 = vld [vmem:[#allocation17 + $0x88] sm:$0xff]
    %v9205 = vld [vmem:[#allocation17 + $0x90] sm:$0xff]
    %v9206 = vld [vmem:[#allocation17 + $0x98] sm:$0xff]
    %v9207 = vld [vmem:[#allocation17 + $0xa0] sm:$0xff]
    %v9208 = vld [vmem:[#allocation17 + $0xa8] sm:$0xff]
    %v9209 = vld [vmem:[#allocation17 + $0xb0] sm:$0xff]
    %v9210 = vld [vmem:[#allocation17 + $0xb8] sm:$0xff]
    %v9211 = vld [vmem:[#allocation17 + $0xc0] sm:$0xff]
    %v9212 = vld [vmem:[#allocation17 + $0xc8] sm:$0xff]
    %v9213 = vld [vmem:[#allocation17 + $0xd0] sm:$0xff]
    %v9214 = vld [vmem:[#allocation17 + $0xd8] sm:$0xff]
    %v9215 = vld [vmem:[#allocation17 + $0xe0] sm:$0xff]
    %v9216 = vld [vmem:[#allocation17 + $0xe8] sm:$0xff]
    %v9217 = vld [vmem:[#allocation17 + $0xf0] sm:$0xff]
    %v9218 = vld [vmem:[#allocation17 + $0xf8] sm:$0xff]
    %v9219 = vld [vmem:[#allocation17 + $0x100] sm:$0xff]
    %v9220 = vld [vmem:[#allocation17 + $0x108] sm:$0xff]
    %v9221 = vld [vmem:[#allocation17 + $0x110] sm:$0xff]
    %v9222 = vld [vmem:[#allocation17 + $0x118] sm:$0xff]
    %v9223 = vld [vmem:[#allocation17 + $0x120] sm:$0xff]
    %v9224 = vld [vmem:[#allocation17 + $0x128] sm:$0xff]
    %v9225 = vld [vmem:[#allocation17 + $0x130] sm:$0xff]
    %v9226 = vld [vmem:[#allocation17 + $0x138] sm:$0xff]
    %v9227 = vld [vmem:[#allocation17 + $0x140] sm:$0xff]
    %v9228 = vld [vmem:[#allocation17 + $0x148] sm:$0xff]
    %v9229 = vld [vmem:[#allocation17 + $0x150] sm:$0xff]
    %v9230 = vld [vmem:[#allocation17 + $0x158] sm:$0xff]
    %v9231 = vld [vmem:[#allocation17 + $0x160] sm:$0xff]
    %v9232 = vld [vmem:[#allocation17 + $0x168] sm:$0xff]
    %v9233 = vld [vmem:[#allocation17 + $0x170] sm:$0xff]
    %v9234 = vld [vmem:[#allocation17 + $0x178] sm:$0xff]
    %v9235 = vld [vmem:[%s9046] sm:$0xf]
    %v9236 = vld [vmem:[%s9046 + $0x4] sm:$0xf]
    %v9237 = vld [vmem:[%s9046 + $0x10] sm:$0xf]
    %v9238 = vld [vmem:[%s9046 + $0x14] sm:$0xf]
    %v9239 = vpack.c.bf16 %v9235, %v9235
    %v9240 = vpack.c.bf16 %v9236, %v9236
    %v9241 = vpack.c.bf16 %v9237, %v9237
    %v9242 = vpack.c.bf16 %v9238, %v9238
    %v9244 = vshrl.u32 %v9239, 16
    %v9246 = vshll.u32 %v9239, 16
    %v9248 = vrot.slane %v9246, 1
    %v9249 = vor.u32 %v9244, %v9248
    %v9251 = vshrl.u32 %v9240, 16
    %v9253 = vshll.u32 %v9240, 16
    %v9255 = vrot.slane %v9253, 1
    %v9256 = vor.u32 %v9251, %v9255
    %v9258 = vshrl.u32 %v9241, 16
    %v9260 = vshll.u32 %v9241, 16
    %v9262 = vrot.slane %v9260, 1
    %v9263 = vor.u32 %v9258, %v9262
    %v9265 = vshrl.u32 %v9242, 16
    %v9267 = vshll.u32 %v9242, 16
    %v9269 = vrot.slane %v9267, 1
    %v9270 = vor.u32 %v9265, %v9269
    %v9275 = vrot.slane %v9239, 1
    %v9276 = vrot.slane %v9240, 1
    %v9277 = vrot.slane %v9241, 1
    %v9278 = vrot.slane %v9242, 1
    %v9279 = vcombine.low %v9239, %v9249
    %v9281 = vunpack.c.l.s4 1966171168
    %v9282 = vunpack.c.0.s8 %v9281
    %v9283 = vlaneseq
    %v9284 = vshrl.u32 %v9283, 7
    %v9285 = vsub.s32 %v9282, %v9284
    %v9286 = vrot.slane %v9279, %v9285
    %v9288 = vunpack.c.l.s4 1966171168
    %v9289 = vunpack.c.0.s8 %v9288
    %v9290 = vlaneseq
    %v9291 = vshrl.u32 %v9290, 7
    %v9292 = vsub.s32 %v9289, %v9291
    %v9293 = vrot.slane %v9275, %v9292
    %v9294 = vcombine.low %v9286, %v9293
    %v9296 = vunpack.c.l.s4 1966171168
    %v9297 = vunpack.c.0.s8 %v9296
    %v9298 = vlaneseq
    %v9299 = vshrl.u32 %v9298, 7
    %v9300 = vsub.s32 %v9297, %v9299
    %v9301 = vrot.slane %v9294, %v9300
    %v9302 = vcombine.low %v9240, %v9256
    %v9304 = vunpack.c.l.s4 1966171168
    %v9305 = vunpack.c.0.s8 %v9304
    %v9306 = vlaneseq
    %v9307 = vshrl.u32 %v9306, 7
    %v9308 = vsub.s32 %v9305, %v9307
    %v9309 = vrot.slane %v9302, %v9308
    %v9311 = vunpack.c.l.s4 1966171168
    %v9312 = vunpack.c.0.s8 %v9311
    %v9313 = vlaneseq
    %v9314 = vshrl.u32 %v9313, 7
    %v9315 = vsub.s32 %v9312, %v9314
    %v9316 = vrot.slane %v9276, %v9315
    %v9317 = vcombine.low %v9309, %v9316
    %v9319 = vunpack.c.l.s4 1966171168
    %v9320 = vunpack.c.0.s8 %v9319
    %v9321 = vlaneseq
    %v9322 = vshrl.u32 %v9321, 7
    %v9323 = vsub.s32 %v9320, %v9322
    %v9324 = vrot.slane %v9317, %v9323
    %v9325 = vcombine.low %v9241, %v9263
    %v9327 = vunpack.c.l.s4 1966171168
    %v9328 = vunpack.c.0.s8 %v9327
    %v9329 = vlaneseq
    %v9330 = vshrl.u32 %v9329, 7
    %v9331 = vsub.s32 %v9328, %v9330
    %v9332 = vrot.slane %v9325, %v9331
    %v9334 = vunpack.c.l.s4 1966171168
    %v9335 = vunpack.c.0.s8 %v9334
    %v9336 = vlaneseq
    %v9337 = vshrl.u32 %v9336, 7
    %v9338 = vsub.s32 %v9335, %v9337
    %v9339 = vrot.slane %v9277, %v9338
    %v9340 = vcombine.low %v9332, %v9339
    %v9342 = vunpack.c.l.s4 1966171168
    %v9343 = vunpack.c.0.s8 %v9342
    %v9344 = vlaneseq
    %v9345 = vshrl.u32 %v9344, 7
    %v9346 = vsub.s32 %v9343, %v9345
    %v9347 = vrot.slane %v9340, %v9346
    %v9348 = vcombine.low %v9242, %v9270
    %v9350 = vunpack.c.l.s4 1966171168
    %v9351 = vunpack.c.0.s8 %v9350
    %v9352 = vlaneseq
    %v9353 = vshrl.u32 %v9352, 7
    %v9354 = vsub.s32 %v9351, %v9353
    %v9355 = vrot.slane %v9348, %v9354
    %v9357 = vunpack.c.l.s4 1966171168
    %v9358 = vunpack.c.0.s8 %v9357
    %v9359 = vlaneseq
    %v9360 = vshrl.u32 %v9359, 7
    %v9361 = vsub.s32 %v9358, %v9360
    %v9362 = vrot.slane %v9278, %v9361
    %v9363 = vcombine.low %v9355, %v9362
    %v9365 = vunpack.c.l.s4 1966171168
    %v9366 = vunpack.c.0.s8 %v9365
    %v9367 = vlaneseq
    %v9368 = vshrl.u32 %v9367, 7
    %v9369 = vsub.s32 %v9366, %v9368
    %v9370 = vrot.slane %v9363, %v9369
    %s9371 = scalar_lea.vmem [#allocation17], 384
    %v9372 = vld [vmem:[%s9371] sm:$0xff]
    %v9373 = vld [vmem:[%s9371 + $0x8] sm:$0xff]
    %v9374 = vld [vmem:[%s9371 + $0x10] sm:$0xff]
    %v9375 = vld [vmem:[%s9371 + $0x18] sm:$0xff]
    %v9376 = vld [vmem:[%s9371 + $0x20] sm:$0xff]
    %v9377 = vld [vmem:[%s9371 + $0x28] sm:$0xff]
    %v9378 = vld [vmem:[%s9371 + $0x30] sm:$0xff]
    %v9379 = vld [vmem:[%s9371 + $0x38] sm:$0xff]
    %v9380 = vld [vmem:[%s9371 + $0x40] sm:$0xff]
    %v9381 = vld [vmem:[%s9371 + $0x48] sm:$0xff]
    %v9382 = vld [vmem:[%s9371 + $0x50] sm:$0xff]
    %v9383 = vld [vmem:[%s9371 + $0x58] sm:$0xff]
    %v9384 = vld [vmem:[%s9371 + $0x60] sm:$0xff]
    %v9385 = vld [vmem:[%s9371 + $0x68] sm:$0xff]
    %v9386 = vld [vmem:[%s9371 + $0x70] sm:$0xff]
    %v9387 = vld [vmem:[%s9371 + $0x78] sm:$0xff]
    %v9388 = vld [vmem:[%s9371 + $0x80] sm:$0xff]
    %v9389 = vld [vmem:[%s9371 + $0x88] sm:$0xff]
    %v9390 = vld [vmem:[%s9371 + $0x90] sm:$0xff]
    %v9391 = vld [vmem:[%s9371 + $0x98] sm:$0xff]
    %v9392 = vld [vmem:[%s9371 + $0xa0] sm:$0xff]
    %v9393 = vld [vmem:[%s9371 + $0xa8] sm:$0xff]
    %v9394 = vld [vmem:[%s9371 + $0xb0] sm:$0xff]
    %v9395 = vld [vmem:[%s9371 + $0xb8] sm:$0xff]
    %v9396 = vld [vmem:[%s9371 + $0xc0] sm:$0xff]
    %v9397 = vld [vmem:[%s9371 + $0xc8] sm:$0xff]
    %v9398 = vld [vmem:[%s9371 + $0xd0] sm:$0xff]
    %v9399 = vld [vmem:[%s9371 + $0xd8] sm:$0xff]
    %v9400 = vld [vmem:[%s9371 + $0xe0] sm:$0xff]
    %v9401 = vld [vmem:[%s9371 + $0xe8] sm:$0xff]
    %v9402 = vld [vmem:[%s9371 + $0xf0] sm:$0xff]
    %v9403 = vld [vmem:[%s9371 + $0xf8] sm:$0xff]
    %v9404 = vld [vmem:[%s9371 + $0x100] sm:$0xff]
    %v9405 = vld [vmem:[%s9371 + $0x108] sm:$0xff]
    %v9406 = vld [vmem:[%s9371 + $0x110] sm:$0xff]
    %v9407 = vld [vmem:[%s9371 + $0x118] sm:$0xff]
    %v9408 = vld [vmem:[%s9371 + $0x120] sm:$0xff]
    %v9409 = vld [vmem:[%s9371 + $0x128] sm:$0xff]
    %v9410 = vld [vmem:[%s9371 + $0x130] sm:$0xff]
    %v9411 = vld [vmem:[%s9371 + $0x138] sm:$0xff]
    %v9412 = vld [vmem:[%s9371 + $0x140] sm:$0xff]
    %v9413 = vld [vmem:[%s9371 + $0x148] sm:$0xff]
    %v9414 = vld [vmem:[%s9371 + $0x150] sm:$0xff]
    %v9415 = vld [vmem:[%s9371 + $0x158] sm:$0xff]
    %v9416 = vld [vmem:[%s9371 + $0x160] sm:$0xff]
    %v9417 = vld [vmem:[%s9371 + $0x168] sm:$0xff]
    %v9418 = vld [vmem:[%s9371 + $0x170] sm:$0xff]
    %v9419 = vld [vmem:[%s9371 + $0x178] sm:$0xff]
    %v9420 = vcombine.low %v9301, %v9324
    %v9421 = vcombine.low %v9347, %v9370
    %v9423 = vunpack.c.l.s4 1966171168
    %v9424 = vunpack.c.0.s8 %v9423
    %v9425 = vlaneseq
    %v9426 = vshrl.u32 %v9425, 7
    %v9427 = vsub.s32 %v9424, %v9426
    %v9428 = vrot.slane %v9420, %v9427
    %v9430 = vunpack.c.l.s4 1966171168
    %v9431 = vunpack.c.0.s8 %v9430
    %v9432 = vlaneseq
    %v9433 = vshrl.u32 %v9432, 7
    %v9434 = vsub.s32 %v9431, %v9433
    %v9435 = vrot.slane %v9421, %v9434
    %v9436 = vcombine.low %v9428, %v9435
    %v9437 = vcombine.high %v9428, %v9435
    %v9439 = vunpack.c.l.s4 1966171168
    %v9440 = vunpack.c.0.s8 %v9439
    %v9441 = vlaneseq
    %v9442 = vshrl.u32 %v9441, 7
    %v9443 = vsub.s32 %v9440, %v9442
    %v9444 = vrot.slane %v9436, %v9443
    %v9446 = vunpack.c.l.s4 1966171168
    %v9447 = vunpack.c.0.s8 %v9446
    %v9448 = vlaneseq
    %v9449 = vshrl.u32 %v9448, 7
    %v9450 = vsub.s32 %v9447, %v9449
    %v9451 = vrot.slane %v9437, %v9450
    %v9452 = vcombine.high %v9444, %v9444
    %v9504 = vunpack.c.l.b16 %v9372
    %v9505 = vunpack.c.h.b16 %v9372
    %v9506 = vunpack.c.l.b16 %v9373
    %v9507 = vunpack.c.h.b16 %v9373
    %v9508 = vunpack.c.l.b16 %v9374
    %v9509 = vunpack.c.h.b16 %v9374
    %v9510 = vunpack.c.l.b16 %v9375
    %v9511 = vunpack.c.h.b16 %v9375
    %v9512 = vunpack.c.l.b16 %v9376
    %v9513 = vunpack.c.h.b16 %v9376
    %v9514 = vunpack.c.l.b16 %v9377
    %v9515 = vunpack.c.h.b16 %v9377
    %v9516 = vunpack.c.l.b16 %v9378
    %v9517 = vunpack.c.h.b16 %v9378
    %v9518 = vunpack.c.l.b16 %v9379
    %v9519 = vunpack.c.h.b16 %v9379
    %v9520 = vunpack.c.l.b16 %v9380
    %v9521 = vunpack.c.h.b16 %v9380
    %v9522 = vunpack.c.l.b16 %v9381
    %v9523 = vunpack.c.h.b16 %v9381
    %v9524 = vunpack.c.l.b16 %v9382
    %v9525 = vunpack.c.h.b16 %v9382
    %v9526 = vunpack.c.l.b16 %v9383
    %v9527 = vunpack.c.h.b16 %v9383
    %v9528 = vunpack.c.l.b16 %v9384
    %v9529 = vunpack.c.h.b16 %v9384
    %v9530 = vunpack.c.l.b16 %v9385
    %v9531 = vunpack.c.h.b16 %v9385
    %v9532 = vunpack.c.l.b16 %v9386
    %v9533 = vunpack.c.h.b16 %v9386
    %v9534 = vunpack.c.l.b16 %v9387
    %v9535 = vunpack.c.h.b16 %v9387
    %v9536 = vunpack.c.l.b16 %v9388
    %v9537 = vunpack.c.h.b16 %v9388
    %v9538 = vunpack.c.l.b16 %v9389
    %v9539 = vunpack.c.h.b16 %v9389
    %v9540 = vunpack.c.l.b16 %v9390
    %v9541 = vunpack.c.h.b16 %v9390
    %v9542 = vunpack.c.l.b16 %v9391
    %v9543 = vunpack.c.h.b16 %v9391
    %v9544 = vunpack.c.l.b16 %v9392
    %v9545 = vunpack.c.h.b16 %v9392
    %v9546 = vunpack.c.l.b16 %v9393
    %v9547 = vunpack.c.h.b16 %v9393
    %v9548 = vunpack.c.l.b16 %v9394
    %v9549 = vunpack.c.h.b16 %v9394
    %v9550 = vunpack.c.l.b16 %v9395
    %v9551 = vunpack.c.h.b16 %v9395
    %v9552 = vunpack.c.l.b16 %v9396
    %v9553 = vunpack.c.h.b16 %v9396
    %v9554 = vunpack.c.l.b16 %v9397
    %v9555 = vunpack.c.h.b16 %v9397
    %v9556 = vunpack.c.l.b16 %v9398
    %v9557 = vunpack.c.h.b16 %v9398
    %v9558 = vunpack.c.l.b16 %v9399
    %v9559 = vunpack.c.h.b16 %v9399
    %v9560 = vunpack.c.l.b16 %v9400
    %v9561 = vunpack.c.h.b16 %v9400
    %v9562 = vunpack.c.l.b16 %v9401
    %v9563 = vunpack.c.h.b16 %v9401
    %v9564 = vunpack.c.l.b16 %v9402
    %v9565 = vunpack.c.h.b16 %v9402
    %v9566 = vunpack.c.l.b16 %v9403
    %v9567 = vunpack.c.h.b16 %v9403
    %v9568 = vunpack.c.l.b16 %v9404
    %v9569 = vunpack.c.h.b16 %v9404
    %v9570 = vunpack.c.l.b16 %v9405
    %v9571 = vunpack.c.h.b16 %v9405
    %v9572 = vunpack.c.l.b16 %v9406
    %v9573 = vunpack.c.h.b16 %v9406
    %v9574 = vunpack.c.l.b16 %v9407
    %v9575 = vunpack.c.h.b16 %v9407
    %v9576 = vunpack.c.l.b16 %v9408
    %v9577 = vunpack.c.h.b16 %v9408
    %v9578 = vunpack.c.l.b16 %v9409
    %v9579 = vunpack.c.h.b16 %v9409
    %v9580 = vunpack.c.l.b16 %v9410
    %v9581 = vunpack.c.h.b16 %v9410
    %v9582 = vunpack.c.l.b16 %v9411
    %v9583 = vunpack.c.h.b16 %v9411
    %v9584 = vunpack.c.l.b16 %v9412
    %v9585 = vunpack.c.h.b16 %v9412
    %v9586 = vunpack.c.l.b16 %v9413
    %v9587 = vunpack.c.h.b16 %v9413
    %v9588 = vunpack.c.l.b16 %v9414
    %v9589 = vunpack.c.h.b16 %v9414
    %v9590 = vunpack.c.l.b16 %v9415
    %v9591 = vunpack.c.h.b16 %v9415
    %v9592 = vunpack.c.l.b16 %v9416
    %v9593 = vunpack.c.h.b16 %v9416
    %v9594 = vunpack.c.l.b16 %v9417
    %v9595 = vunpack.c.h.b16 %v9417
    %v9596 = vunpack.c.l.b16 %v9418
    %v9597 = vunpack.c.h.b16 %v9418
    %v9598 = vunpack.c.l.b16 %v9419
    %v9599 = vunpack.c.h.b16 %v9419
    %v9600 = vpack.c.b16 %v9506, %v9504
    %v9601 = vpack.c.b16 %v9507, %v9505
    %v9602 = vpack.c.b16 %v9510, %v9508
    %v9603 = vpack.c.b16 %v9511, %v9509
    %v9604 = vpack.c.b16 %v9514, %v9512
    %v9605 = vpack.c.b16 %v9515, %v9513
    %v9606 = vpack.c.b16 %v9518, %v9516
    %v9607 = vpack.c.b16 %v9519, %v9517
    %v9608 = vpack.c.b16 %v9522, %v9520
    %v9609 = vpack.c.b16 %v9523, %v9521
    %v9610 = vpack.c.b16 %v9526, %v9524
    %v9611 = vpack.c.b16 %v9527, %v9525
    %v9612 = vpack.c.b16 %v9530, %v9528
    %v9613 = vpack.c.b16 %v9531, %v9529
    %v9614 = vpack.c.b16 %v9534, %v9532
    %v9615 = vpack.c.b16 %v9535, %v9533
    %v9616 = vpack.c.b16 %v9538, %v9536
    %v9617 = vpack.c.b16 %v9539, %v9537
    %v9618 = vpack.c.b16 %v9542, %v9540
    %v9619 = vpack.c.b16 %v9543, %v9541
    %v9620 = vpack.c.b16 %v9546, %v9544
    %v9621 = vpack.c.b16 %v9547, %v9545
    %v9622 = vpack.c.b16 %v9550, %v9548
    %v9623 = vpack.c.b16 %v9551, %v9549
    %v9624 = vpack.c.b16 %v9554, %v9552
    %v9625 = vpack.c.b16 %v9555, %v9553
    %v9626 = vpack.c.b16 %v9558, %v9556
    %v9627 = vpack.c.b16 %v9559, %v9557
    %v9628 = vpack.c.b16 %v9562, %v9560
    %v9629 = vpack.c.b16 %v9563, %v9561
    %v9630 = vpack.c.b16 %v9566, %v9564
    %v9631 = vpack.c.b16 %v9567, %v9565
    %v9632 = vpack.c.b16 %v9570, %v9568
    %v9633 = vpack.c.b16 %v9571, %v9569
    %v9634 = vpack.c.b16 %v9574, %v9572
    %v9635 = vpack.c.b16 %v9575, %v9573
    %v9636 = vpack.c.b16 %v9578, %v9576
    %v9637 = vpack.c.b16 %v9579, %v9577
    %v9638 = vpack.c.b16 %v9582, %v9580
    %v9639 = vpack.c.b16 %v9583, %v9581
    %v9640 = vpack.c.b16 %v9586, %v9584
    %v9641 = vpack.c.b16 %v9587, %v9585
    %v9642 = vpack.c.b16 %v9590, %v9588
    %v9643 = vpack.c.b16 %v9591, %v9589
    %v9644 = vpack.c.b16 %v9594, %v9592
    %v9645 = vpack.c.b16 %v9595, %v9593
    %v9646 = vpack.c.b16 %v9598, %v9596
    %v9647 = vpack.c.b16 %v9599, %v9597
    %9696 = vmatprep.subr.bf16.mxu0 %v9601
    %9697 = vmatpush1.bf16.msra.mxu0 %v9600
    %9698 = vmatprep.subr.bf16.mxu0 %v9603
    %9699 = vmatpush1.bf16.msra.mxu0 %v9602
    %9700 = vmatprep.subr.bf16.mxu0 %v9605
    %9701 = vmatpush1.bf16.msra.mxu0 %v9604
    %9702 = vmatprep.subr.bf16.mxu0 %v9607
    %9703 = vmatpush1.bf16.msra.mxu0 %v9606
    %9704 = vmatprep.subr.bf16.mxu0 %v9609
    %9705 = vmatpush1.bf16.msra.mxu0 %v9608
    %9706 = vmatprep.subr.bf16.mxu0 %v9611
    %9707 = vmatpush1.bf16.msra.mxu0 %v9610
    %9708 = vmatprep.subr.bf16.mxu0 %v9613
    %9709 = vmatpush1.bf16.msra.mxu0 %v9612
    %9710 = vmatprep.subr.bf16.mxu0 %v9615
    %9711 = vmatpush1.bf16.msra.mxu0 %v9614
    %9712 = vmatprep.subr.bf16.mxu0 %v9617
    %9713 = vmatpush1.bf16.msra.mxu0 %v9616
    %9714 = vmatprep.subr.bf16.mxu0 %v9619
    %9715 = vmatpush1.bf16.msra.mxu0 %v9618
    %9716 = vmatprep.subr.bf16.mxu0 %v9621
    %9717 = vmatpush1.bf16.msra.mxu0 %v9620
    %9718 = vmatprep.subr.bf16.mxu0 %v9623
    %9719 = vmatpush1.bf16.msra.mxu0 %v9622
    %9720 = vmatprep.subr.bf16.mxu0 %v9625
    %9721 = vmatpush1.bf16.msra.mxu0 %v9624
    %9722 = vmatprep.subr.bf16.mxu0 %v9627
    %9723 = vmatpush1.bf16.msra.mxu0 %v9626
    %9724 = vmatprep.subr.bf16.mxu0 %v9629
    %9725 = vmatpush1.bf16.msra.mxu0 %v9628
    %9726 = vmatprep.subr.bf16.mxu0 %v9631
    %9727 = vmatpush1.bf16.msra.mxu0 %v9630
    %9728 = vmatprep.mubr.bf16.mxu0 %v9451
    %9729 = vmatmul.mubr.bf16.gmra.mrb[0].mxu0 %v9444
    %v9730 = vpop.f32.mrb[0].mxu0
    %v9731 = vadd.f32 0.0, %v9730
    %v9732 = vpop.f32.mrb[0].mxu0
    %v9733 = vadd.f32 0.0, %v9732
    %v9734 = vpop.f32.mrb[0].mxu0
    %v9735 = vpop.f32.mrb[0].mxu0
    %9736 = vdwg.mxu0
    %9737 = vmatprep.subr.bf16.mxu0 %v9633
    %9738 = vmatpush1.bf16.msra.mxu0 %v9632
    %9739 = vmatprep.subr.bf16.mxu0 %v9635
    %9740 = vmatpush1.bf16.msra.mxu0 %v9634
    %9741 = vmatprep.subr.bf16.mxu0 %v9637
    %9742 = vmatpush1.bf16.msra.mxu0 %v9636
    %9743 = vmatprep.subr.bf16.mxu0 %v9639
    %9744 = vmatpush1.bf16.msra.mxu0 %v9638
    %9745 = vmatprep.subr.bf16.mxu0 %v9641
    %9746 = vmatpush1.bf16.msra.mxu0 %v9640
    %9747 = vmatprep.subr.bf16.mxu0 %v9643
    %9748 = vmatpush1.bf16.msra.mxu0 %v9642
    %9749 = vmatprep.subr.bf16.mxu0 %v9645
    %9750 = vmatpush1.bf16.msra.mxu0 %v9644
    %9751 = vmatprep.subr.bf16.mxu0 %v9647
    %9752 = vmatpush1.bf16.msra.mxu0 %v9646
    %9753 = vmatprep.subr.bf16.mxu0 0
    %9754 = vmatpush1.bf16.msra.mxu0 0
    %9755 = vmatprep.subr.bf16.mxu0 0
    %9756 = vmatpush1.bf16.msra.mxu0 0
    %9757 = vmatprep.subr.bf16.mxu0 0
    %9758 = vmatpush1.bf16.msra.mxu0 0
    %9759 = vmatprep.subr.bf16.mxu0 0
    %9760 = vmatpush1.bf16.msra.mxu0 0
    %9761 = vmatprep.subr.bf16.mxu0 0
    %9762 = vmatpush1.bf16.msra.mxu0 0
    %9763 = vmatprep.subr.bf16.mxu0 0
    %9764 = vmatpush1.bf16.msra.mxu0 0
    %9765 = vmatprep.subr.bf16.mxu0 0
    %9766 = vmatpush1.bf16.msra.mxu0 0
    %9767 = vmatprep.subr.bf16.mxu0 0
    %9768 = vmatpush1.bf16.msra.mxu0 0
    %9769 = vmatprep.mubr.bf16.mxu0 0
    %9770 = vmatmul.mubr.bf16.gmra.mrb[0].mxu0 %v9452
    %v9771 = vpop.f32.mrb[0].mxu0
    %v9772 = vadd.f32 %v9731, %v9771
    %v9773 = vpop.f32.mrb[0].mxu0
    %v9774 = vadd.f32 %v9733, %v9773
    %v9775 = vpop.f32.mrb[0].mxu0
    %v9776 = vpop.f32.mrb[0].mxu0
    %9777 = vdwg.mxu0
    %v9778 = vcombine.low %v9117, %v9140
    %v9779 = vcombine.low %v9163, %v9186
    %v9781 = vunpack.c.l.s4 1966171168
    %v9782 = vunpack.c.0.s8 %v9781
    %v9783 = vlaneseq
    %v9784 = vshrl.u32 %v9783, 7
    %v9785 = vsub.s32 %v9782, %v9784
    %v9786 = vrot.slane %v9778, %v9785
    %v9788 = vunpack.c.l.s4 1966171168
    %v9789 = vunpack.c.0.s8 %v9788
    %v9790 = vlaneseq
    %v9791 = vshrl.u32 %v9790, 7
    %v9792 = vsub.s32 %v9789, %v9791
    %v9793 = vrot.slane %v9779, %v9792
    %v9794 = vcombine.low %v9786, %v9793
    %v9795 = vcombine.high %v9786, %v9793
    %v9797 = vunpack.c.l.s4 1966171168
    %v9798 = vunpack.c.0.s8 %v9797
    %v9799 = vlaneseq
    %v9800 = vshrl.u32 %v9799, 7
    %v9801 = vsub.s32 %v9798, %v9800
    %v9802 = vrot.slane %v9794, %v9801
    %v9804 = vunpack.c.l.s4 1966171168
    %v9805 = vunpack.c.0.s8 %v9804
    %v9806 = vlaneseq
    %v9807 = vshrl.u32 %v9806, 7
    %v9808 = vsub.s32 %v9805, %v9807
    %v9809 = vrot.slane %v9795, %v9808
    %v9810 = vcombine.high %v9802, %v9802
    %v9862 = vunpack.c.l.b16 %v9187
    %v9863 = vunpack.c.h.b16 %v9187
    %v9864 = vunpack.c.l.b16 %v9188
    %v9865 = vunpack.c.h.b16 %v9188
    %v9866 = vunpack.c.l.b16 %v9189
    %v9867 = vunpack.c.h.b16 %v9189
    %v9868 = vunpack.c.l.b16 %v9190
    %v9869 = vunpack.c.h.b16 %v9190
    %v9870 = vunpack.c.l.b16 %v9191
    %v9871 = vunpack.c.h.b16 %v9191
    %v9872 = vunpack.c.l.b16 %v9192
    %v9873 = vunpack.c.h.b16 %v9192
    %v9874 = vunpack.c.l.b16 %v9193
    %v9875 = vunpack.c.h.b16 %v9193
    %v9876 = vunpack.c.l.b16 %v9194
    %v9877 = vunpack.c.h.b16 %v9194
    %v9878 = vunpack.c.l.b16 %v9195
    %v9879 = vunpack.c.h.b16 %v9195
    %v9880 = vunpack.c.l.b16 %v9196
    %v9881 = vunpack.c.h.b16 %v9196
    %v9882 = vunpack.c.l.b16 %v9197
    %v9883 = vunpack.c.h.b16 %v9197
    %v9884 = vunpack.c.l.b16 %v9198
    %v9885 = vunpack.c.h.b16 %v9198
    %v9886 = vunpack.c.l.b16 %v9199
    %v9887 = vunpack.c.h.b16 %v9199
    %v9888 = vunpack.c.l.b16 %v9200
    %v9889 = vunpack.c.h.b16 %v9200
    %v9890 = vunpack.c.l.b16 %v9201
    %v9891 = vunpack.c.h.b16 %v9201
    %v9892 = vunpack.c.l.b16 %v9202
    %v9893 = vunpack.c.h.b16 %v9202
    %v9894 = vunpack.c.l.b16 %v9203
    %v9895 = vunpack.c.h.b16 %v9203
    %v9896 = vunpack.c.l.b16 %v9204
    %v9897 = vunpack.c.h.b16 %v9204
    %v9898 = vunpack.c.l.b16 %v9205
    %v9899 = vunpack.c.h.b16 %v9205
    %v9900 = vunpack.c.l.b16 %v9206
    %v9901 = vunpack.c.h.b16 %v9206
    %v9902 = vunpack.c.l.b16 %v9207
    %v9903 = vunpack.c.h.b16 %v9207
    %v9904 = vunpack.c.l.b16 %v9208
    %v9905 = vunpack.c.h.b16 %v9208
    %v9906 = vunpack.c.l.b16 %v9209
    %v9907 = vunpack.c.h.b16 %v9209
    %v9908 = vunpack.c.l.b16 %v9210
    %v9909 = vunpack.c.h.b16 %v9210
    %v9910 = vunpack.c.l.b16 %v9211
    %v9911 = vunpack.c.h.b16 %v9211
    %v9912 = vunpack.c.l.b16 %v9212
    %v9913 = vunpack.c.h.b16 %v9212
    %v9914 = vunpack.c.l.b16 %v9213
    %v9915 = vunpack.c.h.b16 %v9213
    %v9916 = vunpack.c.l.b16 %v9214
    %v9917 = vunpack.c.h.b16 %v9214
    %v9918 = vunpack.c.l.b16 %v9215
    %v9919 = vunpack.c.h.b16 %v9215
    %v9920 = vunpack.c.l.b16 %v9216
    %v9921 = vunpack.c.h.b16 %v9216
    %v9922 = vunpack.c.l.b16 %v9217
    %v9923 = vunpack.c.h.b16 %v9217
    %v9924 = vunpack.c.l.b16 %v9218
    %v9925 = vunpack.c.h.b16 %v9218
    %v9926 = vunpack.c.l.b16 %v9219
    %v9927 = vunpack.c.h.b16 %v9219
    %v9928 = vunpack.c.l.b16 %v9220
    %v9929 = vunpack.c.h.b16 %v9220
    %v9930 = vunpack.c.l.b16 %v9221
    %v9931 = vunpack.c.h.b16 %v9221
    %v9932 = vunpack.c.l.b16 %v9222
    %v9933 = vunpack.c.h.b16 %v9222
    %v9934 = vunpack.c.l.b16 %v9223
    %v9935 = vunpack.c.h.b16 %v9223
    %v9936 = vunpack.c.l.b16 %v9224
    %v9937 = vunpack.c.h.b16 %v9224
    %v9938 = vunpack.c.l.b16 %v9225
    %v9939 = vunpack.c.h.b16 %v9225
    %v9940 = vunpack.c.l.b16 %v9226
    %v9941 = vunpack.c.h.b16 %v9226
    %v9942 = vunpack.c.l.b16 %v9227
    %v9943 = vunpack.c.h.b16 %v9227
    %v9944 = vunpack.c.l.b16 %v9228
    %v9945 = vunpack.c.h.b16 %v9228
    %v9946 = vunpack.c.l.b16 %v9229
    %v9947 = vunpack.c.h.b16 %v9229
    %v9948 = vunpack.c.l.b16 %v9230
    %v9949 = vunpack.c.h.b16 %v9230
    %v9950 = vunpack.c.l.b16 %v9231
    %v9951 = vunpack.c.h.b16 %v9231
    %v9952 = vunpack.c.l.b16 %v9232
    %v9953 = vunpack.c.h.b16 %v9232
    %v9954 = vunpack.c.l.b16 %v9233
    %v9955 = vunpack.c.h.b16 %v9233
    %v9956 = vunpack.c.l.b16 %v9234
    %v9957 = vunpack.c.h.b16 %v9234
    %v9958 = vpack.c.b16 %v9864, %v9862
    %v9959 = vpack.c.b16 %v9865, %v9863
    %v9960 = vpack.c.b16 %v9868, %v9866
    %v9961 = vpack.c.b16 %v9869, %v9867
    %v9962 = vpack.c.b16 %v9872, %v9870
    %v9963 = vpack.c.b16 %v9873, %v9871
    %v9964 = vpack.c.b16 %v9876, %v9874
    %v9965 = vpack.c.b16 %v9877, %v9875
    %v9966 = vpack.c.b16 %v9880, %v9878
    %v9967 = vpack.c.b16 %v9881, %v9879
    %v9968 = vpack.c.b16 %v9884, %v9882
    %v9969 = vpack.c.b16 %v9885, %v9883
    %v9970 = vpack.c.b16 %v9888, %v9886
    %v9971 = vpack.c.b16 %v9889, %v9887
    %v9972 = vpack.c.b16 %v9892, %v9890
    %v9973 = vpack.c.b16 %v9893, %v9891
    %v9974 = vpack.c.b16 %v9896, %v9894
    %v9975 = vpack.c.b16 %v9897, %v9895
    %v9976 = vpack.c.b16 %v9900, %v9898
    %v9977 = vpack.c.b16 %v9901, %v9899
    %v9978 = vpack.c.b16 %v9904, %v9902
    %v9979 = vpack.c.b16 %v9905, %v9903
    %v9980 = vpack.c.b16 %v9908, %v9906
    %v9981 = vpack.c.b16 %v9909, %v9907
    %v9982 = vpack.c.b16 %v9912, %v9910
    %v9983 = vpack.c.b16 %v9913, %v9911
    %v9984 = vpack.c.b16 %v9916, %v9914
    %v9985 = vpack.c.b16 %v9917, %v9915
    %v9986 = vpack.c.b16 %v9920, %v9918
    %v9987 = vpack.c.b16 %v9921, %v9919
    %v9988 = vpack.c.b16 %v9924, %v9922
    %v9989 = vpack.c.b16 %v9925, %v9923
    %v9990 = vpack.c.b16 %v9928, %v9926
    %v9991 = vpack.c.b16 %v9929, %v9927
    %v9992 = vpack.c.b16 %v9932, %v9930
    %v9993 = vpack.c.b16 %v9933, %v9931
    %v9994 = vpack.c.b16 %v9936, %v9934
    %v9995 = vpack.c.b16 %v9937, %v9935
    %v9996 = vpack.c.b16 %v9940, %v9938
    %v9997 = vpack.c.b16 %v9941, %v9939
    %v9998 = vpack.c.b16 %v9944, %v9942
    %v9999 = vpack.c.b16 %v9945, %v9943
    %v10000 = vpack.c.b16 %v9948, %v9946
    %v10001 = vpack.c.b16 %v9949, %v9947
    %v10002 = vpack.c.b16 %v9952, %v9950
    %v10003 = vpack.c.b16 %v9953, %v9951
    %v10004 = vpack.c.b16 %v9956, %v9954
    %v10005 = vpack.c.b16 %v9957, %v9955
    %10054 = vmatprep.subr.bf16.mxu0 %v9959
    %10055 = vmatpush1.bf16.msra.mxu0 %v9958
    %10056 = vmatprep.subr.bf16.mxu0 %v9961
    %10057 = vmatpush1.bf16.msra.mxu0 %v9960
    %10058 = vmatprep.subr.bf16.mxu0 %v9963
    %10059 = vmatpush1.bf16.msra.mxu0 %v9962
    %10060 = vmatprep.subr.bf16.mxu0 %v9965
    %10061 = vmatpush1.bf16.msra.mxu0 %v9964
    %10062 = vmatprep.subr.bf16.mxu0 %v9967
    %10063 = vmatpush1.bf16.msra.mxu0 %v9966
    %10064 = vmatprep.subr.bf16.mxu0 %v9969
    %10065 = vmatpush1.bf16.msra.mxu0 %v9968
    %10066 = vmatprep.subr.bf16.mxu0 %v9971
    %10067 = vmatpush1.bf16.msra.mxu0 %v9970
    %10068 = vmatprep.subr.bf16.mxu0 %v9973
    %10069 = vmatpush1.bf16.msra.mxu0 %v9972
    %10070 = vmatprep.subr.bf16.mxu0 %v9975
    %10071 = vmatpush1.bf16.msra.mxu0 %v9974
    %10072 = vmatprep.subr.bf16.mxu0 %v9977
    %10073 = vmatpush1.bf16.msra.mxu0 %v9976
    %10074 = vmatprep.subr.bf16.mxu0 %v9979
    %10075 = vmatpush1.bf16.msra.mxu0 %v9978
    %10076 = vmatprep.subr.bf16.mxu0 %v9981
    %10077 = vmatpush1.bf16.msra.mxu0 %v9980
    %10078 = vmatprep.subr.bf16.mxu0 %v9983
    %10079 = vmatpush1.bf16.msra.mxu0 %v9982
    %10080 = vmatprep.subr.bf16.mxu0 %v9985
    %10081 = vmatpush1.bf16.msra.mxu0 %v9984
    %10082 = vmatprep.subr.bf16.mxu0 %v9987
    %10083 = vmatpush1.bf16.msra.mxu0 %v9986
    %10084 = vmatprep.subr.bf16.mxu0 %v9989
    %10085 = vmatpush1.bf16.msra.mxu0 %v9988
    %10086 = vmatprep.mubr.bf16.mxu0 %v9809
    %10087 = vmatmul.mubr.bf16.gmra.mrb[0].mxu0 %v9802
    %v10088 = vpop.f32.mrb[0].mxu0
    %v10089 = vadd.f32 %v9772, %v10088
    %v10090 = vpop.f32.mrb[0].mxu0
    %v10091 = vadd.f32 %v9774, %v10090
    %v10092 = vpop.f32.mrb[0].mxu0
    %v10093 = vpop.f32.mrb[0].mxu0
    %10094 = vdwg.mxu0
    %10095 = vmatprep.subr.bf16.mxu0 %v9991
    %10096 = vmatpush1.bf16.msra.mxu0 %v9990
    %10097 = vmatprep.subr.bf16.mxu0 %v9993
    %10098 = vmatpush1.bf16.msra.mxu0 %v9992
    %10099 = vmatprep.subr.bf16.mxu0 %v9995
    %10100 = vmatpush1.bf16.msra.mxu0 %v9994
    %10101 = vmatprep.subr.bf16.mxu0 %v9997
    %10102 = vmatpush1.bf16.msra.mxu0 %v9996
    %10103 = vmatprep.subr.bf16.mxu0 %v9999
    %10104 = vmatpush1.bf16.msra.mxu0 %v9998
    %10105 = vmatprep.subr.bf16.mxu0 %v10001
    %10106 = vmatpush1.bf16.msra.mxu0 %v10000
    %10107 = vmatprep.subr.bf16.mxu0 %v10003
    %10108 = vmatpush1.bf16.msra.mxu0 %v10002
    %10109 = vmatprep.subr.bf16.mxu0 %v10005
    %10110 = vmatpush1.bf16.msra.mxu0 %v10004
    %10111 = vmatprep.subr.bf16.mxu0 0
    %10112 = vmatpush1.bf16.msra.mxu0 0
    %10113 = vmatprep.subr.bf16.mxu0 0
    %10114 = vmatpush1.bf16.msra.mxu0 0
    %10115 = vmatprep.subr.bf16.mxu0 0
    %10116 = vmatpush1.bf16.msra.mxu0 0
    %10117 = vmatprep.subr.bf16.mxu0 0
    %10118 = vmatpush1.bf16.msra.mxu0 0
    %10119 = vmatprep.subr.bf16.mxu0 0
    %10120 = vmatpush1.bf16.msra.mxu0 0
    %10121 = vmatprep.subr.bf16.mxu0 0
    %10122 = vmatpush1.bf16.msra.mxu0 0
    %10123 = vmatprep.subr.bf16.mxu0 0
    %10124 = vmatpush1.bf16.msra.mxu0 0
    %10125 = vmatprep.subr.bf16.mxu0 0
    %10126 = vmatpush1.bf16.msra.mxu0 0
    %10127 = vmatprep.mubr.bf16.mxu0 0
    %10128 = vmatmul.mubr.bf16.gmra.mrb[0].mxu0 %v9810
    %v10129 = vpop.f32.mrb[0].mxu0
    %v10130 = vadd.f32 %v10089, %v10129
    %v10131 = vpop.f32.mrb[0].mxu0
    %v10132 = vadd.f32 %v10091, %v10131
    %v10133 = vpop.f32.mrb[0].mxu0
    %v10134 = vpop.f32.mrb[0].mxu0
    %10135 = vdwg.mxu0
    %s10136 = scalar_lea.vmem [#allocation4], 8
    %v10137 = vld [vmem:[%s10136] sm:$0xf]
    %v10138 = vld [vmem:[%s10136 + $0x4] sm:$0xf]
    %v10139 = vld [vmem:[%s10136 + $0x10] sm:$0xf]
    %v10140 = vld [vmem:[%s10136 + $0x14] sm:$0xf]
    %v10141 = vpack.c.bf16 %v10137, %v10137
    %v10142 = vpack.c.bf16 %v10138, %v10138
    %v10143 = vpack.c.bf16 %v10139, %v10139
    %v10144 = vpack.c.bf16 %v10140, %v10140
    %v10146 = vshrl.u32 %v10141, 16
    %v10148 = vshll.u32 %v10141, 16
    %v10150 = vrot.slane %v10148, 1
    %v10151 = vor.u32 %v10146, %v10150
    %v10153 = vshrl.u32 %v10142, 16
    %v10155 = vshll.u32 %v10142, 16
    %v10157 = vrot.slane %v10155, 1
    %v10158 = vor.u32 %v10153, %v10157
    %v10160 = vshrl.u32 %v10143, 16
    %v10162 = vshll.u32 %v10143, 16
    %v10164 = vrot.slane %v10162, 1
    %v10165 = vor.u32 %v10160, %v10164
    %v10167 = vshrl.u32 %v10144, 16
    %v10169 = vshll.u32 %v10144, 16
    %v10171 = vrot.slane %v10169, 1
    %v10172 = vor.u32 %v10167, %v10171
    %v10177 = vrot.slane %v10141, 1
    %v10178 = vrot.slane %v10142, 1
    %v10179 = vrot.slane %v10143, 1
    %v10180 = vrot.slane %v10144, 1
    %v10181 = vcombine.low %v10141, %v10151
    %v10183 = vunpack.c.l.s4 1966171168
    %v10184 = vunpack.c.0.s8 %v10183
    %v10185 = vlaneseq
    %v10186 = vshrl.u32 %v10185, 7
    %v10187 = vsub.s32 %v10184, %v10186
    %v10188 = vrot.slane %v10181, %v10187
    %v10190 = vunpack.c.l.s4 1966171168
    %v10191 = vunpack.c.0.s8 %v10190
    %v10192 = vlaneseq
    %v10193 = vshrl.u32 %v10192, 7
    %v10194 = vsub.s32 %v10191, %v10193
    %v10195 = vrot.slane %v10177, %v10194
    %v10196 = vcombine.low %v10188, %v10195
    %v10198 = vunpack.c.l.s4 1966171168
    %v10199 = vunpack.c.0.s8 %v10198
    %v10200 = vlaneseq
    %v10201 = vshrl.u32 %v10200, 7
    %v10202 = vsub.s32 %v10199, %v10201
    %v10203 = vrot.slane %v10196, %v10202
    %v10204 = vcombine.low %v10142, %v10158
    %v10206 = vunpack.c.l.s4 1966171168
    %v10207 = vunpack.c.0.s8 %v10206
    %v10208 = vlaneseq
    %v10209 = vshrl.u32 %v10208, 7
    %v10210 = vsub.s32 %v10207, %v10209
    %v10211 = vrot.slane %v10204, %v10210
    %v10213 = vunpack.c.l.s4 1966171168
    %v10214 = vunpack.c.0.s8 %v10213
    %v10215 = vlaneseq
    %v10216 = vshrl.u32 %v10215, 7
    %v10217 = vsub.s32 %v10214, %v10216
    %v10218 = vrot.slane %v10178, %v10217
    %v10219 = vcombine.low %v10211, %v10218
    %v10221 = vunpack.c.l.s4 1966171168
    %v10222 = vunpack.c.0.s8 %v10221
    %v10223 = vlaneseq
    %v10224 = vshrl.u32 %v10223, 7
    %v10225 = vsub.s32 %v10222, %v10224
    %v10226 = vrot.slane %v10219, %v10225
    %v10227 = vcombine.low %v10143, %v10165
    %v10229 = vunpack.c.l.s4 1966171168
    %v10230 = vunpack.c.0.s8 %v10229
    %v10231 = vlaneseq
    %v10232 = vshrl.u32 %v10231, 7
    %v10233 = vsub.s32 %v10230, %v10232
    %v10234 = vrot.slane %v10227, %v10233
    %v10236 = vunpack.c.l.s4 1966171168
    %v10237 = vunpack.c.0.s8 %v10236
    %v10238 = vlaneseq
    %v10239 = vshrl.u32 %v10238, 7
    %v10240 = vsub.s32 %v10237, %v10239
    %v10241 = vrot.slane %v10179, %v10240
    %v10242 = vcombine.low %v10234, %v10241
    %v10244 = vunpack.c.l.s4 1966171168
    %v10245 = vunpack.c.0.s8 %v10244
    %v10246 = vlaneseq
    %v10247 = vshrl.u32 %v10246, 7
    %v10248 = vsub.s32 %v10245, %v10247
    %v10249 = vrot.slane %v10242, %v10248
    %v10250 = vcombine.low %v10144, %v10172
    %v10252 = vunpack.c.l.s4 1966171168
    %v10253 = vunpack.c.0.s8 %v10252
    %v10254 = vlaneseq
    %v10255 = vshrl.u32 %v10254, 7
    %v10256 = vsub.s32 %v10253, %v10255
    %v10257 = vrot.slane %v10250, %v10256
    %v10259 = vunpack.c.l.s4 1966171168
    %v10260 = vunpack.c.0.s8 %v10259
    %v10261 = vlaneseq
    %v10262 = vshrl.u32 %v10261, 7
    %v10263 = vsub.s32 %v10260, %v10262
    %v10264 = vrot.slane %v10180, %v10263
    %v10265 = vcombine.low %v10257, %v10264
    %v10267 = vunpack.c.l.s4 1966171168
    %v10268 = vunpack.c.0.s8 %v10267
    %v10269 = vlaneseq
    %v10270 = vshrl.u32 %v10269, 7
    %v10271 = vsub.s32 %v10268, %v10270
    %v10272 = vrot.slane %v10265, %v10271
    %s10273 = scalar_lea.vmem [#allocation17], 768
    %v10274 = vld [vmem:[%s10273] sm:$0xff]
    %v10275 = vld [vmem:[%s10273 + $0x8] sm:$0xff]
    %v10276 = vld [vmem:[%s10273 + $0x10] sm:$0xff]
    %v10277 = vld [vmem:[%s10273 + $0x18] sm:$0xff]
    %v10278 = vld [vmem:[%s10273 + $0x20] sm:$0xff]
    %v10279 = vld [vmem:[%s10273 + $0x28] sm:$0xff]
    %v10280 = vld [vmem:[%s10273 + $0x30] sm:$0xff]
    %v10281 = vld [vmem:[%s10273 + $0x38] sm:$0xff]
    %v10282 = vld [vmem:[%s10273 + $0x40] sm:$0xff]
    %v10283 = vld [vmem:[%s10273 + $0x48] sm:$0xff]
    %v10284 = vld [vmem:[%s10273 + $0x50] sm:$0xff]
    %v10285 = vld [vmem:[%s10273 + $0x58] sm:$0xff]
    %v10286 = vld [vmem:[%s10273 + $0x60] sm:$0xff]
    %v10287 = vld [vmem:[%s10273 + $0x68] sm:$0xff]
    %v10288 = vld [vmem:[%s10273 + $0x70] sm:$0xff]
    %v10289 = vld [vmem:[%s10273 + $0x78] sm:$0xff]
    %v10290 = vld [vmem:[%s10273 + $0x80] sm:$0xff]
    %v10291 = vld [vmem:[%s10273 + $0x88] sm:$0xff]
    %v10292 = vld [vmem:[%s10273 + $0x90] sm:$0xff]
    %v10293 = vld [vmem:[%s10273 + $0x98] sm:$0xff]
    %v10294 = vld [vmem:[%s10273 + $0xa0] sm:$0xff]
    %v10295 = vld [vmem:[%s10273 + $0xa8] sm:$0xff]
    %v10296 = vld [vmem:[%s10273 + $0xb0] sm:$0xff]
    %v10297 = vld [vmem:[%s10273 + $0xb8] sm:$0xff]
    %v10298 = vld [vmem:[%s10273 + $0xc0] sm:$0xff]
    %v10299 = vld [vmem:[%s10273 + $0xc8] sm:$0xff]
    %v10300 = vld [vmem:[%s10273 + $0xd0] sm:$0xff]
    %v10301 = vld [vmem:[%s10273 + $0xd8] sm:$0xff]
    %v10302 = vld [vmem:[%s10273 + $0xe0] sm:$0xff]
    %v10303 = vld [vmem:[%s10273 + $0xe8] sm:$0xff]
    %v10304 = vld [vmem:[%s10273 + $0xf0] sm:$0xff]
    %v10305 = vld [vmem:[%s10273 + $0xf8] sm:$0xff]
    %v10306 = vld [vmem:[%s10273 + $0x100] sm:$0xff]
    %v10307 = vld [vmem:[%s10273 + $0x108] sm:$0xff]
    %v10308 = vld [vmem:[%s10273 + $0x110] sm:$0xff]
    %v10309 = vld [vmem:[%s10273 + $0x118] sm:$0xff]
    %v10310 = vld [vmem:[%s10273 + $0x120] sm:$0xff]
    %v10311 = vld [vmem:[%s10273 + $0x128] sm:$0xff]
    %v10312 = vld [vmem:[%s10273 + $0x130] sm:$0xff]
    %v10313 = vld [vmem:[%s10273 + $0x138] sm:$0xff]
    %v10314 = vld [vmem:[%s10273 + $0x140] sm:$0xff]
    %v10315 = vld [vmem:[%s10273 + $0x148] sm:$0xff]
    %v10316 = vld [vmem:[%s10273 + $0x150] sm:$0xff]
    %v10317 = vld [vmem:[%s10273 + $0x158] sm:$0xff]
    %v10318 = vld [vmem:[%s10273 + $0x160] sm:$0xff]
    %v10319 = vld [vmem:[%s10273 + $0x168] sm:$0xff]
    %v10320 = vld [vmem:[%s10273 + $0x170] sm:$0xff]
    %v10321 = vld [vmem:[%s10273 + $0x178] sm:$0xff]
    %v10322 = vcombine.low %v10203, %v10226
    %v10323 = vcombine.low %v10249, %v10272
    %v10325 = vunpack.c.l.s4 1966171168
    %v10326 = vunpack.c.0.s8 %v10325
    %v10327 = vlaneseq
    %v10328 = vshrl.u32 %v10327, 7
    %v10329 = vsub.s32 %v10326, %v10328
    %v10330 = vrot.slane %v10322, %v10329
    %v10332 = vunpack.c.l.s4 1966171168
    %v10333 = vunpack.c.0.s8 %v10332
    %v10334 = vlaneseq
    %v10335 = vshrl.u32 %v10334, 7
    %v10336 = vsub.s32 %v10333, %v10335
    %v10337 = vrot.slane %v10323, %v10336
    %v10338 = vcombine.low %v10330, %v10337
    %v10339 = vcombine.high %v10330, %v10337
    %v10341 = vunpack.c.l.s4 1966171168
    %v10342 = vunpack.c.0.s8 %v10341
    %v10343 = vlaneseq
    %v10344 = vshrl.u32 %v10343, 7
    %v10345 = vsub.s32 %v10342, %v10344
    %v10346 = vrot.slane %v10338, %v10345
    %v10348 = vunpack.c.l.s4 1966171168
    %v10349 = vunpack.c.0.s8 %v10348
    %v10350 = vlaneseq
    %v10351 = vshrl.u32 %v10350, 7
    %v10352 = vsub.s32 %v10349, %v10351
    %v10353 = vrot.slane %v10339, %v10352
    %v10354 = vcombine.high %v10346, %v10346
    %v10406 = vunpack.c.l.b16 %v10274
    %v10407 = vunpack.c.h.b16 %v10274
    %v10408 = vunpack.c.l.b16 %v10275
    %v10409 = vunpack.c.h.b16 %v10275
    %v10410 = vunpack.c.l.b16 %v10276
    %v10411 = vunpack.c.h.b16 %v10276
    %v10412 = vunpack.c.l.b16 %v10277
    %v10413 = vunpack.c.h.b16 %v10277
    %v10414 = vunpack.c.l.b16 %v10278
    %v10415 = vunpack.c.h.b16 %v10278
    %v10416 = vunpack.c.l.b16 %v10279
    %v10417 = vunpack.c.h.b16 %v10279
    %v10418 = vunpack.c.l.b16 %v10280
    %v10419 = vunpack.c.h.b16 %v10280
    %v10420 = vunpack.c.l.b16 %v10281
    %v10421 = vunpack.c.h.b16 %v10281
    %v10422 = vunpack.c.l.b16 %v10282
    %v10423 = vunpack.c.h.b16 %v10282
    %v10424 = vunpack.c.l.b16 %v10283
    %v10425 = vunpack.c.h.b16 %v10283
    %v10426 = vunpack.c.l.b16 %v10284
    %v10427 = vunpack.c.h.b16 %v10284
    %v10428 = vunpack.c.l.b16 %v10285
    %v10429 = vunpack.c.h.b16 %v10285
    %v10430 = vunpack.c.l.b16 %v10286
    %v10431 = vunpack.c.h.b16 %v10286
    %v10432 = vunpack.c.l.b16 %v10287
    %v10433 = vunpack.c.h.b16 %v10287
    %v10434 = vunpack.c.l.b16 %v10288
    %v10435 = vunpack.c.h.b16 %v10288
    %v10436 = vunpack.c.l.b16 %v10289
    %v10437 = vunpack.c.h.b16 %v10289
    %v10438 = vunpack.c.l.b16 %v10290
    %v10439 = vunpack.c.h.b16 %v10290
    %v10440 = vunpack.c.l.b16 %v10291
    %v10441 = vunpack.c.h.b16 %v10291
    %v10442 = vunpack.c.l.b16 %v10292
    %v10443 = vunpack.c.h.b16 %v10292
    %v10444 = vunpack.c.l.b16 %v10293
    %v10445 = vunpack.c.h.b16 %v10293
    %v10446 = vunpack.c.l.b16 %v10294
    %v10447 = vunpack.c.h.b16 %v10294
    %v10448 = vunpack.c.l.b16 %v10295
    %v10449 = vunpack.c.h.b16 %v10295
    %v10450 = vunpack.c.l.b16 %v10296
    %v10451 = vunpack.c.h.b16 %v10296
    %v10452 = vunpack.c.l.b16 %v10297
    %v10453 = vunpack.c.h.b16 %v10297
    %v10454 = vunpack.c.l.b16 %v10298
    %v10455 = vunpack.c.h.b16 %v10298
    %v10456 = vunpack.c.l.b16 %v10299
    %v10457 = vunpack.c.h.b16 %v10299
    %v10458 = vunpack.c.l.b16 %v10300
    %v10459 = vunpack.c.h.b16 %v10300
    %v10460 = vunpack.c.l.b16 %v10301
    %v10461 = vunpack.c.h.b16 %v10301
    %v10462 = vunpack.c.l.b16 %v10302
    %v10463 = vunpack.c.h.b16 %v10302
    %v10464 = vunpack.c.l.b16 %v10303
    %v10465 = vunpack.c.h.b16 %v10303
    %v10466 = vunpack.c.l.b16 %v10304
    %v10467 = vunpack.c.h.b16 %v10304
    %v10468 = vunpack.c.l.b16 %v10305
    %v10469 = vunpack.c.h.b16 %v10305
    %v10470 = vunpack.c.l.b16 %v10306
    %v10471 = vunpack.c.h.b16 %v10306
    %v10472 = vunpack.c.l.b16 %v10307
    %v10473 = vunpack.c.h.b16 %v10307
    %v10474 = vunpack.c.l.b16 %v10308
    %v10475 = vunpack.c.h.b16 %v10308
    %v10476 = vunpack.c.l.b16 %v10309
    %v10477 = vunpack.c.h.b16 %v10309
    %v10478 = vunpack.c.l.b16 %v10310
    %v10479 = vunpack.c.h.b16 %v10310
    %v10480 = vunpack.c.l.b16 %v10311
    %v10481 = vunpack.c.h.b16 %v10311
    %v10482 = vunpack.c.l.b16 %v10312
    %v10483 = vunpack.c.h.b16 %v10312
    %v10484 = vunpack.c.l.b16 %v10313
    %v10485 = vunpack.c.h.b16 %v10313
    %v10486 = vunpack.c.l.b16 %v10314
    %v10487 = vunpack.c.h.b16 %v10314
    %v10488 = vunpack.c.l.b16 %v10315
    %v10489 = vunpack.c.h.b16 %v10315
    %v10490 = vunpack.c.l.b16 %v10316
    %v10491 = vunpack.c.h.b16 %v10316
    %v10492 = vunpack.c.l.b16 %v10317
    %v10493 = vunpack.c.h.b16 %v10317
    %v10494 = vunpack.c.l.b16 %v10318
    %v10495 = vunpack.c.h.b16 %v10318
    %v10496 = vunpack.c.l.b16 %v10319
    %v10497 = vunpack.c.h.b16 %v10319
    %v10498 = vunpack.c.l.b16 %v10320
    %v10499 = vunpack.c.h.b16 %v10320
    %v10500 = vunpack.c.l.b16 %v10321
    %v10501 = vunpack.c.h.b16 %v10321
    %v10502 = vpack.c.b16 %v10408, %v10406
    %v10503 = vpack.c.b16 %v10409, %v10407
    %v10504 = vpack.c.b16 %v10412, %v10410
    %v10505 = vpack.c.b16 %v10413, %v10411
    %v10506 = vpack.c.b16 %v10416, %v10414
    %v10507 = vpack.c.b16 %v10417, %v10415
    %v10508 = vpack.c.b16 %v10420, %v10418
    %v10509 = vpack.c.b16 %v10421, %v10419
    %v10510 = vpack.c.b16 %v10424, %v10422
    %v10511 = vpack.c.b16 %v10425, %v10423
    %v10512 = vpack.c.b16 %v10428, %v10426
    %v10513 = vpack.c.b16 %v10429, %v10427
    %v10514 = vpack.c.b16 %v10432, %v10430
    %v10515 = vpack.c.b16 %v10433, %v10431
    %v10516 = vpack.c.b16 %v10436, %v10434
    %v10517 = vpack.c.b16 %v10437, %v10435
    %v10518 = vpack.c.b16 %v10440, %v10438
    %v10519 = vpack.c.b16 %v10441, %v10439
    %v10520 = vpack.c.b16 %v10444, %v10442
    %v10521 = vpack.c.b16 %v10445, %v10443
    %v10522 = vpack.c.b16 %v10448, %v10446
    %v10523 = vpack.c.b16 %v10449, %v10447
    %v10524 = vpack.c.b16 %v10452, %v10450
    %v10525 = vpack.c.b16 %v10453, %v10451
    %v10526 = vpack.c.b16 %v10456, %v10454
    %v10527 = vpack.c.b16 %v10457, %v10455
    %v10528 = vpack.c.b16 %v10460, %v10458
    %v10529 = vpack.c.b16 %v10461, %v10459
    %v10530 = vpack.c.b16 %v10464, %v10462
    %v10531 = vpack.c.b16 %v10465, %v10463
    %v10532 = vpack.c.b16 %v10468, %v10466
    %v10533 = vpack.c.b16 %v10469, %v10467
    %v10534 = vpack.c.b16 %v10472, %v10470
    %v10535 = vpack.c.b16 %v10473, %v10471
    %v10536 = vpack.c.b16 %v10476, %v10474
    %v10537 = vpack.c.b16 %v10477, %v10475
    %v10538 = vpack.c.b16 %v10480, %v10478
    %v10539 = vpack.c.b16 %v10481, %v10479
    %v10540 = vpack.c.b16 %v10484, %v10482
    %v10541 = vpack.c.b16 %v10485, %v10483
    %v10542 = vpack.c.b16 %v10488, %v10486
    %v10543 = vpack.c.b16 %v10489, %v10487
    %v10544 = vpack.c.b16 %v10492, %v10490
    %v10545 = vpack.c.b16 %v10493, %v10491
    %v10546 = vpack.c.b16 %v10496, %v10494
    %v10547 = vpack.c.b16 %v10497, %v10495
    %v10548 = vpack.c.b16 %v10500, %v10498
    %v10549 = vpack.c.b16 %v10501, %v10499
    %10598 = vmatprep.subr.bf16.mxu0 %v10503
    %10599 = vmatpush1.bf16.msra.mxu0 %v10502
    %10600 = vmatprep.subr.bf16.mxu0 %v10505
    %10601 = vmatpush1.bf16.msra.mxu0 %v10504
    %10602 = vmatprep.subr.bf16.mxu0 %v10507
    %10603 = vmatpush1.bf16.msra.mxu0 %v10506
    %10604 = vmatprep.subr.bf16.mxu0 %v10509
    %10605 = vmatpush1.bf16.msra.mxu0 %v10508
    %10606 = vmatprep.subr.bf16.mxu0 %v10511
    %10607 = vmatpush1.bf16.msra.mxu0 %v10510
    %10608 = vmatprep.subr.bf16.mxu0 %v10513
    %10609 = vmatpush1.bf16.msra.mxu0 %v10512
    %10610 = vmatprep.subr.bf16.mxu0 %v10515
    %10611 = vmatpush1.bf16.msra.mxu0 %v10514
    %10612 = vmatprep.subr.bf16.mxu0 %v10517
    %10613 = vmatpush1.bf16.msra.mxu0 %v10516
    %10614 = vmatprep.subr.bf16.mxu0 %v10519
    %10615 = vmatpush1.bf16.msra.mxu0 %v10518
    %10616 = vmatprep.subr.bf16.mxu0 %v10521
    %10617 = vmatpush1.bf16.msra.mxu0 %v10520
    %10618 = vmatprep.subr.bf16.mxu0 %v10523
    %10619 = vmatpush1.bf16.msra.mxu0 %v10522
    %10620 = vmatprep.subr.bf16.mxu0 %v10525
    %10621 = vmatpush1.bf16.msra.mxu0 %v10524
    %10622 = vmatprep.subr.bf16.mxu0 %v10527
    %10623 = vmatpush1.bf16.msra.mxu0 %v10526
    %10624 = vmatprep.subr.bf16.mxu0 %v10529
    %10625 = vmatpush1.bf16.msra.mxu0 %v10528
    %10626 = vmatprep.subr.bf16.mxu0 %v10531
    %10627 = vmatpush1.bf16.msra.mxu0 %v10530
    %10628 = vmatprep.subr.bf16.mxu0 %v10533
    %10629 = vmatpush1.bf16.msra.mxu0 %v10532
    %10630 = vmatprep.mubr.bf16.mxu0 %v10353
    %10631 = vmatmul.mubr.bf16.gmra.mrb[0].mxu0 %v10346
    %v10632 = vpop.f32.mrb[0].mxu0
    %v10633 = vadd.f32 0.0, %v10632
    %v10634 = vpop.f32.mrb[0].mxu0
    %v10635 = vadd.f32 0.0, %v10634
    %v10636 = vpop.f32.mrb[0].mxu0
    %v10637 = vpop.f32.mrb[0].mxu0
    %10638 = vdwg.mxu0
    %10639 = vmatprep.subr.bf16.mxu0 %v10535
    %10640 = vmatpush1.bf16.msra.mxu0 %v10534
    %10641 = vmatprep.subr.bf16.mxu0 %v10537
    %10642 = vmatpush1.bf16.msra.mxu0 %v10536
    %10643 = vmatprep.subr.bf16.mxu0 %v10539
    %10644 = vmatpush1.bf16.msra.mxu0 %v10538
    %10645 = vmatprep.subr.bf16.mxu0 %v10541
    %10646 = vmatpush1.bf16.msra.mxu0 %v10540
    %10647 = vmatprep.subr.bf16.mxu0 %v10543
    %10648 = vmatpush1.bf16.msra.mxu0 %v10542
    %10649 = vmatprep.subr.bf16.mxu0 %v10545
    %10650 = vmatpush1.bf16.msra.mxu0 %v10544
    %10651 = vmatprep.subr.bf16.mxu0 %v10547
    %10652 = vmatpush1.bf16.msra.mxu0 %v10546
    %10653 = vmatprep.subr.bf16.mxu0 %v10549
    %10654 = vmatpush1.bf16.msra.mxu0 %v10548
    %10655 = vmatprep.subr.bf16.mxu0 0
    %10656 = vmatpush1.bf16.msra.mxu0 0
    %10657 = vmatprep.subr.bf16.mxu0 0
    %10658 = vmatpush1.bf16.msra.mxu0 0
    %10659 = vmatprep.subr.bf16.mxu0 0
    %10660 = vmatpush1.bf16.msra.mxu0 0
    %10661 = vmatprep.subr.bf16.mxu0 0
    %10662 = vmatpush1.bf16.msra.mxu0 0
    %10663 = vmatprep.subr.bf16.mxu0 0
    %10664 = vmatpush1.bf16.msra.mxu0 0
    %10665 = vmatprep.subr.bf16.mxu0 0
    %10666 = vmatpush1.bf16.msra.mxu0 0
    %10667 = vmatprep.subr.bf16.mxu0 0
    %10668 = vmatpush1.bf16.msra.mxu0 0
    %10669 = vmatprep.subr.bf16.mxu0 0
    %10670 = vmatpush1.bf16.msra.mxu0 0
    %10671 = vmatprep.mubr.bf16.mxu0 0
    %10672 = vmatmul.mubr.bf16.gmra.mrb[0].mxu0 %v10354
    %v10673 = vpop.f32.mrb[0].mxu0
    %v10674 = vadd.f32 %v10633, %v10673
    %v10675 = vpop.f32.mrb[0].mxu0
    %v10676 = vadd.f32 %v10635, %v10675
    %v10677 = vpop.f32.mrb[0].mxu0
    %v10678 = vpop.f32.mrb[0].mxu0
    %10679 = vdwg.mxu0
    %v10680 = vadd.f32 %v10130, %v10674
    %v10681 = vadd.f32 %v10132, %v10676
    %v10682 = vld [vmem:[#allocation19] ss:$2 sm:$0x3]
    %v10684 = vlaneseq
    %v10685 = vshrl.u32 %v10684, 7
    %v10686 = vsub.s32 0, %v10685
    %v10687 = vrot.slane %v10682, %v10686
    %v10688 = vlaneseq
    %v10689 = vshrl.u32 %v10688, 7
    %v10690 = vsub.s32 1, %v10689
    %v10691 = vrot.slane %v10682, %v10690
    %v10694 = vmul.f32 %v10680, %v10687
    %v10695 = vmul.f32 %v10681, %v10691
    %s10696 = scalar_lea.vmem [#allocation19], 1
    %v10697 = vld [vmem:[%s10696] ss:$2 sm:$0x3]
    %v10699 = vlaneseq
    %v10700 = vshrl.u32 %v10699, 7
    %v10701 = vsub.s32 0, %v10700
    %v10702 = vrot.slane %v10697, %v10701
    %v10703 = vlaneseq
    %v10704 = vshrl.u32 %v10703, 7
    %v10705 = vsub.s32 1, %v10704
    %v10706 = vrot.slane %v10697, %v10705
    %v10709 = vadd.f32 %v10694, %v10702
    %v10710 = vadd.f32 %v10695, %v10706
    %v10711 = vmax.f32 %v10709, 0.0
    %v10712 = vmax.f32 %v10710, 0.0
    %v10715 = vcombine.low %v10711, %v10712
    %v10716 = vcombine.high %v10711, %v10712
    %v10718 = vunpack.c.l.s4 1983009808
    %v10719 = vunpack.c.0.s8 %v10718
    %v10720 = vlaneseq
    %v10721 = vshrl.u32 %v10720, 7
    %v10722 = vsub.s32 %v10719, %v10721
    %v10723 = vrot.slane %v10715, %v10722
    %v10725 = vunpack.c.l.s4 1983009808
    %v10726 = vunpack.c.0.s8 %v10725
    %v10727 = vlaneseq
    %v10728 = vshrl.u32 %v10727, 7
    %v10729 = vsub.s32 %v10726, %v10728
    %v10730 = vrot.slane %v10716, %v10729
    %v10731 = vcombine.high %v10723, %v10723
    %v10732 = vcombine.high %v10730, %v10730
    %v10734 = vunpack.c.l.s4 1983009808
    %v10735 = vunpack.c.0.s8 %v10734
    %v10736 = vlaneseq
    %v10737 = vshrl.u32 %v10736, 7
    %v10738 = vsub.s32 %v10735, %v10737
    %v10739 = vrot.slane %v10723, %v10738
    %v10740 = vcombine.high %v10739, %v10739
    %v10742 = vunpack.c.l.s4 1983009808
    %v10743 = vunpack.c.0.s8 %v10742
    %v10744 = vlaneseq
    %v10745 = vshrl.u32 %v10744, 7
    %v10746 = vsub.s32 %v10743, %v10745
    %v10747 = vrot.slane %v10731, %v10746
    %v10748 = vcombine.high %v10747, %v10747
    %v10750 = vunpack.c.l.s4 1983009808
    %v10751 = vunpack.c.0.s8 %v10750
    %v10752 = vlaneseq
    %v10753 = vshrl.u32 %v10752, 7
    %v10754 = vsub.s32 %v10751, %v10753
    %v10755 = vrot.slane %v10730, %v10754
    %v10756 = vcombine.high %v10755, %v10755
    %v10758 = vunpack.c.l.s4 1983009808
    %v10759 = vunpack.c.0.s8 %v10758
    %v10760 = vlaneseq
    %v10761 = vshrl.u32 %v10760, 7
    %v10762 = vsub.s32 %v10759, %v10761
    %v10763 = vrot.slane %v10732, %v10762
    %v10764 = vcombine.high %v10763, %v10763
    %v10773 = vsel %vm8909, %v10739, -inf
    %v10774 = vrot.slane %v10773, 4
    %v10775 = vmax.f32 %v10773, %v10774
    %v10776 = vrot.slane %v10775, 2
    %v10777 = vmax.f32 %v10775, %v10776
    %v10778 = vrot.slane %v10777, 1
    %v10779 = vmax.f32 %v10777, %v10778
    %v10780 = vsel %vm8909, %v10740, -inf
    %v10781 = vrot.slane %v10780, 4
    %v10782 = vmax.f32 %v10780, %v10781
    %v10783 = vrot.slane %v10782, 2
    %v10784 = vmax.f32 %v10782, %v10783
    %v10785 = vrot.slane %v10784, 1
    %v10786 = vmax.f32 %v10784, %v10785
    %v10787 = vsel %vm8909, %v10747, -inf
    %v10788 = vrot.slane %v10787, 4
    %v10789 = vmax.f32 %v10787, %v10788
    %v10790 = vrot.slane %v10789, 2
    %v10791 = vmax.f32 %v10789, %v10790
    %v10792 = vrot.slane %v10791, 1
    %v10793 = vmax.f32 %v10791, %v10792
    %v10794 = vsel %vm8909, %v10748, -inf
    %v10795 = vrot.slane %v10794, 4
    %v10796 = vmax.f32 %v10794, %v10795
    %v10797 = vrot.slane %v10796, 2
    %v10798 = vmax.f32 %v10796, %v10797
    %v10799 = vrot.slane %v10798, 1
    %v10800 = vmax.f32 %v10798, %v10799
    %v10801 = vsel %vm8909, %v10755, -inf
    %v10802 = vrot.slane %v10801, 4
    %v10803 = vmax.f32 %v10801, %v10802
    %v10804 = vrot.slane %v10803, 2
    %v10805 = vmax.f32 %v10803, %v10804
    %v10806 = vrot.slane %v10805, 1
    %v10807 = vmax.f32 %v10805, %v10806
    %v10808 = vsel %vm8909, %v10756, -inf
    %v10809 = vrot.slane %v10808, 4
    %v10810 = vmax.f32 %v10808, %v10809
    %v10811 = vrot.slane %v10810, 2
    %v10812 = vmax.f32 %v10810, %v10811
    %v10813 = vrot.slane %v10812, 1
    %v10814 = vmax.f32 %v10812, %v10813
    %v10815 = vsel %vm8909, %v10763, -inf
    %v10816 = vrot.slane %v10815, 4
    %v10817 = vmax.f32 %v10815, %v10816
    %v10818 = vrot.slane %v10817, 2
    %v10819 = vmax.f32 %v10817, %v10818
    %v10820 = vrot.slane %v10819, 1
    %v10821 = vmax.f32 %v10819, %v10820
    %v10822 = vsel %vm8909, %v10764, -inf
    %v10823 = vrot.slane %v10822, 4
    %v10824 = vmax.f32 %v10822, %v10823
    %v10825 = vrot.slane %v10824, 2
    %v10826 = vmax.f32 %v10824, %v10825
    %v10827 = vrot.slane %v10826, 1
    %v10828 = vmax.f32 %v10826, %v10827
    %v10829 = vmax.f32 %v10779, %v10793
    %v10830 = vmax.f32 %v10786, %v10800
    %v10831 = vmax.f32 %v10807, %v10821
    %v10832 = vmax.f32 %v10814, %v10828
    %v10833 = vpack.c.bf16 %v10829, %v10829
    %v10834 = vpack.c.bf16 %v10830, %v10830
    %v10835 = vpack.c.bf16 %v10831, %v10831
    %v10836 = vpack.c.bf16 %v10832, %v10832
    %v10837 = vld [vmem:[#allocation20] sm:$0xff]
    %v10838 = vld [vmem:[#allocation20 + $0x8] sm:$0xff]
    %v10839 = vld [vmem:[#allocation20 + $0x10] sm:$0xff]
    %v10840 = vld [vmem:[#allocation20 + $0x18] sm:$0xff]
    %v10841 = vld [vmem:[#allocation20 + $0x20] sm:$0xff]
    %v10842 = vld [vmem:[#allocation20 + $0x28] sm:$0xff]
    %v10843 = vld [vmem:[#allocation20 + $0x30] sm:$0xff]
    %v10844 = vld [vmem:[#allocation20 + $0x38] sm:$0xff]
    %v10845 = vld [vmem:[#allocation20 + $0x40] sm:$0xff]
    %v10846 = vld [vmem:[#allocation20 + $0x48] sm:$0xff]
    %v10847 = vld [vmem:[#allocation20 + $0x50] sm:$0xff]
    %v10848 = vld [vmem:[#allocation20 + $0x58] sm:$0xff]
    %v10849 = vld [vmem:[#allocation20 + $0x60] sm:$0xff]
    %v10850 = vld [vmem:[#allocation20 + $0x68] sm:$0xff]
    %v10851 = vld [vmem:[#allocation20 + $0x70] sm:$0xff]
    %v10852 = vld [vmem:[#allocation20 + $0x78] sm:$0xff]
    %v10853 = vld [vmem:[#allocation20 + $0x80] sm:$0xff]
    %v10854 = vld [vmem:[#allocation20 + $0x88] sm:$0xff]
    %v10855 = vld [vmem:[#allocation20 + $0x90] sm:$0xff]
    %v10856 = vld [vmem:[#allocation20 + $0x98] sm:$0xff]
    %v10857 = vld [vmem:[#allocation20 + $0xa0] sm:$0xff]
    %v10858 = vld [vmem:[#allocation20 + $0xa8] sm:$0xff]
    %v10859 = vld [vmem:[#allocation20 + $0xb0] sm:$0xff]
    %v10860 = vld [vmem:[#allocation20 + $0xb8] sm:$0xff]
    %v10861 = vld [vmem:[#allocation20 + $0xc0] sm:$0xff]
    %v10862 = vld [vmem:[#allocation20 + $0xc8] sm:$0xff]
    %v10863 = vld [vmem:[#allocation20 + $0xd0] sm:$0xff]
    %v10864 = vld [vmem:[#allocation20 + $0xd8] sm:$0xff]
    %v10865 = vld [vmem:[#allocation20 + $0xe0] sm:$0xff]
    %v10866 = vld [vmem:[#allocation20 + $0xe8] sm:$0xff]
    %v10867 = vld [vmem:[#allocation20 + $0xf0] sm:$0xff]
    %v10868 = vld [vmem:[#allocation20 + $0xf8] sm:$0xff]
    %v10869 = vld [vmem:[#allocation20 + $0x100] sm:$0xff]
    %v10870 = vld [vmem:[#allocation20 + $0x108] sm:$0xff]
    %v10871 = vld [vmem:[#allocation20 + $0x110] sm:$0xff]
    %v10872 = vld [vmem:[#allocation20 + $0x118] sm:$0xff]
    %v10873 = vld [vmem:[#allocation20 + $0x120] sm:$0xff]
    %v10874 = vld [vmem:[#allocation20 + $0x128] sm:$0xff]
    %v10875 = vld [vmem:[#allocation20 + $0x130] sm:$0xff]
    %v10876 = vld [vmem:[#allocation20 + $0x138] sm:$0xff]
    %v10877 = vld [vmem:[#allocation20 + $0x140] sm:$0xff]
    %v10878 = vld [vmem:[#allocation20 + $0x148] sm:$0xff]
    %v10879 = vld [vmem:[#allocation20 + $0x150] sm:$0xff]
    %v10880 = vld [vmem:[#allocation20 + $0x158] sm:$0xff]
    %v10881 = vld [vmem:[#allocation20 + $0x160] sm:$0xff]
    %v10882 = vld [vmem:[#allocation20 + $0x168] sm:$0xff]
    %v10883 = vld [vmem:[#allocation20 + $0x170] sm:$0xff]
    %v10884 = vld [vmem:[#allocation20 + $0x178] sm:$0xff]
    %v10885 = vld [vmem:[#allocation20 + $0x180] sm:$0xff]
    %v10886 = vld [vmem:[#allocation20 + $0x188] sm:$0xff]
    %v10887 = vld [vmem:[#allocation20 + $0x190] sm:$0xff]
    %v10888 = vld [vmem:[#allocation20 + $0x198] sm:$0xff]
    %v10889 = vld [vmem:[#allocation20 + $0x1a0] sm:$0xff]
    %v10890 = vld [vmem:[#allocation20 + $0x1a8] sm:$0xff]
    %v10891 = vld [vmem:[#allocation20 + $0x1b0] sm:$0xff]
    %v10892 = vld [vmem:[#allocation20 + $0x1b8] sm:$0xff]
    %v10893 = vld [vmem:[#allocation20 + $0x1c0] sm:$0xff]
    %v10894 = vld [vmem:[#allocation20 + $0x1c8] sm:$0xff]
    %v10895 = vld [vmem:[#allocation20 + $0x1d0] sm:$0xff]
    %v10896 = vld [vmem:[#allocation20 + $0x1d8] sm:$0xff]
    %v10897 = vld [vmem:[#allocation20 + $0x1e0] sm:$0xff]
    %v10898 = vld [vmem:[#allocation20 + $0x1e8] sm:$0xff]
    %v10899 = vld [vmem:[#allocation20 + $0x1f0] sm:$0xff]
    %v10900 = vld [vmem:[#allocation20 + $0x1f8] sm:$0xff]
    %v10905 = vunpack.c.l.b16 %v10833
    %v10906 = vunpack.c.l.b16 %v10834
    %v10907 = vunpack.c.l.b16 %v10835
    %v10908 = vunpack.c.l.b16 %v10836
    %v10909 = vsel %vm4860, %v10907, %v10905
    %v10910 = vsel %vm4860, %v10908, %v10906
    %v10911 = vpack.c.b16 %v10909, %v10909
    %v10912 = vpack.c.b16 %v10910, %v10910
    %v10979 = vunpack.c.l.b16 %v10837
    %v10980 = vunpack.c.h.b16 %v10837
    %v10981 = vunpack.c.l.b16 %v10838
    %v10982 = vunpack.c.h.b16 %v10838
    %v10983 = vunpack.c.l.b16 %v10839
    %v10984 = vunpack.c.h.b16 %v10839
    %v10985 = vunpack.c.l.b16 %v10840
    %v10986 = vunpack.c.h.b16 %v10840
    %v10987 = vunpack.c.l.b16 %v10841
    %v10988 = vunpack.c.h.b16 %v10841
    %v10989 = vunpack.c.l.b16 %v10842
    %v10990 = vunpack.c.h.b16 %v10842
    %v10991 = vunpack.c.l.b16 %v10843
    %v10992 = vunpack.c.h.b16 %v10843
    %v10993 = vunpack.c.l.b16 %v10844
    %v10994 = vunpack.c.h.b16 %v10844
    %v10995 = vunpack.c.l.b16 %v10845
    %v10996 = vunpack.c.h.b16 %v10845
    %v10997 = vunpack.c.l.b16 %v10846
    %v10998 = vunpack.c.h.b16 %v10846
    %v10999 = vunpack.c.l.b16 %v10847
    %v11000 = vunpack.c.h.b16 %v10847
    %v11001 = vunpack.c.l.b16 %v10848
    %v11002 = vunpack.c.h.b16 %v10848
    %v11003 = vunpack.c.l.b16 %v10849
    %v11004 = vunpack.c.h.b16 %v10849
    %v11005 = vunpack.c.l.b16 %v10850
    %v11006 = vunpack.c.h.b16 %v10850
    %v11007 = vunpack.c.l.b16 %v10851
    %v11008 = vunpack.c.h.b16 %v10851
    %v11009 = vunpack.c.l.b16 %v10852
    %v11010 = vunpack.c.h.b16 %v10852
    %v11011 = vunpack.c.l.b16 %v10853
    %v11012 = vunpack.c.h.b16 %v10853
    %v11013 = vunpack.c.l.b16 %v10854
    %v11014 = vunpack.c.h.b16 %v10854
    %v11015 = vunpack.c.l.b16 %v10855
    %v11016 = vunpack.c.h.b16 %v10855
    %v11017 = vunpack.c.l.b16 %v10856
    %v11018 = vunpack.c.h.b16 %v10856
    %v11019 = vunpack.c.l.b16 %v10857
    %v11020 = vunpack.c.h.b16 %v10857
    %v11021 = vunpack.c.l.b16 %v10858
    %v11022 = vunpack.c.h.b16 %v10858
    %v11023 = vunpack.c.l.b16 %v10859
    %v11024 = vunpack.c.h.b16 %v10859
    %v11025 = vunpack.c.l.b16 %v10860
    %v11026 = vunpack.c.h.b16 %v10860
    %v11027 = vunpack.c.l.b16 %v10861
    %v11028 = vunpack.c.h.b16 %v10861
    %v11029 = vunpack.c.l.b16 %v10862
    %v11030 = vunpack.c.h.b16 %v10862
    %v11031 = vunpack.c.l.b16 %v10863
    %v11032 = vunpack.c.h.b16 %v10863
    %v11033 = vunpack.c.l.b16 %v10864
    %v11034 = vunpack.c.h.b16 %v10864
    %v11035 = vunpack.c.l.b16 %v10865
    %v11036 = vunpack.c.h.b16 %v10865
    %v11037 = vunpack.c.l.b16 %v10866
    %v11038 = vunpack.c.h.b16 %v10866
    %v11039 = vunpack.c.l.b16 %v10867
    %v11040 = vunpack.c.h.b16 %v10867
    %v11041 = vunpack.c.l.b16 %v10868
    %v11042 = vunpack.c.h.b16 %v10868
    %v11043 = vunpack.c.l.b16 %v10869
    %v11044 = vunpack.c.h.b16 %v10869
    %v11045 = vunpack.c.l.b16 %v10870
    %v11046 = vunpack.c.h.b16 %v10870
    %v11047 = vunpack.c.l.b16 %v10871
    %v11048 = vunpack.c.h.b16 %v10871
    %v11049 = vunpack.c.l.b16 %v10872
    %v11050 = vunpack.c.h.b16 %v10872
    %v11051 = vunpack.c.l.b16 %v10873
    %v11052 = vunpack.c.h.b16 %v10873
    %v11053 = vunpack.c.l.b16 %v10874
    %v11054 = vunpack.c.h.b16 %v10874
    %v11055 = vunpack.c.l.b16 %v10875
    %v11056 = vunpack.c.h.b16 %v10875
    %v11057 = vunpack.c.l.b16 %v10876
    %v11058 = vunpack.c.h.b16 %v10876
    %v11059 = vunpack.c.l.b16 %v10877
    %v11060 = vunpack.c.h.b16 %v10877
    %v11061 = vunpack.c.l.b16 %v10878
    %v11062 = vunpack.c.h.b16 %v10878
    %v11063 = vunpack.c.l.b16 %v10879
    %v11064 = vunpack.c.h.b16 %v10879
    %v11065 = vunpack.c.l.b16 %v10880
    %v11066 = vunpack.c.h.b16 %v10880
    %v11067 = vunpack.c.l.b16 %v10881
    %v11068 = vunpack.c.h.b16 %v10881
    %v11069 = vunpack.c.l.b16 %v10882
    %v11070 = vunpack.c.h.b16 %v10882
    %v11071 = vunpack.c.l.b16 %v10883
    %v11072 = vunpack.c.h.b16 %v10883
    %v11073 = vunpack.c.l.b16 %v10884
    %v11074 = vunpack.c.h.b16 %v10884
    %v11075 = vunpack.c.l.b16 %v10885
    %v11076 = vunpack.c.h.b16 %v10885
    %v11077 = vunpack.c.l.b16 %v10886
    %v11078 = vunpack.c.h.b16 %v10886
    %v11079 = vunpack.c.l.b16 %v10887
    %v11080 = vunpack.c.h.b16 %v10887
    %v11081 = vunpack.c.l.b16 %v10888
    %v11082 = vunpack.c.h.b16 %v10888
    %v11083 = vunpack.c.l.b16 %v10889
    %v11084 = vunpack.c.h.b16 %v10889
    %v11085 = vunpack.c.l.b16 %v10890
    %v11086 = vunpack.c.h.b16 %v10890
    %v11087 = vunpack.c.l.b16 %v10891
    %v11088 = vunpack.c.h.b16 %v10891
    %v11089 = vunpack.c.l.b16 %v10892
    %v11090 = vunpack.c.h.b16 %v10892
    %v11091 = vunpack.c.l.b16 %v10893
    %v11092 = vunpack.c.h.b16 %v10893
    %v11093 = vunpack.c.l.b16 %v10894
    %v11094 = vunpack.c.h.b16 %v10894
    %v11095 = vunpack.c.l.b16 %v10895
    %v11096 = vunpack.c.h.b16 %v10895
    %v11097 = vunpack.c.l.b16 %v10896
    %v11098 = vunpack.c.h.b16 %v10896
    %v11099 = vunpack.c.l.b16 %v10897
    %v11100 = vunpack.c.h.b16 %v10897
    %v11101 = vunpack.c.l.b16 %v10898
    %v11102 = vunpack.c.h.b16 %v10898
    %v11103 = vunpack.c.l.b16 %v10899
    %v11104 = vunpack.c.h.b16 %v10899
    %v11105 = vunpack.c.l.b16 %v10900
    %v11106 = vunpack.c.h.b16 %v10900
    %v11107 = vpack.c.b16 %v10983, %v10979
    %v11108 = vpack.c.b16 %v10984, %v10980
    %v11109 = vpack.c.b16 %v10985, %v10981
    %v11110 = vpack.c.b16 %v10986, %v10982
    %v11111 = vpack.c.b16 %v10991, %v10987
    %v11112 = vpack.c.b16 %v10992, %v10988
    %v11113 = vpack.c.b16 %v10993, %v10989
    %v11114 = vpack.c.b16 %v10994, %v10990
    %v11115 = vpack.c.b16 %v10999, %v10995
    %v11116 = vpack.c.b16 %v11000, %v10996
    %v11117 = vpack.c.b16 %v11001, %v10997
    %v11118 = vpack.c.b16 %v11002, %v10998
    %v11119 = vpack.c.b16 %v11007, %v11003
    %v11120 = vpack.c.b16 %v11008, %v11004
    %v11121 = vpack.c.b16 %v11009, %v11005
    %v11122 = vpack.c.b16 %v11010, %v11006
    %v11123 = vpack.c.b16 %v11015, %v11011
    %v11124 = vpack.c.b16 %v11016, %v11012
    %v11125 = vpack.c.b16 %v11017, %v11013
    %v11126 = vpack.c.b16 %v11018, %v11014
    %v11127 = vpack.c.b16 %v11023, %v11019
    %v11128 = vpack.c.b16 %v11024, %v11020
    %v11129 = vpack.c.b16 %v11025, %v11021
    %v11130 = vpack.c.b16 %v11026, %v11022
    %v11131 = vpack.c.b16 %v11031, %v11027
    %v11132 = vpack.c.b16 %v11032, %v11028
    %v11133 = vpack.c.b16 %v11033, %v11029
    %v11134 = vpack.c.b16 %v11034, %v11030
    %v11135 = vpack.c.b16 %v11039, %v11035
    %v11136 = vpack.c.b16 %v11040, %v11036
    %v11137 = vpack.c.b16 %v11041, %v11037
    %v11138 = vpack.c.b16 %v11042, %v11038
    %v11139 = vpack.c.b16 %v11047, %v11043
    %v11140 = vpack.c.b16 %v11048, %v11044
    %v11141 = vpack.c.b16 %v11049, %v11045
    %v11142 = vpack.c.b16 %v11050, %v11046
    %v11143 = vpack.c.b16 %v11055, %v11051
    %v11144 = vpack.c.b16 %v11056, %v11052
    %v11145 = vpack.c.b16 %v11057, %v11053
    %v11146 = vpack.c.b16 %v11058, %v11054
    %v11147 = vpack.c.b16 %v11063, %v11059
    %v11148 = vpack.c.b16 %v11064, %v11060
    %v11149 = vpack.c.b16 %v11065, %v11061
    %v11150 = vpack.c.b16 %v11066, %v11062
    %v11151 = vpack.c.b16 %v11071, %v11067
    %v11152 = vpack.c.b16 %v11072, %v11068
    %v11153 = vpack.c.b16 %v11073, %v11069
    %v11154 = vpack.c.b16 %v11074, %v11070
    %v11155 = vpack.c.b16 %v11079, %v11075
    %v11156 = vpack.c.b16 %v11080, %v11076
    %v11157 = vpack.c.b16 %v11081, %v11077
    %v11158 = vpack.c.b16 %v11082, %v11078
    %v11159 = vpack.c.b16 %v11087, %v11083
    %v11160 = vpack.c.b16 %v11088, %v11084
    %v11161 = vpack.c.b16 %v11089, %v11085
    %v11162 = vpack.c.b16 %v11090, %v11086
    %v11163 = vpack.c.b16 %v11095, %v11091
    %v11164 = vpack.c.b16 %v11096, %v11092
    %v11165 = vpack.c.b16 %v11097, %v11093
    %v11166 = vpack.c.b16 %v11098, %v11094
    %v11167 = vpack.c.b16 %v11103, %v11099
    %v11168 = vpack.c.b16 %v11104, %v11100
    %v11169 = vpack.c.b16 %v11105, %v11101
    %v11170 = vpack.c.b16 %v11106, %v11102
    %11235 = vmatprep.subr.bf16.mxu0 %v11108
    %11236 = vmatpush1.bf16.msra.mxu0 %v11107
    %11237 = vmatprep.subr.bf16.mxu0 %v11112
    %11238 = vmatpush1.bf16.msra.mxu0 %v11111
    %11239 = vmatprep.subr.bf16.mxu0 %v11116
    %11240 = vmatpush1.bf16.msra.mxu0 %v11115
    %11241 = vmatprep.subr.bf16.mxu0 %v11120
    %11242 = vmatpush1.bf16.msra.mxu0 %v11119
    %11243 = vmatprep.subr.bf16.mxu0 %v11124
    %11244 = vmatpush1.bf16.msra.mxu0 %v11123
    %11245 = vmatprep.subr.bf16.mxu0 %v11128
    %11246 = vmatpush1.bf16.msra.mxu0 %v11127
    %11247 = vmatprep.subr.bf16.mxu0 %v11132
    %11248 = vmatpush1.bf16.msra.mxu0 %v11131
    %11249 = vmatprep.subr.bf16.mxu0 %v11136
    %11250 = vmatpush1.bf16.msra.mxu0 %v11135
    %11251 = vmatprep.subr.bf16.mxu0 %v11140
    %11252 = vmatpush1.bf16.msra.mxu0 %v11139
    %11253 = vmatprep.subr.bf16.mxu0 %v11144
    %11254 = vmatpush1.bf16.msra.mxu0 %v11143
    %11255 = vmatprep.subr.bf16.mxu0 %v11148
    %11256 = vmatpush1.bf16.msra.mxu0 %v11147
    %11257 = vmatprep.subr.bf16.mxu0 %v11152
    %11258 = vmatpush1.bf16.msra.mxu0 %v11151
    %11259 = vmatprep.subr.bf16.mxu0 %v11156
    %11260 = vmatpush1.bf16.msra.mxu0 %v11155
    %11261 = vmatprep.subr.bf16.mxu0 %v11160
    %11262 = vmatpush1.bf16.msra.mxu0 %v11159
    %11263 = vmatprep.subr.bf16.mxu0 %v11164
    %11264 = vmatpush1.bf16.msra.mxu0 %v11163
    %11265 = vmatprep.subr.bf16.mxu0 %v11168
    %11266 = vmatpush1.bf16.msra.mxu0 %v11167
    %11267 = vmatprep.mubr.bf16.mxu0 %v10912
    %11268 = vmatmul.mubr.bf16.gmra.mrb[0].mxu0 %v10911
    %v11269 = vpop.f32.mrb[0].mxu0
    %v11270 = vadd.f32 0.0, %v11269
    %v11271 = vpop.f32.mrb[0].mxu0
    %v11272 = vadd.f32 0.0, %v11271
    %v11273 = vpop.f32.mrb[0].mxu0
    %v11274 = vpop.f32.mrb[0].mxu0
    %11275 = vdwg.mxu0
    %11276 = vmatprep.subr.bf16.mxu0 %v11110
    %11277 = vmatpush1.bf16.msra.mxu0 %v11109
    %11278 = vmatprep.subr.bf16.mxu0 %v11114
    %11279 = vmatpush1.bf16.msra.mxu0 %v11113
    %11280 = vmatprep.subr.bf16.mxu0 %v11118
    %11281 = vmatpush1.bf16.msra.mxu0 %v11117
    %11282 = vmatprep.subr.bf16.mxu0 %v11122
    %11283 = vmatpush1.bf16.msra.mxu0 %v11121
    %11284 = vmatprep.subr.bf16.mxu0 %v11126
    %11285 = vmatpush1.bf16.msra.mxu0 %v11125
    %11286 = vmatprep.subr.bf16.mxu0 %v11130
    %11287 = vmatpush1.bf16.msra.mxu0 %v11129
    %11288 = vmatprep.subr.bf16.mxu0 %v11134
    %11289 = vmatpush1.bf16.msra.mxu0 %v11133
    %11290 = vmatprep.subr.bf16.mxu0 %v11138
    %11291 = vmatpush1.bf16.msra.mxu0 %v11137
    %11292 = vmatprep.subr.bf16.mxu0 %v11142
    %11293 = vmatpush1.bf16.msra.mxu0 %v11141
    %11294 = vmatprep.subr.bf16.mxu0 %v11146
    %11295 = vmatpush1.bf16.msra.mxu0 %v11145
    %11296 = vmatprep.subr.bf16.mxu0 %v11150
    %11297 = vmatpush1.bf16.msra.mxu0 %v11149
    %11298 = vmatprep.subr.bf16.mxu0 %v11154
    %11299 = vmatpush1.bf16.msra.mxu0 %v11153
    %11300 = vmatprep.subr.bf16.mxu0 %v11158
    %11301 = vmatpush1.bf16.msra.mxu0 %v11157
    %11302 = vmatprep.subr.bf16.mxu0 %v11162
    %11303 = vmatpush1.bf16.msra.mxu0 %v11161
    %11304 = vmatprep.subr.bf16.mxu0 %v11166
    %11305 = vmatpush1.bf16.msra.mxu0 %v11165
    %11306 = vmatprep.subr.bf16.mxu0 %v11170
    %11307 = vmatpush1.bf16.msra.mxu0 %v11169
    %11308 = vmatprep.mubr.bf16.mxu0 %v10912
    %11309 = vmatmul.mubr.bf16.gmra.mrb[0].mxu0 %v10911
    %v11310 = vpop.f32.mrb[0].mxu0
    %v11311 = vadd.f32 0.0, %v11310
    %v11312 = vpop.f32.mrb[0].mxu0
    %v11313 = vadd.f32 0.0, %v11312
    %v11314 = vpop.f32.mrb[0].mxu0
    %v11315 = vpop.f32.mrb[0].mxu0
    %11316 = vdwg.mxu0
    %v11317 = vld [vmem:[#allocation22] ss:$2 sm:$0xf]
    %v11319 = vlaneseq
    %v11320 = vshrl.u32 %v11319, 7
    %v11321 = vsub.s32 0, %v11320
    %v11322 = vrot.slane %v11317, %v11321
    %v11323 = vlaneseq
    %v11324 = vshrl.u32 %v11323, 7
    %v11325 = vsub.s32 1, %v11324
    %v11326 = vrot.slane %v11317, %v11325
    %v11327 = vlaneseq
    %v11328 = vshrl.u32 %v11327, 7
    %v11329 = vsub.s32 2, %v11328
    %v11330 = vrot.slane %v11317, %v11329
    %v11331 = vlaneseq
    %v11332 = vshrl.u32 %v11331, 7
    %v11333 = vsub.s32 3, %v11332
    %v11334 = vrot.slane %v11317, %v11333
    %v11339 = vmul.f32 %v11270, %v11322
    %v11340 = vmul.f32 %v11272, %v11326
    %v11341 = vmul.f32 %v11311, %v11330
    %v11342 = vmul.f32 %v11313, %v11334
    %s11343 = scalar_lea.vmem [#allocation22], 1
    %v11344 = vld [vmem:[%s11343] ss:$2 sm:$0xf]
    %v11346 = vlaneseq
    %v11347 = vshrl.u32 %v11346, 7
    %v11348 = vsub.s32 0, %v11347
    %v11349 = vrot.slane %v11344, %v11348
    %v11350 = vlaneseq
    %v11351 = vshrl.u32 %v11350, 7
    %v11352 = vsub.s32 1, %v11351
    %v11353 = vrot.slane %v11344, %v11352
    %v11354 = vlaneseq
    %v11355 = vshrl.u32 %v11354, 7
    %v11356 = vsub.s32 2, %v11355
    %v11357 = vrot.slane %v11344, %v11356
    %v11358 = vlaneseq
    %v11359 = vshrl.u32 %v11358, 7
    %v11360 = vsub.s32 3, %v11359
    %v11361 = vrot.slane %v11344, %v11360
    %v11366 = vadd.f32 %v11339, %v11349
    %v11367 = vadd.f32 %v11340, %v11353
    %v11368 = vadd.f32 %v11341, %v11357
    %v11369 = vadd.f32 %v11342, %v11361
    %v11370 = vmax.f32 %v11366, 0.0
    %v11371 = vmax.f32 %v11367, 0.0
    %v11372 = vmax.f32 %v11368, 0.0
    %v11373 = vmax.f32 %v11369, 0.0
    %v11374 = vpack.c.bf16 %v11370, %v11370
    %v11375 = vpack.c.bf16 %v11371, %v11371
    %v11376 = vpack.c.bf16 %v11372, %v11372
    %v11377 = vpack.c.bf16 %v11373, %v11373
    %v11378 = vld [vmem:[#allocation23] sm:$0xf]
    %v11379 = vld [vmem:[#allocation23 + $0x4] sm:$0xf]
    %v11380 = vld [vmem:[#allocation23 + $0x8] sm:$0xf]
    %v11381 = vld [vmem:[#allocation23 + $0xc] sm:$0xf]
    %v11382 = vld [vmem:[#allocation23 + $0x10] sm:$0xf]
    %v11383 = vld [vmem:[#allocation23 + $0x14] sm:$0xf]
    %v11384 = vld [vmem:[#allocation23 + $0x18] sm:$0xf]
    %v11385 = vld [vmem:[#allocation23 + $0x1c] sm:$0xf]
    %v11386 = vld [vmem:[#allocation23 + $0x20] sm:$0xf]
    %v11387 = vld [vmem:[#allocation23 + $0x24] sm:$0xf]
    %v11388 = vld [vmem:[#allocation23 + $0x28] sm:$0xf]
    %v11389 = vld [vmem:[#allocation23 + $0x2c] sm:$0xf]
    %v11390 = vld [vmem:[#allocation23 + $0x30] sm:$0xf]
    %v11391 = vld [vmem:[#allocation23 + $0x34] sm:$0xf]
    %v11392 = vld [vmem:[#allocation23 + $0x38] sm:$0xf]
    %v11393 = vld [vmem:[#allocation23 + $0x3c] sm:$0xf]
    %v11394 = vld [vmem:[#allocation23 + $0x40] sm:$0xf]
    %v11395 = vld [vmem:[#allocation23 + $0x44] sm:$0xf]
    %v11396 = vld [vmem:[#allocation23 + $0x48] sm:$0xf]
    %v11397 = vld [vmem:[#allocation23 + $0x4c] sm:$0xf]
    %v11398 = vld [vmem:[#allocation23 + $0x50] sm:$0xf]
    %v11399 = vld [vmem:[#allocation23 + $0x54] sm:$0xf]
    %v11400 = vld [vmem:[#allocation23 + $0x58] sm:$0xf]
    %v11401 = vld [vmem:[#allocation23 + $0x5c] sm:$0xf]
    %v11402 = vld [vmem:[#allocation23 + $0x60] sm:$0xf]
    %v11403 = vld [vmem:[#allocation23 + $0x64] sm:$0xf]
    %v11404 = vld [vmem:[#allocation23 + $0x68] sm:$0xf]
    %v11405 = vld [vmem:[#allocation23 + $0x6c] sm:$0xf]
    %v11406 = vld [vmem:[#allocation23 + $0x70] sm:$0xf]
    %v11407 = vld [vmem:[#allocation23 + $0x74] sm:$0xf]
    %v11408 = vld [vmem:[#allocation23 + $0x78] sm:$0xf]
    %v11409 = vld [vmem:[#allocation23 + $0x7c] sm:$0xf]
    %v11410 = vld [vmem:[#allocation23 + $0x80] sm:$0xf]
    %v11411 = vld [vmem:[#allocation23 + $0x84] sm:$0xf]
    %v11412 = vld [vmem:[#allocation23 + $0x88] sm:$0xf]
    %v11413 = vld [vmem:[#allocation23 + $0x8c] sm:$0xf]
    %v11414 = vld [vmem:[#allocation23 + $0x90] sm:$0xf]
    %v11415 = vld [vmem:[#allocation23 + $0x94] sm:$0xf]
    %v11416 = vld [vmem:[#allocation23 + $0x98] sm:$0xf]
    %v11417 = vld [vmem:[#allocation23 + $0x9c] sm:$0xf]
    %v11418 = vld [vmem:[#allocation23 + $0xa0] sm:$0xf]
    %v11419 = vld [vmem:[#allocation23 + $0xa4] sm:$0xf]
    %v11420 = vld [vmem:[#allocation23 + $0xa8] sm:$0xf]
    %v11421 = vld [vmem:[#allocation23 + $0xac] sm:$0xf]
    %v11422 = vld [vmem:[#allocation23 + $0xb0] sm:$0xf]
    %v11423 = vld [vmem:[#allocation23 + $0xb4] sm:$0xf]
    %v11424 = vld [vmem:[#allocation23 + $0xb8] sm:$0xf]
    %v11425 = vld [vmem:[#allocation23 + $0xbc] sm:$0xf]
    %v11426 = vld [vmem:[#allocation23 + $0xc0] sm:$0xf]
    %v11427 = vld [vmem:[#allocation23 + $0xc4] sm:$0xf]
    %v11428 = vld [vmem:[#allocation23 + $0xc8] sm:$0xf]
    %v11429 = vld [vmem:[#allocation23 + $0xcc] sm:$0xf]
    %v11430 = vld [vmem:[#allocation23 + $0xd0] sm:$0xf]
    %v11431 = vld [vmem:[#allocation23 + $0xd4] sm:$0xf]
    %v11432 = vld [vmem:[#allocation23 + $0xd8] sm:$0xf]
    %v11433 = vld [vmem:[#allocation23 + $0xdc] sm:$0xf]
    %v11434 = vld [vmem:[#allocation23 + $0xe0] sm:$0xf]
    %v11435 = vld [vmem:[#allocation23 + $0xe4] sm:$0xf]
    %v11436 = vld [vmem:[#allocation23 + $0xe8] sm:$0xf]
    %v11437 = vld [vmem:[#allocation23 + $0xec] sm:$0xf]
    %v11438 = vld [vmem:[#allocation23 + $0xf0] sm:$0xf]
    %v11439 = vld [vmem:[#allocation23 + $0xf4] sm:$0xf]
    %v11440 = vld [vmem:[#allocation23 + $0xf8] sm:$0xf]
    %v11441 = vld [vmem:[#allocation23 + $0xfc] sm:$0xf]
    %v11442 = vld [vmem:[#allocation25] sm:$0x1]
    %v11444 = vlaneseq
    %v11445 = vshrl.u32 %v11444, 7
    %v11446 = vsub.s32 0, %v11445
    %v11447 = vrot.slane %v11442, %v11446
    %v11513 = vunpack.c.l.b16 %v11378
    %v11514 = vunpack.c.l.b16 %v11379
    %v11515 = vunpack.c.l.b16 %v11380
    %v11516 = vunpack.c.l.b16 %v11381
    %v11517 = vunpack.c.l.b16 %v11382
    %v11518 = vunpack.c.l.b16 %v11383
    %v11519 = vunpack.c.l.b16 %v11384
    %v11520 = vunpack.c.l.b16 %v11385
    %v11521 = vunpack.c.l.b16 %v11386
    %v11522 = vunpack.c.l.b16 %v11387
    %v11523 = vunpack.c.l.b16 %v11388
    %v11524 = vunpack.c.l.b16 %v11389
    %v11525 = vunpack.c.l.b16 %v11390
    %v11526 = vunpack.c.l.b16 %v11391
    %v11527 = vunpack.c.l.b16 %v11392
    %v11528 = vunpack.c.l.b16 %v11393
    %v11529 = vunpack.c.l.b16 %v11394
    %v11530 = vunpack.c.l.b16 %v11395
    %v11531 = vunpack.c.l.b16 %v11396
    %v11532 = vunpack.c.l.b16 %v11397
    %v11533 = vunpack.c.l.b16 %v11398
    %v11534 = vunpack.c.l.b16 %v11399
    %v11535 = vunpack.c.l.b16 %v11400
    %v11536 = vunpack.c.l.b16 %v11401
    %v11537 = vunpack.c.l.b16 %v11402
    %v11538 = vunpack.c.l.b16 %v11403
    %v11539 = vunpack.c.l.b16 %v11404
    %v11540 = vunpack.c.l.b16 %v11405
    %v11541 = vunpack.c.l.b16 %v11406
    %v11542 = vunpack.c.l.b16 %v11407
    %v11543 = vunpack.c.l.b16 %v11408
    %v11544 = vunpack.c.l.b16 %v11409
    %v11545 = vunpack.c.l.b16 %v11410
    %v11546 = vunpack.c.l.b16 %v11411
    %v11547 = vunpack.c.l.b16 %v11412
    %v11548 = vunpack.c.l.b16 %v11413
    %v11549 = vunpack.c.l.b16 %v11414
    %v11550 = vunpack.c.l.b16 %v11415
    %v11551 = vunpack.c.l.b16 %v11416
    %v11552 = vunpack.c.l.b16 %v11417
    %v11553 = vunpack.c.l.b16 %v11418
    %v11554 = vunpack.c.l.b16 %v11419
    %v11555 = vunpack.c.l.b16 %v11420
    %v11556 = vunpack.c.l.b16 %v11421
    %v11557 = vunpack.c.l.b16 %v11422
    %v11558 = vunpack.c.l.b16 %v11423
    %v11559 = vunpack.c.l.b16 %v11424
    %v11560 = vunpack.c.l.b16 %v11425
    %v11561 = vunpack.c.l.b16 %v11426
    %v11562 = vunpack.c.l.b16 %v11427
    %v11563 = vunpack.c.l.b16 %v11428
    %v11564 = vunpack.c.l.b16 %v11429
    %v11565 = vunpack.c.l.b16 %v11430
    %v11566 = vunpack.c.l.b16 %v11431
    %v11567 = vunpack.c.l.b16 %v11432
    %v11568 = vunpack.c.l.b16 %v11433
    %v11569 = vunpack.c.l.b16 %v11434
    %v11570 = vunpack.c.l.b16 %v11435
    %v11571 = vunpack.c.l.b16 %v11436
    %v11572 = vunpack.c.l.b16 %v11437
    %v11573 = vunpack.c.l.b16 %v11438
    %v11574 = vunpack.c.l.b16 %v11439
    %v11575 = vunpack.c.l.b16 %v11440
    %v11576 = vunpack.c.l.b16 %v11441
    %v11577 = vpack.c.b16 %v11514, %v11513
    %v11578 = vpack.c.b16 %v11516, %v11515
    %v11579 = vpack.c.b16 %v11518, %v11517
    %v11580 = vpack.c.b16 %v11520, %v11519
    %v11581 = vpack.c.b16 %v11522, %v11521
    %v11582 = vpack.c.b16 %v11524, %v11523
    %v11583 = vpack.c.b16 %v11526, %v11525
    %v11584 = vpack.c.b16 %v11528, %v11527
    %v11585 = vpack.c.b16 %v11530, %v11529
    %v11586 = vpack.c.b16 %v11532, %v11531
    %v11587 = vpack.c.b16 %v11534, %v11533
    %v11588 = vpack.c.b16 %v11536, %v11535
    %v11589 = vpack.c.b16 %v11538, %v11537
    %v11590 = vpack.c.b16 %v11540, %v11539
    %v11591 = vpack.c.b16 %v11542, %v11541
    %v11592 = vpack.c.b16 %v11544, %v11543
    %v11593 = vpack.c.b16 %v11546, %v11545
    %v11594 = vpack.c.b16 %v11548, %v11547
    %v11595 = vpack.c.b16 %v11550, %v11549
    %v11596 = vpack.c.b16 %v11552, %v11551
    %v11597 = vpack.c.b16 %v11554, %v11553
    %v11598 = vpack.c.b16 %v11556, %v11555
    %v11599 = vpack.c.b16 %v11558, %v11557
    %v11600 = vpack.c.b16 %v11560, %v11559
    %v11601 = vpack.c.b16 %v11562, %v11561
    %v11602 = vpack.c.b16 %v11564, %v11563
    %v11603 = vpack.c.b16 %v11566, %v11565
    %v11604 = vpack.c.b16 %v11568, %v11567
    %v11605 = vpack.c.b16 %v11570, %v11569
    %v11606 = vpack.c.b16 %v11572, %v11571
    %v11607 = vpack.c.b16 %v11574, %v11573
    %v11608 = vpack.c.b16 %v11576, %v11575
    %11641 = vmatprep.subr.bf16.mxu0 0
    %11642 = vmatpush1.bf16.msra.mxu0 %v11577
    %11643 = vmatprep.subr.bf16.mxu0 0
    %11644 = vmatpush1.bf16.msra.mxu0 %v11578
    %11645 = vmatprep.subr.bf16.mxu0 0
    %11646 = vmatpush1.bf16.msra.mxu0 %v11579
    %11647 = vmatprep.subr.bf16.mxu0 0
    %11648 = vmatpush1.bf16.msra.mxu0 %v11580
    %11649 = vmatprep.subr.bf16.mxu0 0
    %11650 = vmatpush1.bf16.msra.mxu0 %v11581
    %11651 = vmatprep.subr.bf16.mxu0 0
    %11652 = vmatpush1.bf16.msra.mxu0 %v11582
    %11653 = vmatprep.subr.bf16.mxu0 0
    %11654 = vmatpush1.bf16.msra.mxu0 %v11583
    %11655 = vmatprep.subr.bf16.mxu0 0
    %11656 = vmatpush1.bf16.msra.mxu0 %v11584
    %11657 = vmatprep.subr.bf16.mxu0 0
    %11658 = vmatpush1.bf16.msra.mxu0 %v11585
    %11659 = vmatprep.subr.bf16.mxu0 0
    %11660 = vmatpush1.bf16.msra.mxu0 %v11586
    %11661 = vmatprep.subr.bf16.mxu0 0
    %11662 = vmatpush1.bf16.msra.mxu0 %v11587
    %11663 = vmatprep.subr.bf16.mxu0 0
    %11664 = vmatpush1.bf16.msra.mxu0 %v11588
    %11665 = vmatprep.subr.bf16.mxu0 0
    %11666 = vmatpush1.bf16.msra.mxu0 %v11589
    %11667 = vmatprep.subr.bf16.mxu0 0
    %11668 = vmatpush1.bf16.msra.mxu0 %v11590
    %11669 = vmatprep.subr.bf16.mxu0 0
    %11670 = vmatpush1.bf16.msra.mxu0 %v11591
    %11671 = vmatprep.subr.bf16.mxu0 0
    %11672 = vmatpush1.bf16.msra.mxu0 %v11592
    %11673 = vmatprep.mubr.bf16.mxu0 %v11375
    %11674 = vmatmul.mubr.bf16.gmra.mrb[0].mxu0 %v11374
    %v11675 = vpop.f32.mrb[0].mxu0
    %v11676 = vadd.f32 %v11447, %v11675
    %v11677 = vpop.f32.mrb[0].mxu0
    %v11678 = vpop.f32.mrb[0].mxu0
    %v11679 = vpop.f32.mrb[0].mxu0
    %11680 = vdwg.mxu0
    %11681 = vmatprep.subr.bf16.mxu0 0
    %11682 = vmatpush1.bf16.msra.mxu0 %v11593
    %11683 = vmatprep.subr.bf16.mxu0 0
    %11684 = vmatpush1.bf16.msra.mxu0 %v11594
    %11685 = vmatprep.subr.bf16.mxu0 0
    %11686 = vmatpush1.bf16.msra.mxu0 %v11595
    %11687 = vmatprep.subr.bf16.mxu0 0
    %11688 = vmatpush1.bf16.msra.mxu0 %v11596
    %11689 = vmatprep.subr.bf16.mxu0 0
    %11690 = vmatpush1.bf16.msra.mxu0 %v11597
    %11691 = vmatprep.subr.bf16.mxu0 0
    %11692 = vmatpush1.bf16.msra.mxu0 %v11598
    %11693 = vmatprep.subr.bf16.mxu0 0
    %11694 = vmatpush1.bf16.msra.mxu0 %v11599
    %11695 = vmatprep.subr.bf16.mxu0 0
    %11696 = vmatpush1.bf16.msra.mxu0 %v11600
    %11697 = vmatprep.subr.bf16.mxu0 0
    %11698 = vmatpush1.bf16.msra.mxu0 %v11601
    %11699 = vmatprep.subr.bf16.mxu0 0
    %11700 = vmatpush1.bf16.msra.mxu0 %v11602
    %11701 = vmatprep.subr.bf16.mxu0 0
    %11702 = vmatpush1.bf16.msra.mxu0 %v11603
    %11703 = vmatprep.subr.bf16.mxu0 0
    %11704 = vmatpush1.bf16.msra.mxu0 %v11604
    %11705 = vmatprep.subr.bf16.mxu0 0
    %11706 = vmatpush1.bf16.msra.mxu0 %v11605
    %11707 = vmatprep.subr.bf16.mxu0 0
    %11708 = vmatpush1.bf16.msra.mxu0 %v11606
    %11709 = vmatprep.subr.bf16.mxu0 0
    %11710 = vmatpush1.bf16.msra.mxu0 %v11607
    %11711 = vmatprep.subr.bf16.mxu0 0
    %11712 = vmatpush1.bf16.msra.mxu0 %v11608
    %11713 = vmatprep.mubr.bf16.mxu0 %v11377
    %11714 = vmatmul.mubr.bf16.gmra.mrb[0].mxu0 %v11376
    %v11715 = vpop.f32.mrb[0].mxu0
    %v11716 = vadd.f32 %v11676, %v11715
    %v11717 = vpop.f32.mrb[0].mxu0
    %v11718 = vpop.f32.mrb[0].mxu0
    %v11719 = vpop.f32.mrb[0].mxu0
    %11720 = vdwg.mxu0
    %vm11721 = vcmask 74752
    %11722 = vst.msk [vmem:[#allocation26] sm:$0x3] %vm11721, %v11716
    // Predicated region
    $region106: #{image_classifier_forward.1} parent=1 // pred_check
      _
    $region107: #{image_classifier_forward.1} parent=1 // pred_check_branch
      %11724 = sbr.rel (0) target = $region109
    $region108: #{image_classifier_forward.1} parent=1 // pred_region
      %s11726 = ssub.s32 32, 32
      %11727 = vsyncadd [#allocation7], %s11726
      %s11729 = sshll.u32 [#allocation26], 4
      %s11730 = int_to_ptr.vmem [resolvable:$true] %s11729
      %11732 = dma.vmem_to_hbm [thread:$0]  %s11730, 32, %s13, [#allocation7]
    $region109: #{image_classifier_forward.1} parent=1 // pred_fallthru
      _
    // Predicated region
    $region110: #{image_classifier_forward.1} parent=1 // pred_check
      _
    $region111: #{image_classifier_forward.1} parent=1 // pred_check_branch
      %11734 = sbr.rel (0) target = $region113
    $region112: #{image_classifier_forward.1} parent=1 // pred_region
      %11735 = dma.done [#allocation7], 32
    $region113: #{image_classifier_forward.1} parent=1 // pred_fallthru
      _
    %11736 = vsyncpa [#allocation6], 1
    %11737 = vsyncpa [#allocation9], 1
    %11738 = vsyncpa [#allocation12], 1
    %11739 = vsyncpa [#allocation15], 1
    %11740 = vsyncpa [#allocation18], 1
    %11741 = vsyncpa [#allocation21], 1
    %11742 = vsyncpa [#allocation24], 1
    %11743 = vsyncpa [#allocation7], 1

</llo_original>
